<compile_context>
chip_gen: v7x
topology: tpu7x:2x2x1
jax: 0.10.0
libtpu: 0.0.40
codegen_flags: <defaults>
</compile_context>

<pallas_src>
import functools

import jax
import jax.numpy as jnp
from jax.experimental import pallas as pl
from jax.experimental.pallas import tpu as pltpu

LANE = 128  # channel dims are zero-padded to a multiple of the TPU lane width


def _round_up(x, m):
    return (x + m - 1) // m * m


def _mxu_is_256_wide():
    """True on v6e / v7x (256-wide MXU); False on v5e and older (128-wide)."""
    try:
        kind = jax.devices()[0].device_kind.lower()
    except Exception:
        return False
    return not any(t in kind for t in ("v2", "v3", "v4", "v5"))


# -----------------------------------------------------------------------------
# Fused BasicBlock kernel
# -----------------------------------------------------------------------------
def _make_block_kernel(*, Nb, H, W, Ho, Wo, Cp, Pp, stride, has_proj, fuse_proj):
    """conv1+bn1+relu+conv2+bn2+shortcut+relu for Nb images per grid step."""
    M = Nb * Ho * Wo

    def _zero_halo(ref, h, w, c):
        # Re-zero only the 1-pixel border each step; the interior is fully
        # rewritten every step.  Done unconditionally (not gated on
        # program_id==0) so it stays correct if a megacore shards the
        # "parallel" grid axis across TensorCores (per-core scratches).
        zrow = jnp.zeros((Nb, 1, w + 2, c), ref.dtype)
        zcol = jnp.zeros((Nb, h + 2, 1, c), ref.dtype)
        ref[:, pl.ds(0, 1), :, :] = zrow
        ref[:, pl.ds(h + 1, 1), :, :] = zrow
        ref[:, :, pl.ds(0, 1), :] = zcol
        ref[:, :, pl.ds(w + 1, 1), :] = zcol

    def _tap(ref, kh, kw, s):
        if s == 1:
            return ref[:, pl.ds(kh, Ho), pl.ds(kw, Wo), :]
        return ref[:, pl.ds(kh, Ho, stride=s), pl.ds(kw, Wo, stride=s), :]

    def _conv3x3(pad_ref, w_ref, c, n_out, s):
        # Grouped im2col: 3 accumulating matmuls (K = 3*c each) instead of one
        # 9-tap concat -> 3x smaller live patch; BN scale already folded into
        # the weight columns so no post-matmul scale is needed.
        acc = jnp.zeros((M, n_out), jnp.float32)
        for kh in range(3):
            taps = [_tap(pad_ref, kh, kw, s) for kw in range(3)]
            # NOTE: (Nb,Ho,Wo,3c)->(M,3c) is a free reshape when Wo % 8 == 0.
            patch = jnp.concatenate(taps, axis=-1).reshape(M, 3 * c)
            acc = acc + jnp.dot(patch, w_ref[pl.ds(kh * 3 * c, 3 * c), :],
                                preferred_element_type=jnp.float32)
        return acc

    def kernel(*refs):
        if has_proj and not fuse_proj:
            (x_ref, w1_ref, b1_ref, w2_ref, b2_ref, wsc_ref, bsc_ref,
             o_ref, xpad_ref, mpad_ref) = refs
        elif has_proj:   # projection packed into conv1's extra weight columns
            (x_ref, w1_ref, b1_ref, w2_ref, b2_ref, bsc_ref,
             o_ref, xpad_ref, mpad_ref) = refs
            wsc_ref = None
        else:
            (x_ref, w1_ref, b1_ref, w2_ref, b2_ref,
             o_ref, xpad_ref, mpad_ref) = refs
            wsc_ref = bsc_ref = None

        _zero_halo(xpad_ref, H, W, Cp)
        _zero_halo(mpad_ref, Ho, Wo, Pp)

        # ---- conv1 (3x3, stride s) [+ fused 1x1 projection] + bn1 + relu ----
        xpad_ref[:, pl.ds(1, H), pl.ds(1, W), :] = x_ref[...]       # bf16 in
        n1 = 2 * Pp if fuse_proj else Pp
        acc1 = _conv3x3(xpad_ref, w1_ref, Cp, n1, stride)
        out1 = jnp.maximum(acc1[:, :Pp] + b1_ref[...], 0.0)         # f32

        # ---- shortcut --------------------------------------------------------
        # conv1's center tap == x at the strided output positions, so the
        # shortcut never re-reads x from HBM.
        if fuse_proj:
            sc = acc1[:, Pp:] + bsc_ref[...]
        else:
            xs = _tap(xpad_ref, 1, 1, stride).reshape(M, Cp)
            if has_proj:
                sc = jnp.dot(xs, wsc_ref[...],
                             preferred_element_type=jnp.float32) + bsc_ref[...]
            else:
                sc = xs.astype(jnp.float32)

        # ---- conv2 (3x3, stride 1) + bn2 -------------------------------------
        mpad_ref[:, pl.ds(1, Ho), pl.ds(1, Wo), :] = (
            out1.reshape(Nb, Ho, Wo, Pp).astype(mpad_ref.dtype))    # one cast
        out2 = _conv3x3(mpad_ref, w2_ref, Pp, Pp, 1) + b2_ref[...]

        out = jnp.maximum(out2 + sc, 0.0)
        o_ref[...] = out.reshape(Nb, Ho, Wo, Pp).astype(o_ref.dtype)

    return kernel


# -----------------------------------------------------------------------------
# Parameter prep (fold BN scale into weights in f32, pad to lanes, cast bf16)
# -----------------------------------------------------------------------------
def _fold_bn(gamma, beta, mean, var, eps=1e-5):
    scale = gamma / jnp.sqrt(var + eps)
    bias = beta - mean * scale
    return scale, bias


def _prep_w3x3(w9, scale, cin_p, cout_p):
    """(9, Cin, Cout) f32 -> im2col weight (9*Cin_p, Cout_p) bf16, BN-scaled."""
    _, cin, cout = w9.shape
    w = w9 * scale[None, None, :]                          # fold scale in f32
    w = jnp.pad(w, ((0, 0), (0, cin_p - cin), (0, cout_p - cout)))
    return w.reshape(9 * cin_p, cout_p).astype(jnp.bfloat16)


def _prep_w1x1(w, scale, cin_p, cout_p):
    cin, cout = w.shape
    w = w * scale[None, :]
    return jnp.pad(w, ((0, cin_p - cin), (0, cout_p - cout))).astype(jnp.bfloat16)


def _prep_w1_fused(w9, s1, wsc, ssc, cin_p, cout_p):
    """conv1 weight (scale folded) with the 1x1 projection (scale folded)
    packed as extra output columns only tap 4 (center) contributes to, so one
    (9*Cin_p, 2*Cout_p) matmul yields conv1 and the shortcut."""
    _, cin, cout = w9.shape
    w1 = jnp.pad(w9 * s1[None, None, :],
                 ((0, 0), (0, cin_p - cin), (0, cout_p - cout)))
    wsc_f = jnp.pad(wsc * ssc[None, :],
                    ((0, cin_p - cin), (0, cout_p - cout)))
    ext = jnp.zeros_like(w1).at[4].set(wsc_f)
    return jnp.concatenate([w1, ext], axis=-1).reshape(
        9 * cin_p, 2 * cout_p).astype(jnp.bfloat16)


def _prep_bias(bias, cout_p):
    c = bias.shape[0]
    return jnp.pad(bias, (0, cout_p - c)).reshape(1, cout_p).astype(jnp.float32)


# -----------------------------------------------------------------------------
# BasicBlock forward
# -----------------------------------------------------------------------------
def basic_block_forward(x_nchw, params, stride=1, *, out_dtype=jnp.bfloat16,
                        images_per_step=None, fuse_proj=None):
    """Pallas implementation of BasicBlock.forward (NCHW in / NCHW out)."""
    N, cin, H, W = x_nchw.shape
    planes = params["w1"].shape[-1]
    Cp, Pp = _round_up(cin, LANE), _round_up(planes, LANE)
    Ho = (H - 1) // stride + 1
    Wo = (W - 1) // stride + 1
    has_proj = "w_sc" in params

    if fuse_proj is None:
        # Fusing the projection into conv1's matmul fills the 256-wide MXU N
        # dim for free on v6e/v7x; on 128-wide v5e it would double MXU passes.
        fuse_proj = has_proj and Pp == LANE and _mxu_is_256_wide()
    fuse_proj = bool(fuse_proj) and has_proj

    if images_per_step is None:
        per_img = ((H + 2) * (W + 2) * Cp + (Ho + 2) * (Wo + 2) * Pp) * 2  # bf16
        nb = max(1, min(N, (8 * 1024 * 1024) // max(per_img, 1)))
        while N % nb:
            nb -= 1
        images_per_step = nb
    Nb = images_per_step
    assert N % Nb == 0

    # NCHW -> NHWC, channels zero-padded to a lane multiple, bf16 activations.
    x = jnp.transpose(x_nchw, (0, 2, 3, 1))
    x = jnp.pad(x, ((0, 0), (0, 0), (0, 0), (0, Cp - cin))).astype(jnp.bfloat16)

    if fuse_proj:
        w1 = _prep_w1_fused(params["w1"], params["s1"],
                            params["w_sc"], params["s_sc"], Cp, Pp)
    else:
        w1 = _prep_w3x3(params["w1"], params["s1"], Cp, Pp)
    b1 = _prep_bias(params["b1"], Pp)
    w2 = _prep_w3x3(params["w2"], params["s2"], Pp, Pp)
    b2 = _prep_bias(params["b2"], Pp)

    nw1 = 2 * Pp if fuse_proj else Pp
    args = [x, w1, b1, w2, b2]
    in_specs = [
        pl.BlockSpec((Nb, H, W, Cp), lambda n: (n, 0, 0, 0)),
        pl.BlockSpec((9 * Cp, nw1), lambda n: (0, 0)),
        pl.BlockSpec((1, Pp), lambda n: (0, 0)),
        pl.BlockSpec((9 * Pp, Pp), lambda n: (0, 0)),
        pl.BlockSpec((1, Pp), lambda n: (0, 0)),
    ]
    if has_proj:
        if not fuse_proj:
            args.append(_prep_w1x1(params["w_sc"], params["s_sc"], Cp, Pp))
            in_specs.append(pl.BlockSpec((Cp, Pp), lambda n: (0, 0)))
        args.append(_prep_bias(params["b_sc"], Pp))
        in_specs.append(pl.BlockSpec((1, Pp), lambda n: (0, 0)))

    kernel = _make_block_kernel(Nb=Nb, H=H, W=W, Ho=Ho, Wo=Wo, Cp=Cp, Pp=Pp,
                                stride=stride, has_proj=has_proj,
                                fuse_proj=fuse_proj)

    out = pl.pallas_call(
        kernel,
        out_shape=jax.ShapeDtypeStruct((N, Ho, Wo, Pp), out_dtype),
        grid=(N // Nb,),
        in_specs=in_specs,
        out_specs=pl.BlockSpec((Nb, Ho, Wo, Pp), lambda n: (n, 0, 0, 0)),
        scratch_shapes=[
            pltpu.VMEM((Nb, H + 2, W + 2, Cp), jnp.bfloat16),    # padded x
            pltpu.VMEM((Nb, Ho + 2, Wo + 2, Pp), jnp.bfloat16),  # padded conv1
        ],
        compiler_params=pltpu.CompilerParams(
            dimension_semantics=("parallel",),
            # bf16 weights + tiles + two bf16 scratches are a few MiB: fits
            # v7x's 64 MiB VMEM with large headroom at CIFAR-scale tiles.
            vmem_limit_bytes=32 * 1024 * 1024,
        ),
    )(*args)

    out = out[..., :planes]                     # drop lane padding
    return jnp.transpose(out, (0, 3, 1, 2))     # back to NCHW


# -----------------------------------------------------------------------------
# Synthetic parameters + pure-JAX f32 reference
# -----------------------------------------------------------------------------
def init_basic_block_params(key, in_planes, planes, stride=1):
    """Deterministic synthetic parameters (shapes match the PyTorch module)."""
    ks = jax.random.split(key, 12)

    def bn_params(k, c):
        k1, k2, k3, k4 = jax.random.split(k, 4)
        gamma = 1.0 + 0.1 * jax.random.normal(k1, (c,), jnp.float32)
        beta = 0.1 * jax.random.normal(k2, (c,), jnp.float32)
        mean = 0.1 * jax.random.normal(k3, (c,), jnp.float32)
        var = jnp.abs(jax.random.normal(k4, (c,), jnp.float32)) + 0.5
        return _fold_bn(gamma, beta, mean, var)

    p = {}
    # conv weights stored flattened over the 3x3 taps -> (9, Cin, Cout)
    p["w1"] = 0.1 * jax.random.normal(ks[0], (9, in_planes, planes), jnp.float32)
    p["s1"], p["b1"] = bn_params(ks[1], planes)
    p["w2"] = 0.1 * jax.random.normal(ks[2], (9, planes, planes), jnp.float32)
    p["s2"], p["b2"] = bn_params(ks[3], planes)
    if stride != 1 or in_planes != planes:
        p["w_sc"] = 0.1 * jax.random.normal(ks[4], (in_planes, planes), jnp.float32)
        p["s_sc"], p["b_sc"] = bn_params(ks[5], planes)
    return p


def reference_forward(x_nchw, params, stride=1):
    x = jnp.transpose(x_nchw, (0, 2, 3, 1))

    def c3(inp, w9, s, b, st):
        cin, cout = w9.shape[1], w9.shape[2]
        w = w9.reshape(3, 3, cin, cout)
        y = jax.lax.conv_general_dilated(
            inp, w, (st, st), ((1, 1), (1, 1)),
            dimension_numbers=("NHWC", "HWIO", "NHWC"))
        return y * s + b

    out = jax.nn.relu(c3(x, params["w1"], params["s1"], params["b1"], stride))
    out = c3(out, params["w2"], params["s2"], params["b2"], 1)
    if "w_sc" in params:
        cin, cout = params["w_sc"].shape
        w = params["w_sc"].reshape(1, 1, cin, cout)
        sc = jax.lax.conv_general_dilated(
            x, w, (stride, stride), ((0, 0), (0, 0)),
            dimension_numbers=("NHWC", "HWIO", "NHWC"))
        sc = sc * params["s_sc"] + params["b_sc"]
    else:
        sc = x[:, ::stride, ::stride, :]
    out = jax.nn.relu(out + sc)
    return jnp.transpose(out, (0, 3, 1, 2))


# -----------------------------------------------------------------------------
if __name__ == "__main__":
    key = jax.random.PRNGKey(0)
    k_x, k_p, k_x2, k_p2 = jax.random.split(key, 4)

    N, IN_PLANES, PLANES, H, W = 2, 4, 8, 16, 16
    STRIDE = 1

    # --- test 1: projection shortcut (in_planes != planes) ------------------
    x = jax.random.normal(k_x, (N, IN_PLANES, H, W), jnp.float32)  # NCHW
    params = init_basic_block_params(k_p, IN_PLANES, PLANES, stride=STRIDE)
    fwd = jax.jit(functools.partial(basic_block_forward, stride=STRIDE))
    y = jax.block_until_ready(fwd(x, params)).astype(jnp.float32)
    y_ref = reference_forward(x, params, stride=STRIDE)
    assert y.shape == y_ref.shape == (N, PLANES, H, W)
    # bf16 MXU operands, bf16 residual and bf16 output vs. f32 reference.
    err1 = float(jnp.max(jnp.abs(y - y_ref)))
    assert jnp.allclose(y, y_ref, rtol=3e-2, atol=3e-2), err1

    # --- test 2: identity shortcut (in_planes == planes) ---------------------
    x2 = jax.random.normal(k_x2, (N, PLANES, H, W), jnp.float32)
    params2 = init_basic_block_params(k_p2, PLANES, PLANES, stride=1)
    fwd2 = jax.jit(functools.partial(basic_block_forward, stride=1))
    y2 = jax.block_until_ready(fwd2(x2, params2)).astype(jnp.float32)
    y2_ref = reference_forward(x2, params2, stride=1)
    assert y2.shape == y2_ref.shape == (N, PLANES, H, W)
    err2 = float(jnp.max(jnp.abs(y2 - y2_ref)))
    assert jnp.allclose(y2, y2_ref, rtol=3e-2, atol=3e-2), err2

    print("KERNEL_OK")
</pallas_src>

<mosaic_0001>
module attributes {stable_mosaic.version = 11 : i64} {
  func.func @kernel(%arg0: i32, %arg1: memref<2x16x16x128xbf16, #tpu.memory_space<vmem>>, %arg2: memref<1152x256xbf16, #tpu.memory_space<vmem>>, %arg3: memref<1x128xf32, #tpu.memory_space<vmem>>, %arg4: memref<1152x128xbf16, #tpu.memory_space<vmem>>, %arg5: memref<1x128xf32, #tpu.memory_space<vmem>>, %arg6: memref<1x128xf32, #tpu.memory_space<vmem>>, %arg7: memref<2x16x16x128xbf16, #tpu.memory_space<vmem>>, %arg8: memref<2x18x18x128xbf16, #tpu.memory_space<vmem>>, %arg9: memref<2x18x18x128xbf16, #tpu.memory_space<vmem>>) attributes {dimension_semantics = [#tpu.dimension_semantics<parallel>], iteration_bounds = array<i64: 1>, scalar_prefetch = 0 : i64, scratch_operands = 2 : i64, tpu.core_type = #tpu.core_type<tc>, window_params = [{transform_indices = @transform_0, window_bounds = array<i64: 2, 16, 16, 128>}, {pipeline_mode = #tpu.pipeline_mode<synchronous>, transform_indices = @transform_1, window_bounds = array<i64: 1152, 256>}, {pipeline_mode = #tpu.pipeline_mode<synchronous>, transform_indices = @transform_2, window_bounds = array<i64: 1, 128>}, {pipeline_mode = #tpu.pipeline_mode<synchronous>, transform_indices = @transform_3, window_bounds = array<i64: 1152, 128>}, {pipeline_mode = #tpu.pipeline_mode<synchronous>, transform_indices = @transform_4, window_bounds = array<i64: 1, 128>}, {pipeline_mode = #tpu.pipeline_mode<synchronous>, transform_indices = @transform_5, window_bounds = array<i64: 1, 128>}, {transform_indices = @transform_6, window_bounds = array<i64: 2, 16, 16, 128>}]} {
    %cst = arith.constant 0.000000e+00 : bf16
    %0 = vector.broadcast %cst : bf16 to vector<2x1x18x128xbf16>
    %cst_0 = arith.constant 0.000000e+00 : bf16
    %1 = vector.broadcast %cst_0 : bf16 to vector<2x18x1x128xbf16>
    %c0 = arith.constant 0 : index
    %c0_1 = arith.constant 0 : index
    %c0_2 = arith.constant 0 : index
    %c0_3 = arith.constant 0 : index
    %2 = vector.load %arg8[%c0, %c0_1, %c0_2, %c0_3] : memref<2x18x18x128xbf16, #tpu.memory_space<vmem>>, vector<2x1x18x128xbf16>
    tpu.vector_store %arg8[%c0, %c0_1, %c0_2, %c0_3], %0 {strides = array<i32>} : memref<2x18x18x128xbf16, #tpu.memory_space<vmem>>, vector<2x1x18x128xbf16>,
    %c0_4 = arith.constant 0 : index
    %c17 = arith.constant 17 : index
    %c0_5 = arith.constant 0 : index
    %c0_6 = arith.constant 0 : index
    %3 = vector.load %arg8[%c0_4, %c17, %c0_5, %c0_6] : memref<2x18x18x128xbf16, #tpu.memory_space<vmem>>, vector<2x1x18x128xbf16>
    tpu.vector_store %arg8[%c0_4, %c17, %c0_5, %c0_6], %0 {strides = array<i32>} : memref<2x18x18x128xbf16, #tpu.memory_space<vmem>>, vector<2x1x18x128xbf16>,
    %c0_7 = arith.constant 0 : index
    %c0_8 = arith.constant 0 : index
    %c0_9 = arith.constant 0 : index
    %c0_10 = arith.constant 0 : index
    %4 = vector.load %arg8[%c0_7, %c0_8, %c0_9, %c0_10] : memref<2x18x18x128xbf16, #tpu.memory_space<vmem>>, vector<2x18x1x128xbf16>
    tpu.vector_store %arg8[%c0_7, %c0_8, %c0_9, %c0_10], %1 {strides = array<i32>} : memref<2x18x18x128xbf16, #tpu.memory_space<vmem>>, vector<2x18x1x128xbf16>,
    %c0_11 = arith.constant 0 : index
    %c0_12 = arith.constant 0 : index
    %c17_13 = arith.constant 17 : index
    %c0_14 = arith.constant 0 : index
    %5 = vector.load %arg8[%c0_11, %c0_12, %c17_13, %c0_14] : memref<2x18x18x128xbf16, #tpu.memory_space<vmem>>, vector<2x18x1x128xbf16>
    tpu.vector_store %arg8[%c0_11, %c0_12, %c17_13, %c0_14], %1 {strides = array<i32>} : memref<2x18x18x128xbf16, #tpu.memory_space<vmem>>, vector<2x18x1x128xbf16>,
    %cst_15 = arith.constant 0.000000e+00 : bf16
    %6 = vector.broadcast %cst_15 : bf16 to vector<2x1x18x128xbf16>
    %cst_16 = arith.constant 0.000000e+00 : bf16
    %7 = vector.broadcast %cst_16 : bf16 to vector<2x18x1x128xbf16>
    %c0_17 = arith.constant 0 : index
    %c0_18 = arith.constant 0 : index
    %c0_19 = arith.constant 0 : index
    %c0_20 = arith.constant 0 : index
    %8 = vector.load %arg9[%c0_17, %c0_18, %c0_19, %c0_20] : memref<2x18x18x128xbf16, #tpu.memory_space<vmem>>, vector<2x1x18x128xbf16>
    tpu.vector_store %arg9[%c0_17, %c0_18, %c0_19, %c0_20], %6 {strides = array<i32>} : memref<2x18x18x128xbf16, #tpu.memory_space<vmem>>, vector<2x1x18x128xbf16>,
    %c0_21 = arith.constant 0 : index
    %c17_22 = arith.constant 17 : index
    %c0_23 = arith.constant 0 : index
    %c0_24 = arith.constant 0 : index
    %9 = vector.load %arg9[%c0_21, %c17_22, %c0_23, %c0_24] : memref<2x18x18x128xbf16, #tpu.memory_space<vmem>>, vector<2x1x18x128xbf16>
    tpu.vector_store %arg9[%c0_21, %c17_22, %c0_23, %c0_24], %6 {strides = array<i32>} : memref<2x18x18x128xbf16, #tpu.memory_space<vmem>>, vector<2x1x18x128xbf16>,
    %c0_25 = arith.constant 0 : index
    %c0_26 = arith.constant 0 : index
    %c0_27 = arith.constant 0 : index
    %c0_28 = arith.constant 0 : index
    %10 = vector.load %arg9[%c0_25, %c0_26, %c0_27, %c0_28] : memref<2x18x18x128xbf16, #tpu.memory_space<vmem>>, vector<2x18x1x128xbf16>
    tpu.vector_store %arg9[%c0_25, %c0_26, %c0_27, %c0_28], %7 {strides = array<i32>} : memref<2x18x18x128xbf16, #tpu.memory_space<vmem>>, vector<2x18x1x128xbf16>,
    %c0_29 = arith.constant 0 : index
    %c0_30 = arith.constant 0 : index
    %c17_31 = arith.constant 17 : index
    %c0_32 = arith.constant 0 : index
    %11 = vector.load %arg9[%c0_29, %c0_30, %c17_31, %c0_32] : memref<2x18x18x128xbf16, #tpu.memory_space<vmem>>, vector<2x18x1x128xbf16>
    tpu.vector_store %arg9[%c0_29, %c0_30, %c17_31, %c0_32], %7 {strides = array<i32>} : memref<2x18x18x128xbf16, #tpu.memory_space<vmem>>, vector<2x18x1x128xbf16>,
    %c0_33 = arith.constant 0 : index
    %c0_34 = arith.constant 0 : index
    %c0_35 = arith.constant 0 : index
    %c0_36 = arith.constant 0 : index
    %12 = vector.load %arg1[%c0_33, %c0_34, %c0_35, %c0_36] : memref<2x16x16x128xbf16, #tpu.memory_space<vmem>>, vector<2x16x16x128xbf16>
    %c0_37 = arith.constant 0 : index
    %c1 = arith.constant 1 : index
    %c1_38 = arith.constant 1 : index
    %c0_39 = arith.constant 0 : index
    %13 = vector.load %arg8[%c0_37, %c1, %c1_38, %c0_39] : memref<2x18x18x128xbf16, #tpu.memory_space<vmem>>, vector<2x16x16x128xbf16>
    tpu.vector_store %arg8[%c0_37, %c1, %c1_38, %c0_39], %12 {strides = array<i32>} : memref<2x18x18x128xbf16, #tpu.memory_space<vmem>>, vector<2x16x16x128xbf16>,
    %cst_40 = arith.constant 0.000000e+00 : f32
    %14 = vector.broadcast %cst_40 : f32 to vector<512x256xf32>
    %c0_41 = arith.constant 0 : index
    %c0_42 = arith.constant 0 : index
    %c0_43 = arith.constant 0 : index
    %c0_44 = arith.constant 0 : index
    %15 = vector.load %arg8[%c0_41, %c0_42, %c0_43, %c0_44] : memref<2x18x18x128xbf16, #tpu.memory_space<vmem>>, vector<2x16x16x128xbf16>
    %c0_45 = arith.constant 0 : index
    %c0_46 = arith.constant 0 : index
    %c1_47 = arith.constant 1 : index
    %c0_48 = arith.constant 0 : index
    %16 = vector.load %arg8[%c0_45, %c0_46, %c1_47, %c0_48] : memref<2x18x18x128xbf16, #tpu.memory_space<vmem>>, vector<2x16x16x128xbf16>
    %c0_49 = arith.constant 0 : index
    %c0_50 = arith.constant 0 : index
    %c2 = arith.constant 2 : index
    %c0_51 = arith.constant 0 : index
    %17 = vector.load %arg8[%c0_49, %c0_50, %c2, %c0_51] : memref<2x18x18x128xbf16, #tpu.memory_space<vmem>>, vector<2x16x16x128xbf16>
    %18 = tpu.concatenate %15, %16, %17 in 3 : vector<2x16x16x128xbf16>, vector<2x16x16x128xbf16>, vector<2x16x16x128xbf16> -> vector<2x16x16x384xbf16>
    %19 = vector.shape_cast %18 : vector<2x16x16x384xbf16> to vector<512x384xbf16>
    %c0_52 = arith.constant 0 : index
    %c0_53 = arith.constant 0 : index
    %20 = vector.load %arg2[%c0_52, %c0_53] : memref<1152x256xbf16, #tpu.memory_space<vmem>>, vector<384x256xbf16>
    %cst_54 = arith.constant dense<0.000000e+00> : vector<512x256xf32>
    %21 = tpu.matmul %19, %20, %cst_54 {dimension_numbers = #tpu.dot_dimension_numbers<[1], [0], [0], [1], [0, 0, 1, 1], [], []>} : vector<512x384xbf16>, vector<384x256xbf16>, vector<512x256xf32> -> vector<512x256xf32>
    %22 = arith.addf %14, %21 : vector<512x256xf32>
    %c0_55 = arith.constant 0 : index
    %c1_56 = arith.constant 1 : index
    %c0_57 = arith.constant 0 : index
    %c0_58 = arith.constant 0 : index
    %23 = vector.load %arg8[%c0_55, %c1_56, %c0_57, %c0_58] : memref<2x18x18x128xbf16, #tpu.memory_space<vmem>>, vector<2x16x16x128xbf16>
    %c0_59 = arith.constant 0 : index
    %c1_60 = arith.constant 1 : index
    %c1_61 = arith.constant 1 : index
    %c0_62 = arith.constant 0 : index
    %24 = vector.load %arg8[%c0_59, %c1_60, %c1_61, %c0_62] : memref<2x18x18x128xbf16, #tpu.memory_space<vmem>>, vector<2x16x16x128xbf16>
    %c0_63 = arith.constant 0 : index
    %c1_64 = arith.constant 1 : index
    %c2_65 = arith.constant 2 : index
    %c0_66 = arith.constant 0 : index
    %25 = vector.load %arg8[%c0_63, %c1_64, %c2_65, %c0_66] : memref<2x18x18x128xbf16, #tpu.memory_space<vmem>>, vector<2x16x16x128xbf16>
    %26 = tpu.concatenate %23, %24, %25 in 3 : vector<2x16x16x128xbf16>, vector<2x16x16x128xbf16>, vector<2x16x16x128xbf16> -> vector<2x16x16x384xbf16>
    %27 = vector.shape_cast %26 : vector<2x16x16x384xbf16> to vector<512x384xbf16>
    %c384 = arith.constant 384 : index
    %c0_67 = arith.constant 0 : index
    %28 = vector.load %arg2[%c384, %c0_67] : memref<1152x256xbf16, #tpu.memory_space<vmem>>, vector<384x256xbf16>
    %cst_68 = arith.constant dense<0.000000e+00> : vector<512x256xf32>
    %29 = tpu.matmul %27, %28, %cst_68 {dimension_numbers = #tpu.dot_dimension_numbers<[1], [0], [0], [1], [0, 0, 1, 1], [], []>} : vector<512x384xbf16>, vector<384x256xbf16>, vector<512x256xf32> -> vector<512x256xf32>
    %30 = arith.addf %22, %29 : vector<512x256xf32>
    %c0_69 = arith.constant 0 : index
    %c2_70 = arith.constant 2 : index
    %c0_71 = arith.constant 0 : index
    %c0_72 = arith.constant 0 : index
    %31 = vector.load %arg8[%c0_69, %c2_70, %c0_71, %c0_72] : memref<2x18x18x128xbf16, #tpu.memory_space<vmem>>, vector<2x16x16x128xbf16>
    %c0_73 = arith.constant 0 : index
    %c2_74 = arith.constant 2 : index
    %c1_75 = arith.constant 1 : index
    %c0_76 = arith.constant 0 : index
    %32 = vector.load %arg8[%c0_73, %c2_74, %c1_75, %c0_76] : memref<2x18x18x128xbf16, #tpu.memory_space<vmem>>, vector<2x16x16x128xbf16>
    %c0_77 = arith.constant 0 : index
    %c2_78 = arith.constant 2 : index
    %c2_79 = arith.constant 2 : index
    %c0_80 = arith.constant 0 : index
    %33 = vector.load %arg8[%c0_77, %c2_78, %c2_79, %c0_80] : memref<2x18x18x128xbf16, #tpu.memory_space<vmem>>, vector<2x16x16x128xbf16>
    %34 = tpu.concatenate %31, %32, %33 in 3 : vector<2x16x16x128xbf16>, vector<2x16x16x128xbf16>, vector<2x16x16x128xbf16> -> vector<2x16x16x384xbf16>
    %35 = vector.shape_cast %34 : vector<2x16x16x384xbf16> to vector<512x384xbf16>
    %c768 = arith.constant 768 : index
    %c0_81 = arith.constant 0 : index
    %36 = vector.load %arg2[%c768, %c0_81] : memref<1152x256xbf16, #tpu.memory_space<vmem>>, vector<384x256xbf16>
    %cst_82 = arith.constant dense<0.000000e+00> : vector<512x256xf32>
    %37 = tpu.matmul %35, %36, %cst_82 {dimension_numbers = #tpu.dot_dimension_numbers<[1], [0], [0], [1], [0, 0, 1, 1], [], []>} : vector<512x384xbf16>, vector<384x256xbf16>, vector<512x256xf32> -> vector<512x256xf32>
    %38 = arith.addf %30, %37 : vector<512x256xf32>
    %39 = vector.extract_strided_slice %38 {offsets = [0, 0], sizes = [512, 128], strides = [1, 1]} : vector<512x256xf32> to vector<512x128xf32>
    %c0_83 = arith.constant 0 : index
    %c0_84 = arith.constant 0 : index
    %40 = vector.load %arg3[%c0_83, %c0_84] : memref<1x128xf32, #tpu.memory_space<vmem>>, vector<1x128xf32>
    %41 = vector.broadcast %40 : vector<1x128xf32> to vector<512x128xf32>
    %42 = arith.addf %39, %41 : vector<512x128xf32>
    %cst_85 = arith.constant 0.000000e+00 : f32
    %43 = vector.broadcast %cst_85 : f32 to vector<512x128xf32>
    %44 = arith.maximumf %42, %43 : vector<512x128xf32>
    %45 = vector.extract_strided_slice %38 {offsets = [0, 128], sizes = [512, 128], strides = [1, 1]} : vector<512x256xf32> to vector<512x128xf32>
    %c0_86 = arith.constant 0 : index
    %c0_87 = arith.constant 0 : index
    %46 = vector.load %arg6[%c0_86, %c0_87] : memref<1x128xf32, #tpu.memory_space<vmem>>, vector<1x128xf32>
    %47 = vector.broadcast %46 : vector<1x128xf32> to vector<512x128xf32>
    %48 = arith.addf %45, %47 : vector<512x128xf32>
    %49 = vector.shape_cast %44 : vector<512x128xf32> to vector<2x16x16x128xf32>
    %50 = arith.truncf %49 : vector<2x16x16x128xf32> to vector<2x16x16x128xbf16>
    %c0_88 = arith.constant 0 : index
    %c1_89 = arith.constant 1 : index
    %c1_90 = arith.constant 1 : index
    %c0_91 = arith.constant 0 : index
    %51 = vector.load %arg9[%c0_88, %c1_89, %c1_90, %c0_91] : memref<2x18x18x128xbf16, #tpu.memory_space<vmem>>, vector<2x16x16x128xbf16>
    tpu.vector_store %arg9[%c0_88, %c1_89, %c1_90, %c0_91], %50 {strides = array<i32>} : memref<2x18x18x128xbf16, #tpu.memory_space<vmem>>, vector<2x16x16x128xbf16>,
    %cst_92 = arith.constant 0.000000e+00 : f32
    %52 = vector.broadcast %cst_92 : f32 to vector<512x128xf32>
    %c0_93 = arith.constant 0 : index
    %c0_94 = arith.constant 0 : index
    %c0_95 = arith.constant 0 : index
    %c0_96 = arith.constant 0 : index
    %53 = vector.load %arg9[%c0_93, %c0_94, %c0_95, %c0_96] : memref<2x18x18x128xbf16, #tpu.memory_space<vmem>>, vector<2x16x16x128xbf16>
    %c0_97 = arith.constant 0 : index
    %c0_98 = arith.constant 0 : index
    %c1_99 = arith.constant 1 : index
    %c0_100 = arith.constant 0 : index
    %54 = vector.load %arg9[%c0_97, %c0_98, %c1_99, %c0_100] : memref<2x18x18x128xbf16, #tpu.memory_space<vmem>>, vector<2x16x16x128xbf16>
    %c0_101 = arith.constant 0 : index
    %c0_102 = arith.constant 0 : index
    %c2_103 = arith.constant 2 : index
    %c0_104 = arith.constant 0 : index
    %55 = vector.load %arg9[%c0_101, %c0_102, %c2_103, %c0_104] : memref<2x18x18x128xbf16, #tpu.memory_space<vmem>>, vector<2x16x16x128xbf16>
    %56 = tpu.concatenate %53, %54, %55 in 3 : vector<2x16x16x128xbf16>, vector<2x16x16x128xbf16>, vector<2x16x16x128xbf16> -> vector<2x16x16x384xbf16>
    %57 = vector.shape_cast %56 : vector<2x16x16x384xbf16> to vector<512x384xbf16>
    %c0_105 = arith.constant 0 : index
    %c0_106 = arith.constant 0 : index
    %58 = vector.load %arg4[%c0_105, %c0_106] : memref<1152x128xbf16, #tpu.memory_space<vmem>>, vector<384x128xbf16>
    %cst_107 = arith.constant dense<0.000000e+00> : vector<512x128xf32>
    %59 = tpu.matmul %57, %58, %cst_107 {dimension_numbers = #tpu.dot_dimension_numbers<[1], [0], [0], [1], [0, 0, 1, 1], [], []>} : vector<512x384xbf16>, vector<384x128xbf16>, vector<512x128xf32> -> vector<512x128xf32>
    %60 = arith.addf %52, %59 : vector<512x128xf32>
    %c0_108 = arith.constant 0 : index
    %c1_109 = arith.constant 1 : index
    %c0_110 = arith.constant 0 : index
    %c0_111 = arith.constant 0 : index
    %61 = vector.load %arg9[%c0_108, %c1_109, %c0_110, %c0_111] : memref<2x18x18x128xbf16, #tpu.memory_space<vmem>>, vector<2x16x16x128xbf16>
    %c0_112 = arith.constant 0 : index
    %c1_113 = arith.constant 1 : index
    %c1_114 = arith.constant 1 : index
    %c0_115 = arith.constant 0 : index
    %62 = vector.load %arg9[%c0_112, %c1_113, %c1_114, %c0_115] : memref<2x18x18x128xbf16, #tpu.memory_space<vmem>>, vector<2x16x16x128xbf16>
    %c0_116 = arith.constant 0 : index
    %c1_117 = arith.constant 1 : index
    %c2_118 = arith.constant 2 : index
    %c0_119 = arith.constant 0 : index
    %63 = vector.load %arg9[%c0_116, %c1_117, %c2_118, %c0_119] : memref<2x18x18x128xbf16, #tpu.memory_space<vmem>>, vector<2x16x16x128xbf16>
    %64 = tpu.concatenate %61, %62, %63 in 3 : vector<2x16x16x128xbf16>, vector<2x16x16x128xbf16>, vector<2x16x16x128xbf16> -> vector<2x16x16x384xbf16>
    %65 = vector.shape_cast %64 : vector<2x16x16x384xbf16> to vector<512x384xbf16>
    %c384_120 = arith.constant 384 : index
    %c0_121 = arith.constant 0 : index
    %66 = vector.load %arg4[%c384_120, %c0_121] : memref<1152x128xbf16, #tpu.memory_space<vmem>>, vector<384x128xbf16>
    %cst_122 = arith.constant dense<0.000000e+00> : vector<512x128xf32>
    %67 = tpu.matmul %65, %66, %cst_122 {dimension_numbers = #tpu.dot_dimension_numbers<[1], [0], [0], [1], [0, 0, 1, 1], [], []>} : vector<512x384xbf16>, vector<384x128xbf16>, vector<512x128xf32> -> vector<512x128xf32>
    %68 = arith.addf %60, %67 : vector<512x128xf32>
    %c0_123 = arith.constant 0 : index
    %c2_124 = arith.constant 2 : index
    %c0_125 = arith.constant 0 : index
    %c0_126 = arith.constant 0 : index
    %69 = vector.load %arg9[%c0_123, %c2_124, %c0_125, %c0_126] : memref<2x18x18x128xbf16, #tpu.memory_space<vmem>>, vector<2x16x16x128xbf16>
    %c0_127 = arith.constant 0 : index
    %c2_128 = arith.constant 2 : index
    %c1_129 = arith.constant 1 : index
    %c0_130 = arith.constant 0 : index
    %70 = vector.load %arg9[%c0_127, %c2_128, %c1_129, %c0_130] : memref<2x18x18x128xbf16, #tpu.memory_space<vmem>>, vector<2x16x16x128xbf16>
    %c0_131 = arith.constant 0 : index
    %c2_132 = arith.constant 2 : index
    %c2_133 = arith.constant 2 : index
    %c0_134 = arith.constant 0 : index
    %71 = vector.load %arg9[%c0_131, %c2_132, %c2_133, %c0_134] : memref<2x18x18x128xbf16, #tpu.memory_space<vmem>>, vector<2x16x16x128xbf16>
    %72 = tpu.concatenate %69, %70, %71 in 3 : vector<2x16x16x128xbf16>, vector<2x16x16x128xbf16>, vector<2x16x16x128xbf16> -> vector<2x16x16x384xbf16>
    %73 = vector.shape_cast %72 : vector<2x16x16x384xbf16> to vector<512x384xbf16>
    %c768_135 = arith.constant 768 : index
    %c0_136 = arith.constant 0 : index
    %74 = vector.load %arg4[%c768_135, %c0_136] : memref<1152x128xbf16, #tpu.memory_space<vmem>>, vector<384x128xbf16>
    %cst_137 = arith.constant dense<0.000000e+00> : vector<512x128xf32>
    %75 = tpu.matmul %73, %74, %cst_137 {dimension_numbers = #tpu.dot_dimension_numbers<[1], [0], [0], [1], [0, 0, 1, 1], [], []>} : vector<512x384xbf16>, vector<384x128xbf16>, vector<512x128xf32> -> vector<512x128xf32>
    %76 = arith.addf %68, %75 : vector<512x128xf32>
    %c0_138 = arith.constant 0 : index
    %c0_139 = arith.constant 0 : index
    %77 = vector.load %arg5[%c0_138, %c0_139] : memref<1x128xf32, #tpu.memory_space<vmem>>, vector<1x128xf32>
    %78 = vector.broadcast %77 : vector<1x128xf32> to vector<512x128xf32>
    %79 = arith.addf %76, %78 : vector<512x128xf32>
    %80 = arith.addf %79, %48 : vector<512x128xf32>
    %cst_140 = arith.constant 0.000000e+00 : f32
    %81 = vector.broadcast %cst_140 : f32 to vector<512x128xf32>
    %82 = arith.maximumf %80, %81 : vector<512x128xf32>
    %83 = vector.shape_cast %82 : vector<512x128xf32> to vector<2x16x16x128xf32>
    %84 = arith.truncf %83 : vector<2x16x16x128xf32> to vector<2x16x16x128xbf16>
    %c0_141 = arith.constant 0 : index
    %c0_142 = arith.constant 0 : index
    %c0_143 = arith.constant 0 : index
    %c0_144 = arith.constant 0 : index
    %85 = vector.load %arg7[%c0_141, %c0_142, %c0_143, %c0_144] : memref<2x16x16x128xbf16, #tpu.memory_space<vmem>>, vector<2x16x16x128xbf16>
    tpu.vector_store %arg7[%c0_141, %c0_142, %c0_143, %c0_144], %84 {strides = array<i32>} : memref<2x16x16x128xbf16, #tpu.memory_space<vmem>>, vector<2x16x16x128xbf16>,
    return
  }
  func.func @transform_0(%arg0: i32) -> (i32, i32, i32, i32) {
    %c0_i32 = arith.constant 0 : i32
    %c0_i32_0 = arith.constant 0 : i32
    %c0_i32_1 = arith.constant 0 : i32
    %c0_i32_2 = arith.constant 0 : i32
    return %arg0, %c0_i32, %c0_i32_0, %c0_i32_1 : i32, i32, i32, i32
  }
  func.func @transform_1(%arg0: i32) -> (i32, i32) {
    %c0_i32 = arith.constant 0 : i32
    %c0_i32_0 = arith.constant 0 : i32
    %c0_i32_1 = arith.constant 0 : i32
    return %c0_i32, %c0_i32_0 : i32, i32
  }
  func.func @transform_2(%arg0: i32) -> (i32, i32) {
    %c0_i32 = arith.constant 0 : i32
    %c0_i32_0 = arith.constant 0 : i32
    %c0_i32_1 = arith.constant 0 : i32
    return %c0_i32, %c0_i32_0 : i32, i32
  }
  func.func @transform_3(%arg0: i32) -> (i32, i32) {
    %c0_i32 = arith.constant 0 : i32
    %c0_i32_0 = arith.constant 0 : i32
    %c0_i32_1 = arith.constant 0 : i32
    return %c0_i32, %c0_i32_0 : i32, i32
  }
  func.func @transform_4(%arg0: i32) -> (i32, i32) {
    %c0_i32 = arith.constant 0 : i32
    %c0_i32_0 = arith.constant 0 : i32
    %c0_i32_1 = arith.constant 0 : i32
    return %c0_i32, %c0_i32_0 : i32, i32
  }
  func.func @transform_5(%arg0: i32) -> (i32, i32) {
    %c0_i32 = arith.constant 0 : i32
    %c0_i32_0 = arith.constant 0 : i32
    %c0_i32_1 = arith.constant 0 : i32
    return %c0_i32, %c0_i32_0 : i32, i32
  }
  func.func @transform_6(%arg0: i32) -> (i32, i32, i32, i32) {
    %c0_i32 = arith.constant 0 : i32
    %c0_i32_0 = arith.constant 0 : i32
    %c0_i32_1 = arith.constant 0 : i32
    %c0_i32_2 = arith.constant 0 : i32
    return %arg0, %c0_i32, %c0_i32_0, %c0_i32_1 : i32, i32, i32, i32
  }
}

</mosaic_0001>

<llo_original>
// kernel: basic_block_forward.1
$region0: #{basic_block_forward.1}
  #allocation0 [shape = 'u32[]', space=smem, size = 0x4, offset = 0x4, fixed_abs, tag = 'smem constant byte address 0x4 - core index']
  #allocation1 [shape = 'u32[144,128]{1,0:T(1,128)}', space=vmem, size = 0x12000, scoped, tag = 'internal scratch']
  #allocation2 [shape = 'bf16[2,18,18,128]{3,2,1,0:T(8,128)(2,1)}', space=vmem, size = 0x36000, scoped, tag = 'scratch operand']
  #allocation3 [shape = 'bf16[2,18,18,128]{3,2,1,0:T(8,128)(2,1)}', space=vmem, size = 0x36000, scoped, tag = 'scratch operand']
  %s0 = inlined_call_operand.vmem [shape: bf16[2,16,16,128], index: 0, kind: input, shape index: {}]
  %s1 = inlined_call_operand.vmem [shape: bf16[1152,256], index: 1, kind: input, shape index: {}]
  %s2 = inlined_call_operand.vmem [shape: f32[1,128], index: 2, kind: input, shape index: {}]
  %s3 = inlined_call_operand.vmem [shape: bf16[1152,128], index: 3, kind: input, shape index: {}]
  %s4 = inlined_call_operand.vmem [shape: f32[1,128], index: 4, kind: input, shape index: {}]
  %s5 = inlined_call_operand.vmem [shape: f32[1,128], index: 5, kind: input, shape index: {}]
  %s6 = inlined_call_operand.vmem [shape: bf16[2,16,16,128], index: 6, kind: output, shape index: {}]
  %s7 = sld [smem:[#allocation0]]
  $region34: #{basic_block_forward.1} parent=0
    _
  %s9 = ssub.s32 1, %s7
  %s10 = scalar_select 0, %s9, %s7
  // Predicated region
  $region2: #{basic_block_forward.1} parent=0 // pred_check
    _
  $region3: #{basic_block_forward.1} parent=0 // pred_check_branch
    %12 = sbr.rel (0) target = $region5
  $region4: #{basic_block_forward.1} parent=0 // pred_region
    _
  $region5: #{basic_block_forward.1} parent=0 // pred_fallthru
    _
  // Predicated region
  $region6: #{basic_block_forward.1} parent=0 // pred_check
    _
  $region7: #{basic_block_forward.1} parent=0 // pred_check_branch
    %14 = sbr.rel (0) target = $region9
  $region8: #{basic_block_forward.1} parent=0 // pred_region
    _
  $region9: #{basic_block_forward.1} parent=0 // pred_fallthru
    _
  // Predicated region
  $region10: #{basic_block_forward.1} parent=0 // pred_check
    _
  $region11: #{basic_block_forward.1} parent=0 // pred_check_branch
    %16 = sbr.rel (0) target = $region13
  $region12: #{basic_block_forward.1} parent=0 // pred_region
    _
  $region13: #{basic_block_forward.1} parent=0 // pred_fallthru
    _
  // Predicated region
  $region14: #{basic_block_forward.1} parent=0 // pred_check
    _
  $region15: #{basic_block_forward.1} parent=0 // pred_check_branch
    %18 = sbr.rel (0) target = $region17
  $region16: #{basic_block_forward.1} parent=0 // pred_region
    _
  $region17: #{basic_block_forward.1} parent=0 // pred_fallthru
    _
  // Predicated region
  $region18: #{basic_block_forward.1} parent=0 // pred_check
    _
  $region19: #{basic_block_forward.1} parent=0 // pred_check_branch
    %20 = sbr.rel (0) target = $region21
  $region20: #{basic_block_forward.1} parent=0 // pred_region
    _
  $region21: #{basic_block_forward.1} parent=0 // pred_fallthru
    _
  // Predicated region
  $region22: #{basic_block_forward.1} parent=0 // pred_check
    _
  $region23: #{basic_block_forward.1} parent=0 // pred_check_branch
    %22 = sbr.rel (0) target = $region25
  $region24: #{basic_block_forward.1} parent=0 // pred_region
    _
  $region25: #{basic_block_forward.1} parent=0 // pred_fallthru
    _
  %24 = vst [vmem:[#allocation2] sm:$0xf] 0
  %25 = vst [vmem:[#allocation2 + $0x4] sm:$0xf] 0
  %26 = vst [vmem:[#allocation2 + $0x8] sm:$0x1] 0
  %27 = vst [vmem:[#allocation2 + $0xd8] sm:$0xf] 0
  %28 = vst [vmem:[#allocation2 + $0xdc] sm:$0xf] 0
  %29 = vst [vmem:[#allocation2 + $0xe0] sm:$0x1] 0
  %s30 = scalar_lea.vmem [#allocation2], 204
  %31 = vst [vmem:[%s30] sm:$0xf] 0
  %32 = vst [vmem:[%s30 + $0x4] sm:$0xf] 0
  %33 = vst [vmem:[%s30 + $0x8] sm:$0x1] 0
  %34 = vst [vmem:[%s30 + $0xd8] sm:$0xf] 0
  %35 = vst [vmem:[%s30 + $0xdc] sm:$0xf] 0
  %36 = vst [vmem:[%s30 + $0xe0] sm:$0x1] 0
  %vm37 = vcmask 1040384
  %vm38 = vsmask.f32 256
  %vm39 = vmand %vm37, %vm38
  %v40 = vld [vmem:[#allocation2] sm:$0x1]
  %v41 = vsel %vm39, 0, %v40
  %42 = vst [vmem:[#allocation2] sm:$0x1] %v41
  %v43 = vld [vmem:[#allocation2 + $0xc] sm:$0x1]
  %v44 = vsel %vm39, 0, %v43
  %45 = vst [vmem:[#allocation2 + $0xc] sm:$0x1] %v44
  %v46 = vld [vmem:[#allocation2 + $0x18] sm:$0x1]
  %v47 = vsel %vm39, 0, %v46
  %48 = vst [vmem:[#allocation2 + $0x18] sm:$0x1] %v47
  %v49 = vld [vmem:[#allocation2 + $0x24] sm:$0x1]
  %v50 = vsel %vm39, 0, %v49
  %51 = vst [vmem:[#allocation2 + $0x24] sm:$0x1] %v50
  %v52 = vld [vmem:[#allocation2 + $0x30] sm:$0x1]
  %v53 = vsel %vm39, 0, %v52
  %54 = vst [vmem:[#allocation2 + $0x30] sm:$0x1] %v53
  %v55 = vld [vmem:[#allocation2 + $0x3c] sm:$0x1]
  %v56 = vsel %vm39, 0, %v55
  %57 = vst [vmem:[#allocation2 + $0x3c] sm:$0x1] %v56
  %v58 = vld [vmem:[#allocation2 + $0x48] sm:$0x1]
  %v59 = vsel %vm39, 0, %v58
  %60 = vst [vmem:[#allocation2 + $0x48] sm:$0x1] %v59
  %v61 = vld [vmem:[#allocation2 + $0x54] sm:$0x1]
  %v62 = vsel %vm39, 0, %v61
  %63 = vst [vmem:[#allocation2 + $0x54] sm:$0x1] %v62
  %v64 = vld [vmem:[#allocation2 + $0x60] sm:$0x1]
  %v65 = vsel %vm39, 0, %v64
  %66 = vst [vmem:[#allocation2 + $0x60] sm:$0x1] %v65
  %v67 = vld [vmem:[#allocation2 + $0x6c] sm:$0x1]
  %v68 = vsel %vm39, 0, %v67
  %69 = vst [vmem:[#allocation2 + $0x6c] sm:$0x1] %v68
  %v70 = vld [vmem:[#allocation2 + $0x78] sm:$0x1]
  %v71 = vsel %vm39, 0, %v70
  %72 = vst [vmem:[#allocation2 + $0x78] sm:$0x1] %v71
  %v73 = vld [vmem:[#allocation2 + $0x84] sm:$0x1]
  %v74 = vsel %vm39, 0, %v73
  %75 = vst [vmem:[#allocation2 + $0x84] sm:$0x1] %v74
  %v76 = vld [vmem:[#allocation2 + $0x90] sm:$0x1]
  %v77 = vsel %vm39, 0, %v76
  %78 = vst [vmem:[#allocation2 + $0x90] sm:$0x1] %v77
  %v79 = vld [vmem:[#allocation2 + $0x9c] sm:$0x1]
  %v80 = vsel %vm39, 0, %v79
  %81 = vst [vmem:[#allocation2 + $0x9c] sm:$0x1] %v80
  %v82 = vld [vmem:[#allocation2 + $0xa8] sm:$0x1]
  %v83 = vsel %vm39, 0, %v82
  %84 = vst [vmem:[#allocation2 + $0xa8] sm:$0x1] %v83
  %v85 = vld [vmem:[#allocation2 + $0xb4] sm:$0x1]
  %v86 = vsel %vm39, 0, %v85
  %87 = vst [vmem:[#allocation2 + $0xb4] sm:$0x1] %v86
  %v88 = vld [vmem:[#allocation2 + $0xc0] sm:$0x1]
  %v89 = vsel %vm39, 0, %v88
  %90 = vst [vmem:[#allocation2 + $0xc0] sm:$0x1] %v89
  %v91 = vld [vmem:[#allocation2 + $0xcc] sm:$0x1]
  %v92 = vsel %vm39, 0, %v91
  %93 = vst [vmem:[#allocation2 + $0xcc] sm:$0x1] %v92
  %v94 = vld [vmem:[#allocation2 + $0xd8] sm:$0x1]
  %v95 = vsel %vm39, 0, %v94
  %96 = vst [vmem:[#allocation2 + $0xd8] sm:$0x1] %v95
  %v97 = vld [vmem:[#allocation2 + $0xe4] sm:$0x1]
  %v98 = vsel %vm39, 0, %v97
  %99 = vst [vmem:[#allocation2 + $0xe4] sm:$0x1] %v98
  %v100 = vld [vmem:[#allocation2 + $0xf0] sm:$0x1]
  %v101 = vsel %vm39, 0, %v100
  %102 = vst [vmem:[#allocation2 + $0xf0] sm:$0x1] %v101
  %v103 = vld [vmem:[#allocation2 + $0xfc] sm:$0x1]
  %v104 = vsel %vm39, 0, %v103
  %105 = vst [vmem:[#allocation2 + $0xfc] sm:$0x1] %v104
  %v106 = vld [vmem:[#allocation2 + $0x108] sm:$0x1]
  %v107 = vsel %vm39, 0, %v106
  %108 = vst [vmem:[#allocation2 + $0x108] sm:$0x1] %v107
  %v109 = vld [vmem:[#allocation2 + $0x114] sm:$0x1]
  %v110 = vsel %vm39, 0, %v109
  %111 = vst [vmem:[#allocation2 + $0x114] sm:$0x1] %v110
  %v112 = vld [vmem:[#allocation2 + $0x120] sm:$0x1]
  %v113 = vsel %vm39, 0, %v112
  %114 = vst [vmem:[#allocation2 + $0x120] sm:$0x1] %v113
  %v115 = vld [vmem:[#allocation2 + $0x12c] sm:$0x1]
  %v116 = vsel %vm39, 0, %v115
  %117 = vst [vmem:[#allocation2 + $0x12c] sm:$0x1] %v116
  %v118 = vld [vmem:[#allocation2 + $0x138] sm:$0x1]
  %v119 = vsel %vm39, 0, %v118
  %120 = vst [vmem:[#allocation2 + $0x138] sm:$0x1] %v119
  %v121 = vld [vmem:[#allocation2 + $0x144] sm:$0x1]
  %v122 = vsel %vm39, 0, %v121
  %123 = vst [vmem:[#allocation2 + $0x144] sm:$0x1] %v122
  %v124 = vld [vmem:[#allocation2 + $0x150] sm:$0x1]
  %v125 = vsel %vm39, 0, %v124
  %126 = vst [vmem:[#allocation2 + $0x150] sm:$0x1] %v125
  %v127 = vld [vmem:[#allocation2 + $0x15c] sm:$0x1]
  %v128 = vsel %vm39, 0, %v127
  %129 = vst [vmem:[#allocation2 + $0x15c] sm:$0x1] %v128
  %v130 = vld [vmem:[#allocation2 + $0x168] sm:$0x1]
  %v131 = vsel %vm39, 0, %v130
  %132 = vst [vmem:[#allocation2 + $0x168] sm:$0x1] %v131
  %v133 = vld [vmem:[#allocation2 + $0x174] sm:$0x1]
  %v134 = vsel %vm39, 0, %v133
  %135 = vst [vmem:[#allocation2 + $0x174] sm:$0x1] %v134
  %v136 = vld [vmem:[#allocation2 + $0x180] sm:$0x1]
  %v137 = vsel %vm39, 0, %v136
  %138 = vst [vmem:[#allocation2 + $0x180] sm:$0x1] %v137
  %v139 = vld [vmem:[#allocation2 + $0x18c] sm:$0x1]
  %v140 = vsel %vm39, 0, %v139
  %141 = vst [vmem:[#allocation2 + $0x18c] sm:$0x1] %v140
  %v142 = vld [vmem:[#allocation2 + $0x198] sm:$0x1]
  %v143 = vsel %vm39, 0, %v142
  %144 = vst [vmem:[#allocation2 + $0x198] sm:$0x1] %v143
  %v145 = vld [vmem:[#allocation2 + $0x1a4] sm:$0x1]
  %v146 = vsel %vm39, 0, %v145
  %147 = vst [vmem:[#allocation2 + $0x1a4] sm:$0x1] %v146
  %vm148 = vsmask.f32 7938
  %vm149 = vmand %vm37, %vm148
  %v150 = vld [vmem:[#allocation2 + $0x8] sm:$0x1]
  %v151 = vsel %vm149, 0, %v150
  %152 = vst [vmem:[#allocation2 + $0x8] sm:$0x1] %v151
  %v153 = vld [vmem:[#allocation2 + $0x14] sm:$0x1]
  %v154 = vsel %vm149, 0, %v153
  %155 = vst [vmem:[#allocation2 + $0x14] sm:$0x1] %v154
  %v156 = vld [vmem:[#allocation2 + $0x20] sm:$0x1]
  %v157 = vsel %vm149, 0, %v156
  %158 = vst [vmem:[#allocation2 + $0x20] sm:$0x1] %v157
  %v159 = vld [vmem:[#allocation2 + $0x2c] sm:$0x1]
  %v160 = vsel %vm149, 0, %v159
  %161 = vst [vmem:[#allocation2 + $0x2c] sm:$0x1] %v160
  %v162 = vld [vmem:[#allocation2 + $0x38] sm:$0x1]
  %v163 = vsel %vm149, 0, %v162
  %164 = vst [vmem:[#allocation2 + $0x38] sm:$0x1] %v163
  %v165 = vld [vmem:[#allocation2 + $0x44] sm:$0x1]
  %v166 = vsel %vm149, 0, %v165
  %167 = vst [vmem:[#allocation2 + $0x44] sm:$0x1] %v166
  %v168 = vld [vmem:[#allocation2 + $0x50] sm:$0x1]
  %v169 = vsel %vm149, 0, %v168
  %170 = vst [vmem:[#allocation2 + $0x50] sm:$0x1] %v169
  %v171 = vld [vmem:[#allocation2 + $0x5c] sm:$0x1]
  %v172 = vsel %vm149, 0, %v171
  %173 = vst [vmem:[#allocation2 + $0x5c] sm:$0x1] %v172
  %v174 = vld [vmem:[#allocation2 + $0x68] sm:$0x1]
  %v175 = vsel %vm149, 0, %v174
  %176 = vst [vmem:[#allocation2 + $0x68] sm:$0x1] %v175
  %v177 = vld [vmem:[#allocation2 + $0x74] sm:$0x1]
  %v178 = vsel %vm149, 0, %v177
  %179 = vst [vmem:[#allocation2 + $0x74] sm:$0x1] %v178
  %v180 = vld [vmem:[#allocation2 + $0x80] sm:$0x1]
  %v181 = vsel %vm149, 0, %v180
  %182 = vst [vmem:[#allocation2 + $0x80] sm:$0x1] %v181
  %v183 = vld [vmem:[#allocation2 + $0x8c] sm:$0x1]
  %v184 = vsel %vm149, 0, %v183
  %185 = vst [vmem:[#allocation2 + $0x8c] sm:$0x1] %v184
  %v186 = vld [vmem:[#allocation2 + $0x98] sm:$0x1]
  %v187 = vsel %vm149, 0, %v186
  %188 = vst [vmem:[#allocation2 + $0x98] sm:$0x1] %v187
  %v189 = vld [vmem:[#allocation2 + $0xa4] sm:$0x1]
  %v190 = vsel %vm149, 0, %v189
  %191 = vst [vmem:[#allocation2 + $0xa4] sm:$0x1] %v190
  %v192 = vld [vmem:[#allocation2 + $0xb0] sm:$0x1]
  %v193 = vsel %vm149, 0, %v192
  %194 = vst [vmem:[#allocation2 + $0xb0] sm:$0x1] %v193
  %v195 = vld [vmem:[#allocation2 + $0xbc] sm:$0x1]
  %v196 = vsel %vm149, 0, %v195
  %197 = vst [vmem:[#allocation2 + $0xbc] sm:$0x1] %v196
  %v198 = vld [vmem:[#allocation2 + $0xc8] sm:$0x1]
  %v199 = vsel %vm149, 0, %v198
  %200 = vst [vmem:[#allocation2 + $0xc8] sm:$0x1] %v199
  %v201 = vld [vmem:[#allocation2 + $0xd4] sm:$0x1]
  %v202 = vsel %vm149, 0, %v201
  %203 = vst [vmem:[#allocation2 + $0xd4] sm:$0x1] %v202
  %v204 = vld [vmem:[#allocation2 + $0xe0] sm:$0x1]
  %v205 = vsel %vm149, 0, %v204
  %206 = vst [vmem:[#allocation2 + $0xe0] sm:$0x1] %v205
  %v207 = vld [vmem:[#allocation2 + $0xec] sm:$0x1]
  %v208 = vsel %vm149, 0, %v207
  %209 = vst [vmem:[#allocation2 + $0xec] sm:$0x1] %v208
  %v210 = vld [vmem:[#allocation2 + $0xf8] sm:$0x1]
  %v211 = vsel %vm149, 0, %v210
  %212 = vst [vmem:[#allocation2 + $0xf8] sm:$0x1] %v211
  %v213 = vld [vmem:[#allocation2 + $0x104] sm:$0x1]
  %v214 = vsel %vm149, 0, %v213
  %215 = vst [vmem:[#allocation2 + $0x104] sm:$0x1] %v214
  %v216 = vld [vmem:[#allocation2 + $0x110] sm:$0x1]
  %v217 = vsel %vm149, 0, %v216
  %218 = vst [vmem:[#allocation2 + $0x110] sm:$0x1] %v217
  %v219 = vld [vmem:[#allocation2 + $0x11c] sm:$0x1]
  %v220 = vsel %vm149, 0, %v219
  %221 = vst [vmem:[#allocation2 + $0x11c] sm:$0x1] %v220
  %v222 = vld [vmem:[#allocation2 + $0x128] sm:$0x1]
  %v223 = vsel %vm149, 0, %v222
  %224 = vst [vmem:[#allocation2 + $0x128] sm:$0x1] %v223
  %v225 = vld [vmem:[#allocation2 + $0x134] sm:$0x1]
  %v226 = vsel %vm149, 0, %v225
  %227 = vst [vmem:[#allocation2 + $0x134] sm:$0x1] %v226
  %v228 = vld [vmem:[#allocation2 + $0x140] sm:$0x1]
  %v229 = vsel %vm149, 0, %v228
  %230 = vst [vmem:[#allocation2 + $0x140] sm:$0x1] %v229
  %v231 = vld [vmem:[#allocation2 + $0x14c] sm:$0x1]
  %v232 = vsel %vm149, 0, %v231
  %233 = vst [vmem:[#allocation2 + $0x14c] sm:$0x1] %v232
  %v234 = vld [vmem:[#allocation2 + $0x158] sm:$0x1]
  %v235 = vsel %vm149, 0, %v234
  %236 = vst [vmem:[#allocation2 + $0x158] sm:$0x1] %v235
  %v237 = vld [vmem:[#allocation2 + $0x164] sm:$0x1]
  %v238 = vsel %vm149, 0, %v237
  %239 = vst [vmem:[#allocation2 + $0x164] sm:$0x1] %v238
  %v240 = vld [vmem:[#allocation2 + $0x170] sm:$0x1]
  %v241 = vsel %vm149, 0, %v240
  %242 = vst [vmem:[#allocation2 + $0x170] sm:$0x1] %v241
  %v243 = vld [vmem:[#allocation2 + $0x17c] sm:$0x1]
  %v244 = vsel %vm149, 0, %v243
  %245 = vst [vmem:[#allocation2 + $0x17c] sm:$0x1] %v244
  %v246 = vld [vmem:[#allocation2 + $0x188] sm:$0x1]
  %v247 = vsel %vm149, 0, %v246
  %248 = vst [vmem:[#allocation2 + $0x188] sm:$0x1] %v247
  %v249 = vld [vmem:[#allocation2 + $0x194] sm:$0x1]
  %v250 = vsel %vm149, 0, %v249
  %251 = vst [vmem:[#allocation2 + $0x194] sm:$0x1] %v250
  %v252 = vld [vmem:[#allocation2 + $0x1a0] sm:$0x1]
  %v253 = vsel %vm149, 0, %v252
  %254 = vst [vmem:[#allocation2 + $0x1a0] sm:$0x1] %v253
  %v255 = vld [vmem:[#allocation2 + $0x1ac] sm:$0x1]
  %v256 = vsel %vm149, 0, %v255
  %257 = vst [vmem:[#allocation2 + $0x1ac] sm:$0x1] %v256
  %258 = vst [vmem:[#allocation3] sm:$0xf] 0
  %259 = vst [vmem:[#allocation3 + $0x4] sm:$0xf] 0
  %260 = vst [vmem:[#allocation3 + $0x8] sm:$0x1] 0
  %261 = vst [vmem:[#allocation3 + $0xd8] sm:$0xf] 0
  %262 = vst [vmem:[#allocation3 + $0xdc] sm:$0xf] 0
  %263 = vst [vmem:[#allocation3 + $0xe0] sm:$0x1] 0
  %s264 = scalar_lea.vmem [#allocation3], 204
  %265 = vst [vmem:[%s264] sm:$0xf] 0
  %266 = vst [vmem:[%s264 + $0x4] sm:$0xf] 0
  %267 = vst [vmem:[%s264 + $0x8] sm:$0x1] 0
  %268 = vst [vmem:[%s264 + $0xd8] sm:$0xf] 0
  %269 = vst [vmem:[%s264 + $0xdc] sm:$0xf] 0
  %270 = vst [vmem:[%s264 + $0xe0] sm:$0x1] 0
  %v271 = vld [vmem:[#allocation3] sm:$0x1]
  %v272 = vsel %vm39, 0, %v271
  %273 = vst [vmem:[#allocation3] sm:$0x1] %v272
  %v274 = vld [vmem:[#allocation3 + $0xc] sm:$0x1]
  %v275 = vsel %vm39, 0, %v274
  %276 = vst [vmem:[#allocation3 + $0xc] sm:$0x1] %v275
  %v277 = vld [vmem:[#allocation3 + $0x18] sm:$0x1]
  %v278 = vsel %vm39, 0, %v277
  %279 = vst [vmem:[#allocation3 + $0x18] sm:$0x1] %v278
  %v280 = vld [vmem:[#allocation3 + $0x24] sm:$0x1]
  %v281 = vsel %vm39, 0, %v280
  %282 = vst [vmem:[#allocation3 + $0x24] sm:$0x1] %v281
  %v283 = vld [vmem:[#allocation3 + $0x30] sm:$0x1]
  %v284 = vsel %vm39, 0, %v283
  %285 = vst [vmem:[#allocation3 + $0x30] sm:$0x1] %v284
  %v286 = vld [vmem:[#allocation3 + $0x3c] sm:$0x1]
  %v287 = vsel %vm39, 0, %v286
  %288 = vst [vmem:[#allocation3 + $0x3c] sm:$0x1] %v287
  %v289 = vld [vmem:[#allocation3 + $0x48] sm:$0x1]
  %v290 = vsel %vm39, 0, %v289
  %291 = vst [vmem:[#allocation3 + $0x48] sm:$0x1] %v290
  %v292 = vld [vmem:[#allocation3 + $0x54] sm:$0x1]
  %v293 = vsel %vm39, 0, %v292
  %294 = vst [vmem:[#allocation3 + $0x54] sm:$0x1] %v293
  %v295 = vld [vmem:[#allocation3 + $0x60] sm:$0x1]
  %v296 = vsel %vm39, 0, %v295
  %297 = vst [vmem:[#allocation3 + $0x60] sm:$0x1] %v296
  %v298 = vld [vmem:[#allocation3 + $0x6c] sm:$0x1]
  %v299 = vsel %vm39, 0, %v298
  %300 = vst [vmem:[#allocation3 + $0x6c] sm:$0x1] %v299
  %v301 = vld [vmem:[#allocation3 + $0x78] sm:$0x1]
  %v302 = vsel %vm39, 0, %v301
  %303 = vst [vmem:[#allocation3 + $0x78] sm:$0x1] %v302
  %v304 = vld [vmem:[#allocation3 + $0x84] sm:$0x1]
  %v305 = vsel %vm39, 0, %v304
  %306 = vst [vmem:[#allocation3 + $0x84] sm:$0x1] %v305
  %v307 = vld [vmem:[#allocation3 + $0x90] sm:$0x1]
  %v308 = vsel %vm39, 0, %v307
  %309 = vst [vmem:[#allocation3 + $0x90] sm:$0x1] %v308
  %v310 = vld [vmem:[#allocation3 + $0x9c] sm:$0x1]
  %v311 = vsel %vm39, 0, %v310
  %312 = vst [vmem:[#allocation3 + $0x9c] sm:$0x1] %v311
  %v313 = vld [vmem:[#allocation3 + $0xa8] sm:$0x1]
  %v314 = vsel %vm39, 0, %v313
  %315 = vst [vmem:[#allocation3 + $0xa8] sm:$0x1] %v314
  %v316 = vld [vmem:[#allocation3 + $0xb4] sm:$0x1]
  %v317 = vsel %vm39, 0, %v316
  %318 = vst [vmem:[#allocation3 + $0xb4] sm:$0x1] %v317
  %v319 = vld [vmem:[#allocation3 + $0xc0] sm:$0x1]
  %v320 = vsel %vm39, 0, %v319
  %321 = vst [vmem:[#allocation3 + $0xc0] sm:$0x1] %v320
  %v322 = vld [vmem:[#allocation3 + $0xcc] sm:$0x1]
  %v323 = vsel %vm39, 0, %v322
  %324 = vst [vmem:[#allocation3 + $0xcc] sm:$0x1] %v323
  %v325 = vld [vmem:[#allocation3 + $0xd8] sm:$0x1]
  %v326 = vsel %vm39, 0, %v325
  %327 = vst [vmem:[#allocation3 + $0xd8] sm:$0x1] %v326
  %v328 = vld [vmem:[#allocation3 + $0xe4] sm:$0x1]
  %v329 = vsel %vm39, 0, %v328
  %330 = vst [vmem:[#allocation3 + $0xe4] sm:$0x1] %v329
  %v331 = vld [vmem:[#allocation3 + $0xf0] sm:$0x1]
  %v332 = vsel %vm39, 0, %v331
  %333 = vst [vmem:[#allocation3 + $0xf0] sm:$0x1] %v332
  %v334 = vld [vmem:[#allocation3 + $0xfc] sm:$0x1]
  %v335 = vsel %vm39, 0, %v334
  %336 = vst [vmem:[#allocation3 + $0xfc] sm:$0x1] %v335
  %v337 = vld [vmem:[#allocation3 + $0x108] sm:$0x1]
  %v338 = vsel %vm39, 0, %v337
  %339 = vst [vmem:[#allocation3 + $0x108] sm:$0x1] %v338
  %v340 = vld [vmem:[#allocation3 + $0x114] sm:$0x1]
  %v341 = vsel %vm39, 0, %v340
  %342 = vst [vmem:[#allocation3 + $0x114] sm:$0x1] %v341
  %v343 = vld [vmem:[#allocation3 + $0x120] sm:$0x1]
  %v344 = vsel %vm39, 0, %v343
  %345 = vst [vmem:[#allocation3 + $0x120] sm:$0x1] %v344
  %v346 = vld [vmem:[#allocation3 + $0x12c] sm:$0x1]
  %v347 = vsel %vm39, 0, %v346
  %348 = vst [vmem:[#allocation3 + $0x12c] sm:$0x1] %v347
  %v349 = vld [vmem:[#allocation3 + $0x138] sm:$0x1]
  %v350 = vsel %vm39, 0, %v349
  %351 = vst [vmem:[#allocation3 + $0x138] sm:$0x1] %v350
  %v352 = vld [vmem:[#allocation3 + $0x144] sm:$0x1]
  %v353 = vsel %vm39, 0, %v352
  %354 = vst [vmem:[#allocation3 + $0x144] sm:$0x1] %v353
  %v355 = vld [vmem:[#allocation3 + $0x150] sm:$0x1]
  %v356 = vsel %vm39, 0, %v355
  %357 = vst [vmem:[#allocation3 + $0x150] sm:$0x1] %v356
  %v358 = vld [vmem:[#allocation3 + $0x15c] sm:$0x1]
  %v359 = vsel %vm39, 0, %v358
  %360 = vst [vmem:[#allocation3 + $0x15c] sm:$0x1] %v359
  %v361 = vld [vmem:[#allocation3 + $0x168] sm:$0x1]
  %v362 = vsel %vm39, 0, %v361
  %363 = vst [vmem:[#allocation3 + $0x168] sm:$0x1] %v362
  %v364 = vld [vmem:[#allocation3 + $0x174] sm:$0x1]
  %v365 = vsel %vm39, 0, %v364
  %366 = vst [vmem:[#allocation3 + $0x174] sm:$0x1] %v365
  %v367 = vld [vmem:[#allocation3 + $0x180] sm:$0x1]
  %v368 = vsel %vm39, 0, %v367
  %369 = vst [vmem:[#allocation3 + $0x180] sm:$0x1] %v368
  %v370 = vld [vmem:[#allocation3 + $0x18c] sm:$0x1]
  %v371 = vsel %vm39, 0, %v370
  %372 = vst [vmem:[#allocation3 + $0x18c] sm:$0x1] %v371
  %v373 = vld [vmem:[#allocation3 + $0x198] sm:$0x1]
  %v374 = vsel %vm39, 0, %v373
  %375 = vst [vmem:[#allocation3 + $0x198] sm:$0x1] %v374
  %v376 = vld [vmem:[#allocation3 + $0x1a4] sm:$0x1]
  %v377 = vsel %vm39, 0, %v376
  %378 = vst [vmem:[#allocation3 + $0x1a4] sm:$0x1] %v377
  %v379 = vld [vmem:[#allocation3 + $0x8] sm:$0x1]
  %v380 = vsel %vm149, 0, %v379
  %381 = vst [vmem:[#allocation3 + $0x8] sm:$0x1] %v380
  %v382 = vld [vmem:[#allocation3 + $0x14] sm:$0x1]
  %v383 = vsel %vm149, 0, %v382
  %384 = vst [vmem:[#allocation3 + $0x14] sm:$0x1] %v383
  %v385 = vld [vmem:[#allocation3 + $0x20] sm:$0x1]
  %v386 = vsel %vm149, 0, %v385
  %387 = vst [vmem:[#allocation3 + $0x20] sm:$0x1] %v386
  %v388 = vld [vmem:[#allocation3 + $0x2c] sm:$0x1]
  %v389 = vsel %vm149, 0, %v388
  %390 = vst [vmem:[#allocation3 + $0x2c] sm:$0x1] %v389
  %v391 = vld [vmem:[#allocation3 + $0x38] sm:$0x1]
  %v392 = vsel %vm149, 0, %v391
  %393 = vst [vmem:[#allocation3 + $0x38] sm:$0x1] %v392
  %v394 = vld [vmem:[#allocation3 + $0x44] sm:$0x1]
  %v395 = vsel %vm149, 0, %v394
  %396 = vst [vmem:[#allocation3 + $0x44] sm:$0x1] %v395
  %v397 = vld [vmem:[#allocation3 + $0x50] sm:$0x1]
  %v398 = vsel %vm149, 0, %v397
  %399 = vst [vmem:[#allocation3 + $0x50] sm:$0x1] %v398
  %v400 = vld [vmem:[#allocation3 + $0x5c] sm:$0x1]
  %v401 = vsel %vm149, 0, %v400
  %402 = vst [vmem:[#allocation3 + $0x5c] sm:$0x1] %v401
  %v403 = vld [vmem:[#allocation3 + $0x68] sm:$0x1]
  %v404 = vsel %vm149, 0, %v403
  %405 = vst [vmem:[#allocation3 + $0x68] sm:$0x1] %v404
  %v406 = vld [vmem:[#allocation3 + $0x74] sm:$0x1]
  %v407 = vsel %vm149, 0, %v406
  %408 = vst [vmem:[#allocation3 + $0x74] sm:$0x1] %v407
  %v409 = vld [vmem:[#allocation3 + $0x80] sm:$0x1]
  %v410 = vsel %vm149, 0, %v409
  %411 = vst [vmem:[#allocation3 + $0x80] sm:$0x1] %v410
  %v412 = vld [vmem:[#allocation3 + $0x8c] sm:$0x1]
  %v413 = vsel %vm149, 0, %v412
  %414 = vst [vmem:[#allocation3 + $0x8c] sm:$0x1] %v413
  %v415 = vld [vmem:[#allocation3 + $0x98] sm:$0x1]
  %v416 = vsel %vm149, 0, %v415
  %417 = vst [vmem:[#allocation3 + $0x98] sm:$0x1] %v416
  %v418 = vld [vmem:[#allocation3 + $0xa4] sm:$0x1]
  %v419 = vsel %vm149, 0, %v418
  %420 = vst [vmem:[#allocation3 + $0xa4] sm:$0x1] %v419
  %v421 = vld [vmem:[#allocation3 + $0xb0] sm:$0x1]
  %v422 = vsel %vm149, 0, %v421
  %423 = vst [vmem:[#allocation3 + $0xb0] sm:$0x1] %v422
  %v424 = vld [vmem:[#allocation3 + $0xbc] sm:$0x1]
  %v425 = vsel %vm149, 0, %v424
  %426 = vst [vmem:[#allocation3 + $0xbc] sm:$0x1] %v425
  %v427 = vld [vmem:[#allocation3 + $0xc8] sm:$0x1]
  %v428 = vsel %vm149, 0, %v427
  %429 = vst [vmem:[#allocation3 + $0xc8] sm:$0x1] %v428
  %v430 = vld [vmem:[#allocation3 + $0xd4] sm:$0x1]
  %v431 = vsel %vm149, 0, %v430
  %432 = vst [vmem:[#allocation3 + $0xd4] sm:$0x1] %v431
  %v433 = vld [vmem:[#allocation3 + $0xe0] sm:$0x1]
  %v434 = vsel %vm149, 0, %v433
  %435 = vst [vmem:[#allocation3 + $0xe0] sm:$0x1] %v434
  %v436 = vld [vmem:[#allocation3 + $0xec] sm:$0x1]
  %v437 = vsel %vm149, 0, %v436
  %438 = vst [vmem:[#allocation3 + $0xec] sm:$0x1] %v437
  %v439 = vld [vmem:[#allocation3 + $0xf8] sm:$0x1]
  %v440 = vsel %vm149, 0, %v439
  %441 = vst [vmem:[#allocation3 + $0xf8] sm:$0x1] %v440
  %v442 = vld [vmem:[#allocation3 + $0x104] sm:$0x1]
  %v443 = vsel %vm149, 0, %v442
  %444 = vst [vmem:[#allocation3 + $0x104] sm:$0x1] %v443
  %v445 = vld [vmem:[#allocation3 + $0x110] sm:$0x1]
  %v446 = vsel %vm149, 0, %v445
  %447 = vst [vmem:[#allocation3 + $0x110] sm:$0x1] %v446
  %v448 = vld [vmem:[#allocation3 + $0x11c] sm:$0x1]
  %v449 = vsel %vm149, 0, %v448
  %450 = vst [vmem:[#allocation3 + $0x11c] sm:$0x1] %v449
  %v451 = vld [vmem:[#allocation3 + $0x128] sm:$0x1]
  %v452 = vsel %vm149, 0, %v451
  %453 = vst [vmem:[#allocation3 + $0x128] sm:$0x1] %v452
  %v454 = vld [vmem:[#allocation3 + $0x134] sm:$0x1]
  %v455 = vsel %vm149, 0, %v454
  %456 = vst [vmem:[#allocation3 + $0x134] sm:$0x1] %v455
  %v457 = vld [vmem:[#allocation3 + $0x140] sm:$0x1]
  %v458 = vsel %vm149, 0, %v457
  %459 = vst [vmem:[#allocation3 + $0x140] sm:$0x1] %v458
  %v460 = vld [vmem:[#allocation3 + $0x14c] sm:$0x1]
  %v461 = vsel %vm149, 0, %v460
  %462 = vst [vmem:[#allocation3 + $0x14c] sm:$0x1] %v461
  %v463 = vld [vmem:[#allocation3 + $0x158] sm:$0x1]
  %v464 = vsel %vm149, 0, %v463
  %465 = vst [vmem:[#allocation3 + $0x158] sm:$0x1] %v464
  %v466 = vld [vmem:[#allocation3 + $0x164] sm:$0x1]
  %v467 = vsel %vm149, 0, %v466
  %468 = vst [vmem:[#allocation3 + $0x164] sm:$0x1] %v467
  %v469 = vld [vmem:[#allocation3 + $0x170] sm:$0x1]
  %v470 = vsel %vm149, 0, %v469
  %471 = vst [vmem:[#allocation3 + $0x170] sm:$0x1] %v470
  %v472 = vld [vmem:[#allocation3 + $0x17c] sm:$0x1]
  %v473 = vsel %vm149, 0, %v472
  %474 = vst [vmem:[#allocation3 + $0x17c] sm:$0x1] %v473
  %v475 = vld [vmem:[#allocation3 + $0x188] sm:$0x1]
  %v476 = vsel %vm149, 0, %v475
  %477 = vst [vmem:[#allocation3 + $0x188] sm:$0x1] %v476
  %v478 = vld [vmem:[#allocation3 + $0x194] sm:$0x1]
  %v479 = vsel %vm149, 0, %v478
  %480 = vst [vmem:[#allocation3 + $0x194] sm:$0x1] %v479
  %v481 = vld [vmem:[#allocation3 + $0x1a0] sm:$0x1]
  %v482 = vsel %vm149, 0, %v481
  %483 = vst [vmem:[#allocation3 + $0x1a0] sm:$0x1] %v482
  %v484 = vld [vmem:[#allocation3 + $0x1ac] sm:$0x1]
  %v485 = vsel %vm149, 0, %v484
  %486 = vst [vmem:[#allocation3 + $0x1ac] sm:$0x1] %v485
  %v487 = vld [vmem:[%s0] sm:$0xf]
  %v488 = vld [vmem:[%s0 + $0x4] sm:$0xf]
  %v489 = vld [vmem:[%s0 + $0x8] sm:$0xf]
  %v490 = vld [vmem:[%s0 + $0xc] sm:$0xf]
  %v491 = vld [vmem:[%s0 + $0x10] sm:$0xf]
  %v492 = vld [vmem:[%s0 + $0x14] sm:$0xf]
  %v493 = vld [vmem:[%s0 + $0x18] sm:$0xf]
  %v494 = vld [vmem:[%s0 + $0x1c] sm:$0xf]
  %v495 = vld [vmem:[%s0 + $0x20] sm:$0xf]
  %v496 = vld [vmem:[%s0 + $0x24] sm:$0xf]
  %v497 = vld [vmem:[%s0 + $0x28] sm:$0xf]
  %v498 = vld [vmem:[%s0 + $0x2c] sm:$0xf]
  %v499 = vld [vmem:[%s0 + $0x30] sm:$0xf]
  %v500 = vld [vmem:[%s0 + $0x34] sm:$0xf]
  %v501 = vld [vmem:[%s0 + $0x38] sm:$0xf]
  %v502 = vld [vmem:[%s0 + $0x3c] sm:$0xf]
  %v503 = vld [vmem:[%s0 + $0x40] sm:$0xf]
  %v504 = vld [vmem:[%s0 + $0x44] sm:$0xf]
  %v505 = vld [vmem:[%s0 + $0x48] sm:$0xf]
  %v506 = vld [vmem:[%s0 + $0x4c] sm:$0xf]
  %v507 = vld [vmem:[%s0 + $0x50] sm:$0xf]
  %v508 = vld [vmem:[%s0 + $0x54] sm:$0xf]
  %v509 = vld [vmem:[%s0 + $0x58] sm:$0xf]
  %v510 = vld [vmem:[%s0 + $0x5c] sm:$0xf]
  %v511 = vld [vmem:[%s0 + $0x60] sm:$0xf]
  %v512 = vld [vmem:[%s0 + $0x64] sm:$0xf]
  %v513 = vld [vmem:[%s0 + $0x68] sm:$0xf]
  %v514 = vld [vmem:[%s0 + $0x6c] sm:$0xf]
  %v515 = vld [vmem:[%s0 + $0x70] sm:$0xf]
  %v516 = vld [vmem:[%s0 + $0x74] sm:$0xf]
  %v517 = vld [vmem:[%s0 + $0x78] sm:$0xf]
  %v518 = vld [vmem:[%s0 + $0x7c] sm:$0xf]
  %v519 = vld [vmem:[%s0 + $0x80] sm:$0xf]
  %v520 = vld [vmem:[%s0 + $0x84] sm:$0xf]
  %v521 = vld [vmem:[%s0 + $0x88] sm:$0xf]
  %v522 = vld [vmem:[%s0 + $0x8c] sm:$0xf]
  %v523 = vld [vmem:[%s0 + $0x90] sm:$0xf]
  %v524 = vld [vmem:[%s0 + $0x94] sm:$0xf]
  %v525 = vld [vmem:[%s0 + $0x98] sm:$0xf]
  %v526 = vld [vmem:[%s0 + $0x9c] sm:$0xf]
  %v527 = vld [vmem:[%s0 + $0xa0] sm:$0xf]
  %v528 = vld [vmem:[%s0 + $0xa4] sm:$0xf]
  %v529 = vld [vmem:[%s0 + $0xa8] sm:$0xf]
  %v530 = vld [vmem:[%s0 + $0xac] sm:$0xf]
  %v531 = vld [vmem:[%s0 + $0xb0] sm:$0xf]
  %v532 = vld [vmem:[%s0 + $0xb4] sm:$0xf]
  %v533 = vld [vmem:[%s0 + $0xb8] sm:$0xf]
  %v534 = vld [vmem:[%s0 + $0xbc] sm:$0xf]
  %v535 = vld [vmem:[%s0 + $0xc0] sm:$0xf]
  %v536 = vld [vmem:[%s0 + $0xc4] sm:$0xf]
  %v537 = vld [vmem:[%s0 + $0xc8] sm:$0xf]
  %v538 = vld [vmem:[%s0 + $0xcc] sm:$0xf]
  %v539 = vld [vmem:[%s0 + $0xd0] sm:$0xf]
  %v540 = vld [vmem:[%s0 + $0xd4] sm:$0xf]
  %v541 = vld [vmem:[%s0 + $0xd8] sm:$0xf]
  %v542 = vld [vmem:[%s0 + $0xdc] sm:$0xf]
  %v543 = vld [vmem:[%s0 + $0xe0] sm:$0xf]
  %v544 = vld [vmem:[%s0 + $0xe4] sm:$0xf]
  %v545 = vld [vmem:[%s0 + $0xe8] sm:$0xf]
  %v546 = vld [vmem:[%s0 + $0xec] sm:$0xf]
  %v547 = vld [vmem:[%s0 + $0xf0] sm:$0xf]
  %v548 = vld [vmem:[%s0 + $0xf4] sm:$0xf]
  %v549 = vld [vmem:[%s0 + $0xf8] sm:$0xf]
  %v550 = vld [vmem:[%s0 + $0xfc] sm:$0xf]
  %vm551 = vsmask.f32 4368
  %vm552 = vmor %vm38, %vm551
  %v554 = vshrl.u32 %v487, 16
  %v556 = vrot.slane %v554, 7
  %v557 = vshll.u32 %v487, 16
  %v559 = vor.u32 %v556, %v557
  %v560 = vrot.slane %v556, 4
  %v562 = vshrl.u32 %v488, 16
  %v564 = vrot.slane %v562, 7
  %v565 = vshll.u32 %v488, 16
  %v567 = vor.u32 %v564, %v565
  %v568 = vsel %vm552, %v560, %v567
  %v569 = vrot.slane %v564, 4
  %v571 = vshrl.u32 %v489, 16
  %v573 = vrot.slane %v571, 7
  %v574 = vshll.u32 %v489, 16
  %v576 = vor.u32 %v573, %v574
  %v577 = vrot.slane %v573, 4
  %v579 = vshrl.u32 %v490, 16
  %v581 = vrot.slane %v579, 7
  %v582 = vshll.u32 %v490, 16
  %v584 = vor.u32 %v581, %v582
  %v585 = vsel %vm552, %v577, %v584
  %v586 = vrot.slane %v581, 4
  %v588 = vshrl.u32 %v491, 16
  %v590 = vrot.slane %v588, 7
  %v591 = vshll.u32 %v491, 16
  %v593 = vor.u32 %v590, %v591
  %v594 = vrot.slane %v590, 4
  %v596 = vshrl.u32 %v492, 16
  %v598 = vrot.slane %v596, 7
  %v599 = vshll.u32 %v492, 16
  %v601 = vor.u32 %v598, %v599
  %v602 = vsel %vm552, %v594, %v601
  %v603 = vrot.slane %v598, 4
  %v605 = vshrl.u32 %v493, 16
  %v607 = vrot.slane %v605, 7
  %v608 = vshll.u32 %v493, 16
  %v610 = vor.u32 %v607, %v608
  %v611 = vrot.slane %v607, 4
  %v613 = vshrl.u32 %v494, 16
  %v615 = vrot.slane %v613, 7
  %v616 = vshll.u32 %v494, 16
  %v618 = vor.u32 %v615, %v616
  %v619 = vsel %vm552, %v611, %v618
  %v620 = vrot.slane %v615, 4
  %v622 = vshrl.u32 %v495, 16
  %v624 = vrot.slane %v622, 7
  %v625 = vshll.u32 %v495, 16
  %v627 = vor.u32 %v624, %v625
  %v628 = vrot.slane %v624, 4
  %v630 = vshrl.u32 %v496, 16
  %v632 = vrot.slane %v630, 7
  %v633 = vshll.u32 %v496, 16
  %v635 = vor.u32 %v632, %v633
  %v636 = vsel %vm552, %v628, %v635
  %v637 = vrot.slane %v632, 4
  %v639 = vshrl.u32 %v497, 16
  %v641 = vrot.slane %v639, 7
  %v642 = vshll.u32 %v497, 16
  %v644 = vor.u32 %v641, %v642
  %v645 = vrot.slane %v641, 4
  %v647 = vshrl.u32 %v498, 16
  %v649 = vrot.slane %v647, 7
  %v650 = vshll.u32 %v498, 16
  %v652 = vor.u32 %v649, %v650
  %v653 = vsel %vm552, %v645, %v652
  %v654 = vrot.slane %v649, 4
  %v656 = vshrl.u32 %v499, 16
  %v658 = vrot.slane %v656, 7
  %v659 = vshll.u32 %v499, 16
  %v661 = vor.u32 %v658, %v659
  %v662 = vrot.slane %v658, 4
  %v664 = vshrl.u32 %v500, 16
  %v666 = vrot.slane %v664, 7
  %v667 = vshll.u32 %v500, 16
  %v669 = vor.u32 %v666, %v667
  %v670 = vsel %vm552, %v662, %v669
  %v671 = vrot.slane %v666, 4
  %v673 = vshrl.u32 %v501, 16
  %v675 = vrot.slane %v673, 7
  %v676 = vshll.u32 %v501, 16
  %v678 = vor.u32 %v675, %v676
  %v679 = vrot.slane %v675, 4
  %v681 = vshrl.u32 %v502, 16
  %v683 = vrot.slane %v681, 7
  %v684 = vshll.u32 %v502, 16
  %v686 = vor.u32 %v683, %v684
  %v687 = vsel %vm552, %v679, %v686
  %v688 = vrot.slane %v683, 4
  %v690 = vshrl.u32 %v503, 16
  %v692 = vrot.slane %v690, 7
  %v693 = vshll.u32 %v503, 16
  %v695 = vor.u32 %v692, %v693
  %v696 = vrot.slane %v692, 4
  %v698 = vshrl.u32 %v504, 16
  %v700 = vrot.slane %v698, 7
  %v701 = vshll.u32 %v504, 16
  %v703 = vor.u32 %v700, %v701
  %v704 = vsel %vm552, %v696, %v703
  %v705 = vrot.slane %v700, 4
  %v707 = vshrl.u32 %v505, 16
  %v709 = vrot.slane %v707, 7
  %v710 = vshll.u32 %v505, 16
  %v712 = vor.u32 %v709, %v710
  %v713 = vrot.slane %v709, 4
  %v715 = vshrl.u32 %v506, 16
  %v717 = vrot.slane %v715, 7
  %v718 = vshll.u32 %v506, 16
  %v720 = vor.u32 %v717, %v718
  %v721 = vsel %vm552, %v713, %v720
  %v722 = vrot.slane %v717, 4
  %v724 = vshrl.u32 %v507, 16
  %v726 = vrot.slane %v724, 7
  %v727 = vshll.u32 %v507, 16
  %v729 = vor.u32 %v726, %v727
  %v730 = vrot.slane %v726, 4
  %v732 = vshrl.u32 %v508, 16
  %v734 = vrot.slane %v732, 7
  %v735 = vshll.u32 %v508, 16
  %v737 = vor.u32 %v734, %v735
  %v738 = vsel %vm552, %v730, %v737
  %v739 = vrot.slane %v734, 4
  %v741 = vshrl.u32 %v509, 16
  %v743 = vrot.slane %v741, 7
  %v744 = vshll.u32 %v509, 16
  %v746 = vor.u32 %v743, %v744
  %v747 = vrot.slane %v743, 4
  %v749 = vshrl.u32 %v510, 16
  %v751 = vrot.slane %v749, 7
  %v752 = vshll.u32 %v510, 16
  %v754 = vor.u32 %v751, %v752
  %v755 = vsel %vm552, %v747, %v754
  %v756 = vrot.slane %v751, 4
  %v758 = vshrl.u32 %v511, 16
  %v760 = vrot.slane %v758, 7
  %v761 = vshll.u32 %v511, 16
  %v763 = vor.u32 %v760, %v761
  %v764 = vrot.slane %v760, 4
  %v766 = vshrl.u32 %v512, 16
  %v768 = vrot.slane %v766, 7
  %v769 = vshll.u32 %v512, 16
  %v771 = vor.u32 %v768, %v769
  %v772 = vsel %vm552, %v764, %v771
  %v773 = vrot.slane %v768, 4
  %v775 = vshrl.u32 %v513, 16
  %v777 = vrot.slane %v775, 7
  %v778 = vshll.u32 %v513, 16
  %v780 = vor.u32 %v777, %v778
  %v781 = vrot.slane %v777, 4
  %v783 = vshrl.u32 %v514, 16
  %v785 = vrot.slane %v783, 7
  %v786 = vshll.u32 %v514, 16
  %v788 = vor.u32 %v785, %v786
  %v789 = vsel %vm552, %v781, %v788
  %v790 = vrot.slane %v785, 4
  %v792 = vshrl.u32 %v515, 16
  %v794 = vrot.slane %v792, 7
  %v795 = vshll.u32 %v515, 16
  %v797 = vor.u32 %v794, %v795
  %v798 = vrot.slane %v794, 4
  %v800 = vshrl.u32 %v516, 16
  %v802 = vrot.slane %v800, 7
  %v803 = vshll.u32 %v516, 16
  %v805 = vor.u32 %v802, %v803
  %v806 = vsel %vm552, %v798, %v805
  %v807 = vrot.slane %v802, 4
  %v809 = vshrl.u32 %v517, 16
  %v811 = vrot.slane %v809, 7
  %v812 = vshll.u32 %v517, 16
  %v814 = vor.u32 %v811, %v812
  %v815 = vrot.slane %v811, 4
  %v817 = vshrl.u32 %v518, 16
  %v819 = vrot.slane %v817, 7
  %v820 = vshll.u32 %v518, 16
  %v822 = vor.u32 %v819, %v820
  %v823 = vsel %vm552, %v815, %v822
  %v824 = vrot.slane %v819, 4
  %v826 = vshrl.u32 %v519, 16
  %v828 = vrot.slane %v826, 7
  %v829 = vshll.u32 %v519, 16
  %v831 = vor.u32 %v828, %v829
  %v832 = vrot.slane %v828, 4
  %v834 = vshrl.u32 %v520, 16
  %v836 = vrot.slane %v834, 7
  %v837 = vshll.u32 %v520, 16
  %v839 = vor.u32 %v836, %v837
  %v840 = vsel %vm552, %v832, %v839
  %v841 = vrot.slane %v836, 4
  %v843 = vshrl.u32 %v521, 16
  %v845 = vrot.slane %v843, 7
  %v846 = vshll.u32 %v521, 16
  %v848 = vor.u32 %v845, %v846
  %v849 = vrot.slane %v845, 4
  %v851 = vshrl.u32 %v522, 16
  %v853 = vrot.slane %v851, 7
  %v854 = vshll.u32 %v522, 16
  %v856 = vor.u32 %v853, %v854
  %v857 = vsel %vm552, %v849, %v856
  %v858 = vrot.slane %v853, 4
  %v860 = vshrl.u32 %v523, 16
  %v862 = vrot.slane %v860, 7
  %v863 = vshll.u32 %v523, 16
  %v865 = vor.u32 %v862, %v863
  %v866 = vrot.slane %v862, 4
  %v868 = vshrl.u32 %v524, 16
  %v870 = vrot.slane %v868, 7
  %v871 = vshll.u32 %v524, 16
  %v873 = vor.u32 %v870, %v871
  %v874 = vsel %vm552, %v866, %v873
  %v875 = vrot.slane %v870, 4
  %v877 = vshrl.u32 %v525, 16
  %v879 = vrot.slane %v877, 7
  %v880 = vshll.u32 %v525, 16
  %v882 = vor.u32 %v879, %v880
  %v883 = vrot.slane %v879, 4
  %v885 = vshrl.u32 %v526, 16
  %v887 = vrot.slane %v885, 7
  %v888 = vshll.u32 %v526, 16
  %v890 = vor.u32 %v887, %v888
  %v891 = vsel %vm552, %v883, %v890
  %v892 = vrot.slane %v887, 4
  %v894 = vshrl.u32 %v527, 16
  %v896 = vrot.slane %v894, 7
  %v897 = vshll.u32 %v527, 16
  %v899 = vor.u32 %v896, %v897
  %v900 = vrot.slane %v896, 4
  %v902 = vshrl.u32 %v528, 16
  %v904 = vrot.slane %v902, 7
  %v905 = vshll.u32 %v528, 16
  %v907 = vor.u32 %v904, %v905
  %v908 = vsel %vm552, %v900, %v907
  %v909 = vrot.slane %v904, 4
  %v911 = vshrl.u32 %v529, 16
  %v913 = vrot.slane %v911, 7
  %v914 = vshll.u32 %v529, 16
  %v916 = vor.u32 %v913, %v914
  %v917 = vrot.slane %v913, 4
  %v919 = vshrl.u32 %v530, 16
  %v921 = vrot.slane %v919, 7
  %v922 = vshll.u32 %v530, 16
  %v924 = vor.u32 %v921, %v922
  %v925 = vsel %vm552, %v917, %v924
  %v926 = vrot.slane %v921, 4
  %v928 = vshrl.u32 %v531, 16
  %v930 = vrot.slane %v928, 7
  %v931 = vshll.u32 %v531, 16
  %v933 = vor.u32 %v930, %v931
  %v934 = vrot.slane %v930, 4
  %v936 = vshrl.u32 %v532, 16
  %v938 = vrot.slane %v936, 7
  %v939 = vshll.u32 %v532, 16
  %v941 = vor.u32 %v938, %v939
  %v942 = vsel %vm552, %v934, %v941
  %v943 = vrot.slane %v938, 4
  %v945 = vshrl.u32 %v533, 16
  %v947 = vrot.slane %v945, 7
  %v948 = vshll.u32 %v533, 16
  %v950 = vor.u32 %v947, %v948
  %v951 = vrot.slane %v947, 4
  %v953 = vshrl.u32 %v534, 16
  %v955 = vrot.slane %v953, 7
  %v956 = vshll.u32 %v534, 16
  %v958 = vor.u32 %v955, %v956
  %v959 = vsel %vm552, %v951, %v958
  %v960 = vrot.slane %v955, 4
  %v962 = vshrl.u32 %v535, 16
  %v964 = vrot.slane %v962, 7
  %v965 = vshll.u32 %v535, 16
  %v967 = vor.u32 %v964, %v965
  %v968 = vrot.slane %v964, 4
  %v970 = vshrl.u32 %v536, 16
  %v972 = vrot.slane %v970, 7
  %v973 = vshll.u32 %v536, 16
  %v975 = vor.u32 %v972, %v973
  %v976 = vsel %vm552, %v968, %v975
  %v977 = vrot.slane %v972, 4
  %v979 = vshrl.u32 %v537, 16
  %v981 = vrot.slane %v979, 7
  %v982 = vshll.u32 %v537, 16
  %v984 = vor.u32 %v981, %v982
  %v985 = vrot.slane %v981, 4
  %v987 = vshrl.u32 %v538, 16
  %v989 = vrot.slane %v987, 7
  %v990 = vshll.u32 %v538, 16
  %v992 = vor.u32 %v989, %v990
  %v993 = vsel %vm552, %v985, %v992
  %v994 = vrot.slane %v989, 4
  %v996 = vshrl.u32 %v539, 16
  %v998 = vrot.slane %v996, 7
  %v999 = vshll.u32 %v539, 16
  %v1001 = vor.u32 %v998, %v999
  %v1002 = vrot.slane %v998, 4
  %v1004 = vshrl.u32 %v540, 16
  %v1006 = vrot.slane %v1004, 7
  %v1007 = vshll.u32 %v540, 16
  %v1009 = vor.u32 %v1006, %v1007
  %v1010 = vsel %vm552, %v1002, %v1009
  %v1011 = vrot.slane %v1006, 4
  %v1013 = vshrl.u32 %v541, 16
  %v1015 = vrot.slane %v1013, 7
  %v1016 = vshll.u32 %v541, 16
  %v1018 = vor.u32 %v1015, %v1016
  %v1019 = vrot.slane %v1015, 4
  %v1021 = vshrl.u32 %v542, 16
  %v1023 = vrot.slane %v1021, 7
  %v1024 = vshll.u32 %v542, 16
  %v1026 = vor.u32 %v1023, %v1024
  %v1027 = vsel %vm552, %v1019, %v1026
  %v1028 = vrot.slane %v1023, 4
  %v1030 = vshrl.u32 %v543, 16
  %v1032 = vrot.slane %v1030, 7
  %v1033 = vshll.u32 %v543, 16
  %v1035 = vor.u32 %v1032, %v1033
  %v1036 = vrot.slane %v1032, 4
  %v1038 = vshrl.u32 %v544, 16
  %v1040 = vrot.slane %v1038, 7
  %v1041 = vshll.u32 %v544, 16
  %v1043 = vor.u32 %v1040, %v1041
  %v1044 = vsel %vm552, %v1036, %v1043
  %v1045 = vrot.slane %v1040, 4
  %v1047 = vshrl.u32 %v545, 16
  %v1049 = vrot.slane %v1047, 7
  %v1050 = vshll.u32 %v545, 16
  %v1052 = vor.u32 %v1049, %v1050
  %v1053 = vrot.slane %v1049, 4
  %v1055 = vshrl.u32 %v546, 16
  %v1057 = vrot.slane %v1055, 7
  %v1058 = vshll.u32 %v546, 16
  %v1060 = vor.u32 %v1057, %v1058
  %v1061 = vsel %vm552, %v1053, %v1060
  %v1062 = vrot.slane %v1057, 4
  %v1064 = vshrl.u32 %v547, 16
  %v1066 = vrot.slane %v1064, 7
  %v1067 = vshll.u32 %v547, 16
  %v1069 = vor.u32 %v1066, %v1067
  %v1070 = vrot.slane %v1066, 4
  %v1072 = vshrl.u32 %v548, 16
  %v1074 = vrot.slane %v1072, 7
  %v1075 = vshll.u32 %v548, 16
  %v1077 = vor.u32 %v1074, %v1075
  %v1078 = vsel %vm552, %v1070, %v1077
  %v1079 = vrot.slane %v1074, 4
  %v1081 = vshrl.u32 %v549, 16
  %v1083 = vrot.slane %v1081, 7
  %v1084 = vshll.u32 %v549, 16
  %v1086 = vor.u32 %v1083, %v1084
  %v1087 = vrot.slane %v1083, 4
  %v1089 = vshrl.u32 %v550, 16
  %v1091 = vrot.slane %v1089, 7
  %v1092 = vshll.u32 %v550, 16
  %v1094 = vor.u32 %v1091, %v1092
  %v1095 = vsel %vm552, %v1087, %v1094
  %v1096 = vrot.slane %v1091, 4
  %s1193 = scalar_lea.vmem [#allocation2], 12
  %vm1194 = vcmask 1043456
  %vm1195 = vmand %vm1194, %vm148
  %v1196 = vld [vmem:[%s1193] sm:$0xf]
  %v1197 = vsel %vm1195, %v559, %v1196
  %1198 = vst [vmem:[%s1193] sm:$0xf] %v1197
  %1199 = vst [vmem:[%s1193 + $0x4] sm:$0xf] %v568
  %v1200 = vld [vmem:[%s1193 + $0x8] sm:$0x1]
  %v1201 = vsel %vm39, %v569, %v1200
  %1202 = vst [vmem:[%s1193 + $0x8] sm:$0x1] %v1201
  %v1203 = vld [vmem:[%s1193 + $0xc] sm:$0xf]
  %v1204 = vsel %vm1195, %v576, %v1203
  %1205 = vst [vmem:[%s1193 + $0xc] sm:$0xf] %v1204
  %1206 = vst [vmem:[%s1193 + $0x10] sm:$0xf] %v585
  %v1207 = vld [vmem:[%s1193 + $0x14] sm:$0x1]
  %v1208 = vsel %vm39, %v586, %v1207
  %1209 = vst [vmem:[%s1193 + $0x14] sm:$0x1] %v1208
  %v1210 = vld [vmem:[%s1193 + $0x18] sm:$0xf]
  %v1211 = vsel %vm1195, %v593, %v1210
  %1212 = vst [vmem:[%s1193 + $0x18] sm:$0xf] %v1211
  %1213 = vst [vmem:[%s1193 + $0x1c] sm:$0xf] %v602
  %v1214 = vld [vmem:[%s1193 + $0x20] sm:$0x1]
  %v1215 = vsel %vm39, %v603, %v1214
  %1216 = vst [vmem:[%s1193 + $0x20] sm:$0x1] %v1215
  %v1217 = vld [vmem:[%s1193 + $0x24] sm:$0xf]
  %v1218 = vsel %vm1195, %v610, %v1217
  %1219 = vst [vmem:[%s1193 + $0x24] sm:$0xf] %v1218
  %1220 = vst [vmem:[%s1193 + $0x28] sm:$0xf] %v619
  %v1221 = vld [vmem:[%s1193 + $0x2c] sm:$0x1]
  %v1222 = vsel %vm39, %v620, %v1221
  %1223 = vst [vmem:[%s1193 + $0x2c] sm:$0x1] %v1222
  %v1224 = vld [vmem:[%s1193 + $0x30] sm:$0xf]
  %v1225 = vsel %vm1195, %v627, %v1224
  %1226 = vst [vmem:[%s1193 + $0x30] sm:$0xf] %v1225
  %1227 = vst [vmem:[%s1193 + $0x34] sm:$0xf] %v636
  %v1228 = vld [vmem:[%s1193 + $0x38] sm:$0x1]
  %v1229 = vsel %vm39, %v637, %v1228
  %1230 = vst [vmem:[%s1193 + $0x38] sm:$0x1] %v1229
  %v1231 = vld [vmem:[%s1193 + $0x3c] sm:$0xf]
  %v1232 = vsel %vm1195, %v644, %v1231
  %1233 = vst [vmem:[%s1193 + $0x3c] sm:$0xf] %v1232
  %1234 = vst [vmem:[%s1193 + $0x40] sm:$0xf] %v653
  %v1235 = vld [vmem:[%s1193 + $0x44] sm:$0x1]
  %v1236 = vsel %vm39, %v654, %v1235
  %1237 = vst [vmem:[%s1193 + $0x44] sm:$0x1] %v1236
  %v1238 = vld [vmem:[%s1193 + $0x48] sm:$0xf]
  %v1239 = vsel %vm1195, %v661, %v1238
  %1240 = vst [vmem:[%s1193 + $0x48] sm:$0xf] %v1239
  %1241 = vst [vmem:[%s1193 + $0x4c] sm:$0xf] %v670
  %v1242 = vld [vmem:[%s1193 + $0x50] sm:$0x1]
  %v1243 = vsel %vm39, %v671, %v1242
  %1244 = vst [vmem:[%s1193 + $0x50] sm:$0x1] %v1243
  %v1245 = vld [vmem:[%s1193 + $0x54] sm:$0xf]
  %v1246 = vsel %vm1195, %v678, %v1245
  %1247 = vst [vmem:[%s1193 + $0x54] sm:$0xf] %v1246
  %1248 = vst [vmem:[%s1193 + $0x58] sm:$0xf] %v687
  %v1249 = vld [vmem:[%s1193 + $0x5c] sm:$0x1]
  %v1250 = vsel %vm39, %v688, %v1249
  %1251 = vst [vmem:[%s1193 + $0x5c] sm:$0x1] %v1250
  %v1252 = vld [vmem:[%s1193 + $0x60] sm:$0xf]
  %v1253 = vsel %vm1195, %v695, %v1252
  %1254 = vst [vmem:[%s1193 + $0x60] sm:$0xf] %v1253
  %1255 = vst [vmem:[%s1193 + $0x64] sm:$0xf] %v704
  %v1256 = vld [vmem:[%s1193 + $0x68] sm:$0x1]
  %v1257 = vsel %vm39, %v705, %v1256
  %1258 = vst [vmem:[%s1193 + $0x68] sm:$0x1] %v1257
  %v1259 = vld [vmem:[%s1193 + $0x6c] sm:$0xf]
  %v1260 = vsel %vm1195, %v712, %v1259
  %1261 = vst [vmem:[%s1193 + $0x6c] sm:$0xf] %v1260
  %1262 = vst [vmem:[%s1193 + $0x70] sm:$0xf] %v721
  %v1263 = vld [vmem:[%s1193 + $0x74] sm:$0x1]
  %v1264 = vsel %vm39, %v722, %v1263
  %1265 = vst [vmem:[%s1193 + $0x74] sm:$0x1] %v1264
  %v1266 = vld [vmem:[%s1193 + $0x78] sm:$0xf]
  %v1267 = vsel %vm1195, %v729, %v1266
  %1268 = vst [vmem:[%s1193 + $0x78] sm:$0xf] %v1267
  %1269 = vst [vmem:[%s1193 + $0x7c] sm:$0xf] %v738
  %v1270 = vld [vmem:[%s1193 + $0x80] sm:$0x1]
  %v1271 = vsel %vm39, %v739, %v1270
  %1272 = vst [vmem:[%s1193 + $0x80] sm:$0x1] %v1271
  %v1273 = vld [vmem:[%s1193 + $0x84] sm:$0xf]
  %v1274 = vsel %vm1195, %v746, %v1273
  %1275 = vst [vmem:[%s1193 + $0x84] sm:$0xf] %v1274
  %1276 = vst [vmem:[%s1193 + $0x88] sm:$0xf] %v755
  %v1277 = vld [vmem:[%s1193 + $0x8c] sm:$0x1]
  %v1278 = vsel %vm39, %v756, %v1277
  %1279 = vst [vmem:[%s1193 + $0x8c] sm:$0x1] %v1278
  %v1280 = vld [vmem:[%s1193 + $0x90] sm:$0xf]
  %v1281 = vsel %vm1195, %v763, %v1280
  %1282 = vst [vmem:[%s1193 + $0x90] sm:$0xf] %v1281
  %1283 = vst [vmem:[%s1193 + $0x94] sm:$0xf] %v772
  %v1284 = vld [vmem:[%s1193 + $0x98] sm:$0x1]
  %v1285 = vsel %vm39, %v773, %v1284
  %1286 = vst [vmem:[%s1193 + $0x98] sm:$0x1] %v1285
  %v1287 = vld [vmem:[%s1193 + $0x9c] sm:$0xf]
  %v1288 = vsel %vm1195, %v780, %v1287
  %1289 = vst [vmem:[%s1193 + $0x9c] sm:$0xf] %v1288
  %1290 = vst [vmem:[%s1193 + $0xa0] sm:$0xf] %v789
  %v1291 = vld [vmem:[%s1193 + $0xa4] sm:$0x1]
  %v1292 = vsel %vm39, %v790, %v1291
  %1293 = vst [vmem:[%s1193 + $0xa4] sm:$0x1] %v1292
  %v1294 = vld [vmem:[%s1193 + $0xa8] sm:$0xf]
  %v1295 = vsel %vm1195, %v797, %v1294
  %1296 = vst [vmem:[%s1193 + $0xa8] sm:$0xf] %v1295
  %1297 = vst [vmem:[%s1193 + $0xac] sm:$0xf] %v806
  %v1298 = vld [vmem:[%s1193 + $0xb0] sm:$0x1]
  %v1299 = vsel %vm39, %v807, %v1298
  %1300 = vst [vmem:[%s1193 + $0xb0] sm:$0x1] %v1299
  %v1301 = vld [vmem:[%s1193 + $0xb4] sm:$0xf]
  %v1302 = vsel %vm1195, %v814, %v1301
  %1303 = vst [vmem:[%s1193 + $0xb4] sm:$0xf] %v1302
  %1304 = vst [vmem:[%s1193 + $0xb8] sm:$0xf] %v823
  %v1305 = vld [vmem:[%s1193 + $0xbc] sm:$0x1]
  %v1306 = vsel %vm39, %v824, %v1305
  %1307 = vst [vmem:[%s1193 + $0xbc] sm:$0x1] %v1306
  %v1308 = vld [vmem:[%s1193 + $0xd8] sm:$0xf]
  %v1309 = vsel %vm1195, %v831, %v1308
  %1310 = vst [vmem:[%s1193 + $0xd8] sm:$0xf] %v1309
  %1311 = vst [vmem:[%s1193 + $0xdc] sm:$0xf] %v840
  %v1312 = vld [vmem:[%s1193 + $0xe0] sm:$0x1]
  %v1313 = vsel %vm39, %v841, %v1312
  %1314 = vst [vmem:[%s1193 + $0xe0] sm:$0x1] %v1313
  %v1315 = vld [vmem:[%s1193 + $0xe4] sm:$0xf]
  %v1316 = vsel %vm1195, %v848, %v1315
  %1317 = vst [vmem:[%s1193 + $0xe4] sm:$0xf] %v1316
  %1318 = vst [vmem:[%s1193 + $0xe8] sm:$0xf] %v857
  %v1319 = vld [vmem:[%s1193 + $0xec] sm:$0x1]
  %v1320 = vsel %vm39, %v858, %v1319
  %1321 = vst [vmem:[%s1193 + $0xec] sm:$0x1] %v1320
  %v1322 = vld [vmem:[%s1193 + $0xf0] sm:$0xf]
  %v1323 = vsel %vm1195, %v865, %v1322
  %1324 = vst [vmem:[%s1193 + $0xf0] sm:$0xf] %v1323
  %1325 = vst [vmem:[%s1193 + $0xf4] sm:$0xf] %v874
  %v1326 = vld [vmem:[%s1193 + $0xf8] sm:$0x1]
  %v1327 = vsel %vm39, %v875, %v1326
  %1328 = vst [vmem:[%s1193 + $0xf8] sm:$0x1] %v1327
  %v1329 = vld [vmem:[%s1193 + $0xfc] sm:$0xf]
  %v1330 = vsel %vm1195, %v882, %v1329
  %1331 = vst [vmem:[%s1193 + $0xfc] sm:$0xf] %v1330
  %1332 = vst [vmem:[%s1193 + $0x100] sm:$0xf] %v891
  %v1333 = vld [vmem:[%s1193 + $0x104] sm:$0x1]
  %v1334 = vsel %vm39, %v892, %v1333
  %1335 = vst [vmem:[%s1193 + $0x104] sm:$0x1] %v1334
  %v1336 = vld [vmem:[%s1193 + $0x108] sm:$0xf]
  %v1337 = vsel %vm1195, %v899, %v1336
  %1338 = vst [vmem:[%s1193 + $0x108] sm:$0xf] %v1337
  %1339 = vst [vmem:[%s1193 + $0x10c] sm:$0xf] %v908
  %v1340 = vld [vmem:[%s1193 + $0x110] sm:$0x1]
  %v1341 = vsel %vm39, %v909, %v1340
  %1342 = vst [vmem:[%s1193 + $0x110] sm:$0x1] %v1341
  %v1343 = vld [vmem:[%s1193 + $0x114] sm:$0xf]
  %v1344 = vsel %vm1195, %v916, %v1343
  %1345 = vst [vmem:[%s1193 + $0x114] sm:$0xf] %v1344
  %1346 = vst [vmem:[%s1193 + $0x118] sm:$0xf] %v925
  %v1347 = vld [vmem:[%s1193 + $0x11c] sm:$0x1]
  %v1348 = vsel %vm39, %v926, %v1347
  %1349 = vst [vmem:[%s1193 + $0x11c] sm:$0x1] %v1348
  %v1350 = vld [vmem:[%s1193 + $0x120] sm:$0xf]
  %v1351 = vsel %vm1195, %v933, %v1350
  %1352 = vst [vmem:[%s1193 + $0x120] sm:$0xf] %v1351
  %1353 = vst [vmem:[%s1193 + $0x124] sm:$0xf] %v942
  %v1354 = vld [vmem:[%s1193 + $0x128] sm:$0x1]
  %v1355 = vsel %vm39, %v943, %v1354
  %1356 = vst [vmem:[%s1193 + $0x128] sm:$0x1] %v1355
  %v1357 = vld [vmem:[%s1193 + $0x12c] sm:$0xf]
  %v1358 = vsel %vm1195, %v950, %v1357
  %1359 = vst [vmem:[%s1193 + $0x12c] sm:$0xf] %v1358
  %1360 = vst [vmem:[%s1193 + $0x130] sm:$0xf] %v959
  %v1361 = vld [vmem:[%s1193 + $0x134] sm:$0x1]
  %v1362 = vsel %vm39, %v960, %v1361
  %1363 = vst [vmem:[%s1193 + $0x134] sm:$0x1] %v1362
  %v1364 = vld [vmem:[%s1193 + $0x138] sm:$0xf]
  %v1365 = vsel %vm1195, %v967, %v1364
  %1366 = vst [vmem:[%s1193 + $0x138] sm:$0xf] %v1365
  %1367 = vst [vmem:[%s1193 + $0x13c] sm:$0xf] %v976
  %v1368 = vld [vmem:[%s1193 + $0x140] sm:$0x1]
  %v1369 = vsel %vm39, %v977, %v1368
  %1370 = vst [vmem:[%s1193 + $0x140] sm:$0x1] %v1369
  %v1371 = vld [vmem:[%s1193 + $0x144] sm:$0xf]
  %v1372 = vsel %vm1195, %v984, %v1371
  %1373 = vst [vmem:[%s1193 + $0x144] sm:$0xf] %v1372
  %1374 = vst [vmem:[%s1193 + $0x148] sm:$0xf] %v993
  %v1375 = vld [vmem:[%s1193 + $0x14c] sm:$0x1]
  %v1376 = vsel %vm39, %v994, %v1375
  %1377 = vst [vmem:[%s1193 + $0x14c] sm:$0x1] %v1376
  %v1378 = vld [vmem:[%s1193 + $0x150] sm:$0xf]
  %v1379 = vsel %vm1195, %v1001, %v1378
  %1380 = vst [vmem:[%s1193 + $0x150] sm:$0xf] %v1379
  %1381 = vst [vmem:[%s1193 + $0x154] sm:$0xf] %v1010
  %v1382 = vld [vmem:[%s1193 + $0x158] sm:$0x1]
  %v1383 = vsel %vm39, %v1011, %v1382
  %1384 = vst [vmem:[%s1193 + $0x158] sm:$0x1] %v1383
  %v1385 = vld [vmem:[%s1193 + $0x15c] sm:$0xf]
  %v1386 = vsel %vm1195, %v1018, %v1385
  %1387 = vst [vmem:[%s1193 + $0x15c] sm:$0xf] %v1386
  %1388 = vst [vmem:[%s1193 + $0x160] sm:$0xf] %v1027
  %v1389 = vld [vmem:[%s1193 + $0x164] sm:$0x1]
  %v1390 = vsel %vm39, %v1028, %v1389
  %1391 = vst [vmem:[%s1193 + $0x164] sm:$0x1] %v1390
  %v1392 = vld [vmem:[%s1193 + $0x168] sm:$0xf]
  %v1393 = vsel %vm1195, %v1035, %v1392
  %1394 = vst [vmem:[%s1193 + $0x168] sm:$0xf] %v1393
  %1395 = vst [vmem:[%s1193 + $0x16c] sm:$0xf] %v1044
  %v1396 = vld [vmem:[%s1193 + $0x170] sm:$0x1]
  %v1397 = vsel %vm39, %v1045, %v1396
  %1398 = vst [vmem:[%s1193 + $0x170] sm:$0x1] %v1397
  %v1399 = vld [vmem:[%s1193 + $0x174] sm:$0xf]
  %v1400 = vsel %vm1195, %v1052, %v1399
  %1401 = vst [vmem:[%s1193 + $0x174] sm:$0xf] %v1400
  %1402 = vst [vmem:[%s1193 + $0x178] sm:$0xf] %v1061
  %v1403 = vld [vmem:[%s1193 + $0x17c] sm:$0x1]
  %v1404 = vsel %vm39, %v1062, %v1403
  %1405 = vst [vmem:[%s1193 + $0x17c] sm:$0x1] %v1404
  %v1406 = vld [vmem:[%s1193 + $0x180] sm:$0xf]
  %v1407 = vsel %vm1195, %v1069, %v1406
  %1408 = vst [vmem:[%s1193 + $0x180] sm:$0xf] %v1407
  %1409 = vst [vmem:[%s1193 + $0x184] sm:$0xf] %v1078
  %v1410 = vld [vmem:[%s1193 + $0x188] sm:$0x1]
  %v1411 = vsel %vm39, %v1079, %v1410
  %1412 = vst [vmem:[%s1193 + $0x188] sm:$0x1] %v1411
  %v1413 = vld [vmem:[%s1193 + $0x18c] sm:$0xf]
  %v1414 = vsel %vm1195, %v1086, %v1413
  %1415 = vst [vmem:[%s1193 + $0x18c] sm:$0xf] %v1414
  %1416 = vst [vmem:[%s1193 + $0x190] sm:$0xf] %v1095
  %v1417 = vld [vmem:[%s1193 + $0x194] sm:$0x1]
  %v1418 = vsel %vm39, %v1096, %v1417
  %1419 = vst [vmem:[%s1193 + $0x194] sm:$0x1] %v1418
  %v1420 = vld [vmem:[#allocation2] sm:$0xf]
  %v1421 = vld [vmem:[#allocation2 + $0x4] sm:$0xf]
  %v1422 = vld [vmem:[#allocation2 + $0xc] sm:$0xf]
  %v1423 = vld [vmem:[#allocation2 + $0x10] sm:$0xf]
  %v1424 = vld [vmem:[#allocation2 + $0x18] sm:$0xf]
  %v1425 = vld [vmem:[#allocation2 + $0x1c] sm:$0xf]
  %v1426 = vld [vmem:[#allocation2 + $0x24] sm:$0xf]
  %v1427 = vld [vmem:[#allocation2 + $0x28] sm:$0xf]
  %v1428 = vld [vmem:[#allocation2 + $0x30] sm:$0xf]
  %v1429 = vld [vmem:[#allocation2 + $0x34] sm:$0xf]
  %v1430 = vld [vmem:[#allocation2 + $0x3c] sm:$0xf]
  %v1431 = vld [vmem:[#allocation2 + $0x40] sm:$0xf]
  %v1432 = vld [vmem:[#allocation2 + $0x48] sm:$0xf]
  %v1433 = vld [vmem:[#allocation2 + $0x4c] sm:$0xf]
  %v1434 = vld [vmem:[#allocation2 + $0x54] sm:$0xf]
  %v1435 = vld [vmem:[#allocation2 + $0x58] sm:$0xf]
  %v1436 = vld [vmem:[#allocation2 + $0x60] sm:$0xf]
  %v1437 = vld [vmem:[#allocation2 + $0x64] sm:$0xf]
  %v1438 = vld [vmem:[#allocation2 + $0x6c] sm:$0xf]
  %v1439 = vld [vmem:[#allocation2 + $0x70] sm:$0xf]
  %v1440 = vld [vmem:[#allocation2 + $0x78] sm:$0xf]
  %v1441 = vld [vmem:[#allocation2 + $0x7c] sm:$0xf]
  %v1442 = vld [vmem:[#allocation2 + $0x84] sm:$0xf]
  %v1443 = vld [vmem:[#allocation2 + $0x88] sm:$0xf]
  %v1444 = vld [vmem:[#allocation2 + $0x90] sm:$0xf]
  %v1445 = vld [vmem:[#allocation2 + $0x94] sm:$0xf]
  %v1446 = vld [vmem:[#allocation2 + $0x9c] sm:$0xf]
  %v1447 = vld [vmem:[#allocation2 + $0xa0] sm:$0xf]
  %v1448 = vld [vmem:[#allocation2 + $0xa8] sm:$0xf]
  %v1449 = vld [vmem:[#allocation2 + $0xac] sm:$0xf]
  %v1450 = vld [vmem:[#allocation2 + $0xb4] sm:$0xf]
  %v1451 = vld [vmem:[#allocation2 + $0xb8] sm:$0xf]
  %v1452 = vld [vmem:[#allocation2 + $0xd8] sm:$0xf]
  %v1453 = vld [vmem:[#allocation2 + $0xdc] sm:$0xf]
  %v1454 = vld [vmem:[#allocation2 + $0xe4] sm:$0xf]
  %v1455 = vld [vmem:[#allocation2 + $0xe8] sm:$0xf]
  %v1456 = vld [vmem:[#allocation2 + $0xf0] sm:$0xf]
  %v1457 = vld [vmem:[#allocation2 + $0xf4] sm:$0xf]
  %v1458 = vld [vmem:[#allocation2 + $0xfc] sm:$0xf]
  %v1459 = vld [vmem:[#allocation2 + $0x100] sm:$0xf]
  %v1460 = vld [vmem:[#allocation2 + $0x108] sm:$0xf]
  %v1461 = vld [vmem:[#allocation2 + $0x10c] sm:$0xf]
  %v1462 = vld [vmem:[#allocation2 + $0x114] sm:$0xf]
  %v1463 = vld [vmem:[#allocation2 + $0x118] sm:$0xf]
  %v1464 = vld [vmem:[#allocation2 + $0x120] sm:$0xf]
  %v1465 = vld [vmem:[#allocation2 + $0x124] sm:$0xf]
  %v1466 = vld [vmem:[#allocation2 + $0x12c] sm:$0xf]
  %v1467 = vld [vmem:[#allocation2 + $0x130] sm:$0xf]
  %v1468 = vld [vmem:[#allocation2 + $0x138] sm:$0xf]
  %v1469 = vld [vmem:[#allocation2 + $0x13c] sm:$0xf]
  %v1470 = vld [vmem:[#allocation2 + $0x144] sm:$0xf]
  %v1471 = vld [vmem:[#allocation2 + $0x148] sm:$0xf]
  %v1472 = vld [vmem:[#allocation2 + $0x150] sm:$0xf]
  %v1473 = vld [vmem:[#allocation2 + $0x154] sm:$0xf]
  %v1474 = vld [vmem:[#allocation2 + $0x15c] sm:$0xf]
  %v1475 = vld [vmem:[#allocation2 + $0x160] sm:$0xf]
  %v1476 = vld [vmem:[#allocation2 + $0x168] sm:$0xf]
  %v1477 = vld [vmem:[#allocation2 + $0x16c] sm:$0xf]
  %v1478 = vld [vmem:[#allocation2 + $0x174] sm:$0xf]
  %v1479 = vld [vmem:[#allocation2 + $0x178] sm:$0xf]
  %v1480 = vld [vmem:[#allocation2 + $0x180] sm:$0xf]
  %v1481 = vld [vmem:[#allocation2 + $0x184] sm:$0xf]
  %v1482 = vld [vmem:[#allocation2 + $0x18c] sm:$0xf]
  %v1483 = vld [vmem:[#allocation2 + $0x190] sm:$0xf]
  %v1484 = vld [vmem:[#allocation2 + $0x8] sm:$0x1]
  %v1485 = vld [vmem:[#allocation2 + $0x14] sm:$0x1]
  %v1486 = vld [vmem:[#allocation2 + $0x20] sm:$0x1]
  %v1487 = vld [vmem:[#allocation2 + $0x2c] sm:$0x1]
  %v1488 = vld [vmem:[#allocation2 + $0x38] sm:$0x1]
  %v1489 = vld [vmem:[#allocation2 + $0x44] sm:$0x1]
  %v1490 = vld [vmem:[#allocation2 + $0x50] sm:$0x1]
  %v1491 = vld [vmem:[#allocation2 + $0x5c] sm:$0x1]
  %v1492 = vld [vmem:[#allocation2 + $0x68] sm:$0x1]
  %v1493 = vld [vmem:[#allocation2 + $0x74] sm:$0x1]
  %v1494 = vld [vmem:[#allocation2 + $0x80] sm:$0x1]
  %v1495 = vld [vmem:[#allocation2 + $0x8c] sm:$0x1]
  %v1496 = vld [vmem:[#allocation2 + $0x98] sm:$0x1]
  %v1497 = vld [vmem:[#allocation2 + $0xa4] sm:$0x1]
  %v1498 = vld [vmem:[#allocation2 + $0xb0] sm:$0x1]
  %v1499 = vld [vmem:[#allocation2 + $0xbc] sm:$0x1]
  %v1500 = vld [vmem:[#allocation2 + $0xe0] sm:$0x1]
  %v1501 = vld [vmem:[#allocation2 + $0xec] sm:$0x1]
  %v1502 = vld [vmem:[#allocation2 + $0xf8] sm:$0x1]
  %v1503 = vld [vmem:[#allocation2 + $0x104] sm:$0x1]
  %v1504 = vld [vmem:[#allocation2 + $0x110] sm:$0x1]
  %v1505 = vld [vmem:[#allocation2 + $0x11c] sm:$0x1]
  %v1506 = vld [vmem:[#allocation2 + $0x128] sm:$0x1]
  %v1507 = vld [vmem:[#allocation2 + $0x134] sm:$0x1]
  %v1508 = vld [vmem:[#allocation2 + $0x140] sm:$0x1]
  %v1509 = vld [vmem:[#allocation2 + $0x14c] sm:$0x1]
  %v1510 = vld [vmem:[#allocation2 + $0x158] sm:$0x1]
  %v1511 = vld [vmem:[#allocation2 + $0x164] sm:$0x1]
  %v1512 = vld [vmem:[#allocation2 + $0x170] sm:$0x1]
  %v1513 = vld [vmem:[#allocation2 + $0x17c] sm:$0x1]
  %v1514 = vld [vmem:[#allocation2 + $0x188] sm:$0x1]
  %v1515 = vld [vmem:[#allocation2 + $0x194] sm:$0x1]
  %v1516 = vld [vmem:[#allocation2] sm:$0xe]
  %v1517 = vld [vmem:[#allocation2 + $0xc] sm:$0xe]
  %v1518 = vld [vmem:[#allocation2 + $0x18] sm:$0xe]
  %v1519 = vld [vmem:[#allocation2 + $0x24] sm:$0xe]
  %v1520 = vld [vmem:[#allocation2 + $0x30] sm:$0xe]
  %v1521 = vld [vmem:[#allocation2 + $0x3c] sm:$0xe]
  %v1522 = vld [vmem:[#allocation2 + $0x48] sm:$0xe]
  %v1523 = vld [vmem:[#allocation2 + $0x54] sm:$0xe]
  %v1524 = vld [vmem:[#allocation2 + $0x60] sm:$0xe]
  %v1525 = vld [vmem:[#allocation2 + $0x6c] sm:$0xe]
  %v1526 = vld [vmem:[#allocation2 + $0x78] sm:$0xe]
  %v1527 = vld [vmem:[#allocation2 + $0x84] sm:$0xe]
  %v1528 = vld [vmem:[#allocation2 + $0x90] sm:$0xe]
  %v1529 = vld [vmem:[#allocation2 + $0x9c] sm:$0xe]
  %v1530 = vld [vmem:[#allocation2 + $0xa8] sm:$0xe]
  %v1531 = vld [vmem:[#allocation2 + $0xb4] sm:$0xe]
  %v1532 = vld [vmem:[#allocation2 + $0xd8] sm:$0xe]
  %v1533 = vld [vmem:[#allocation2 + $0xe4] sm:$0xe]
  %v1534 = vld [vmem:[#allocation2 + $0xf0] sm:$0xe]
  %v1535 = vld [vmem:[#allocation2 + $0xfc] sm:$0xe]
  %v1536 = vld [vmem:[#allocation2 + $0x108] sm:$0xe]
  %v1537 = vld [vmem:[#allocation2 + $0x114] sm:$0xe]
  %v1538 = vld [vmem:[#allocation2 + $0x120] sm:$0xe]
  %v1539 = vld [vmem:[#allocation2 + $0x12c] sm:$0xe]
  %v1540 = vld [vmem:[#allocation2 + $0x138] sm:$0xe]
  %v1541 = vld [vmem:[#allocation2 + $0x144] sm:$0xe]
  %v1542 = vld [vmem:[#allocation2 + $0x150] sm:$0xe]
  %v1543 = vld [vmem:[#allocation2 + $0x15c] sm:$0xe]
  %v1544 = vld [vmem:[#allocation2 + $0x168] sm:$0xe]
  %v1545 = vld [vmem:[#allocation2 + $0x174] sm:$0xe]
  %v1546 = vld [vmem:[#allocation2 + $0x180] sm:$0xe]
  %v1547 = vld [vmem:[#allocation2 + $0x18c] sm:$0xe]
  %v1612 = vunpack.c.l.b16 %v1420
  %v1613 = vunpack.c.l.b16 %v1421
  %v1614 = vunpack.c.l.b16 %v1422
  %v1615 = vunpack.c.l.b16 %v1423
  %v1616 = vunpack.c.l.b16 %v1424
  %v1617 = vunpack.c.l.b16 %v1425
  %v1618 = vunpack.c.l.b16 %v1426
  %v1619 = vunpack.c.l.b16 %v1427
  %v1620 = vunpack.c.l.b16 %v1428
  %v1621 = vunpack.c.l.b16 %v1429
  %v1622 = vunpack.c.l.b16 %v1430
  %v1623 = vunpack.c.l.b16 %v1431
  %v1624 = vunpack.c.l.b16 %v1432
  %v1625 = vunpack.c.l.b16 %v1433
  %v1626 = vunpack.c.l.b16 %v1434
  %v1627 = vunpack.c.l.b16 %v1435
  %v1628 = vunpack.c.l.b16 %v1436
  %v1629 = vunpack.c.l.b16 %v1437
  %v1630 = vunpack.c.l.b16 %v1438
  %v1631 = vunpack.c.l.b16 %v1439
  %v1632 = vunpack.c.l.b16 %v1440
  %v1633 = vunpack.c.l.b16 %v1441
  %v1634 = vunpack.c.l.b16 %v1442
  %v1635 = vunpack.c.l.b16 %v1443
  %v1636 = vunpack.c.l.b16 %v1444
  %v1637 = vunpack.c.l.b16 %v1445
  %v1638 = vunpack.c.l.b16 %v1446
  %v1639 = vunpack.c.l.b16 %v1447
  %v1640 = vunpack.c.l.b16 %v1448
  %v1641 = vunpack.c.l.b16 %v1449
  %v1642 = vunpack.c.l.b16 %v1450
  %v1643 = vunpack.c.l.b16 %v1451
  %v1644 = vunpack.c.l.b16 %v1452
  %v1645 = vunpack.c.l.b16 %v1453
  %v1646 = vunpack.c.l.b16 %v1454
  %v1647 = vunpack.c.l.b16 %v1455
  %v1648 = vunpack.c.l.b16 %v1456
  %v1649 = vunpack.c.l.b16 %v1457
  %v1650 = vunpack.c.l.b16 %v1458
  %v1651 = vunpack.c.l.b16 %v1459
  %v1652 = vunpack.c.l.b16 %v1460
  %v1653 = vunpack.c.l.b16 %v1461
  %v1654 = vunpack.c.l.b16 %v1462
  %v1655 = vunpack.c.l.b16 %v1463
  %v1656 = vunpack.c.l.b16 %v1464
  %v1657 = vunpack.c.l.b16 %v1465
  %v1658 = vunpack.c.l.b16 %v1466
  %v1659 = vunpack.c.l.b16 %v1467
  %v1660 = vunpack.c.l.b16 %v1468
  %v1661 = vunpack.c.l.b16 %v1469
  %v1662 = vunpack.c.l.b16 %v1470
  %v1663 = vunpack.c.l.b16 %v1471
  %v1664 = vunpack.c.l.b16 %v1472
  %v1665 = vunpack.c.l.b16 %v1473
  %v1666 = vunpack.c.l.b16 %v1474
  %v1667 = vunpack.c.l.b16 %v1475
  %v1668 = vunpack.c.l.b16 %v1476
  %v1669 = vunpack.c.l.b16 %v1477
  %v1670 = vunpack.c.l.b16 %v1478
  %v1671 = vunpack.c.l.b16 %v1479
  %v1672 = vunpack.c.l.b16 %v1480
  %v1673 = vunpack.c.l.b16 %v1481
  %v1674 = vunpack.c.l.b16 %v1482
  %v1675 = vunpack.c.l.b16 %v1483
  %v1676 = vpack.c.b16 %v1613, %v1612
  %v1677 = vpack.c.b16 %v1615, %v1614
  %v1678 = vpack.c.b16 %v1617, %v1616
  %v1679 = vpack.c.b16 %v1619, %v1618
  %v1680 = vpack.c.b16 %v1621, %v1620
  %v1681 = vpack.c.b16 %v1623, %v1622
  %v1682 = vpack.c.b16 %v1625, %v1624
  %v1683 = vpack.c.b16 %v1627, %v1626
  %v1684 = vpack.c.b16 %v1629, %v1628
  %v1685 = vpack.c.b16 %v1631, %v1630
  %v1686 = vpack.c.b16 %v1633, %v1632
  %v1687 = vpack.c.b16 %v1635, %v1634
  %v1688 = vpack.c.b16 %v1637, %v1636
  %v1689 = vpack.c.b16 %v1639, %v1638
  %v1690 = vpack.c.b16 %v1641, %v1640
  %v1691 = vpack.c.b16 %v1643, %v1642
  %v1692 = vpack.c.b16 %v1645, %v1644
  %v1693 = vpack.c.b16 %v1647, %v1646
  %v1694 = vpack.c.b16 %v1649, %v1648
  %v1695 = vpack.c.b16 %v1651, %v1650
  %v1696 = vpack.c.b16 %v1653, %v1652
  %v1697 = vpack.c.b16 %v1655, %v1654
  %v1698 = vpack.c.b16 %v1657, %v1656
  %v1699 = vpack.c.b16 %v1659, %v1658
  %v1700 = vpack.c.b16 %v1661, %v1660
  %v1701 = vpack.c.b16 %v1663, %v1662
  %v1702 = vpack.c.b16 %v1665, %v1664
  %v1703 = vpack.c.b16 %v1667, %v1666
  %v1704 = vpack.c.b16 %v1669, %v1668
  %v1705 = vpack.c.b16 %v1671, %v1670
  %v1706 = vpack.c.b16 %v1673, %v1672
  %v1707 = vpack.c.b16 %v1675, %v1674
  %v1772 = vunpack.c.l.b16 %v1484
  %v1773 = vunpack.c.l.b16 %v1485
  %v1774 = vunpack.c.l.b16 %v1486
  %v1775 = vunpack.c.l.b16 %v1487
  %v1776 = vunpack.c.l.b16 %v1488
  %v1777 = vunpack.c.l.b16 %v1489
  %v1778 = vunpack.c.l.b16 %v1490
  %v1779 = vunpack.c.l.b16 %v1491
  %v1780 = vunpack.c.l.b16 %v1492
  %v1781 = vunpack.c.l.b16 %v1493
  %v1782 = vunpack.c.l.b16 %v1494
  %v1783 = vunpack.c.l.b16 %v1495
  %v1784 = vunpack.c.l.b16 %v1496
  %v1785 = vunpack.c.l.b16 %v1497
  %v1786 = vunpack.c.l.b16 %v1498
  %v1787 = vunpack.c.l.b16 %v1499
  %v1788 = vunpack.c.l.b16 %v1500
  %v1789 = vunpack.c.l.b16 %v1501
  %v1790 = vunpack.c.l.b16 %v1502
  %v1791 = vunpack.c.l.b16 %v1503
  %v1792 = vunpack.c.l.b16 %v1504
  %v1793 = vunpack.c.l.b16 %v1505
  %v1794 = vunpack.c.l.b16 %v1506
  %v1795 = vunpack.c.l.b16 %v1507
  %v1796 = vunpack.c.l.b16 %v1508
  %v1797 = vunpack.c.l.b16 %v1509
  %v1798 = vunpack.c.l.b16 %v1510
  %v1799 = vunpack.c.l.b16 %v1511
  %v1800 = vunpack.c.l.b16 %v1512
  %v1801 = vunpack.c.l.b16 %v1513
  %v1802 = vunpack.c.l.b16 %v1514
  %v1803 = vunpack.c.l.b16 %v1515
  %v1804 = vpack.c.b16 %v1772, %v1772
  %v1805 = vpack.c.b16 %v1773, %v1773
  %v1806 = vpack.c.b16 %v1774, %v1774
  %v1807 = vpack.c.b16 %v1775, %v1775
  %v1808 = vpack.c.b16 %v1776, %v1776
  %v1809 = vpack.c.b16 %v1777, %v1777
  %v1810 = vpack.c.b16 %v1778, %v1778
  %v1811 = vpack.c.b16 %v1779, %v1779
  %v1812 = vpack.c.b16 %v1780, %v1780
  %v1813 = vpack.c.b16 %v1781, %v1781
  %v1814 = vpack.c.b16 %v1782, %v1782
  %v1815 = vpack.c.b16 %v1783, %v1783
  %v1816 = vpack.c.b16 %v1784, %v1784
  %v1817 = vpack.c.b16 %v1785, %v1785
  %v1818 = vpack.c.b16 %v1786, %v1786
  %v1819 = vpack.c.b16 %v1787, %v1787
  %v1820 = vpack.c.b16 %v1788, %v1788
  %v1821 = vpack.c.b16 %v1789, %v1789
  %v1822 = vpack.c.b16 %v1790, %v1790
  %v1823 = vpack.c.b16 %v1791, %v1791
  %v1824 = vpack.c.b16 %v1792, %v1792
  %v1825 = vpack.c.b16 %v1793, %v1793
  %v1826 = vpack.c.b16 %v1794, %v1794
  %v1827 = vpack.c.b16 %v1795, %v1795
  %v1828 = vpack.c.b16 %v1796, %v1796
  %v1829 = vpack.c.b16 %v1797, %v1797
  %v1830 = vpack.c.b16 %v1798, %v1798
  %v1831 = vpack.c.b16 %v1799, %v1799
  %v1832 = vpack.c.b16 %v1800, %v1800
  %v1833 = vpack.c.b16 %v1801, %v1801
  %v1834 = vpack.c.b16 %v1802, %v1802
  %v1835 = vpack.c.b16 %v1803, %v1803
  %vm1836 = vsmask.f32 7424
  %v1838 = vshrl.u32 %v1676, 16
  %v1840 = vshll.u32 %v1676, 16
  %v1842 = vrot.slane %v1840, 1
  %v1843 = vor.u32 %v1838, %v1842
  %v1845 = vshll.u32 %v1804, 16
  %v1847 = vrot.slane %v1845, 1
  %v1848 = vsel %vm1836, %v1843, %v1847
  %v1850 = vshrl.u32 %v1677, 16
  %v1852 = vshll.u32 %v1677, 16
  %v1854 = vrot.slane %v1852, 1
  %v1855 = vor.u32 %v1850, %v1854
  %v1857 = vshll.u32 %v1805, 16
  %v1859 = vrot.slane %v1857, 1
  %v1860 = vsel %vm1836, %v1855, %v1859
  %v1862 = vshrl.u32 %v1678, 16
  %v1864 = vshll.u32 %v1678, 16
  %v1866 = vrot.slane %v1864, 1
  %v1867 = vor.u32 %v1862, %v1866
  %v1869 = vshll.u32 %v1806, 16
  %v1871 = vrot.slane %v1869, 1
  %v1872 = vsel %vm1836, %v1867, %v1871
  %v1874 = vshrl.u32 %v1679, 16
  %v1876 = vshll.u32 %v1679, 16
  %v1878 = vrot.slane %v1876, 1
  %v1879 = vor.u32 %v1874, %v1878
  %v1881 = vshll.u32 %v1807, 16
  %v1883 = vrot.slane %v1881, 1
  %v1884 = vsel %vm1836, %v1879, %v1883
  %v1886 = vshrl.u32 %v1680, 16
  %v1888 = vshll.u32 %v1680, 16
  %v1890 = vrot.slane %v1888, 1
  %v1891 = vor.u32 %v1886, %v1890
  %v1893 = vshll.u32 %v1808, 16
  %v1895 = vrot.slane %v1893, 1
  %v1896 = vsel %vm1836, %v1891, %v1895
  %v1898 = vshrl.u32 %v1681, 16
  %v1900 = vshll.u32 %v1681, 16
  %v1902 = vrot.slane %v1900, 1
  %v1903 = vor.u32 %v1898, %v1902
  %v1905 = vshll.u32 %v1809, 16
  %v1907 = vrot.slane %v1905, 1
  %v1908 = vsel %vm1836, %v1903, %v1907
  %v1910 = vshrl.u32 %v1682, 16
  %v1912 = vshll.u32 %v1682, 16
  %v1914 = vrot.slane %v1912, 1
  %v1915 = vor.u32 %v1910, %v1914
  %v1917 = vshll.u32 %v1810, 16
  %v1919 = vrot.slane %v1917, 1
  %v1920 = vsel %vm1836, %v1915, %v1919
  %v1922 = vshrl.u32 %v1683, 16
  %v1924 = vshll.u32 %v1683, 16
  %v1926 = vrot.slane %v1924, 1
  %v1927 = vor.u32 %v1922, %v1926
  %v1929 = vshll.u32 %v1811, 16
  %v1931 = vrot.slane %v1929, 1
  %v1932 = vsel %vm1836, %v1927, %v1931
  %v1934 = vshrl.u32 %v1684, 16
  %v1936 = vshll.u32 %v1684, 16
  %v1938 = vrot.slane %v1936, 1
  %v1939 = vor.u32 %v1934, %v1938
  %v1941 = vshll.u32 %v1812, 16
  %v1943 = vrot.slane %v1941, 1
  %v1944 = vsel %vm1836, %v1939, %v1943
  %v1946 = vshrl.u32 %v1685, 16
  %v1948 = vshll.u32 %v1685, 16
  %v1950 = vrot.slane %v1948, 1
  %v1951 = vor.u32 %v1946, %v1950
  %v1953 = vshll.u32 %v1813, 16
  %v1955 = vrot.slane %v1953, 1
  %v1956 = vsel %vm1836, %v1951, %v1955
  %v1958 = vshrl.u32 %v1686, 16
  %v1960 = vshll.u32 %v1686, 16
  %v1962 = vrot.slane %v1960, 1
  %v1963 = vor.u32 %v1958, %v1962
  %v1965 = vshll.u32 %v1814, 16
  %v1967 = vrot.slane %v1965, 1
  %v1968 = vsel %vm1836, %v1963, %v1967
  %v1970 = vshrl.u32 %v1687, 16
  %v1972 = vshll.u32 %v1687, 16
  %v1974 = vrot.slane %v1972, 1
  %v1975 = vor.u32 %v1970, %v1974
  %v1977 = vshll.u32 %v1815, 16
  %v1979 = vrot.slane %v1977, 1
  %v1980 = vsel %vm1836, %v1975, %v1979
  %v1982 = vshrl.u32 %v1688, 16
  %v1984 = vshll.u32 %v1688, 16
  %v1986 = vrot.slane %v1984, 1
  %v1987 = vor.u32 %v1982, %v1986
  %v1989 = vshll.u32 %v1816, 16
  %v1991 = vrot.slane %v1989, 1
  %v1992 = vsel %vm1836, %v1987, %v1991
  %v1994 = vshrl.u32 %v1689, 16
  %v1996 = vshll.u32 %v1689, 16
  %v1998 = vrot.slane %v1996, 1
  %v1999 = vor.u32 %v1994, %v1998
  %v2001 = vshll.u32 %v1817, 16
  %v2003 = vrot.slane %v2001, 1
  %v2004 = vsel %vm1836, %v1999, %v2003
  %v2006 = vshrl.u32 %v1690, 16
  %v2008 = vshll.u32 %v1690, 16
  %v2010 = vrot.slane %v2008, 1
  %v2011 = vor.u32 %v2006, %v2010
  %v2013 = vshll.u32 %v1818, 16
  %v2015 = vrot.slane %v2013, 1
  %v2016 = vsel %vm1836, %v2011, %v2015
  %v2018 = vshrl.u32 %v1691, 16
  %v2020 = vshll.u32 %v1691, 16
  %v2022 = vrot.slane %v2020, 1
  %v2023 = vor.u32 %v2018, %v2022
  %v2025 = vshll.u32 %v1819, 16
  %v2027 = vrot.slane %v2025, 1
  %v2028 = vsel %vm1836, %v2023, %v2027
  %v2030 = vshrl.u32 %v1692, 16
  %v2032 = vshll.u32 %v1692, 16
  %v2034 = vrot.slane %v2032, 1
  %v2035 = vor.u32 %v2030, %v2034
  %v2037 = vshll.u32 %v1820, 16
  %v2039 = vrot.slane %v2037, 1
  %v2040 = vsel %vm1836, %v2035, %v2039
  %v2042 = vshrl.u32 %v1693, 16
  %v2044 = vshll.u32 %v1693, 16
  %v2046 = vrot.slane %v2044, 1
  %v2047 = vor.u32 %v2042, %v2046
  %v2049 = vshll.u32 %v1821, 16
  %v2051 = vrot.slane %v2049, 1
  %v2052 = vsel %vm1836, %v2047, %v2051
  %v2054 = vshrl.u32 %v1694, 16
  %v2056 = vshll.u32 %v1694, 16
  %v2058 = vrot.slane %v2056, 1
  %v2059 = vor.u32 %v2054, %v2058
  %v2061 = vshll.u32 %v1822, 16
  %v2063 = vrot.slane %v2061, 1
  %v2064 = vsel %vm1836, %v2059, %v2063
  %v2066 = vshrl.u32 %v1695, 16
  %v2068 = vshll.u32 %v1695, 16
  %v2070 = vrot.slane %v2068, 1
  %v2071 = vor.u32 %v2066, %v2070
  %v2073 = vshll.u32 %v1823, 16
  %v2075 = vrot.slane %v2073, 1
  %v2076 = vsel %vm1836, %v2071, %v2075
  %v2078 = vshrl.u32 %v1696, 16
  %v2080 = vshll.u32 %v1696, 16
  %v2082 = vrot.slane %v2080, 1
  %v2083 = vor.u32 %v2078, %v2082
  %v2085 = vshll.u32 %v1824, 16
  %v2087 = vrot.slane %v2085, 1
  %v2088 = vsel %vm1836, %v2083, %v2087
  %v2090 = vshrl.u32 %v1697, 16
  %v2092 = vshll.u32 %v1697, 16
  %v2094 = vrot.slane %v2092, 1
  %v2095 = vor.u32 %v2090, %v2094
  %v2097 = vshll.u32 %v1825, 16
  %v2099 = vrot.slane %v2097, 1
  %v2100 = vsel %vm1836, %v2095, %v2099
  %v2102 = vshrl.u32 %v1698, 16
  %v2104 = vshll.u32 %v1698, 16
  %v2106 = vrot.slane %v2104, 1
  %v2107 = vor.u32 %v2102, %v2106
  %v2109 = vshll.u32 %v1826, 16
  %v2111 = vrot.slane %v2109, 1
  %v2112 = vsel %vm1836, %v2107, %v2111
  %v2114 = vshrl.u32 %v1699, 16
  %v2116 = vshll.u32 %v1699, 16
  %v2118 = vrot.slane %v2116, 1
  %v2119 = vor.u32 %v2114, %v2118
  %v2121 = vshll.u32 %v1827, 16
  %v2123 = vrot.slane %v2121, 1
  %v2124 = vsel %vm1836, %v2119, %v2123
  %v2126 = vshrl.u32 %v1700, 16
  %v2128 = vshll.u32 %v1700, 16
  %v2130 = vrot.slane %v2128, 1
  %v2131 = vor.u32 %v2126, %v2130
  %v2133 = vshll.u32 %v1828, 16
  %v2135 = vrot.slane %v2133, 1
  %v2136 = vsel %vm1836, %v2131, %v2135
  %v2138 = vshrl.u32 %v1701, 16
  %v2140 = vshll.u32 %v1701, 16
  %v2142 = vrot.slane %v2140, 1
  %v2143 = vor.u32 %v2138, %v2142
  %v2145 = vshll.u32 %v1829, 16
  %v2147 = vrot.slane %v2145, 1
  %v2148 = vsel %vm1836, %v2143, %v2147
  %v2150 = vshrl.u32 %v1702, 16
  %v2152 = vshll.u32 %v1702, 16
  %v2154 = vrot.slane %v2152, 1
  %v2155 = vor.u32 %v2150, %v2154
  %v2157 = vshll.u32 %v1830, 16
  %v2159 = vrot.slane %v2157, 1
  %v2160 = vsel %vm1836, %v2155, %v2159
  %v2162 = vshrl.u32 %v1703, 16
  %v2164 = vshll.u32 %v1703, 16
  %v2166 = vrot.slane %v2164, 1
  %v2167 = vor.u32 %v2162, %v2166
  %v2169 = vshll.u32 %v1831, 16
  %v2171 = vrot.slane %v2169, 1
  %v2172 = vsel %vm1836, %v2167, %v2171
  %v2174 = vshrl.u32 %v1704, 16
  %v2176 = vshll.u32 %v1704, 16
  %v2178 = vrot.slane %v2176, 1
  %v2179 = vor.u32 %v2174, %v2178
  %v2181 = vshll.u32 %v1832, 16
  %v2183 = vrot.slane %v2181, 1
  %v2184 = vsel %vm1836, %v2179, %v2183
  %v2186 = vshrl.u32 %v1705, 16
  %v2188 = vshll.u32 %v1705, 16
  %v2190 = vrot.slane %v2188, 1
  %v2191 = vor.u32 %v2186, %v2190
  %v2193 = vshll.u32 %v1833, 16
  %v2195 = vrot.slane %v2193, 1
  %v2196 = vsel %vm1836, %v2191, %v2195
  %v2198 = vshrl.u32 %v1706, 16
  %v2200 = vshll.u32 %v1706, 16
  %v2202 = vrot.slane %v2200, 1
  %v2203 = vor.u32 %v2198, %v2202
  %v2205 = vshll.u32 %v1834, 16
  %v2207 = vrot.slane %v2205, 1
  %v2208 = vsel %vm1836, %v2203, %v2207
  %v2210 = vshrl.u32 %v1707, 16
  %v2212 = vshll.u32 %v1707, 16
  %v2214 = vrot.slane %v2212, 1
  %v2215 = vor.u32 %v2210, %v2214
  %v2217 = vshll.u32 %v1835, 16
  %v2219 = vrot.slane %v2217, 1
  %v2220 = vsel %vm1836, %v2215, %v2219
  %v2285 = vunpack.c.l.b16 %v1516
  %v2286 = vunpack.c.l.b16 %v1517
  %v2287 = vunpack.c.l.b16 %v1518
  %v2288 = vunpack.c.l.b16 %v1519
  %v2289 = vunpack.c.l.b16 %v1520
  %v2290 = vunpack.c.l.b16 %v1521
  %v2291 = vunpack.c.l.b16 %v1522
  %v2292 = vunpack.c.l.b16 %v1523
  %v2293 = vunpack.c.l.b16 %v1524
  %v2294 = vunpack.c.l.b16 %v1525
  %v2295 = vunpack.c.l.b16 %v1526
  %v2296 = vunpack.c.l.b16 %v1527
  %v2297 = vunpack.c.l.b16 %v1528
  %v2298 = vunpack.c.l.b16 %v1529
  %v2299 = vunpack.c.l.b16 %v1530
  %v2300 = vunpack.c.l.b16 %v1531
  %v2301 = vunpack.c.l.b16 %v1532
  %v2302 = vunpack.c.l.b16 %v1533
  %v2303 = vunpack.c.l.b16 %v1534
  %v2304 = vunpack.c.l.b16 %v1535
  %v2305 = vunpack.c.l.b16 %v1536
  %v2306 = vunpack.c.l.b16 %v1537
  %v2307 = vunpack.c.l.b16 %v1538
  %v2308 = vunpack.c.l.b16 %v1539
  %v2309 = vunpack.c.l.b16 %v1540
  %v2310 = vunpack.c.l.b16 %v1541
  %v2311 = vunpack.c.l.b16 %v1542
  %v2312 = vunpack.c.l.b16 %v1543
  %v2313 = vunpack.c.l.b16 %v1544
  %v2314 = vunpack.c.l.b16 %v1545
  %v2315 = vunpack.c.l.b16 %v1546
  %v2316 = vunpack.c.l.b16 %v1547
  %v2317 = vpack.c.b16 %v1613, %v2285
  %v2318 = vpack.c.b16 %v1615, %v2286
  %v2319 = vpack.c.b16 %v1617, %v2287
  %v2320 = vpack.c.b16 %v1619, %v2288
  %v2321 = vpack.c.b16 %v1621, %v2289
  %v2322 = vpack.c.b16 %v1623, %v2290
  %v2323 = vpack.c.b16 %v1625, %v2291
  %v2324 = vpack.c.b16 %v1627, %v2292
  %v2325 = vpack.c.b16 %v1629, %v2293
  %v2326 = vpack.c.b16 %v1631, %v2294
  %v2327 = vpack.c.b16 %v1633, %v2295
  %v2328 = vpack.c.b16 %v1635, %v2296
  %v2329 = vpack.c.b16 %v1637, %v2297
  %v2330 = vpack.c.b16 %v1639, %v2298
  %v2331 = vpack.c.b16 %v1641, %v2299
  %v2332 = vpack.c.b16 %v1643, %v2300
  %v2333 = vpack.c.b16 %v1645, %v2301
  %v2334 = vpack.c.b16 %v1647, %v2302
  %v2335 = vpack.c.b16 %v1649, %v2303
  %v2336 = vpack.c.b16 %v1651, %v2304
  %v2337 = vpack.c.b16 %v1653, %v2305
  %v2338 = vpack.c.b16 %v1655, %v2306
  %v2339 = vpack.c.b16 %v1657, %v2307
  %v2340 = vpack.c.b16 %v1659, %v2308
  %v2341 = vpack.c.b16 %v1661, %v2309
  %v2342 = vpack.c.b16 %v1663, %v2310
  %v2343 = vpack.c.b16 %v1665, %v2311
  %v2344 = vpack.c.b16 %v1667, %v2312
  %v2345 = vpack.c.b16 %v1669, %v2313
  %v2346 = vpack.c.b16 %v1671, %v2314
  %v2347 = vpack.c.b16 %v1673, %v2315
  %v2348 = vpack.c.b16 %v1675, %v2316
  %vm2349 = vcmask 1046528
  %v2350 = vrot.slane %v2317, 1
  %v2351 = vrot.slane %v1804, 1
  %v2352 = vsel %vm2349, %v2350, %v2351
  %v2353 = vrot.slane %v2318, 1
  %v2354 = vrot.slane %v1805, 1
  %v2355 = vsel %vm2349, %v2353, %v2354
  %v2356 = vrot.slane %v2319, 1
  %v2357 = vrot.slane %v1806, 1
  %v2358 = vsel %vm2349, %v2356, %v2357
  %v2359 = vrot.slane %v2320, 1
  %v2360 = vrot.slane %v1807, 1
  %v2361 = vsel %vm2349, %v2359, %v2360
  %v2362 = vrot.slane %v2321, 1
  %v2363 = vrot.slane %v1808, 1
  %v2364 = vsel %vm2349, %v2362, %v2363
  %v2365 = vrot.slane %v2322, 1
  %v2366 = vrot.slane %v1809, 1
  %v2367 = vsel %vm2349, %v2365, %v2366
  %v2368 = vrot.slane %v2323, 1
  %v2369 = vrot.slane %v1810, 1
  %v2370 = vsel %vm2349, %v2368, %v2369
  %v2371 = vrot.slane %v2324, 1
  %v2372 = vrot.slane %v1811, 1
  %v2373 = vsel %vm2349, %v2371, %v2372
  %v2374 = vrot.slane %v2325, 1
  %v2375 = vrot.slane %v1812, 1
  %v2376 = vsel %vm2349, %v2374, %v2375
  %v2377 = vrot.slane %v2326, 1
  %v2378 = vrot.slane %v1813, 1
  %v2379 = vsel %vm2349, %v2377, %v2378
  %v2380 = vrot.slane %v2327, 1
  %v2381 = vrot.slane %v1814, 1
  %v2382 = vsel %vm2349, %v2380, %v2381
  %v2383 = vrot.slane %v2328, 1
  %v2384 = vrot.slane %v1815, 1
  %v2385 = vsel %vm2349, %v2383, %v2384
  %v2386 = vrot.slane %v2329, 1
  %v2387 = vrot.slane %v1816, 1
  %v2388 = vsel %vm2349, %v2386, %v2387
  %v2389 = vrot.slane %v2330, 1
  %v2390 = vrot.slane %v1817, 1
  %v2391 = vsel %vm2349, %v2389, %v2390
  %v2392 = vrot.slane %v2331, 1
  %v2393 = vrot.slane %v1818, 1
  %v2394 = vsel %vm2349, %v2392, %v2393
  %v2395 = vrot.slane %v2332, 1
  %v2396 = vrot.slane %v1819, 1
  %v2397 = vsel %vm2349, %v2395, %v2396
  %v2398 = vrot.slane %v2333, 1
  %v2399 = vrot.slane %v1820, 1
  %v2400 = vsel %vm2349, %v2398, %v2399
  %v2401 = vrot.slane %v2334, 1
  %v2402 = vrot.slane %v1821, 1
  %v2403 = vsel %vm2349, %v2401, %v2402
  %v2404 = vrot.slane %v2335, 1
  %v2405 = vrot.slane %v1822, 1
  %v2406 = vsel %vm2349, %v2404, %v2405
  %v2407 = vrot.slane %v2336, 1
  %v2408 = vrot.slane %v1823, 1
  %v2409 = vsel %vm2349, %v2407, %v2408
  %v2410 = vrot.slane %v2337, 1
  %v2411 = vrot.slane %v1824, 1
  %v2412 = vsel %vm2349, %v2410, %v2411
  %v2413 = vrot.slane %v2338, 1
  %v2414 = vrot.slane %v1825, 1
  %v2415 = vsel %vm2349, %v2413, %v2414
  %v2416 = vrot.slane %v2339, 1
  %v2417 = vrot.slane %v1826, 1
  %v2418 = vsel %vm2349, %v2416, %v2417
  %v2419 = vrot.slane %v2340, 1
  %v2420 = vrot.slane %v1827, 1
  %v2421 = vsel %vm2349, %v2419, %v2420
  %v2422 = vrot.slane %v2341, 1
  %v2423 = vrot.slane %v1828, 1
  %v2424 = vsel %vm2349, %v2422, %v2423
  %v2425 = vrot.slane %v2342, 1
  %v2426 = vrot.slane %v1829, 1
  %v2427 = vsel %vm2349, %v2425, %v2426
  %v2428 = vrot.slane %v2343, 1
  %v2429 = vrot.slane %v1830, 1
  %v2430 = vsel %vm2349, %v2428, %v2429
  %v2431 = vrot.slane %v2344, 1
  %v2432 = vrot.slane %v1831, 1
  %v2433 = vsel %vm2349, %v2431, %v2432
  %v2434 = vrot.slane %v2345, 1
  %v2435 = vrot.slane %v1832, 1
  %v2436 = vsel %vm2349, %v2434, %v2435
  %v2437 = vrot.slane %v2346, 1
  %v2438 = vrot.slane %v1833, 1
  %v2439 = vsel %vm2349, %v2437, %v2438
  %v2440 = vrot.slane %v2347, 1
  %v2441 = vrot.slane %v1834, 1
  %v2442 = vsel %vm2349, %v2440, %v2441
  %v2443 = vrot.slane %v2348, 1
  %v2444 = vrot.slane %v1835, 1
  %v2445 = vsel %vm2349, %v2443, %v2444
  %v2478 = vld [vmem:[%s1] sm:$0xff]
  %v2479 = vld [vmem:[%s1 + $0x8] sm:$0xff]
  %v2480 = vld [vmem:[%s1 + $0x10] sm:$0xff]
  %v2481 = vld [vmem:[%s1 + $0x18] sm:$0xff]
  %v2482 = vld [vmem:[%s1 + $0x20] sm:$0xff]
  %v2483 = vld [vmem:[%s1 + $0x28] sm:$0xff]
  %v2484 = vld [vmem:[%s1 + $0x30] sm:$0xff]
  %v2485 = vld [vmem:[%s1 + $0x38] sm:$0xff]
  %v2486 = vld [vmem:[%s1 + $0x40] sm:$0xff]
  %v2487 = vld [vmem:[%s1 + $0x48] sm:$0xff]
  %v2488 = vld [vmem:[%s1 + $0x50] sm:$0xff]
  %v2489 = vld [vmem:[%s1 + $0x58] sm:$0xff]
  %v2490 = vld [vmem:[%s1 + $0x60] sm:$0xff]
  %v2491 = vld [vmem:[%s1 + $0x68] sm:$0xff]
  %v2492 = vld [vmem:[%s1 + $0x70] sm:$0xff]
  %v2493 = vld [vmem:[%s1 + $0x78] sm:$0xff]
  %v2494 = vld [vmem:[%s1 + $0x80] sm:$0xff]
  %v2495 = vld [vmem:[%s1 + $0x88] sm:$0xff]
  %v2496 = vld [vmem:[%s1 + $0x90] sm:$0xff]
  %v2497 = vld [vmem:[%s1 + $0x98] sm:$0xff]
  %v2498 = vld [vmem:[%s1 + $0xa0] sm:$0xff]
  %v2499 = vld [vmem:[%s1 + $0xa8] sm:$0xff]
  %v2500 = vld [vmem:[%s1 + $0xb0] sm:$0xff]
  %v2501 = vld [vmem:[%s1 + $0xb8] sm:$0xff]
  %v2502 = vld [vmem:[%s1 + $0xc0] sm:$0xff]
  %v2503 = vld [vmem:[%s1 + $0xc8] sm:$0xff]
  %v2504 = vld [vmem:[%s1 + $0xd0] sm:$0xff]
  %v2505 = vld [vmem:[%s1 + $0xd8] sm:$0xff]
  %v2506 = vld [vmem:[%s1 + $0xe0] sm:$0xff]
  %v2507 = vld [vmem:[%s1 + $0xe8] sm:$0xff]
  %v2508 = vld [vmem:[%s1 + $0xf0] sm:$0xff]
  %v2509 = vld [vmem:[%s1 + $0xf8] sm:$0xff]
  %v2510 = vld [vmem:[%s1 + $0x100] sm:$0xff]
  %v2511 = vld [vmem:[%s1 + $0x108] sm:$0xff]
  %v2512 = vld [vmem:[%s1 + $0x110] sm:$0xff]
  %v2513 = vld [vmem:[%s1 + $0x118] sm:$0xff]
  %v2514 = vld [vmem:[%s1 + $0x120] sm:$0xff]
  %v2515 = vld [vmem:[%s1 + $0x128] sm:$0xff]
  %v2516 = vld [vmem:[%s1 + $0x130] sm:$0xff]
  %v2517 = vld [vmem:[%s1 + $0x138] sm:$0xff]
  %v2518 = vld [vmem:[%s1 + $0x140] sm:$0xff]
  %v2519 = vld [vmem:[%s1 + $0x148] sm:$0xff]
  %v2520 = vld [vmem:[%s1 + $0x150] sm:$0xff]
  %v2521 = vld [vmem:[%s1 + $0x158] sm:$0xff]
  %v2522 = vld [vmem:[%s1 + $0x160] sm:$0xff]
  %v2523 = vld [vmem:[%s1 + $0x168] sm:$0xff]
  %v2524 = vld [vmem:[%s1 + $0x170] sm:$0xff]
  %v2525 = vld [vmem:[%s1 + $0x178] sm:$0xff]
  %v2526 = vld [vmem:[%s1193] sm:$0xf]
  %v2527 = vld [vmem:[%s1193 + $0x4] sm:$0xf]
  %v2528 = vld [vmem:[%s1193 + $0xc] sm:$0xf]
  %v2529 = vld [vmem:[%s1193 + $0x10] sm:$0xf]
  %v2530 = vld [vmem:[%s1193 + $0x18] sm:$0xf]
  %v2531 = vld [vmem:[%s1193 + $0x1c] sm:$0xf]
  %v2532 = vld [vmem:[%s1193 + $0x24] sm:$0xf]
  %v2533 = vld [vmem:[%s1193 + $0x28] sm:$0xf]
  %v2534 = vld [vmem:[%s1193 + $0x30] sm:$0xf]
  %v2535 = vld [vmem:[%s1193 + $0x34] sm:$0xf]
  %v2536 = vld [vmem:[%s1193 + $0x3c] sm:$0xf]
  %v2537 = vld [vmem:[%s1193 + $0x40] sm:$0xf]
  %v2538 = vld [vmem:[%s1193 + $0x48] sm:$0xf]
  %v2539 = vld [vmem:[%s1193 + $0x4c] sm:$0xf]
  %v2540 = vld [vmem:[%s1193 + $0x54] sm:$0xf]
  %v2541 = vld [vmem:[%s1193 + $0x58] sm:$0xf]
  %v2542 = vld [vmem:[%s1193 + $0x60] sm:$0xf]
  %v2543 = vld [vmem:[%s1193 + $0x64] sm:$0xf]
  %v2544 = vld [vmem:[%s1193 + $0x6c] sm:$0xf]
  %v2545 = vld [vmem:[%s1193 + $0x70] sm:$0xf]
  %v2546 = vld [vmem:[%s1193 + $0x78] sm:$0xf]
  %v2547 = vld [vmem:[%s1193 + $0x7c] sm:$0xf]
  %v2548 = vld [vmem:[%s1193 + $0x84] sm:$0xf]
  %v2549 = vld [vmem:[%s1193 + $0x88] sm:$0xf]
  %v2550 = vld [vmem:[%s1193 + $0x90] sm:$0xf]
  %v2551 = vld [vmem:[%s1193 + $0x94] sm:$0xf]
  %v2552 = vld [vmem:[%s1193 + $0x9c] sm:$0xf]
  %v2553 = vld [vmem:[%s1193 + $0xa0] sm:$0xf]
  %v2554 = vld [vmem:[%s1193 + $0xa8] sm:$0xf]
  %v2555 = vld [vmem:[%s1193 + $0xac] sm:$0xf]
  %v2556 = vld [vmem:[%s1193 + $0xb4] sm:$0xf]
  %v2557 = vld [vmem:[%s1193 + $0xb8] sm:$0xf]
  %v2558 = vld [vmem:[%s1193 + $0xd8] sm:$0xf]
  %v2559 = vld [vmem:[%s1193 + $0xdc] sm:$0xf]
  %v2560 = vld [vmem:[%s1193 + $0xe4] sm:$0xf]
  %v2561 = vld [vmem:[%s1193 + $0xe8] sm:$0xf]
  %v2562 = vld [vmem:[%s1193 + $0xf0] sm:$0xf]
  %v2563 = vld [vmem:[%s1193 + $0xf4] sm:$0xf]
  %v2564 = vld [vmem:[%s1193 + $0xfc] sm:$0xf]
  %v2565 = vld [vmem:[%s1193 + $0x100] sm:$0xf]
  %v2566 = vld [vmem:[%s1193 + $0x108] sm:$0xf]
  %v2567 = vld [vmem:[%s1193 + $0x10c] sm:$0xf]
  %v2568 = vld [vmem:[%s1193 + $0x114] sm:$0xf]
  %v2569 = vld [vmem:[%s1193 + $0x118] sm:$0xf]
  %v2570 = vld [vmem:[%s1193 + $0x120] sm:$0xf]
  %v2571 = vld [vmem:[%s1193 + $0x124] sm:$0xf]
  %v2572 = vld [vmem:[%s1193 + $0x12c] sm:$0xf]
  %v2573 = vld [vmem:[%s1193 + $0x130] sm:$0xf]
  %v2574 = vld [vmem:[%s1193 + $0x138] sm:$0xf]
  %v2575 = vld [vmem:[%s1193 + $0x13c] sm:$0xf]
  %v2576 = vld [vmem:[%s1193 + $0x144] sm:$0xf]
  %v2577 = vld [vmem:[%s1193 + $0x148] sm:$0xf]
  %v2578 = vld [vmem:[%s1193 + $0x150] sm:$0xf]
  %v2579 = vld [vmem:[%s1193 + $0x154] sm:$0xf]
  %v2580 = vld [vmem:[%s1193 + $0x15c] sm:$0xf]
  %v2581 = vld [vmem:[%s1193 + $0x160] sm:$0xf]
  %v2582 = vld [vmem:[%s1193 + $0x168] sm:$0xf]
  %v2583 = vld [vmem:[%s1193 + $0x16c] sm:$0xf]
  %v2584 = vld [vmem:[%s1193 + $0x174] sm:$0xf]
  %v2585 = vld [vmem:[%s1193 + $0x178] sm:$0xf]
  %v2586 = vld [vmem:[%s1193 + $0x180] sm:$0xf]
  %v2587 = vld [vmem:[%s1193 + $0x184] sm:$0xf]
  %v2588 = vld [vmem:[%s1193 + $0x18c] sm:$0xf]
  %v2589 = vld [vmem:[%s1193 + $0x190] sm:$0xf]
  %v2590 = vld [vmem:[%s1193 + $0x8] sm:$0x1]
  %v2591 = vld [vmem:[%s1193 + $0x14] sm:$0x1]
  %v2592 = vld [vmem:[%s1193 + $0x20] sm:$0x1]
  %v2593 = vld [vmem:[%s1193 + $0x2c] sm:$0x1]
  %v2594 = vld [vmem:[%s1193 + $0x38] sm:$0x1]
  %v2595 = vld [vmem:[%s1193 + $0x44] sm:$0x1]
  %v2596 = vld [vmem:[%s1193 + $0x50] sm:$0x1]
  %v2597 = vld [vmem:[%s1193 + $0x5c] sm:$0x1]
  %v2598 = vld [vmem:[%s1193 + $0x68] sm:$0x1]
  %v2599 = vld [vmem:[%s1193 + $0x74] sm:$0x1]
  %v2600 = vld [vmem:[%s1193 + $0x80] sm:$0x1]
  %v2601 = vld [vmem:[%s1193 + $0x8c] sm:$0x1]
  %v2602 = vld [vmem:[%s1193 + $0x98] sm:$0x1]
  %v2603 = vld [vmem:[%s1193 + $0xa4] sm:$0x1]
  %v2604 = vld [vmem:[%s1193 + $0xb0] sm:$0x1]
  %v2605 = vld [vmem:[%s1193 + $0xbc] sm:$0x1]
  %v2606 = vld [vmem:[%s1193 + $0xe0] sm:$0x1]
  %v2607 = vld [vmem:[%s1193 + $0xec] sm:$0x1]
  %v2608 = vld [vmem:[%s1193 + $0xf8] sm:$0x1]
  %v2609 = vld [vmem:[%s1193 + $0x104] sm:$0x1]
  %v2610 = vld [vmem:[%s1193 + $0x110] sm:$0x1]
  %v2611 = vld [vmem:[%s1193 + $0x11c] sm:$0x1]
  %v2612 = vld [vmem:[%s1193 + $0x128] sm:$0x1]
  %v2613 = vld [vmem:[%s1193 + $0x134] sm:$0x1]
  %v2614 = vld [vmem:[%s1193 + $0x140] sm:$0x1]
  %v2615 = vld [vmem:[%s1193 + $0x14c] sm:$0x1]
  %v2616 = vld [vmem:[%s1193 + $0x158] sm:$0x1]
  %v2617 = vld [vmem:[%s1193 + $0x164] sm:$0x1]
  %v2618 = vld [vmem:[%s1193 + $0x170] sm:$0x1]
  %v2619 = vld [vmem:[%s1193 + $0x17c] sm:$0x1]
  %v2620 = vld [vmem:[%s1193 + $0x188] sm:$0x1]
  %v2621 = vld [vmem:[%s1193 + $0x194] sm:$0x1]
  %v2622 = vld [vmem:[%s1193] sm:$0xe]
  %v2623 = vld [vmem:[%s1193 + $0xc] sm:$0xe]
  %v2624 = vld [vmem:[%s1193 + $0x18] sm:$0xe]
  %v2625 = vld [vmem:[%s1193 + $0x24] sm:$0xe]
  %v2626 = vld [vmem:[%s1193 + $0x30] sm:$0xe]
  %v2627 = vld [vmem:[%s1193 + $0x3c] sm:$0xe]
  %v2628 = vld [vmem:[%s1193 + $0x48] sm:$0xe]
  %v2629 = vld [vmem:[%s1193 + $0x54] sm:$0xe]
  %v2630 = vld [vmem:[%s1193 + $0x60] sm:$0xe]
  %v2631 = vld [vmem:[%s1193 + $0x6c] sm:$0xe]
  %v2632 = vld [vmem:[%s1193 + $0x78] sm:$0xe]
  %v2633 = vld [vmem:[%s1193 + $0x84] sm:$0xe]
  %v2634 = vld [vmem:[%s1193 + $0x90] sm:$0xe]
  %v2635 = vld [vmem:[%s1193 + $0x9c] sm:$0xe]
  %v2636 = vld [vmem:[%s1193 + $0xa8] sm:$0xe]
  %v2637 = vld [vmem:[%s1193 + $0xb4] sm:$0xe]
  %v2638 = vld [vmem:[%s1193 + $0xd8] sm:$0xe]
  %v2639 = vld [vmem:[%s1193 + $0xe4] sm:$0xe]
  %v2640 = vld [vmem:[%s1193 + $0xf0] sm:$0xe]
  %v2641 = vld [vmem:[%s1193 + $0xfc] sm:$0xe]
  %v2642 = vld [vmem:[%s1193 + $0x108] sm:$0xe]
  %v2643 = vld [vmem:[%s1193 + $0x114] sm:$0xe]
  %v2644 = vld [vmem:[%s1193 + $0x120] sm:$0xe]
  %v2645 = vld [vmem:[%s1193 + $0x12c] sm:$0xe]
  %v2646 = vld [vmem:[%s1193 + $0x138] sm:$0xe]
  %v2647 = vld [vmem:[%s1193 + $0x144] sm:$0xe]
  %v2648 = vld [vmem:[%s1193 + $0x150] sm:$0xe]
  %v2649 = vld [vmem:[%s1193 + $0x15c] sm:$0xe]
  %v2650 = vld [vmem:[%s1193 + $0x168] sm:$0xe]
  %v2651 = vld [vmem:[%s1193 + $0x174] sm:$0xe]
  %v2652 = vld [vmem:[%s1193 + $0x180] sm:$0xe]
  %v2653 = vld [vmem:[%s1193 + $0x18c] sm:$0xe]
  %v2718 = vunpack.c.l.b16 %v2526
  %v2719 = vunpack.c.l.b16 %v2527
  %v2720 = vunpack.c.l.b16 %v2528
  %v2721 = vunpack.c.l.b16 %v2529
  %v2722 = vunpack.c.l.b16 %v2530
  %v2723 = vunpack.c.l.b16 %v2531
  %v2724 = vunpack.c.l.b16 %v2532
  %v2725 = vunpack.c.l.b16 %v2533
  %v2726 = vunpack.c.l.b16 %v2534
  %v2727 = vunpack.c.l.b16 %v2535
  %v2728 = vunpack.c.l.b16 %v2536
  %v2729 = vunpack.c.l.b16 %v2537
  %v2730 = vunpack.c.l.b16 %v2538
  %v2731 = vunpack.c.l.b16 %v2539
  %v2732 = vunpack.c.l.b16 %v2540
  %v2733 = vunpack.c.l.b16 %v2541
  %v2734 = vunpack.c.l.b16 %v2542
  %v2735 = vunpack.c.l.b16 %v2543
  %v2736 = vunpack.c.l.b16 %v2544
  %v2737 = vunpack.c.l.b16 %v2545
  %v2738 = vunpack.c.l.b16 %v2546
  %v2739 = vunpack.c.l.b16 %v2547
  %v2740 = vunpack.c.l.b16 %v2548
  %v2741 = vunpack.c.l.b16 %v2549
  %v2742 = vunpack.c.l.b16 %v2550
  %v2743 = vunpack.c.l.b16 %v2551
  %v2744 = vunpack.c.l.b16 %v2552
  %v2745 = vunpack.c.l.b16 %v2553
  %v2746 = vunpack.c.l.b16 %v2554
  %v2747 = vunpack.c.l.b16 %v2555
  %v2748 = vunpack.c.l.b16 %v2556
  %v2749 = vunpack.c.l.b16 %v2557
  %v2750 = vunpack.c.l.b16 %v2558
  %v2751 = vunpack.c.l.b16 %v2559
  %v2752 = vunpack.c.l.b16 %v2560
  %v2753 = vunpack.c.l.b16 %v2561
  %v2754 = vunpack.c.l.b16 %v2562
  %v2755 = vunpack.c.l.b16 %v2563
  %v2756 = vunpack.c.l.b16 %v2564
  %v2757 = vunpack.c.l.b16 %v2565
  %v2758 = vunpack.c.l.b16 %v2566
  %v2759 = vunpack.c.l.b16 %v2567
  %v2760 = vunpack.c.l.b16 %v2568
  %v2761 = vunpack.c.l.b16 %v2569
  %v2762 = vunpack.c.l.b16 %v2570
  %v2763 = vunpack.c.l.b16 %v2571
  %v2764 = vunpack.c.l.b16 %v2572
  %v2765 = vunpack.c.l.b16 %v2573
  %v2766 = vunpack.c.l.b16 %v2574
  %v2767 = vunpack.c.l.b16 %v2575
  %v2768 = vunpack.c.l.b16 %v2576
  %v2769 = vunpack.c.l.b16 %v2577
  %v2770 = vunpack.c.l.b16 %v2578
  %v2771 = vunpack.c.l.b16 %v2579
  %v2772 = vunpack.c.l.b16 %v2580
  %v2773 = vunpack.c.l.b16 %v2581
  %v2774 = vunpack.c.l.b16 %v2582
  %v2775 = vunpack.c.l.b16 %v2583
  %v2776 = vunpack.c.l.b16 %v2584
  %v2777 = vunpack.c.l.b16 %v2585
  %v2778 = vunpack.c.l.b16 %v2586
  %v2779 = vunpack.c.l.b16 %v2587
  %v2780 = vunpack.c.l.b16 %v2588
  %v2781 = vunpack.c.l.b16 %v2589
  %v2782 = vpack.c.b16 %v2719, %v2718
  %v2783 = vpack.c.b16 %v2721, %v2720
  %v2784 = vpack.c.b16 %v2723, %v2722
  %v2785 = vpack.c.b16 %v2725, %v2724
  %v2786 = vpack.c.b16 %v2727, %v2726
  %v2787 = vpack.c.b16 %v2729, %v2728
  %v2788 = vpack.c.b16 %v2731, %v2730
  %v2789 = vpack.c.b16 %v2733, %v2732
  %v2790 = vpack.c.b16 %v2735, %v2734
  %v2791 = vpack.c.b16 %v2737, %v2736
  %v2792 = vpack.c.b16 %v2739, %v2738
  %v2793 = vpack.c.b16 %v2741, %v2740
  %v2794 = vpack.c.b16 %v2743, %v2742
  %v2795 = vpack.c.b16 %v2745, %v2744
  %v2796 = vpack.c.b16 %v2747, %v2746
  %v2797 = vpack.c.b16 %v2749, %v2748
  %v2798 = vpack.c.b16 %v2751, %v2750
  %v2799 = vpack.c.b16 %v2753, %v2752
  %v2800 = vpack.c.b16 %v2755, %v2754
  %v2801 = vpack.c.b16 %v2757, %v2756
  %v2802 = vpack.c.b16 %v2759, %v2758
  %v2803 = vpack.c.b16 %v2761, %v2760
  %v2804 = vpack.c.b16 %v2763, %v2762
  %v2805 = vpack.c.b16 %v2765, %v2764
  %v2806 = vpack.c.b16 %v2767, %v2766
  %v2807 = vpack.c.b16 %v2769, %v2768
  %v2808 = vpack.c.b16 %v2771, %v2770
  %v2809 = vpack.c.b16 %v2773, %v2772
  %v2810 = vpack.c.b16 %v2775, %v2774
  %v2811 = vpack.c.b16 %v2777, %v2776
  %v2812 = vpack.c.b16 %v2779, %v2778
  %v2813 = vpack.c.b16 %v2781, %v2780
  %v2878 = vunpack.c.l.b16 %v2590
  %v2879 = vunpack.c.l.b16 %v2591
  %v2880 = vunpack.c.l.b16 %v2592
  %v2881 = vunpack.c.l.b16 %v2593
  %v2882 = vunpack.c.l.b16 %v2594
  %v2883 = vunpack.c.l.b16 %v2595
  %v2884 = vunpack.c.l.b16 %v2596
  %v2885 = vunpack.c.l.b16 %v2597
  %v2886 = vunpack.c.l.b16 %v2598
  %v2887 = vunpack.c.l.b16 %v2599
  %v2888 = vunpack.c.l.b16 %v2600
  %v2889 = vunpack.c.l.b16 %v2601
  %v2890 = vunpack.c.l.b16 %v2602
  %v2891 = vunpack.c.l.b16 %v2603
  %v2892 = vunpack.c.l.b16 %v2604
  %v2893 = vunpack.c.l.b16 %v2605
  %v2894 = vunpack.c.l.b16 %v2606
  %v2895 = vunpack.c.l.b16 %v2607
  %v2896 = vunpack.c.l.b16 %v2608
  %v2897 = vunpack.c.l.b16 %v2609
  %v2898 = vunpack.c.l.b16 %v2610
  %v2899 = vunpack.c.l.b16 %v2611
  %v2900 = vunpack.c.l.b16 %v2612
  %v2901 = vunpack.c.l.b16 %v2613
  %v2902 = vunpack.c.l.b16 %v2614
  %v2903 = vunpack.c.l.b16 %v2615
  %v2904 = vunpack.c.l.b16 %v2616
  %v2905 = vunpack.c.l.b16 %v2617
  %v2906 = vunpack.c.l.b16 %v2618
  %v2907 = vunpack.c.l.b16 %v2619
  %v2908 = vunpack.c.l.b16 %v2620
  %v2909 = vunpack.c.l.b16 %v2621
  %v2910 = vpack.c.b16 %v2878, %v2878
  %v2911 = vpack.c.b16 %v2879, %v2879
  %v2912 = vpack.c.b16 %v2880, %v2880
  %v2913 = vpack.c.b16 %v2881, %v2881
  %v2914 = vpack.c.b16 %v2882, %v2882
  %v2915 = vpack.c.b16 %v2883, %v2883
  %v2916 = vpack.c.b16 %v2884, %v2884
  %v2917 = vpack.c.b16 %v2885, %v2885
  %v2918 = vpack.c.b16 %v2886, %v2886
  %v2919 = vpack.c.b16 %v2887, %v2887
  %v2920 = vpack.c.b16 %v2888, %v2888
  %v2921 = vpack.c.b16 %v2889, %v2889
  %v2922 = vpack.c.b16 %v2890, %v2890
  %v2923 = vpack.c.b16 %v2891, %v2891
  %v2924 = vpack.c.b16 %v2892, %v2892
  %v2925 = vpack.c.b16 %v2893, %v2893
  %v2926 = vpack.c.b16 %v2894, %v2894
  %v2927 = vpack.c.b16 %v2895, %v2895
  %v2928 = vpack.c.b16 %v2896, %v2896
  %v2929 = vpack.c.b16 %v2897, %v2897
  %v2930 = vpack.c.b16 %v2898, %v2898
  %v2931 = vpack.c.b16 %v2899, %v2899
  %v2932 = vpack.c.b16 %v2900, %v2900
  %v2933 = vpack.c.b16 %v2901, %v2901
  %v2934 = vpack.c.b16 %v2902, %v2902
  %v2935 = vpack.c.b16 %v2903, %v2903
  %v2936 = vpack.c.b16 %v2904, %v2904
  %v2937 = vpack.c.b16 %v2905, %v2905
  %v2938 = vpack.c.b16 %v2906, %v2906
  %v2939 = vpack.c.b16 %v2907, %v2907
  %v2940 = vpack.c.b16 %v2908, %v2908
  %v2941 = vpack.c.b16 %v2909, %v2909
  %v2943 = vshrl.u32 %v2782, 16
  %v2945 = vshll.u32 %v2782, 16
  %v2947 = vrot.slane %v2945, 1
  %v2948 = vor.u32 %v2943, %v2947
  %v2950 = vshll.u32 %v2910, 16
  %v2952 = vrot.slane %v2950, 1
  %v2953 = vsel %vm1836, %v2948, %v2952
  %v2955 = vshrl.u32 %v2783, 16
  %v2957 = vshll.u32 %v2783, 16
  %v2959 = vrot.slane %v2957, 1
  %v2960 = vor.u32 %v2955, %v2959
  %v2962 = vshll.u32 %v2911, 16
  %v2964 = vrot.slane %v2962, 1
  %v2965 = vsel %vm1836, %v2960, %v2964
  %v2967 = vshrl.u32 %v2784, 16
  %v2969 = vshll.u32 %v2784, 16
  %v2971 = vrot.slane %v2969, 1
  %v2972 = vor.u32 %v2967, %v2971
  %v2974 = vshll.u32 %v2912, 16
  %v2976 = vrot.slane %v2974, 1
  %v2977 = vsel %vm1836, %v2972, %v2976
  %v2979 = vshrl.u32 %v2785, 16
  %v2981 = vshll.u32 %v2785, 16
  %v2983 = vrot.slane %v2981, 1
  %v2984 = vor.u32 %v2979, %v2983
  %v2986 = vshll.u32 %v2913, 16
  %v2988 = vrot.slane %v2986, 1
  %v2989 = vsel %vm1836, %v2984, %v2988
  %v2991 = vshrl.u32 %v2786, 16
  %v2993 = vshll.u32 %v2786, 16
  %v2995 = vrot.slane %v2993, 1
  %v2996 = vor.u32 %v2991, %v2995
  %v2998 = vshll.u32 %v2914, 16
  %v3000 = vrot.slane %v2998, 1
  %v3001 = vsel %vm1836, %v2996, %v3000
  %v3003 = vshrl.u32 %v2787, 16
  %v3005 = vshll.u32 %v2787, 16
  %v3007 = vrot.slane %v3005, 1
  %v3008 = vor.u32 %v3003, %v3007
  %v3010 = vshll.u32 %v2915, 16
  %v3012 = vrot.slane %v3010, 1
  %v3013 = vsel %vm1836, %v3008, %v3012
  %v3015 = vshrl.u32 %v2788, 16
  %v3017 = vshll.u32 %v2788, 16
  %v3019 = vrot.slane %v3017, 1
  %v3020 = vor.u32 %v3015, %v3019
  %v3022 = vshll.u32 %v2916, 16
  %v3024 = vrot.slane %v3022, 1
  %v3025 = vsel %vm1836, %v3020, %v3024
  %v3027 = vshrl.u32 %v2789, 16
  %v3029 = vshll.u32 %v2789, 16
  %v3031 = vrot.slane %v3029, 1
  %v3032 = vor.u32 %v3027, %v3031
  %v3034 = vshll.u32 %v2917, 16
  %v3036 = vrot.slane %v3034, 1
  %v3037 = vsel %vm1836, %v3032, %v3036
  %v3039 = vshrl.u32 %v2790, 16
  %v3041 = vshll.u32 %v2790, 16
  %v3043 = vrot.slane %v3041, 1
  %v3044 = vor.u32 %v3039, %v3043
  %v3046 = vshll.u32 %v2918, 16
  %v3048 = vrot.slane %v3046, 1
  %v3049 = vsel %vm1836, %v3044, %v3048
  %v3051 = vshrl.u32 %v2791, 16
  %v3053 = vshll.u32 %v2791, 16
  %v3055 = vrot.slane %v3053, 1
  %v3056 = vor.u32 %v3051, %v3055
  %v3058 = vshll.u32 %v2919, 16
  %v3060 = vrot.slane %v3058, 1
  %v3061 = vsel %vm1836, %v3056, %v3060
  %v3063 = vshrl.u32 %v2792, 16
  %v3065 = vshll.u32 %v2792, 16
  %v3067 = vrot.slane %v3065, 1
  %v3068 = vor.u32 %v3063, %v3067
  %v3070 = vshll.u32 %v2920, 16
  %v3072 = vrot.slane %v3070, 1
  %v3073 = vsel %vm1836, %v3068, %v3072
  %v3075 = vshrl.u32 %v2793, 16
  %v3077 = vshll.u32 %v2793, 16
  %v3079 = vrot.slane %v3077, 1
  %v3080 = vor.u32 %v3075, %v3079
  %v3082 = vshll.u32 %v2921, 16
  %v3084 = vrot.slane %v3082, 1
  %v3085 = vsel %vm1836, %v3080, %v3084
  %v3087 = vshrl.u32 %v2794, 16
  %v3089 = vshll.u32 %v2794, 16
  %v3091 = vrot.slane %v3089, 1
  %v3092 = vor.u32 %v3087, %v3091
  %v3094 = vshll.u32 %v2922, 16
  %v3096 = vrot.slane %v3094, 1
  %v3097 = vsel %vm1836, %v3092, %v3096
  %v3099 = vshrl.u32 %v2795, 16
  %v3101 = vshll.u32 %v2795, 16
  %v3103 = vrot.slane %v3101, 1
  %v3104 = vor.u32 %v3099, %v3103
  %v3106 = vshll.u32 %v2923, 16
  %v3108 = vrot.slane %v3106, 1
  %v3109 = vsel %vm1836, %v3104, %v3108
  %v3111 = vshrl.u32 %v2796, 16
  %v3113 = vshll.u32 %v2796, 16
  %v3115 = vrot.slane %v3113, 1
  %v3116 = vor.u32 %v3111, %v3115
  %v3118 = vshll.u32 %v2924, 16
  %v3120 = vrot.slane %v3118, 1
  %v3121 = vsel %vm1836, %v3116, %v3120
  %v3123 = vshrl.u32 %v2797, 16
  %v3125 = vshll.u32 %v2797, 16
  %v3127 = vrot.slane %v3125, 1
  %v3128 = vor.u32 %v3123, %v3127
  %v3130 = vshll.u32 %v2925, 16
  %v3132 = vrot.slane %v3130, 1
  %v3133 = vsel %vm1836, %v3128, %v3132
  %v3135 = vshrl.u32 %v2798, 16
  %v3137 = vshll.u32 %v2798, 16
  %v3139 = vrot.slane %v3137, 1
  %v3140 = vor.u32 %v3135, %v3139
  %v3142 = vshll.u32 %v2926, 16
  %v3144 = vrot.slane %v3142, 1
  %v3145 = vsel %vm1836, %v3140, %v3144
  %v3147 = vshrl.u32 %v2799, 16
  %v3149 = vshll.u32 %v2799, 16
  %v3151 = vrot.slane %v3149, 1
  %v3152 = vor.u32 %v3147, %v3151
  %v3154 = vshll.u32 %v2927, 16
  %v3156 = vrot.slane %v3154, 1
  %v3157 = vsel %vm1836, %v3152, %v3156
  %v3159 = vshrl.u32 %v2800, 16
  %v3161 = vshll.u32 %v2800, 16
  %v3163 = vrot.slane %v3161, 1
  %v3164 = vor.u32 %v3159, %v3163
  %v3166 = vshll.u32 %v2928, 16
  %v3168 = vrot.slane %v3166, 1
  %v3169 = vsel %vm1836, %v3164, %v3168
  %v3171 = vshrl.u32 %v2801, 16
  %v3173 = vshll.u32 %v2801, 16
  %v3175 = vrot.slane %v3173, 1
  %v3176 = vor.u32 %v3171, %v3175
  %v3178 = vshll.u32 %v2929, 16
  %v3180 = vrot.slane %v3178, 1
  %v3181 = vsel %vm1836, %v3176, %v3180
  %v3183 = vshrl.u32 %v2802, 16
  %v3185 = vshll.u32 %v2802, 16
  %v3187 = vrot.slane %v3185, 1
  %v3188 = vor.u32 %v3183, %v3187
  %v3190 = vshll.u32 %v2930, 16
  %v3192 = vrot.slane %v3190, 1
  %v3193 = vsel %vm1836, %v3188, %v3192
  %v3195 = vshrl.u32 %v2803, 16
  %v3197 = vshll.u32 %v2803, 16
  %v3199 = vrot.slane %v3197, 1
  %v3200 = vor.u32 %v3195, %v3199
  %v3202 = vshll.u32 %v2931, 16
  %v3204 = vrot.slane %v3202, 1
  %v3205 = vsel %vm1836, %v3200, %v3204
  %v3207 = vshrl.u32 %v2804, 16
  %v3209 = vshll.u32 %v2804, 16
  %v3211 = vrot.slane %v3209, 1
  %v3212 = vor.u32 %v3207, %v3211
  %v3214 = vshll.u32 %v2932, 16
  %v3216 = vrot.slane %v3214, 1
  %v3217 = vsel %vm1836, %v3212, %v3216
  %v3219 = vshrl.u32 %v2805, 16
  %v3221 = vshll.u32 %v2805, 16
  %v3223 = vrot.slane %v3221, 1
  %v3224 = vor.u32 %v3219, %v3223
  %v3226 = vshll.u32 %v2933, 16
  %v3228 = vrot.slane %v3226, 1
  %v3229 = vsel %vm1836, %v3224, %v3228
  %v3231 = vshrl.u32 %v2806, 16
  %v3233 = vshll.u32 %v2806, 16
  %v3235 = vrot.slane %v3233, 1
  %v3236 = vor.u32 %v3231, %v3235
  %v3238 = vshll.u32 %v2934, 16
  %v3240 = vrot.slane %v3238, 1
  %v3241 = vsel %vm1836, %v3236, %v3240
  %v3243 = vshrl.u32 %v2807, 16
  %v3245 = vshll.u32 %v2807, 16
  %v3247 = vrot.slane %v3245, 1
  %v3248 = vor.u32 %v3243, %v3247
  %v3250 = vshll.u32 %v2935, 16
  %v3252 = vrot.slane %v3250, 1
  %v3253 = vsel %vm1836, %v3248, %v3252
  %v3255 = vshrl.u32 %v2808, 16
  %v3257 = vshll.u32 %v2808, 16
  %v3259 = vrot.slane %v3257, 1
  %v3260 = vor.u32 %v3255, %v3259
  %v3262 = vshll.u32 %v2936, 16
  %v3264 = vrot.slane %v3262, 1
  %v3265 = vsel %vm1836, %v3260, %v3264
  %v3267 = vshrl.u32 %v2809, 16
  %v3269 = vshll.u32 %v2809, 16
  %v3271 = vrot.slane %v3269, 1
  %v3272 = vor.u32 %v3267, %v3271
  %v3274 = vshll.u32 %v2937, 16
  %v3276 = vrot.slane %v3274, 1
  %v3277 = vsel %vm1836, %v3272, %v3276
  %v3279 = vshrl.u32 %v2810, 16
  %v3281 = vshll.u32 %v2810, 16
  %v3283 = vrot.slane %v3281, 1
  %v3284 = vor.u32 %v3279, %v3283
  %v3286 = vshll.u32 %v2938, 16
  %v3288 = vrot.slane %v3286, 1
  %v3289 = vsel %vm1836, %v3284, %v3288
  %v3291 = vshrl.u32 %v2811, 16
  %v3293 = vshll.u32 %v2811, 16
  %v3295 = vrot.slane %v3293, 1
  %v3296 = vor.u32 %v3291, %v3295
  %v3298 = vshll.u32 %v2939, 16
  %v3300 = vrot.slane %v3298, 1
  %v3301 = vsel %vm1836, %v3296, %v3300
  %v3303 = vshrl.u32 %v2812, 16
  %v3305 = vshll.u32 %v2812, 16
  %v3307 = vrot.slane %v3305, 1
  %v3308 = vor.u32 %v3303, %v3307
  %v3310 = vshll.u32 %v2940, 16
  %v3312 = vrot.slane %v3310, 1
  %v3313 = vsel %vm1836, %v3308, %v3312
  %v3315 = vshrl.u32 %v2813, 16
  %v3317 = vshll.u32 %v2813, 16
  %v3319 = vrot.slane %v3317, 1
  %v3320 = vor.u32 %v3315, %v3319
  %v3322 = vshll.u32 %v2941, 16
  %v3324 = vrot.slane %v3322, 1
  %v3325 = vsel %vm1836, %v3320, %v3324
  %v3390 = vunpack.c.l.b16 %v2622
  %v3391 = vunpack.c.l.b16 %v2623
  %v3392 = vunpack.c.l.b16 %v2624
  %v3393 = vunpack.c.l.b16 %v2625
  %v3394 = vunpack.c.l.b16 %v2626
  %v3395 = vunpack.c.l.b16 %v2627
  %v3396 = vunpack.c.l.b16 %v2628
  %v3397 = vunpack.c.l.b16 %v2629
  %v3398 = vunpack.c.l.b16 %v2630
  %v3399 = vunpack.c.l.b16 %v2631
  %v3400 = vunpack.c.l.b16 %v2632
  %v3401 = vunpack.c.l.b16 %v2633
  %v3402 = vunpack.c.l.b16 %v2634
  %v3403 = vunpack.c.l.b16 %v2635
  %v3404 = vunpack.c.l.b16 %v2636
  %v3405 = vunpack.c.l.b16 %v2637
  %v3406 = vunpack.c.l.b16 %v2638
  %v3407 = vunpack.c.l.b16 %v2639
  %v3408 = vunpack.c.l.b16 %v2640
  %v3409 = vunpack.c.l.b16 %v2641
  %v3410 = vunpack.c.l.b16 %v2642
  %v3411 = vunpack.c.l.b16 %v2643
  %v3412 = vunpack.c.l.b16 %v2644
  %v3413 = vunpack.c.l.b16 %v2645
  %v3414 = vunpack.c.l.b16 %v2646
  %v3415 = vunpack.c.l.b16 %v2647
  %v3416 = vunpack.c.l.b16 %v2648
  %v3417 = vunpack.c.l.b16 %v2649
  %v3418 = vunpack.c.l.b16 %v2650
  %v3419 = vunpack.c.l.b16 %v2651
  %v3420 = vunpack.c.l.b16 %v2652
  %v3421 = vunpack.c.l.b16 %v2653
  %v3422 = vpack.c.b16 %v2719, %v3390
  %v3423 = vpack.c.b16 %v2721, %v3391
  %v3424 = vpack.c.b16 %v2723, %v3392
  %v3425 = vpack.c.b16 %v2725, %v3393
  %v3426 = vpack.c.b16 %v2727, %v3394
  %v3427 = vpack.c.b16 %v2729, %v3395
  %v3428 = vpack.c.b16 %v2731, %v3396
  %v3429 = vpack.c.b16 %v2733, %v3397
  %v3430 = vpack.c.b16 %v2735, %v3398
  %v3431 = vpack.c.b16 %v2737, %v3399
  %v3432 = vpack.c.b16 %v2739, %v3400
  %v3433 = vpack.c.b16 %v2741, %v3401
  %v3434 = vpack.c.b16 %v2743, %v3402
  %v3435 = vpack.c.b16 %v2745, %v3403
  %v3436 = vpack.c.b16 %v2747, %v3404
  %v3437 = vpack.c.b16 %v2749, %v3405
  %v3438 = vpack.c.b16 %v2751, %v3406
  %v3439 = vpack.c.b16 %v2753, %v3407
  %v3440 = vpack.c.b16 %v2755, %v3408
  %v3441 = vpack.c.b16 %v2757, %v3409
  %v3442 = vpack.c.b16 %v2759, %v3410
  %v3443 = vpack.c.b16 %v2761, %v3411
  %v3444 = vpack.c.b16 %v2763, %v3412
  %v3445 = vpack.c.b16 %v2765, %v3413
  %v3446 = vpack.c.b16 %v2767, %v3414
  %v3447 = vpack.c.b16 %v2769, %v3415
  %v3448 = vpack.c.b16 %v2771, %v3416
  %v3449 = vpack.c.b16 %v2773, %v3417
  %v3450 = vpack.c.b16 %v2775, %v3418
  %v3451 = vpack.c.b16 %v2777, %v3419
  %v3452 = vpack.c.b16 %v2779, %v3420
  %v3453 = vpack.c.b16 %v2781, %v3421
  %v3454 = vrot.slane %v3422, 1
  %v3455 = vrot.slane %v2910, 1
  %v3456 = vsel %vm2349, %v3454, %v3455
  %v3457 = vrot.slane %v3423, 1
  %v3458 = vrot.slane %v2911, 1
  %v3459 = vsel %vm2349, %v3457, %v3458
  %v3460 = vrot.slane %v3424, 1
  %v3461 = vrot.slane %v2912, 1
  %v3462 = vsel %vm2349, %v3460, %v3461
  %v3463 = vrot.slane %v3425, 1
  %v3464 = vrot.slane %v2913, 1
  %v3465 = vsel %vm2349, %v3463, %v3464
  %v3466 = vrot.slane %v3426, 1
  %v3467 = vrot.slane %v2914, 1
  %v3468 = vsel %vm2349, %v3466, %v3467
  %v3469 = vrot.slane %v3427, 1
  %v3470 = vrot.slane %v2915, 1
  %v3471 = vsel %vm2349, %v3469, %v3470
  %v3472 = vrot.slane %v3428, 1
  %v3473 = vrot.slane %v2916, 1
  %v3474 = vsel %vm2349, %v3472, %v3473
  %v3475 = vrot.slane %v3429, 1
  %v3476 = vrot.slane %v2917, 1
  %v3477 = vsel %vm2349, %v3475, %v3476
  %v3478 = vrot.slane %v3430, 1
  %v3479 = vrot.slane %v2918, 1
  %v3480 = vsel %vm2349, %v3478, %v3479
  %v3481 = vrot.slane %v3431, 1
  %v3482 = vrot.slane %v2919, 1
  %v3483 = vsel %vm2349, %v3481, %v3482
  %v3484 = vrot.slane %v3432, 1
  %v3485 = vrot.slane %v2920, 1
  %v3486 = vsel %vm2349, %v3484, %v3485
  %v3487 = vrot.slane %v3433, 1
  %v3488 = vrot.slane %v2921, 1
  %v3489 = vsel %vm2349, %v3487, %v3488
  %v3490 = vrot.slane %v3434, 1
  %v3491 = vrot.slane %v2922, 1
  %v3492 = vsel %vm2349, %v3490, %v3491
  %v3493 = vrot.slane %v3435, 1
  %v3494 = vrot.slane %v2923, 1
  %v3495 = vsel %vm2349, %v3493, %v3494
  %v3496 = vrot.slane %v3436, 1
  %v3497 = vrot.slane %v2924, 1
  %v3498 = vsel %vm2349, %v3496, %v3497
  %v3499 = vrot.slane %v3437, 1
  %v3500 = vrot.slane %v2925, 1
  %v3501 = vsel %vm2349, %v3499, %v3500
  %v3502 = vrot.slane %v3438, 1
  %v3503 = vrot.slane %v2926, 1
  %v3504 = vsel %vm2349, %v3502, %v3503
  %v3505 = vrot.slane %v3439, 1
  %v3506 = vrot.slane %v2927, 1
  %v3507 = vsel %vm2349, %v3505, %v3506
  %v3508 = vrot.slane %v3440, 1
  %v3509 = vrot.slane %v2928, 1
  %v3510 = vsel %vm2349, %v3508, %v3509
  %v3511 = vrot.slane %v3441, 1
  %v3512 = vrot.slane %v2929, 1
  %v3513 = vsel %vm2349, %v3511, %v3512
  %v3514 = vrot.slane %v3442, 1
  %v3515 = vrot.slane %v2930, 1
  %v3516 = vsel %vm2349, %v3514, %v3515
  %v3517 = vrot.slane %v3443, 1
  %v3518 = vrot.slane %v2931, 1
  %v3519 = vsel %vm2349, %v3517, %v3518
  %v3520 = vrot.slane %v3444, 1
  %v3521 = vrot.slane %v2932, 1
  %v3522 = vsel %vm2349, %v3520, %v3521
  %v3523 = vrot.slane %v3445, 1
  %v3524 = vrot.slane %v2933, 1
  %v3525 = vsel %vm2349, %v3523, %v3524
  %v3526 = vrot.slane %v3446, 1
  %v3527 = vrot.slane %v2934, 1
  %v3528 = vsel %vm2349, %v3526, %v3527
  %v3529 = vrot.slane %v3447, 1
  %v3530 = vrot.slane %v2935, 1
  %v3531 = vsel %vm2349, %v3529, %v3530
  %v3532 = vrot.slane %v3448, 1
  %v3533 = vrot.slane %v2936, 1
  %v3534 = vsel %vm2349, %v3532, %v3533
  %v3535 = vrot.slane %v3449, 1
  %v3536 = vrot.slane %v2937, 1
  %v3537 = vsel %vm2349, %v3535, %v3536
  %v3538 = vrot.slane %v3450, 1
  %v3539 = vrot.slane %v2938, 1
  %v3540 = vsel %vm2349, %v3538, %v3539
  %v3541 = vrot.slane %v3451, 1
  %v3542 = vrot.slane %v2939, 1
  %v3543 = vsel %vm2349, %v3541, %v3542
  %v3544 = vrot.slane %v3452, 1
  %v3545 = vrot.slane %v2940, 1
  %v3546 = vsel %vm2349, %v3544, %v3545
  %v3547 = vrot.slane %v3453, 1
  %v3548 = vrot.slane %v2941, 1
  %v3549 = vsel %vm2349, %v3547, %v3548
  %v3582 = vld [vmem:[%s1 + $0x180] sm:$0xff]
  %v3583 = vld [vmem:[%s1 + $0x188] sm:$0xff]
  %v3584 = vld [vmem:[%s1 + $0x190] sm:$0xff]
  %v3585 = vld [vmem:[%s1 + $0x198] sm:$0xff]
  %v3586 = vld [vmem:[%s1 + $0x1a0] sm:$0xff]
  %v3587 = vld [vmem:[%s1 + $0x1a8] sm:$0xff]
  %v3588 = vld [vmem:[%s1 + $0x1b0] sm:$0xff]
  %v3589 = vld [vmem:[%s1 + $0x1b8] sm:$0xff]
  %v3590 = vld [vmem:[%s1 + $0x1c0] sm:$0xff]
  %v3591 = vld [vmem:[%s1 + $0x1c8] sm:$0xff]
  %v3592 = vld [vmem:[%s1 + $0x1d0] sm:$0xff]
  %v3593 = vld [vmem:[%s1 + $0x1d8] sm:$0xff]
  %v3594 = vld [vmem:[%s1 + $0x1e0] sm:$0xff]
  %v3595 = vld [vmem:[%s1 + $0x1e8] sm:$0xff]
  %v3596 = vld [vmem:[%s1 + $0x1f0] sm:$0xff]
  %v3597 = vld [vmem:[%s1 + $0x1f8] sm:$0xff]
  %v3598 = vld [vmem:[%s1 + $0x200] sm:$0xff]
  %v3599 = vld [vmem:[%s1 + $0x208] sm:$0xff]
  %v3600 = vld [vmem:[%s1 + $0x210] sm:$0xff]
  %v3601 = vld [vmem:[%s1 + $0x218] sm:$0xff]
  %v3602 = vld [vmem:[%s1 + $0x220] sm:$0xff]
  %v3603 = vld [vmem:[%s1 + $0x228] sm:$0xff]
  %v3604 = vld [vmem:[%s1 + $0x230] sm:$0xff]
  %v3605 = vld [vmem:[%s1 + $0x238] sm:$0xff]
  %v3606 = vld [vmem:[%s1 + $0x240] sm:$0xff]
  %v3607 = vld [vmem:[%s1 + $0x248] sm:$0xff]
  %v3608 = vld [vmem:[%s1 + $0x250] sm:$0xff]
  %v3609 = vld [vmem:[%s1 + $0x258] sm:$0xff]
  %v3610 = vld [vmem:[%s1 + $0x260] sm:$0xff]
  %v3611 = vld [vmem:[%s1 + $0x268] sm:$0xff]
  %v3612 = vld [vmem:[%s1 + $0x270] sm:$0xff]
  %v3613 = vld [vmem:[%s1 + $0x278] sm:$0xff]
  %v3614 = vld [vmem:[%s1 + $0x280] sm:$0xff]
  %v3615 = vld [vmem:[%s1 + $0x288] sm:$0xff]
  %v3616 = vld [vmem:[%s1 + $0x290] sm:$0xff]
  %v3617 = vld [vmem:[%s1 + $0x298] sm:$0xff]
  %v3618 = vld [vmem:[%s1 + $0x2a0] sm:$0xff]
  %v3619 = vld [vmem:[%s1 + $0x2a8] sm:$0xff]
  %v3620 = vld [vmem:[%s1 + $0x2b0] sm:$0xff]
  %v3621 = vld [vmem:[%s1 + $0x2b8] sm:$0xff]
  %v3622 = vld [vmem:[%s1 + $0x2c0] sm:$0xff]
  %v3623 = vld [vmem:[%s1 + $0x2c8] sm:$0xff]
  %v3624 = vld [vmem:[%s1 + $0x2d0] sm:$0xff]
  %v3625 = vld [vmem:[%s1 + $0x2d8] sm:$0xff]
  %v3626 = vld [vmem:[%s1 + $0x2e0] sm:$0xff]
  %v3627 = vld [vmem:[%s1 + $0x2e8] sm:$0xff]
  %v3628 = vld [vmem:[%s1 + $0x2f0] sm:$0xff]
  %v3629 = vld [vmem:[%s1 + $0x2f8] sm:$0xff]
  %v3678 = vunpack.c.l.b16 %v3582
  %v3679 = vunpack.c.h.b16 %v3582
  %v3680 = vunpack.c.l.b16 %v3583
  %v3681 = vunpack.c.h.b16 %v3583
  %v3682 = vunpack.c.l.b16 %v3584
  %v3683 = vunpack.c.h.b16 %v3584
  %v3684 = vunpack.c.l.b16 %v3585
  %v3685 = vunpack.c.h.b16 %v3585
  %v3686 = vunpack.c.l.b16 %v3586
  %v3687 = vunpack.c.h.b16 %v3586
  %v3688 = vunpack.c.l.b16 %v3587
  %v3689 = vunpack.c.h.b16 %v3587
  %v3690 = vunpack.c.l.b16 %v3588
  %v3691 = vunpack.c.h.b16 %v3588
  %v3692 = vunpack.c.l.b16 %v3589
  %v3693 = vunpack.c.h.b16 %v3589
  %v3694 = vunpack.c.l.b16 %v3590
  %v3695 = vunpack.c.h.b16 %v3590
  %v3696 = vunpack.c.l.b16 %v3591
  %v3697 = vunpack.c.h.b16 %v3591
  %v3698 = vunpack.c.l.b16 %v3592
  %v3699 = vunpack.c.h.b16 %v3592
  %v3700 = vunpack.c.l.b16 %v3593
  %v3701 = vunpack.c.h.b16 %v3593
  %v3702 = vunpack.c.l.b16 %v3594
  %v3703 = vunpack.c.h.b16 %v3594
  %v3704 = vunpack.c.l.b16 %v3595
  %v3705 = vunpack.c.h.b16 %v3595
  %v3706 = vunpack.c.l.b16 %v3596
  %v3707 = vunpack.c.h.b16 %v3596
  %v3708 = vunpack.c.l.b16 %v3597
  %v3709 = vunpack.c.h.b16 %v3597
  %v3710 = vunpack.c.l.b16 %v3598
  %v3711 = vunpack.c.h.b16 %v3598
  %v3712 = vunpack.c.l.b16 %v3599
  %v3713 = vunpack.c.h.b16 %v3599
  %v3714 = vunpack.c.l.b16 %v3600
  %v3715 = vunpack.c.h.b16 %v3600
  %v3716 = vunpack.c.l.b16 %v3601
  %v3717 = vunpack.c.h.b16 %v3601
  %v3718 = vunpack.c.l.b16 %v3602
  %v3719 = vunpack.c.h.b16 %v3602
  %v3720 = vunpack.c.l.b16 %v3603
  %v3721 = vunpack.c.h.b16 %v3603
  %v3722 = vunpack.c.l.b16 %v3604
  %v3723 = vunpack.c.h.b16 %v3604
  %v3724 = vunpack.c.l.b16 %v3605
  %v3725 = vunpack.c.h.b16 %v3605
  %v3726 = vunpack.c.l.b16 %v3606
  %v3727 = vunpack.c.h.b16 %v3606
  %v3728 = vunpack.c.l.b16 %v3607
  %v3729 = vunpack.c.h.b16 %v3607
  %v3730 = vunpack.c.l.b16 %v3608
  %v3731 = vunpack.c.h.b16 %v3608
  %v3732 = vunpack.c.l.b16 %v3609
  %v3733 = vunpack.c.h.b16 %v3609
  %v3734 = vunpack.c.l.b16 %v3610
  %v3735 = vunpack.c.h.b16 %v3610
  %v3736 = vunpack.c.l.b16 %v3611
  %v3737 = vunpack.c.h.b16 %v3611
  %v3738 = vunpack.c.l.b16 %v3612
  %v3739 = vunpack.c.h.b16 %v3612
  %v3740 = vunpack.c.l.b16 %v3613
  %v3741 = vunpack.c.h.b16 %v3613
  %v3742 = vunpack.c.l.b16 %v3614
  %v3743 = vunpack.c.h.b16 %v3614
  %v3744 = vunpack.c.l.b16 %v3615
  %v3745 = vunpack.c.h.b16 %v3615
  %v3746 = vunpack.c.l.b16 %v3616
  %v3747 = vunpack.c.h.b16 %v3616
  %v3748 = vunpack.c.l.b16 %v3617
  %v3749 = vunpack.c.h.b16 %v3617
  %v3750 = vunpack.c.l.b16 %v3618
  %v3751 = vunpack.c.h.b16 %v3618
  %v3752 = vunpack.c.l.b16 %v3619
  %v3753 = vunpack.c.h.b16 %v3619
  %v3754 = vunpack.c.l.b16 %v3620
  %v3755 = vunpack.c.h.b16 %v3620
  %v3756 = vunpack.c.l.b16 %v3621
  %v3757 = vunpack.c.h.b16 %v3621
  %v3758 = vunpack.c.l.b16 %v3622
  %v3759 = vunpack.c.h.b16 %v3622
  %v3760 = vunpack.c.l.b16 %v3623
  %v3761 = vunpack.c.h.b16 %v3623
  %v3762 = vunpack.c.l.b16 %v3624
  %v3763 = vunpack.c.h.b16 %v3624
  %v3764 = vunpack.c.l.b16 %v3625
  %v3765 = vunpack.c.h.b16 %v3625
  %v3766 = vunpack.c.l.b16 %v3626
  %v3767 = vunpack.c.h.b16 %v3626
  %v3768 = vunpack.c.l.b16 %v3627
  %v3769 = vunpack.c.h.b16 %v3627
  %v3770 = vunpack.c.l.b16 %v3628
  %v3771 = vunpack.c.h.b16 %v3628
  %v3772 = vunpack.c.l.b16 %v3629
  %v3773 = vunpack.c.h.b16 %v3629
  %v3774 = vpack.c.b16 %v3680, %v3678
  %v3775 = vpack.c.b16 %v3681, %v3679
  %v3776 = vpack.c.b16 %v3684, %v3682
  %v3777 = vpack.c.b16 %v3685, %v3683
  %v3778 = vpack.c.b16 %v3688, %v3686
  %v3779 = vpack.c.b16 %v3689, %v3687
  %v3780 = vpack.c.b16 %v3692, %v3690
  %v3781 = vpack.c.b16 %v3693, %v3691
  %v3782 = vpack.c.b16 %v3696, %v3694
  %v3783 = vpack.c.b16 %v3697, %v3695
  %v3784 = vpack.c.b16 %v3700, %v3698
  %v3785 = vpack.c.b16 %v3701, %v3699
  %v3786 = vpack.c.b16 %v3704, %v3702
  %v3787 = vpack.c.b16 %v3705, %v3703
  %v3788 = vpack.c.b16 %v3708, %v3706
  %v3789 = vpack.c.b16 %v3709, %v3707
  %v3790 = vpack.c.b16 %v3712, %v3710
  %v3791 = vpack.c.b16 %v3713, %v3711
  %v3792 = vpack.c.b16 %v3716, %v3714
  %v3793 = vpack.c.b16 %v3717, %v3715
  %v3794 = vpack.c.b16 %v3720, %v3718
  %v3795 = vpack.c.b16 %v3721, %v3719
  %v3796 = vpack.c.b16 %v3724, %v3722
  %v3797 = vpack.c.b16 %v3725, %v3723
  %v3798 = vpack.c.b16 %v3728, %v3726
  %v3799 = vpack.c.b16 %v3729, %v3727
  %v3800 = vpack.c.b16 %v3732, %v3730
  %v3801 = vpack.c.b16 %v3733, %v3731
  %v3802 = vpack.c.b16 %v3736, %v3734
  %v3803 = vpack.c.b16 %v3737, %v3735
  %v3804 = vpack.c.b16 %v3740, %v3738
  %v3805 = vpack.c.b16 %v3741, %v3739
  %v3806 = vpack.c.b16 %v3744, %v3742
  %v3807 = vpack.c.b16 %v3745, %v3743
  %v3808 = vpack.c.b16 %v3748, %v3746
  %v3809 = vpack.c.b16 %v3749, %v3747
  %v3810 = vpack.c.b16 %v3752, %v3750
  %v3811 = vpack.c.b16 %v3753, %v3751
  %v3812 = vpack.c.b16 %v3756, %v3754
  %v3813 = vpack.c.b16 %v3757, %v3755
  %v3814 = vpack.c.b16 %v3760, %v3758
  %v3815 = vpack.c.b16 %v3761, %v3759
  %v3816 = vpack.c.b16 %v3764, %v3762
  %v3817 = vpack.c.b16 %v3765, %v3763
  %v3818 = vpack.c.b16 %v3768, %v3766
  %v3819 = vpack.c.b16 %v3769, %v3767
  %v3820 = vpack.c.b16 %v3772, %v3770
  %v3821 = vpack.c.b16 %v3773, %v3771
  %3870 = vmatprep.subr.bf16.mxu0 %v3775
  %3871 = vmatpush1.bf16.msra.mxu0 %v3774
  %3872 = vmatprep.subr.bf16.mxu0 %v3777
  %3873 = vmatpush1.bf16.msra.mxu0 %v3776
  %3874 = vmatprep.subr.bf16.mxu0 %v3779
  %3875 = vmatpush1.bf16.msra.mxu0 %v3778
  %3876 = vmatprep.subr.bf16.mxu0 %v3781
  %3877 = vmatpush1.bf16.msra.mxu0 %v3780
  %3878 = vmatprep.subr.bf16.mxu0 %v3783
  %3879 = vmatpush1.bf16.msra.mxu0 %v3782
  %3880 = vmatprep.subr.bf16.mxu0 %v3785
  %3881 = vmatpush1.bf16.msra.mxu0 %v3784
  %3882 = vmatprep.subr.bf16.mxu0 %v3787
  %3883 = vmatpush1.bf16.msra.mxu0 %v3786
  %3884 = vmatprep.subr.bf16.mxu0 %v3789
  %3885 = vmatpush1.bf16.msra.mxu0 %v3788
  %3886 = vmatprep.subr.bf16.mxu0 %v3791
  %3887 = vmatpush1.bf16.msra.mxu0 %v3790
  %3888 = vmatprep.subr.bf16.mxu0 %v3793
  %3889 = vmatpush1.bf16.msra.mxu0 %v3792
  %3890 = vmatprep.subr.bf16.mxu0 %v3795
  %3891 = vmatpush1.bf16.msra.mxu0 %v3794
  %3892 = vmatprep.subr.bf16.mxu0 %v3797
  %3893 = vmatpush1.bf16.msra.mxu0 %v3796
  %3894 = vmatprep.subr.bf16.mxu0 %v3799
  %3895 = vmatpush1.bf16.msra.mxu0 %v3798
  %3896 = vmatprep.subr.bf16.mxu0 %v3801
  %3897 = vmatpush1.bf16.msra.mxu0 %v3800
  %3898 = vmatprep.subr.bf16.mxu0 %v3803
  %3899 = vmatpush1.bf16.msra.mxu0 %v3802
  %3900 = vmatprep.subr.bf16.mxu0 %v3805
  %3901 = vmatpush1.bf16.msra.mxu0 %v3804
  %3902 = vmatprep.mubr.bf16.mxu0 %v2953
  %3903 = vmatmul.mubr.bf16.gmra.mrb[0].mxu0 %v2782
  %v3904 = vpop.f32.mrb[0].mxu0
  %v3905 = vadd.f32 0.0, %v3904
  %v3906 = vpop.f32.mrb[0].mxu0
  %v3907 = vadd.f32 0.0, %v3906
  %v3908 = vpop.f32.mrb[0].mxu0
  %v3909 = vadd.f32 0.0, %v3908
  %v3910 = vpop.f32.mrb[0].mxu0
  %v3911 = vadd.f32 0.0, %v3910
  %3912 = vmatprep.mubr.bf16.mxu0 %v2965
  %3913 = vmatmul.mubr.bf16.gmra.mrb[0].mxu0 %v2783
  %v3914 = vpop.f32.mrb[0].mxu0
  %v3915 = vadd.f32 0.0, %v3914
  %v3916 = vpop.f32.mrb[0].mxu0
  %v3917 = vadd.f32 0.0, %v3916
  %v3918 = vpop.f32.mrb[0].mxu0
  %v3919 = vadd.f32 0.0, %v3918
  %v3920 = vpop.f32.mrb[0].mxu0
  %v3921 = vadd.f32 0.0, %v3920
  %3922 = vmatprep.mubr.bf16.mxu0 %v2977
  %3923 = vmatmul.mubr.bf16.gmra.mrb[0].mxu0 %v2784
  %v3924 = vpop.f32.mrb[0].mxu0
  %v3925 = vadd.f32 0.0, %v3924
  %v3926 = vpop.f32.mrb[0].mxu0
  %v3927 = vadd.f32 0.0, %v3926
  %v3928 = vpop.f32.mrb[0].mxu0
  %v3929 = vadd.f32 0.0, %v3928
  %v3930 = vpop.f32.mrb[0].mxu0
  %v3931 = vadd.f32 0.0, %v3930
  %3932 = vmatprep.mubr.bf16.mxu0 %v2989
  %3933 = vmatmul.mubr.bf16.gmra.mrb[0].mxu0 %v2785
  %v3934 = vpop.f32.mrb[0].mxu0
  %v3935 = vadd.f32 0.0, %v3934
  %v3936 = vpop.f32.mrb[0].mxu0
  %v3937 = vadd.f32 0.0, %v3936
  %v3938 = vpop.f32.mrb[0].mxu0
  %v3939 = vadd.f32 0.0, %v3938
  %v3940 = vpop.f32.mrb[0].mxu0
  %v3941 = vadd.f32 0.0, %v3940
  %3942 = vmatprep.mubr.bf16.mxu0 %v3001
  %3943 = vmatmul.mubr.bf16.gmra.mrb[0].mxu0 %v2786
  %v3944 = vpop.f32.mrb[0].mxu0
  %v3945 = vadd.f32 0.0, %v3944
  %v3946 = vpop.f32.mrb[0].mxu0
  %v3947 = vadd.f32 0.0, %v3946
  %v3948 = vpop.f32.mrb[0].mxu0
  %v3949 = vadd.f32 0.0, %v3948
  %v3950 = vpop.f32.mrb[0].mxu0
  %v3951 = vadd.f32 0.0, %v3950
  %3952 = vmatprep.mubr.bf16.mxu0 %v3013
  %3953 = vmatmul.mubr.bf16.gmra.mrb[0].mxu0 %v2787
  %v3954 = vpop.f32.mrb[0].mxu0
  %v3955 = vadd.f32 0.0, %v3954
  %v3956 = vpop.f32.mrb[0].mxu0
  %v3957 = vadd.f32 0.0, %v3956
  %v3958 = vpop.f32.mrb[0].mxu0
  %v3959 = vadd.f32 0.0, %v3958
  %v3960 = vpop.f32.mrb[0].mxu0
  %v3961 = vadd.f32 0.0, %v3960
  %3962 = vmatprep.mubr.bf16.mxu0 %v3025
  %3963 = vmatmul.mubr.bf16.gmra.mrb[0].mxu0 %v2788
  %v3964 = vpop.f32.mrb[0].mxu0
  %v3965 = vadd.f32 0.0, %v3964
  %v3966 = vpop.f32.mrb[0].mxu0
  %v3967 = vadd.f32 0.0, %v3966
  %v3968 = vpop.f32.mrb[0].mxu0
  %v3969 = vadd.f32 0.0, %v3968
  %v3970 = vpop.f32.mrb[0].mxu0
  %v3971 = vadd.f32 0.0, %v3970
  %3972 = vmatprep.mubr.bf16.mxu0 %v3037
  %3973 = vmatmul.mubr.bf16.gmra.mrb[0].mxu0 %v2789
  %v3974 = vpop.f32.mrb[0].mxu0
  %v3975 = vadd.f32 0.0, %v3974
  %v3976 = vpop.f32.mrb[0].mxu0
  %v3977 = vadd.f32 0.0, %v3976
  %v3978 = vpop.f32.mrb[0].mxu0
  %v3979 = vadd.f32 0.0, %v3978
  %v3980 = vpop.f32.mrb[0].mxu0
  %v3981 = vadd.f32 0.0, %v3980
  %3982 = vmatprep.mubr.bf16.mxu0 %v3049
  %3983 = vmatmul.mubr.bf16.gmra.mrb[0].mxu0 %v2790
  %v3984 = vpop.f32.mrb[0].mxu0
  %v3985 = vadd.f32 0.0, %v3984
  %v3986 = vpop.f32.mrb[0].mxu0
  %v3987 = vadd.f32 0.0, %v3986
  %v3988 = vpop.f32.mrb[0].mxu0
  %v3989 = vadd.f32 0.0, %v3988
  %v3990 = vpop.f32.mrb[0].mxu0
  %v3991 = vadd.f32 0.0, %v3990
  %3992 = vmatprep.mubr.bf16.mxu0 %v3061
  %3993 = vmatmul.mubr.bf16.gmra.mrb[0].mxu0 %v2791
  %v3994 = vpop.f32.mrb[0].mxu0
  %v3995 = vadd.f32 0.0, %v3994
  %v3996 = vpop.f32.mrb[0].mxu0
  %v3997 = vadd.f32 0.0, %v3996
  %v3998 = vpop.f32.mrb[0].mxu0
  %v3999 = vadd.f32 0.0, %v3998
  %v4000 = vpop.f32.mrb[0].mxu0
  %v4001 = vadd.f32 0.0, %v4000
  %4002 = vmatprep.mubr.bf16.mxu0 %v3073
  %4003 = vmatmul.mubr.bf16.gmra.mrb[0].mxu0 %v2792
  %v4004 = vpop.f32.mrb[0].mxu0
  %v4005 = vadd.f32 0.0, %v4004
  %v4006 = vpop.f32.mrb[0].mxu0
  %v4007 = vadd.f32 0.0, %v4006
  %v4008 = vpop.f32.mrb[0].mxu0
  %v4009 = vadd.f32 0.0, %v4008
  %v4010 = vpop.f32.mrb[0].mxu0
  %v4011 = vadd.f32 0.0, %v4010
  %4012 = vmatprep.mubr.bf16.mxu0 %v3085
  %4013 = vmatmul.mubr.bf16.gmra.mrb[0].mxu0 %v2793
  %v4014 = vpop.f32.mrb[0].mxu0
  %v4015 = vadd.f32 0.0, %v4014
  %v4016 = vpop.f32.mrb[0].mxu0
  %v4017 = vadd.f32 0.0, %v4016
  %v4018 = vpop.f32.mrb[0].mxu0
  %v4019 = vadd.f32 0.0, %v4018
  %v4020 = vpop.f32.mrb[0].mxu0
  %v4021 = vadd.f32 0.0, %v4020
  %4022 = vmatprep.mubr.bf16.mxu0 %v3097
  %4023 = vmatmul.mubr.bf16.gmra.mrb[0].mxu0 %v2794
  %v4024 = vpop.f32.mrb[0].mxu0
  %v4025 = vadd.f32 0.0, %v4024
  %v4026 = vpop.f32.mrb[0].mxu0
  %v4027 = vadd.f32 0.0, %v4026
  %v4028 = vpop.f32.mrb[0].mxu0
  %v4029 = vadd.f32 0.0, %v4028
  %v4030 = vpop.f32.mrb[0].mxu0
  %v4031 = vadd.f32 0.0, %v4030
  %4032 = vmatprep.mubr.bf16.mxu0 %v3109
  %4033 = vmatmul.mubr.bf16.gmra.mrb[0].mxu0 %v2795
  %v4034 = vpop.f32.mrb[0].mxu0
  %v4035 = vadd.f32 0.0, %v4034
  %v4036 = vpop.f32.mrb[0].mxu0
  %v4037 = vadd.f32 0.0, %v4036
  %v4038 = vpop.f32.mrb[0].mxu0
  %v4039 = vadd.f32 0.0, %v4038
  %v4040 = vpop.f32.mrb[0].mxu0
  %v4041 = vadd.f32 0.0, %v4040
  %4042 = vmatprep.mubr.bf16.mxu0 %v3121
  %4043 = vmatmul.mubr.bf16.gmra.mrb[0].mxu0 %v2796
  %v4044 = vpop.f32.mrb[0].mxu0
  %v4045 = vadd.f32 0.0, %v4044
  %v4046 = vpop.f32.mrb[0].mxu0
  %v4047 = vadd.f32 0.0, %v4046
  %v4048 = vpop.f32.mrb[0].mxu0
  %v4049 = vadd.f32 0.0, %v4048
  %v4050 = vpop.f32.mrb[0].mxu0
  %v4051 = vadd.f32 0.0, %v4050
  %4052 = vmatprep.mubr.bf16.mxu0 %v3133
  %4053 = vmatmul.mubr.bf16.gmra.mrb[0].mxu0 %v2797
  %v4054 = vpop.f32.mrb[0].mxu0
  %v4055 = vadd.f32 0.0, %v4054
  %v4056 = vpop.f32.mrb[0].mxu0
  %v4057 = vadd.f32 0.0, %v4056
  %v4058 = vpop.f32.mrb[0].mxu0
  %v4059 = vadd.f32 0.0, %v4058
  %v4060 = vpop.f32.mrb[0].mxu0
  %v4061 = vadd.f32 0.0, %v4060
  %4062 = vmatprep.mubr.bf16.mxu0 %v3145
  %4063 = vmatmul.mubr.bf16.gmra.mrb[0].mxu0 %v2798
  %v4064 = vpop.f32.mrb[0].mxu0
  %v4065 = vadd.f32 0.0, %v4064
  %v4066 = vpop.f32.mrb[0].mxu0
  %v4067 = vadd.f32 0.0, %v4066
  %v4068 = vpop.f32.mrb[0].mxu0
  %v4069 = vadd.f32 0.0, %v4068
  %v4070 = vpop.f32.mrb[0].mxu0
  %v4071 = vadd.f32 0.0, %v4070
  %4072 = vmatprep.mubr.bf16.mxu0 %v3157
  %4073 = vmatmul.mubr.bf16.gmra.mrb[0].mxu0 %v2799
  %v4074 = vpop.f32.mrb[0].mxu0
  %v4075 = vadd.f32 0.0, %v4074
  %v4076 = vpop.f32.mrb[0].mxu0
  %v4077 = vadd.f32 0.0, %v4076
  %v4078 = vpop.f32.mrb[0].mxu0
  %v4079 = vadd.f32 0.0, %v4078
  %v4080 = vpop.f32.mrb[0].mxu0
  %v4081 = vadd.f32 0.0, %v4080
  %4082 = vmatprep.mubr.bf16.mxu0 %v3169
  %4083 = vmatmul.mubr.bf16.gmra.mrb[0].mxu0 %v2800
  %v4084 = vpop.f32.mrb[0].mxu0
  %v4085 = vadd.f32 0.0, %v4084
  %v4086 = vpop.f32.mrb[0].mxu0
  %v4087 = vadd.f32 0.0, %v4086
  %v4088 = vpop.f32.mrb[0].mxu0
  %v4089 = vadd.f32 0.0, %v4088
  %v4090 = vpop.f32.mrb[0].mxu0
  %v4091 = vadd.f32 0.0, %v4090
  %4092 = vmatprep.mubr.bf16.mxu0 %v3181
  %4093 = vmatmul.mubr.bf16.gmra.mrb[0].mxu0 %v2801
  %v4094 = vpop.f32.mrb[0].mxu0
  %v4095 = vadd.f32 0.0, %v4094
  %v4096 = vpop.f32.mrb[0].mxu0
  %v4097 = vadd.f32 0.0, %v4096
  %v4098 = vpop.f32.mrb[0].mxu0
  %v4099 = vadd.f32 0.0, %v4098
  %v4100 = vpop.f32.mrb[0].mxu0
  %v4101 = vadd.f32 0.0, %v4100
  %4102 = vmatprep.mubr.bf16.mxu0 %v3193
  %4103 = vmatmul.mubr.bf16.gmra.mrb[0].mxu0 %v2802
  %v4104 = vpop.f32.mrb[0].mxu0
  %v4105 = vadd.f32 0.0, %v4104
  %v4106 = vpop.f32.mrb[0].mxu0
  %v4107 = vadd.f32 0.0, %v4106
  %v4108 = vpop.f32.mrb[0].mxu0
  %v4109 = vadd.f32 0.0, %v4108
  %v4110 = vpop.f32.mrb[0].mxu0
  %v4111 = vadd.f32 0.0, %v4110
  %4112 = vmatprep.mubr.bf16.mxu0 %v3205
  %4113 = vmatmul.mubr.bf16.gmra.mrb[0].mxu0 %v2803
  %v4114 = vpop.f32.mrb[0].mxu0
  %v4115 = vadd.f32 0.0, %v4114
  %v4116 = vpop.f32.mrb[0].mxu0
  %v4117 = vadd.f32 0.0, %v4116
  %v4118 = vpop.f32.mrb[0].mxu0
  %v4119 = vadd.f32 0.0, %v4118
  %v4120 = vpop.f32.mrb[0].mxu0
  %v4121 = vadd.f32 0.0, %v4120
  %4122 = vmatprep.mubr.bf16.mxu0 %v3217
  %4123 = vmatmul.mubr.bf16.gmra.mrb[0].mxu0 %v2804
  %v4124 = vpop.f32.mrb[0].mxu0
  %v4125 = vadd.f32 0.0, %v4124
  %v4126 = vpop.f32.mrb[0].mxu0
  %v4127 = vadd.f32 0.0, %v4126
  %v4128 = vpop.f32.mrb[0].mxu0
  %v4129 = vadd.f32 0.0, %v4128
  %v4130 = vpop.f32.mrb[0].mxu0
  %v4131 = vadd.f32 0.0, %v4130
  %4132 = vmatprep.mubr.bf16.mxu0 %v3229
  %4133 = vmatmul.mubr.bf16.gmra.mrb[0].mxu0 %v2805
  %v4134 = vpop.f32.mrb[0].mxu0
  %v4135 = vadd.f32 0.0, %v4134
  %v4136 = vpop.f32.mrb[0].mxu0
  %v4137 = vadd.f32 0.0, %v4136
  %v4138 = vpop.f32.mrb[0].mxu0
  %v4139 = vadd.f32 0.0, %v4138
  %v4140 = vpop.f32.mrb[0].mxu0
  %v4141 = vadd.f32 0.0, %v4140
  %4142 = vmatprep.mubr.bf16.mxu0 %v3241
  %4143 = vmatmul.mubr.bf16.gmra.mrb[0].mxu0 %v2806
  %v4144 = vpop.f32.mrb[0].mxu0
  %v4145 = vadd.f32 0.0, %v4144
  %v4146 = vpop.f32.mrb[0].mxu0
  %v4147 = vadd.f32 0.0, %v4146
  %v4148 = vpop.f32.mrb[0].mxu0
  %v4149 = vadd.f32 0.0, %v4148
  %v4150 = vpop.f32.mrb[0].mxu0
  %v4151 = vadd.f32 0.0, %v4150
  %4152 = vmatprep.mubr.bf16.mxu0 %v3253
  %4153 = vmatmul.mubr.bf16.gmra.mrb[0].mxu0 %v2807
  %v4154 = vpop.f32.mrb[0].mxu0
  %v4155 = vadd.f32 0.0, %v4154
  %v4156 = vpop.f32.mrb[0].mxu0
  %v4157 = vadd.f32 0.0, %v4156
  %v4158 = vpop.f32.mrb[0].mxu0
  %v4159 = vadd.f32 0.0, %v4158
  %v4160 = vpop.f32.mrb[0].mxu0
  %v4161 = vadd.f32 0.0, %v4160
  %4162 = vmatprep.mubr.bf16.mxu0 %v3265
  %4163 = vmatmul.mubr.bf16.gmra.mrb[0].mxu0 %v2808
  %v4164 = vpop.f32.mrb[0].mxu0
  %v4165 = vadd.f32 0.0, %v4164
  %v4166 = vpop.f32.mrb[0].mxu0
  %v4167 = vadd.f32 0.0, %v4166
  %v4168 = vpop.f32.mrb[0].mxu0
  %v4169 = vadd.f32 0.0, %v4168
  %v4170 = vpop.f32.mrb[0].mxu0
  %v4171 = vadd.f32 0.0, %v4170
  %4172 = vmatprep.mubr.bf16.mxu0 %v3277
  %4173 = vmatmul.mubr.bf16.gmra.mrb[0].mxu0 %v2809
  %v4174 = vpop.f32.mrb[0].mxu0
  %v4175 = vadd.f32 0.0, %v4174
  %v4176 = vpop.f32.mrb[0].mxu0
  %v4177 = vadd.f32 0.0, %v4176
  %v4178 = vpop.f32.mrb[0].mxu0
  %v4179 = vadd.f32 0.0, %v4178
  %v4180 = vpop.f32.mrb[0].mxu0
  %v4181 = vadd.f32 0.0, %v4180
  %4182 = vmatprep.mubr.bf16.mxu0 %v3289
  %4183 = vmatmul.mubr.bf16.gmra.mrb[0].mxu0 %v2810
  %v4184 = vpop.f32.mrb[0].mxu0
  %v4185 = vadd.f32 0.0, %v4184
  %v4186 = vpop.f32.mrb[0].mxu0
  %v4187 = vadd.f32 0.0, %v4186
  %v4188 = vpop.f32.mrb[0].mxu0
  %v4189 = vadd.f32 0.0, %v4188
  %v4190 = vpop.f32.mrb[0].mxu0
  %v4191 = vadd.f32 0.0, %v4190
  %4192 = vmatprep.mubr.bf16.mxu0 %v3301
  %4193 = vmatmul.mubr.bf16.gmra.mrb[0].mxu0 %v2811
  %v4194 = vpop.f32.mrb[0].mxu0
  %v4195 = vadd.f32 0.0, %v4194
  %v4196 = vpop.f32.mrb[0].mxu0
  %v4197 = vadd.f32 0.0, %v4196
  %v4198 = vpop.f32.mrb[0].mxu0
  %v4199 = vadd.f32 0.0, %v4198
  %v4200 = vpop.f32.mrb[0].mxu0
  %v4201 = vadd.f32 0.0, %v4200
  %4202 = vmatprep.mubr.bf16.mxu0 %v3313
  %4203 = vmatmul.mubr.bf16.gmra.mrb[0].mxu0 %v2812
  %v4204 = vpop.f32.mrb[0].mxu0
  %v4205 = vadd.f32 0.0, %v4204
  %v4206 = vpop.f32.mrb[0].mxu0
  %v4207 = vadd.f32 0.0, %v4206
  %v4208 = vpop.f32.mrb[0].mxu0
  %v4209 = vadd.f32 0.0, %v4208
  %v4210 = vpop.f32.mrb[0].mxu0
  %v4211 = vadd.f32 0.0, %v4210
  %4212 = vmatprep.mubr.bf16.mxu0 %v3325
  %4213 = vmatmul.mubr.bf16.gmra.mrb[0].mxu0 %v2813
  %v4214 = vpop.f32.mrb[0].mxu0
  %v4215 = vadd.f32 0.0, %v4214
  %v4216 = vpop.f32.mrb[0].mxu0
  %v4217 = vadd.f32 0.0, %v4216
  %v4218 = vpop.f32.mrb[0].mxu0
  %v4219 = vadd.f32 0.0, %v4218
  %v4220 = vpop.f32.mrb[0].mxu0
  %v4221 = vadd.f32 0.0, %v4220
  %4222 = vdwg.mxu0
  %4223 = vmatprep.subr.bf16.mxu0 %v3807
  %4224 = vmatpush1.bf16.msra.mxu0 %v3806
  %4225 = vmatprep.subr.bf16.mxu0 %v3809
  %4226 = vmatpush1.bf16.msra.mxu0 %v3808
  %4227 = vmatprep.subr.bf16.mxu0 %v3811
  %4228 = vmatpush1.bf16.msra.mxu0 %v3810
  %4229 = vmatprep.subr.bf16.mxu0 %v3813
  %4230 = vmatpush1.bf16.msra.mxu0 %v3812
  %4231 = vmatprep.subr.bf16.mxu0 %v3815
  %4232 = vmatpush1.bf16.msra.mxu0 %v3814
  %4233 = vmatprep.subr.bf16.mxu0 %v3817
  %4234 = vmatpush1.bf16.msra.mxu0 %v3816
  %4235 = vmatprep.subr.bf16.mxu0 %v3819
  %4236 = vmatpush1.bf16.msra.mxu0 %v3818
  %4237 = vmatprep.subr.bf16.mxu0 %v3821
  %4238 = vmatpush1.bf16.msra.mxu0 %v3820
  %4239 = vmatprep.subr.bf16.mxu0 0
  %4240 = vmatpush1.bf16.msra.mxu0 0
  %4241 = vmatprep.subr.bf16.mxu0 0
  %4242 = vmatpush1.bf16.msra.mxu0 0
  %4243 = vmatprep.subr.bf16.mxu0 0
  %4244 = vmatpush1.bf16.msra.mxu0 0
  %4245 = vmatprep.subr.bf16.mxu0 0
  %4246 = vmatpush1.bf16.msra.mxu0 0
  %4247 = vmatprep.subr.bf16.mxu0 0
  %4248 = vmatpush1.bf16.msra.mxu0 0
  %4249 = vmatprep.subr.bf16.mxu0 0
  %4250 = vmatpush1.bf16.msra.mxu0 0
  %4251 = vmatprep.subr.bf16.mxu0 0
  %4252 = vmatpush1.bf16.msra.mxu0 0
  %4253 = vmatprep.subr.bf16.mxu0 0
  %4254 = vmatpush1.bf16.msra.mxu0 0
  %4255 = vmatprep.mubr.bf16.mxu0 0
  %4256 = vmatmul.mubr.bf16.gmra.mrb[0].mxu0 %v3456
  %v4257 = vpop.f32.mrb[0].mxu0
  %v4258 = vadd.f32 %v3905, %v4257
  %v4259 = vpop.f32.mrb[0].mxu0
  %v4260 = vadd.f32 %v3907, %v4259
  %v4261 = vpop.f32.mrb[0].mxu0
  %v4262 = vadd.f32 %v3909, %v4261
  %v4263 = vpop.f32.mrb[0].mxu0
  %v4264 = vadd.f32 %v3911, %v4263
  %4265 = vmatprep.mubr.bf16.mxu0 0
  %4266 = vmatmul.mubr.bf16.gmra.mrb[0].mxu0 %v3459
  %v4267 = vpop.f32.mrb[0].mxu0
  %v4268 = vadd.f32 %v3915, %v4267
  %v4269 = vpop.f32.mrb[0].mxu0
  %v4270 = vadd.f32 %v3917, %v4269
  %v4271 = vpop.f32.mrb[0].mxu0
  %v4272 = vadd.f32 %v3919, %v4271
  %v4273 = vpop.f32.mrb[0].mxu0
  %v4274 = vadd.f32 %v3921, %v4273
  %4275 = vmatprep.mubr.bf16.mxu0 0
  %4276 = vmatmul.mubr.bf16.gmra.mrb[0].mxu0 %v3462
  %v4277 = vpop.f32.mrb[0].mxu0
  %v4278 = vadd.f32 %v3925, %v4277
  %v4279 = vpop.f32.mrb[0].mxu0
  %v4280 = vadd.f32 %v3927, %v4279
  %v4281 = vpop.f32.mrb[0].mxu0
  %v4282 = vadd.f32 %v3929, %v4281
  %v4283 = vpop.f32.mrb[0].mxu0
  %v4284 = vadd.f32 %v3931, %v4283
  %4285 = vmatprep.mubr.bf16.mxu0 0
  %4286 = vmatmul.mubr.bf16.gmra.mrb[0].mxu0 %v3465
  %v4287 = vpop.f32.mrb[0].mxu0
  %v4288 = vadd.f32 %v3935, %v4287
  %v4289 = vpop.f32.mrb[0].mxu0
  %v4290 = vadd.f32 %v3937, %v4289
  %v4291 = vpop.f32.mrb[0].mxu0
  %v4292 = vadd.f32 %v3939, %v4291
  %v4293 = vpop.f32.mrb[0].mxu0
  %v4294 = vadd.f32 %v3941, %v4293
  %4295 = vmatprep.mubr.bf16.mxu0 0
  %4296 = vmatmul.mubr.bf16.gmra.mrb[0].mxu0 %v3468
  %v4297 = vpop.f32.mrb[0].mxu0
  %v4298 = vadd.f32 %v3945, %v4297
  %v4299 = vpop.f32.mrb[0].mxu0
  %v4300 = vadd.f32 %v3947, %v4299
  %v4301 = vpop.f32.mrb[0].mxu0
  %v4302 = vadd.f32 %v3949, %v4301
  %v4303 = vpop.f32.mrb[0].mxu0
  %v4304 = vadd.f32 %v3951, %v4303
  %4305 = vmatprep.mubr.bf16.mxu0 0
  %4306 = vmatmul.mubr.bf16.gmra.mrb[0].mxu0 %v3471
  %v4307 = vpop.f32.mrb[0].mxu0
  %v4308 = vadd.f32 %v3955, %v4307
  %v4309 = vpop.f32.mrb[0].mxu0
  %v4310 = vadd.f32 %v3957, %v4309
  %v4311 = vpop.f32.mrb[0].mxu0
  %v4312 = vadd.f32 %v3959, %v4311
  %v4313 = vpop.f32.mrb[0].mxu0
  %v4314 = vadd.f32 %v3961, %v4313
  %4315 = vmatprep.mubr.bf16.mxu0 0
  %4316 = vmatmul.mubr.bf16.gmra.mrb[0].mxu0 %v3474
  %v4317 = vpop.f32.mrb[0].mxu0
  %v4318 = vadd.f32 %v3965, %v4317
  %v4319 = vpop.f32.mrb[0].mxu0
  %v4320 = vadd.f32 %v3967, %v4319
  %v4321 = vpop.f32.mrb[0].mxu0
  %v4322 = vadd.f32 %v3969, %v4321
  %v4323 = vpop.f32.mrb[0].mxu0
  %v4324 = vadd.f32 %v3971, %v4323
  %4325 = vmatprep.mubr.bf16.mxu0 0
  %4326 = vmatmul.mubr.bf16.gmra.mrb[0].mxu0 %v3477
  %v4327 = vpop.f32.mrb[0].mxu0
  %v4328 = vadd.f32 %v3975, %v4327
  %v4329 = vpop.f32.mrb[0].mxu0
  %v4330 = vadd.f32 %v3977, %v4329
  %v4331 = vpop.f32.mrb[0].mxu0
  %v4332 = vadd.f32 %v3979, %v4331
  %v4333 = vpop.f32.mrb[0].mxu0
  %v4334 = vadd.f32 %v3981, %v4333
  %4335 = vmatprep.mubr.bf16.mxu0 0
  %4336 = vmatmul.mubr.bf16.gmra.mrb[0].mxu0 %v3480
  %v4337 = vpop.f32.mrb[0].mxu0
  %v4338 = vadd.f32 %v3985, %v4337
  %v4339 = vpop.f32.mrb[0].mxu0
  %v4340 = vadd.f32 %v3987, %v4339
  %v4341 = vpop.f32.mrb[0].mxu0
  %v4342 = vadd.f32 %v3989, %v4341
  %v4343 = vpop.f32.mrb[0].mxu0
  %v4344 = vadd.f32 %v3991, %v4343
  %4345 = vmatprep.mubr.bf16.mxu0 0
  %4346 = vmatmul.mubr.bf16.gmra.mrb[0].mxu0 %v3483
  %v4347 = vpop.f32.mrb[0].mxu0
  %v4348 = vadd.f32 %v3995, %v4347
  %v4349 = vpop.f32.mrb[0].mxu0
  %v4350 = vadd.f32 %v3997, %v4349
  %v4351 = vpop.f32.mrb[0].mxu0
  %v4352 = vadd.f32 %v3999, %v4351
  %v4353 = vpop.f32.mrb[0].mxu0
  %v4354 = vadd.f32 %v4001, %v4353
  %4355 = vmatprep.mubr.bf16.mxu0 0
  %4356 = vmatmul.mubr.bf16.gmra.mrb[0].mxu0 %v3486
  %v4357 = vpop.f32.mrb[0].mxu0
  %v4358 = vadd.f32 %v4005, %v4357
  %v4359 = vpop.f32.mrb[0].mxu0
  %v4360 = vadd.f32 %v4007, %v4359
  %v4361 = vpop.f32.mrb[0].mxu0
  %v4362 = vadd.f32 %v4009, %v4361
  %v4363 = vpop.f32.mrb[0].mxu0
  %v4364 = vadd.f32 %v4011, %v4363
  %4365 = vmatprep.mubr.bf16.mxu0 0
  %4366 = vmatmul.mubr.bf16.gmra.mrb[0].mxu0 %v3489
  %v4367 = vpop.f32.mrb[0].mxu0
  %v4368 = vadd.f32 %v4015, %v4367
  %v4369 = vpop.f32.mrb[0].mxu0
  %v4370 = vadd.f32 %v4017, %v4369
  %v4371 = vpop.f32.mrb[0].mxu0
  %v4372 = vadd.f32 %v4019, %v4371
  %v4373 = vpop.f32.mrb[0].mxu0
  %v4374 = vadd.f32 %v4021, %v4373
  %4375 = vmatprep.mubr.bf16.mxu0 0
  %4376 = vmatmul.mubr.bf16.gmra.mrb[0].mxu0 %v3492
  %v4377 = vpop.f32.mrb[0].mxu0
  %v4378 = vadd.f32 %v4025, %v4377
  %v4379 = vpop.f32.mrb[0].mxu0
  %v4380 = vadd.f32 %v4027, %v4379
  %v4381 = vpop.f32.mrb[0].mxu0
  %v4382 = vadd.f32 %v4029, %v4381
  %v4383 = vpop.f32.mrb[0].mxu0
  %v4384 = vadd.f32 %v4031, %v4383
  %4385 = vmatprep.mubr.bf16.mxu0 0
  %4386 = vmatmul.mubr.bf16.gmra.mrb[0].mxu0 %v3495
  %v4387 = vpop.f32.mrb[0].mxu0
  %v4388 = vadd.f32 %v4035, %v4387
  %v4389 = vpop.f32.mrb[0].mxu0
  %v4390 = vadd.f32 %v4037, %v4389
  %v4391 = vpop.f32.mrb[0].mxu0
  %v4392 = vadd.f32 %v4039, %v4391
  %v4393 = vpop.f32.mrb[0].mxu0
  %v4394 = vadd.f32 %v4041, %v4393
  %4395 = vmatprep.mubr.bf16.mxu0 0
  %4396 = vmatmul.mubr.bf16.gmra.mrb[0].mxu0 %v3498
  %v4397 = vpop.f32.mrb[0].mxu0
  %v4398 = vadd.f32 %v4045, %v4397
  %v4399 = vpop.f32.mrb[0].mxu0
  %v4400 = vadd.f32 %v4047, %v4399
  %v4401 = vpop.f32.mrb[0].mxu0
  %v4402 = vadd.f32 %v4049, %v4401
  %v4403 = vpop.f32.mrb[0].mxu0
  %v4404 = vadd.f32 %v4051, %v4403
  %4405 = vmatprep.mubr.bf16.mxu0 0
  %4406 = vmatmul.mubr.bf16.gmra.mrb[0].mxu0 %v3501
  %v4407 = vpop.f32.mrb[0].mxu0
  %v4408 = vadd.f32 %v4055, %v4407
  %v4409 = vpop.f32.mrb[0].mxu0
  %v4410 = vadd.f32 %v4057, %v4409
  %v4411 = vpop.f32.mrb[0].mxu0
  %v4412 = vadd.f32 %v4059, %v4411
  %v4413 = vpop.f32.mrb[0].mxu0
  %v4414 = vadd.f32 %v4061, %v4413
  %4415 = vmatprep.mubr.bf16.mxu0 0
  %4416 = vmatmul.mubr.bf16.gmra.mrb[0].mxu0 %v3504
  %v4417 = vpop.f32.mrb[0].mxu0
  %v4418 = vadd.f32 %v4065, %v4417
  %v4419 = vpop.f32.mrb[0].mxu0
  %v4420 = vadd.f32 %v4067, %v4419
  %v4421 = vpop.f32.mrb[0].mxu0
  %v4422 = vadd.f32 %v4069, %v4421
  %v4423 = vpop.f32.mrb[0].mxu0
  %v4424 = vadd.f32 %v4071, %v4423
  %4425 = vmatprep.mubr.bf16.mxu0 0
  %4426 = vmatmul.mubr.bf16.gmra.mrb[0].mxu0 %v3507
  %v4427 = vpop.f32.mrb[0].mxu0
  %v4428 = vadd.f32 %v4075, %v4427
  %v4429 = vpop.f32.mrb[0].mxu0
  %v4430 = vadd.f32 %v4077, %v4429
  %v4431 = vpop.f32.mrb[0].mxu0
  %v4432 = vadd.f32 %v4079, %v4431
  %v4433 = vpop.f32.mrb[0].mxu0
  %v4434 = vadd.f32 %v4081, %v4433
  %4435 = vmatprep.mubr.bf16.mxu0 0
  %4436 = vmatmul.mubr.bf16.gmra.mrb[0].mxu0 %v3510
  %v4437 = vpop.f32.mrb[0].mxu0
  %v4438 = vadd.f32 %v4085, %v4437
  %v4439 = vpop.f32.mrb[0].mxu0
  %v4440 = vadd.f32 %v4087, %v4439
  %v4441 = vpop.f32.mrb[0].mxu0
  %v4442 = vadd.f32 %v4089, %v4441
  %v4443 = vpop.f32.mrb[0].mxu0
  %v4444 = vadd.f32 %v4091, %v4443
  %4445 = vmatprep.mubr.bf16.mxu0 0
  %4446 = vmatmul.mubr.bf16.gmra.mrb[0].mxu0 %v3513
  %v4447 = vpop.f32.mrb[0].mxu0
  %v4448 = vadd.f32 %v4095, %v4447
  %v4449 = vpop.f32.mrb[0].mxu0
  %v4450 = vadd.f32 %v4097, %v4449
  %v4451 = vpop.f32.mrb[0].mxu0
  %v4452 = vadd.f32 %v4099, %v4451
  %v4453 = vpop.f32.mrb[0].mxu0
  %v4454 = vadd.f32 %v4101, %v4453
  %4455 = vmatprep.mubr.bf16.mxu0 0
  %4456 = vmatmul.mubr.bf16.gmra.mrb[0].mxu0 %v3516
  %v4457 = vpop.f32.mrb[0].mxu0
  %v4458 = vadd.f32 %v4105, %v4457
  %v4459 = vpop.f32.mrb[0].mxu0
  %v4460 = vadd.f32 %v4107, %v4459
  %v4461 = vpop.f32.mrb[0].mxu0
  %v4462 = vadd.f32 %v4109, %v4461
  %v4463 = vpop.f32.mrb[0].mxu0
  %v4464 = vadd.f32 %v4111, %v4463
  %4465 = vmatprep.mubr.bf16.mxu0 0
  %4466 = vmatmul.mubr.bf16.gmra.mrb[0].mxu0 %v3519
  %v4467 = vpop.f32.mrb[0].mxu0
  %v4468 = vadd.f32 %v4115, %v4467
  %v4469 = vpop.f32.mrb[0].mxu0
  %v4470 = vadd.f32 %v4117, %v4469
  %v4471 = vpop.f32.mrb[0].mxu0
  %v4472 = vadd.f32 %v4119, %v4471
  %v4473 = vpop.f32.mrb[0].mxu0
  %v4474 = vadd.f32 %v4121, %v4473
  %4475 = vmatprep.mubr.bf16.mxu0 0
  %4476 = vmatmul.mubr.bf16.gmra.mrb[0].mxu0 %v3522
  %v4477 = vpop.f32.mrb[0].mxu0
  %v4478 = vadd.f32 %v4125, %v4477
  %v4479 = vpop.f32.mrb[0].mxu0
  %v4480 = vadd.f32 %v4127, %v4479
  %v4481 = vpop.f32.mrb[0].mxu0
  %v4482 = vadd.f32 %v4129, %v4481
  %v4483 = vpop.f32.mrb[0].mxu0
  %v4484 = vadd.f32 %v4131, %v4483
  %4485 = vmatprep.mubr.bf16.mxu0 0
  %4486 = vmatmul.mubr.bf16.gmra.mrb[0].mxu0 %v3525
  %v4487 = vpop.f32.mrb[0].mxu0
  %v4488 = vadd.f32 %v4135, %v4487
  %v4489 = vpop.f32.mrb[0].mxu0
  %v4490 = vadd.f32 %v4137, %v4489
  %v4491 = vpop.f32.mrb[0].mxu0
  %v4492 = vadd.f32 %v4139, %v4491
  %v4493 = vpop.f32.mrb[0].mxu0
  %v4494 = vadd.f32 %v4141, %v4493
  %4495 = vmatprep.mubr.bf16.mxu0 0
  %4496 = vmatmul.mubr.bf16.gmra.mrb[0].mxu0 %v3528
  %v4497 = vpop.f32.mrb[0].mxu0
  %v4498 = vadd.f32 %v4145, %v4497
  %v4499 = vpop.f32.mrb[0].mxu0
  %v4500 = vadd.f32 %v4147, %v4499
  %v4501 = vpop.f32.mrb[0].mxu0
  %v4502 = vadd.f32 %v4149, %v4501
  %v4503 = vpop.f32.mrb[0].mxu0
  %v4504 = vadd.f32 %v4151, %v4503
  %4505 = vmatprep.mubr.bf16.mxu0 0
  %4506 = vmatmul.mubr.bf16.gmra.mrb[0].mxu0 %v3531
  %v4507 = vpop.f32.mrb[0].mxu0
  %v4508 = vadd.f32 %v4155, %v4507
  %v4509 = vpop.f32.mrb[0].mxu0
  %v4510 = vadd.f32 %v4157, %v4509
  %v4511 = vpop.f32.mrb[0].mxu0
  %v4512 = vadd.f32 %v4159, %v4511
  %v4513 = vpop.f32.mrb[0].mxu0
  %v4514 = vadd.f32 %v4161, %v4513
  %4515 = vmatprep.mubr.bf16.mxu0 0
  %4516 = vmatmul.mubr.bf16.gmra.mrb[0].mxu0 %v3534
  %v4517 = vpop.f32.mrb[0].mxu0
  %v4518 = vadd.f32 %v4165, %v4517
  %v4519 = vpop.f32.mrb[0].mxu0
  %v4520 = vadd.f32 %v4167, %v4519
  %v4521 = vpop.f32.mrb[0].mxu0
  %v4522 = vadd.f32 %v4169, %v4521
  %v4523 = vpop.f32.mrb[0].mxu0
  %v4524 = vadd.f32 %v4171, %v4523
  %4525 = vmatprep.mubr.bf16.mxu0 0
  %4526 = vmatmul.mubr.bf16.gmra.mrb[0].mxu0 %v3537
  %v4527 = vpop.f32.mrb[0].mxu0
  %v4528 = vadd.f32 %v4175, %v4527
  %v4529 = vpop.f32.mrb[0].mxu0
  %v4530 = vadd.f32 %v4177, %v4529
  %v4531 = vpop.f32.mrb[0].mxu0
  %v4532 = vadd.f32 %v4179, %v4531
  %v4533 = vpop.f32.mrb[0].mxu0
  %v4534 = vadd.f32 %v4181, %v4533
  %4535 = vmatprep.mubr.bf16.mxu0 0
  %4536 = vmatmul.mubr.bf16.gmra.mrb[0].mxu0 %v3540
  %v4537 = vpop.f32.mrb[0].mxu0
  %v4538 = vadd.f32 %v4185, %v4537
  %v4539 = vpop.f32.mrb[0].mxu0
  %v4540 = vadd.f32 %v4187, %v4539
  %v4541 = vpop.f32.mrb[0].mxu0
  %v4542 = vadd.f32 %v4189, %v4541
  %v4543 = vpop.f32.mrb[0].mxu0
  %v4544 = vadd.f32 %v4191, %v4543
  %4545 = vmatprep.mubr.bf16.mxu0 0
  %4546 = vmatmul.mubr.bf16.gmra.mrb[0].mxu0 %v3543
  %v4547 = vpop.f32.mrb[0].mxu0
  %v4548 = vadd.f32 %v4195, %v4547
  %v4549 = vpop.f32.mrb[0].mxu0
  %v4550 = vadd.f32 %v4197, %v4549
  %v4551 = vpop.f32.mrb[0].mxu0
  %v4552 = vadd.f32 %v4199, %v4551
  %v4553 = vpop.f32.mrb[0].mxu0
  %v4554 = vadd.f32 %v4201, %v4553
  %4555 = vmatprep.mubr.bf16.mxu0 0
  %4556 = vmatmul.mubr.bf16.gmra.mrb[0].mxu0 %v3546
  %v4557 = vpop.f32.mrb[0].mxu0
  %v4558 = vadd.f32 %v4205, %v4557
  %v4559 = vpop.f32.mrb[0].mxu0
  %v4560 = vadd.f32 %v4207, %v4559
  %v4561 = vpop.f32.mrb[0].mxu0
  %v4562 = vadd.f32 %v4209, %v4561
  %v4563 = vpop.f32.mrb[0].mxu0
  %v4564 = vadd.f32 %v4211, %v4563
  %4565 = vmatprep.mubr.bf16.mxu0 0
  %4566 = vmatmul.mubr.bf16.gmra.mrb[0].mxu0 %v3549
  %v4567 = vpop.f32.mrb[0].mxu0
  %v4568 = vadd.f32 %v4215, %v4567
  %v4569 = vpop.f32.mrb[0].mxu0
  %v4570 = vadd.f32 %v4217, %v4569
  %v4571 = vpop.f32.mrb[0].mxu0
  %v4572 = vadd.f32 %v4219, %v4571
  %v4573 = vpop.f32.mrb[0].mxu0
  %v4574 = vadd.f32 %v4221, %v4573
  %4575 = vdwg.mxu0
  %v4624 = vunpack.c.l.b16 %v2478
  %v4625 = vunpack.c.h.b16 %v2478
  %v4626 = vunpack.c.l.b16 %v2479
  %v4627 = vunpack.c.h.b16 %v2479
  %v4628 = vunpack.c.l.b16 %v2480
  %v4629 = vunpack.c.h.b16 %v2480
  %v4630 = vunpack.c.l.b16 %v2481
  %v4631 = vunpack.c.h.b16 %v2481
  %v4632 = vunpack.c.l.b16 %v2482
  %v4633 = vunpack.c.h.b16 %v2482
  %v4634 = vunpack.c.l.b16 %v2483
  %v4635 = vunpack.c.h.b16 %v2483
  %v4636 = vunpack.c.l.b16 %v2484
  %v4637 = vunpack.c.h.b16 %v2484
  %v4638 = vunpack.c.l.b16 %v2485
  %v4639 = vunpack.c.h.b16 %v2485
  %v4640 = vunpack.c.l.b16 %v2486
  %v4641 = vunpack.c.h.b16 %v2486
  %v4642 = vunpack.c.l.b16 %v2487
  %v4643 = vunpack.c.h.b16 %v2487
  %v4644 = vunpack.c.l.b16 %v2488
  %v4645 = vunpack.c.h.b16 %v2488
  %v4646 = vunpack.c.l.b16 %v2489
  %v4647 = vunpack.c.h.b16 %v2489
  %v4648 = vunpack.c.l.b16 %v2490
  %v4649 = vunpack.c.h.b16 %v2490
  %v4650 = vunpack.c.l.b16 %v2491
  %v4651 = vunpack.c.h.b16 %v2491
  %v4652 = vunpack.c.l.b16 %v2492
  %v4653 = vunpack.c.h.b16 %v2492
  %v4654 = vunpack.c.l.b16 %v2493
  %v4655 = vunpack.c.h.b16 %v2493
  %v4656 = vunpack.c.l.b16 %v2494
  %v4657 = vunpack.c.h.b16 %v2494
  %v4658 = vunpack.c.l.b16 %v2495
  %v4659 = vunpack.c.h.b16 %v2495
  %v4660 = vunpack.c.l.b16 %v2496
  %v4661 = vunpack.c.h.b16 %v2496
  %v4662 = vunpack.c.l.b16 %v2497
  %v4663 = vunpack.c.h.b16 %v2497
  %v4664 = vunpack.c.l.b16 %v2498
  %v4665 = vunpack.c.h.b16 %v2498
  %v4666 = vunpack.c.l.b16 %v2499
  %v4667 = vunpack.c.h.b16 %v2499
  %v4668 = vunpack.c.l.b16 %v2500
  %v4669 = vunpack.c.h.b16 %v2500
  %v4670 = vunpack.c.l.b16 %v2501
  %v4671 = vunpack.c.h.b16 %v2501
  %v4672 = vunpack.c.l.b16 %v2502
  %v4673 = vunpack.c.h.b16 %v2502
  %v4674 = vunpack.c.l.b16 %v2503
  %v4675 = vunpack.c.h.b16 %v2503
  %v4676 = vunpack.c.l.b16 %v2504
  %v4677 = vunpack.c.h.b16 %v2504
  %v4678 = vunpack.c.l.b16 %v2505
  %v4679 = vunpack.c.h.b16 %v2505
  %v4680 = vunpack.c.l.b16 %v2506
  %v4681 = vunpack.c.h.b16 %v2506
  %v4682 = vunpack.c.l.b16 %v2507
  %v4683 = vunpack.c.h.b16 %v2507
  %v4684 = vunpack.c.l.b16 %v2508
  %v4685 = vunpack.c.h.b16 %v2508
  %v4686 = vunpack.c.l.b16 %v2509
  %v4687 = vunpack.c.h.b16 %v2509
  %v4688 = vunpack.c.l.b16 %v2510
  %v4689 = vunpack.c.h.b16 %v2510
  %v4690 = vunpack.c.l.b16 %v2511
  %v4691 = vunpack.c.h.b16 %v2511
  %v4692 = vunpack.c.l.b16 %v2512
  %v4693 = vunpack.c.h.b16 %v2512
  %v4694 = vunpack.c.l.b16 %v2513
  %v4695 = vunpack.c.h.b16 %v2513
  %v4696 = vunpack.c.l.b16 %v2514
  %v4697 = vunpack.c.h.b16 %v2514
  %v4698 = vunpack.c.l.b16 %v2515
  %v4699 = vunpack.c.h.b16 %v2515
  %v4700 = vunpack.c.l.b16 %v2516
  %v4701 = vunpack.c.h.b16 %v2516
  %v4702 = vunpack.c.l.b16 %v2517
  %v4703 = vunpack.c.h.b16 %v2517
  %v4704 = vunpack.c.l.b16 %v2518
  %v4705 = vunpack.c.h.b16 %v2518
  %v4706 = vunpack.c.l.b16 %v2519
  %v4707 = vunpack.c.h.b16 %v2519
  %v4708 = vunpack.c.l.b16 %v2520
  %v4709 = vunpack.c.h.b16 %v2520
  %v4710 = vunpack.c.l.b16 %v2521
  %v4711 = vunpack.c.h.b16 %v2521
  %v4712 = vunpack.c.l.b16 %v2522
  %v4713 = vunpack.c.h.b16 %v2522
  %v4714 = vunpack.c.l.b16 %v2523
  %v4715 = vunpack.c.h.b16 %v2523
  %v4716 = vunpack.c.l.b16 %v2524
  %v4717 = vunpack.c.h.b16 %v2524
  %v4718 = vunpack.c.l.b16 %v2525
  %v4719 = vunpack.c.h.b16 %v2525
  %v4720 = vpack.c.b16 %v4626, %v4624
  %v4721 = vpack.c.b16 %v4627, %v4625
  %v4722 = vpack.c.b16 %v4630, %v4628
  %v4723 = vpack.c.b16 %v4631, %v4629
  %v4724 = vpack.c.b16 %v4634, %v4632
  %v4725 = vpack.c.b16 %v4635, %v4633
  %v4726 = vpack.c.b16 %v4638, %v4636
  %v4727 = vpack.c.b16 %v4639, %v4637
  %v4728 = vpack.c.b16 %v4642, %v4640
  %v4729 = vpack.c.b16 %v4643, %v4641
  %v4730 = vpack.c.b16 %v4646, %v4644
  %v4731 = vpack.c.b16 %v4647, %v4645
  %v4732 = vpack.c.b16 %v4650, %v4648
  %v4733 = vpack.c.b16 %v4651, %v4649
  %v4734 = vpack.c.b16 %v4654, %v4652
  %v4735 = vpack.c.b16 %v4655, %v4653
  %v4736 = vpack.c.b16 %v4658, %v4656
  %v4737 = vpack.c.b16 %v4659, %v4657
  %v4738 = vpack.c.b16 %v4662, %v4660
  %v4739 = vpack.c.b16 %v4663, %v4661
  %v4740 = vpack.c.b16 %v4666, %v4664
  %v4741 = vpack.c.b16 %v4667, %v4665
  %v4742 = vpack.c.b16 %v4670, %v4668
  %v4743 = vpack.c.b16 %v4671, %v4669
  %v4744 = vpack.c.b16 %v4674, %v4672
  %v4745 = vpack.c.b16 %v4675, %v4673
  %v4746 = vpack.c.b16 %v4678, %v4676
  %v4747 = vpack.c.b16 %v4679, %v4677
  %v4748 = vpack.c.b16 %v4682, %v4680
  %v4749 = vpack.c.b16 %v4683, %v4681
  %v4750 = vpack.c.b16 %v4686, %v4684
  %v4751 = vpack.c.b16 %v4687, %v4685
  %v4752 = vpack.c.b16 %v4690, %v4688
  %v4753 = vpack.c.b16 %v4691, %v4689
  %v4754 = vpack.c.b16 %v4694, %v4692
  %v4755 = vpack.c.b16 %v4695, %v4693
  %v4756 = vpack.c.b16 %v4698, %v4696
  %v4757 = vpack.c.b16 %v4699, %v4697
  %v4758 = vpack.c.b16 %v4702, %v4700
  %v4759 = vpack.c.b16 %v4703, %v4701
  %v4760 = vpack.c.b16 %v4706, %v4704
  %v4761 = vpack.c.b16 %v4707, %v4705
  %v4762 = vpack.c.b16 %v4710, %v4708
  %v4763 = vpack.c.b16 %v4711, %v4709
  %v4764 = vpack.c.b16 %v4714, %v4712
  %v4765 = vpack.c.b16 %v4715, %v4713
  %v4766 = vpack.c.b16 %v4718, %v4716
  %v4767 = vpack.c.b16 %v4719, %v4717
  %4816 = vmatprep.subr.bf16.mxu0 %v4721
  %4817 = vmatpush1.bf16.msra.mxu0 %v4720
  %4818 = vmatprep.subr.bf16.mxu0 %v4723
  %4819 = vmatpush1.bf16.msra.mxu0 %v4722
  %4820 = vmatprep.subr.bf16.mxu0 %v4725
  %4821 = vmatpush1.bf16.msra.mxu0 %v4724
  %4822 = vmatprep.subr.bf16.mxu0 %v4727
  %4823 = vmatpush1.bf16.msra.mxu0 %v4726
  %4824 = vmatprep.subr.bf16.mxu0 %v4729
  %4825 = vmatpush1.bf16.msra.mxu0 %v4728
  %4826 = vmatprep.subr.bf16.mxu0 %v4731
  %4827 = vmatpush1.bf16.msra.mxu0 %v4730
  %4828 = vmatprep.subr.bf16.mxu0 %v4733
  %4829 = vmatpush1.bf16.msra.mxu0 %v4732
  %4830 = vmatprep.subr.bf16.mxu0 %v4735
  %4831 = vmatpush1.bf16.msra.mxu0 %v4734
  %4832 = vmatprep.subr.bf16.mxu0 %v4737
  %4833 = vmatpush1.bf16.msra.mxu0 %v4736
  %4834 = vmatprep.subr.bf16.mxu0 %v4739
  %4835 = vmatpush1.bf16.msra.mxu0 %v4738
  %4836 = vmatprep.subr.bf16.mxu0 %v4741
  %4837 = vmatpush1.bf16.msra.mxu0 %v4740
  %4838 = vmatprep.subr.bf16.mxu0 %v4743
  %4839 = vmatpush1.bf16.msra.mxu0 %v4742
  %4840 = vmatprep.subr.bf16.mxu0 %v4745
  %4841 = vmatpush1.bf16.msra.mxu0 %v4744
  %4842 = vmatprep.subr.bf16.mxu0 %v4747
  %4843 = vmatpush1.bf16.msra.mxu0 %v4746
  %4844 = vmatprep.subr.bf16.mxu0 %v4749
  %4845 = vmatpush1.bf16.msra.mxu0 %v4748
  %4846 = vmatprep.subr.bf16.mxu0 %v4751
  %4847 = vmatpush1.bf16.msra.mxu0 %v4750
  %4848 = vmatprep.mubr.bf16.mxu0 %v1848
  %4849 = vmatmul.mubr.bf16.gmra.mrb[0].mxu0 %v1676
  %v4850 = vpop.f32.mrb[0].mxu0
  %v4851 = vadd.f32 %v4258, %v4850
  %v4852 = vpop.f32.mrb[0].mxu0
  %v4853 = vadd.f32 %v4260, %v4852
  %v4854 = vpop.f32.mrb[0].mxu0
  %v4855 = vadd.f32 %v4262, %v4854
  %v4856 = vpop.f32.mrb[0].mxu0
  %v4857 = vadd.f32 %v4264, %v4856
  %4858 = vmatprep.mubr.bf16.mxu0 %v1860
  %4859 = vmatmul.mubr.bf16.gmra.mrb[0].mxu0 %v1677
  %v4860 = vpop.f32.mrb[0].mxu0
  %v4861 = vadd.f32 %v4268, %v4860
  %v4862 = vpop.f32.mrb[0].mxu0
  %v4863 = vadd.f32 %v4270, %v4862
  %v4864 = vpop.f32.mrb[0].mxu0
  %v4865 = vadd.f32 %v4272, %v4864
  %v4866 = vpop.f32.mrb[0].mxu0
  %v4867 = vadd.f32 %v4274, %v4866
  %4868 = vmatprep.mubr.bf16.mxu0 %v1872
  %4869 = vmatmul.mubr.bf16.gmra.mrb[0].mxu0 %v1678
  %v4870 = vpop.f32.mrb[0].mxu0
  %v4871 = vadd.f32 %v4278, %v4870
  %v4872 = vpop.f32.mrb[0].mxu0
  %v4873 = vadd.f32 %v4280, %v4872
  %v4874 = vpop.f32.mrb[0].mxu0
  %v4875 = vadd.f32 %v4282, %v4874
  %v4876 = vpop.f32.mrb[0].mxu0
  %v4877 = vadd.f32 %v4284, %v4876
  %4878 = vmatprep.mubr.bf16.mxu0 %v1884
  %4879 = vmatmul.mubr.bf16.gmra.mrb[0].mxu0 %v1679
  %v4880 = vpop.f32.mrb[0].mxu0
  %v4881 = vadd.f32 %v4288, %v4880
  %v4882 = vpop.f32.mrb[0].mxu0
  %v4883 = vadd.f32 %v4290, %v4882
  %v4884 = vpop.f32.mrb[0].mxu0
  %v4885 = vadd.f32 %v4292, %v4884
  %v4886 = vpop.f32.mrb[0].mxu0
  %v4887 = vadd.f32 %v4294, %v4886
  %4888 = vmatprep.mubr.bf16.mxu0 %v1896
  %4889 = vmatmul.mubr.bf16.gmra.mrb[0].mxu0 %v1680
  %v4890 = vpop.f32.mrb[0].mxu0
  %v4891 = vadd.f32 %v4298, %v4890
  %v4892 = vpop.f32.mrb[0].mxu0
  %v4893 = vadd.f32 %v4300, %v4892
  %v4894 = vpop.f32.mrb[0].mxu0
  %v4895 = vadd.f32 %v4302, %v4894
  %v4896 = vpop.f32.mrb[0].mxu0
  %v4897 = vadd.f32 %v4304, %v4896
  %4898 = vmatprep.mubr.bf16.mxu0 %v1908
  %4899 = vmatmul.mubr.bf16.gmra.mrb[0].mxu0 %v1681
  %v4900 = vpop.f32.mrb[0].mxu0
  %v4901 = vadd.f32 %v4308, %v4900
  %v4902 = vpop.f32.mrb[0].mxu0
  %v4903 = vadd.f32 %v4310, %v4902
  %v4904 = vpop.f32.mrb[0].mxu0
  %v4905 = vadd.f32 %v4312, %v4904
  %v4906 = vpop.f32.mrb[0].mxu0
  %v4907 = vadd.f32 %v4314, %v4906
  %4908 = vmatprep.mubr.bf16.mxu0 %v1920
  %4909 = vmatmul.mubr.bf16.gmra.mrb[0].mxu0 %v1682
  %v4910 = vpop.f32.mrb[0].mxu0
  %v4911 = vadd.f32 %v4318, %v4910
  %v4912 = vpop.f32.mrb[0].mxu0
  %v4913 = vadd.f32 %v4320, %v4912
  %v4914 = vpop.f32.mrb[0].mxu0
  %v4915 = vadd.f32 %v4322, %v4914
  %v4916 = vpop.f32.mrb[0].mxu0
  %v4917 = vadd.f32 %v4324, %v4916
  %4918 = vmatprep.mubr.bf16.mxu0 %v1932
  %4919 = vmatmul.mubr.bf16.gmra.mrb[0].mxu0 %v1683
  %v4920 = vpop.f32.mrb[0].mxu0
  %v4921 = vadd.f32 %v4328, %v4920
  %v4922 = vpop.f32.mrb[0].mxu0
  %v4923 = vadd.f32 %v4330, %v4922
  %v4924 = vpop.f32.mrb[0].mxu0
  %v4925 = vadd.f32 %v4332, %v4924
  %v4926 = vpop.f32.mrb[0].mxu0
  %v4927 = vadd.f32 %v4334, %v4926
  %4928 = vmatprep.mubr.bf16.mxu0 %v1944
  %4929 = vmatmul.mubr.bf16.gmra.mrb[0].mxu0 %v1684
  %v4930 = vpop.f32.mrb[0].mxu0
  %v4931 = vadd.f32 %v4338, %v4930
  %v4932 = vpop.f32.mrb[0].mxu0
  %v4933 = vadd.f32 %v4340, %v4932
  %v4934 = vpop.f32.mrb[0].mxu0
  %v4935 = vadd.f32 %v4342, %v4934
  %v4936 = vpop.f32.mrb[0].mxu0
  %v4937 = vadd.f32 %v4344, %v4936
  %4938 = vmatprep.mubr.bf16.mxu0 %v1956
  %4939 = vmatmul.mubr.bf16.gmra.mrb[0].mxu0 %v1685
  %v4940 = vpop.f32.mrb[0].mxu0
  %v4941 = vadd.f32 %v4348, %v4940
  %v4942 = vpop.f32.mrb[0].mxu0
  %v4943 = vadd.f32 %v4350, %v4942
  %v4944 = vpop.f32.mrb[0].mxu0
  %v4945 = vadd.f32 %v4352, %v4944
  %v4946 = vpop.f32.mrb[0].mxu0
  %v4947 = vadd.f32 %v4354, %v4946
  %4948 = vmatprep.mubr.bf16.mxu0 %v1968
  %4949 = vmatmul.mubr.bf16.gmra.mrb[0].mxu0 %v1686
  %v4950 = vpop.f32.mrb[0].mxu0
  %v4951 = vadd.f32 %v4358, %v4950
  %v4952 = vpop.f32.mrb[0].mxu0
  %v4953 = vadd.f32 %v4360, %v4952
  %v4954 = vpop.f32.mrb[0].mxu0
  %v4955 = vadd.f32 %v4362, %v4954
  %v4956 = vpop.f32.mrb[0].mxu0
  %v4957 = vadd.f32 %v4364, %v4956
  %4958 = vmatprep.mubr.bf16.mxu0 %v1980
  %4959 = vmatmul.mubr.bf16.gmra.mrb[0].mxu0 %v1687
  %v4960 = vpop.f32.mrb[0].mxu0
  %v4961 = vadd.f32 %v4368, %v4960
  %v4962 = vpop.f32.mrb[0].mxu0
  %v4963 = vadd.f32 %v4370, %v4962
  %v4964 = vpop.f32.mrb[0].mxu0
  %v4965 = vadd.f32 %v4372, %v4964
  %v4966 = vpop.f32.mrb[0].mxu0
  %v4967 = vadd.f32 %v4374, %v4966
  %4968 = vmatprep.mubr.bf16.mxu0 %v1992
  %4969 = vmatmul.mubr.bf16.gmra.mrb[0].mxu0 %v1688
  %v4970 = vpop.f32.mrb[0].mxu0
  %v4971 = vadd.f32 %v4378, %v4970
  %v4972 = vpop.f32.mrb[0].mxu0
  %v4973 = vadd.f32 %v4380, %v4972
  %v4974 = vpop.f32.mrb[0].mxu0
  %v4975 = vadd.f32 %v4382, %v4974
  %v4976 = vpop.f32.mrb[0].mxu0
  %v4977 = vadd.f32 %v4384, %v4976
  %4978 = vmatprep.mubr.bf16.mxu0 %v2004
  %4979 = vmatmul.mubr.bf16.gmra.mrb[0].mxu0 %v1689
  %v4980 = vpop.f32.mrb[0].mxu0
  %v4981 = vadd.f32 %v4388, %v4980
  %v4982 = vpop.f32.mrb[0].mxu0
  %v4983 = vadd.f32 %v4390, %v4982
  %v4984 = vpop.f32.mrb[0].mxu0
  %v4985 = vadd.f32 %v4392, %v4984
  %v4986 = vpop.f32.mrb[0].mxu0
  %v4987 = vadd.f32 %v4394, %v4986
  %4988 = vmatprep.mubr.bf16.mxu0 %v2016
  %4989 = vmatmul.mubr.bf16.gmra.mrb[0].mxu0 %v1690
  %v4990 = vpop.f32.mrb[0].mxu0
  %v4991 = vadd.f32 %v4398, %v4990
  %v4992 = vpop.f32.mrb[0].mxu0
  %v4993 = vadd.f32 %v4400, %v4992
  %v4994 = vpop.f32.mrb[0].mxu0
  %v4995 = vadd.f32 %v4402, %v4994
  %v4996 = vpop.f32.mrb[0].mxu0
  %v4997 = vadd.f32 %v4404, %v4996
  %4998 = vmatprep.mubr.bf16.mxu0 %v2028
  %4999 = vmatmul.mubr.bf16.gmra.mrb[0].mxu0 %v1691
  %v5000 = vpop.f32.mrb[0].mxu0
  %v5001 = vadd.f32 %v4408, %v5000
  %v5002 = vpop.f32.mrb[0].mxu0
  %v5003 = vadd.f32 %v4410, %v5002
  %v5004 = vpop.f32.mrb[0].mxu0
  %v5005 = vadd.f32 %v4412, %v5004
  %v5006 = vpop.f32.mrb[0].mxu0
  %v5007 = vadd.f32 %v4414, %v5006
  %5008 = vmatprep.mubr.bf16.mxu0 %v2040
  %5009 = vmatmul.mubr.bf16.gmra.mrb[0].mxu0 %v1692
  %v5010 = vpop.f32.mrb[0].mxu0
  %v5011 = vadd.f32 %v4418, %v5010
  %v5012 = vpop.f32.mrb[0].mxu0
  %v5013 = vadd.f32 %v4420, %v5012
  %v5014 = vpop.f32.mrb[0].mxu0
  %v5015 = vadd.f32 %v4422, %v5014
  %v5016 = vpop.f32.mrb[0].mxu0
  %v5017 = vadd.f32 %v4424, %v5016
  %5018 = vmatprep.mubr.bf16.mxu0 %v2052
  %5019 = vmatmul.mubr.bf16.gmra.mrb[0].mxu0 %v1693
  %v5020 = vpop.f32.mrb[0].mxu0
  %v5021 = vadd.f32 %v4428, %v5020
  %v5022 = vpop.f32.mrb[0].mxu0
  %v5023 = vadd.f32 %v4430, %v5022
  %v5024 = vpop.f32.mrb[0].mxu0
  %v5025 = vadd.f32 %v4432, %v5024
  %v5026 = vpop.f32.mrb[0].mxu0
  %v5027 = vadd.f32 %v4434, %v5026
  %5028 = vmatprep.mubr.bf16.mxu0 %v2064
  %5029 = vmatmul.mubr.bf16.gmra.mrb[0].mxu0 %v1694
  %v5030 = vpop.f32.mrb[0].mxu0
  %v5031 = vadd.f32 %v4438, %v5030
  %v5032 = vpop.f32.mrb[0].mxu0
  %v5033 = vadd.f32 %v4440, %v5032
  %v5034 = vpop.f32.mrb[0].mxu0
  %v5035 = vadd.f32 %v4442, %v5034
  %v5036 = vpop.f32.mrb[0].mxu0
  %v5037 = vadd.f32 %v4444, %v5036
  %5038 = vmatprep.mubr.bf16.mxu0 %v2076
  %5039 = vmatmul.mubr.bf16.gmra.mrb[0].mxu0 %v1695
  %v5040 = vpop.f32.mrb[0].mxu0
  %v5041 = vadd.f32 %v4448, %v5040
  %v5042 = vpop.f32.mrb[0].mxu0
  %v5043 = vadd.f32 %v4450, %v5042
  %v5044 = vpop.f32.mrb[0].mxu0
  %v5045 = vadd.f32 %v4452, %v5044
  %v5046 = vpop.f32.mrb[0].mxu0
  %v5047 = vadd.f32 %v4454, %v5046
  %5048 = vmatprep.mubr.bf16.mxu0 %v2088
  %5049 = vmatmul.mubr.bf16.gmra.mrb[0].mxu0 %v1696
  %v5050 = vpop.f32.mrb[0].mxu0
  %v5051 = vadd.f32 %v4458, %v5050
  %v5052 = vpop.f32.mrb[0].mxu0
  %v5053 = vadd.f32 %v4460, %v5052
  %v5054 = vpop.f32.mrb[0].mxu0
  %v5055 = vadd.f32 %v4462, %v5054
  %v5056 = vpop.f32.mrb[0].mxu0
  %v5057 = vadd.f32 %v4464, %v5056
  %5058 = vmatprep.mubr.bf16.mxu0 %v2100
  %5059 = vmatmul.mubr.bf16.gmra.mrb[0].mxu0 %v1697
  %v5060 = vpop.f32.mrb[0].mxu0
  %v5061 = vadd.f32 %v4468, %v5060
  %v5062 = vpop.f32.mrb[0].mxu0
  %v5063 = vadd.f32 %v4470, %v5062
  %v5064 = vpop.f32.mrb[0].mxu0
  %v5065 = vadd.f32 %v4472, %v5064
  %v5066 = vpop.f32.mrb[0].mxu0
  %v5067 = vadd.f32 %v4474, %v5066
  %5068 = vmatprep.mubr.bf16.mxu0 %v2112
  %5069 = vmatmul.mubr.bf16.gmra.mrb[0].mxu0 %v1698
  %v5070 = vpop.f32.mrb[0].mxu0
  %v5071 = vadd.f32 %v4478, %v5070
  %v5072 = vpop.f32.mrb[0].mxu0
  %v5073 = vadd.f32 %v4480, %v5072
  %v5074 = vpop.f32.mrb[0].mxu0
  %v5075 = vadd.f32 %v4482, %v5074
  %v5076 = vpop.f32.mrb[0].mxu0
  %v5077 = vadd.f32 %v4484, %v5076
  %5078 = vmatprep.mubr.bf16.mxu0 %v2124
  %5079 = vmatmul.mubr.bf16.gmra.mrb[0].mxu0 %v1699
  %v5080 = vpop.f32.mrb[0].mxu0
  %v5081 = vadd.f32 %v4488, %v5080
  %v5082 = vpop.f32.mrb[0].mxu0
  %v5083 = vadd.f32 %v4490, %v5082
  %v5084 = vpop.f32.mrb[0].mxu0
  %v5085 = vadd.f32 %v4492, %v5084
  %v5086 = vpop.f32.mrb[0].mxu0
  %v5087 = vadd.f32 %v4494, %v5086
  %5088 = vmatprep.mubr.bf16.mxu0 %v2136
  %5089 = vmatmul.mubr.bf16.gmra.mrb[0].mxu0 %v1700
  %v5090 = vpop.f32.mrb[0].mxu0
  %v5091 = vadd.f32 %v4498, %v5090
  %v5092 = vpop.f32.mrb[0].mxu0
  %v5093 = vadd.f32 %v4500, %v5092
  %v5094 = vpop.f32.mrb[0].mxu0
  %v5095 = vadd.f32 %v4502, %v5094
  %v5096 = vpop.f32.mrb[0].mxu0
  %v5097 = vadd.f32 %v4504, %v5096
  %5098 = vmatprep.mubr.bf16.mxu0 %v2148
  %5099 = vmatmul.mubr.bf16.gmra.mrb[0].mxu0 %v1701
  %v5100 = vpop.f32.mrb[0].mxu0
  %v5101 = vadd.f32 %v4508, %v5100
  %v5102 = vpop.f32.mrb[0].mxu0
  %v5103 = vadd.f32 %v4510, %v5102
  %v5104 = vpop.f32.mrb[0].mxu0
  %v5105 = vadd.f32 %v4512, %v5104
  %v5106 = vpop.f32.mrb[0].mxu0
  %v5107 = vadd.f32 %v4514, %v5106
  %5108 = vmatprep.mubr.bf16.mxu0 %v2160
  %5109 = vmatmul.mubr.bf16.gmra.mrb[0].mxu0 %v1702
  %v5110 = vpop.f32.mrb[0].mxu0
  %v5111 = vadd.f32 %v4518, %v5110
  %v5112 = vpop.f32.mrb[0].mxu0
  %v5113 = vadd.f32 %v4520, %v5112
  %v5114 = vpop.f32.mrb[0].mxu0
  %v5115 = vadd.f32 %v4522, %v5114
  %v5116 = vpop.f32.mrb[0].mxu0
  %v5117 = vadd.f32 %v4524, %v5116
  %5118 = vmatprep.mubr.bf16.mxu0 %v2172
  %5119 = vmatmul.mubr.bf16.gmra.mrb[0].mxu0 %v1703
  %v5120 = vpop.f32.mrb[0].mxu0
  %v5121 = vadd.f32 %v4528, %v5120
  %v5122 = vpop.f32.mrb[0].mxu0
  %v5123 = vadd.f32 %v4530, %v5122
  %v5124 = vpop.f32.mrb[0].mxu0
  %v5125 = vadd.f32 %v4532, %v5124
  %v5126 = vpop.f32.mrb[0].mxu0
  %v5127 = vadd.f32 %v4534, %v5126
  %5128 = vmatprep.mubr.bf16.mxu0 %v2184
  %5129 = vmatmul.mubr.bf16.gmra.mrb[0].mxu0 %v1704
  %v5130 = vpop.f32.mrb[0].mxu0
  %v5131 = vadd.f32 %v4538, %v5130
  %v5132 = vpop.f32.mrb[0].mxu0
  %v5133 = vadd.f32 %v4540, %v5132
  %v5134 = vpop.f32.mrb[0].mxu0
  %v5135 = vadd.f32 %v4542, %v5134
  %v5136 = vpop.f32.mrb[0].mxu0
  %v5137 = vadd.f32 %v4544, %v5136
  %5138 = vmatprep.mubr.bf16.mxu0 %v2196
  %5139 = vmatmul.mubr.bf16.gmra.mrb[0].mxu0 %v1705
  %v5140 = vpop.f32.mrb[0].mxu0
  %v5141 = vadd.f32 %v4548, %v5140
  %v5142 = vpop.f32.mrb[0].mxu0
  %v5143 = vadd.f32 %v4550, %v5142
  %v5144 = vpop.f32.mrb[0].mxu0
  %v5145 = vadd.f32 %v4552, %v5144
  %v5146 = vpop.f32.mrb[0].mxu0
  %v5147 = vadd.f32 %v4554, %v5146
  %5148 = vmatprep.mubr.bf16.mxu0 %v2208
  %5149 = vmatmul.mubr.bf16.gmra.mrb[0].mxu0 %v1706
  %v5150 = vpop.f32.mrb[0].mxu0
  %v5151 = vadd.f32 %v4558, %v5150
  %v5152 = vpop.f32.mrb[0].mxu0
  %v5153 = vadd.f32 %v4560, %v5152
  %v5154 = vpop.f32.mrb[0].mxu0
  %v5155 = vadd.f32 %v4562, %v5154
  %v5156 = vpop.f32.mrb[0].mxu0
  %v5157 = vadd.f32 %v4564, %v5156
  %5158 = vmatprep.mubr.bf16.mxu0 %v2220
  %5159 = vmatmul.mubr.bf16.gmra.mrb[0].mxu0 %v1707
  %v5160 = vpop.f32.mrb[0].mxu0
  %v5161 = vadd.f32 %v4568, %v5160
  %v5162 = vpop.f32.mrb[0].mxu0
  %v5163 = vadd.f32 %v4570, %v5162
  %v5164 = vpop.f32.mrb[0].mxu0
  %v5165 = vadd.f32 %v4572, %v5164
  %v5166 = vpop.f32.mrb[0].mxu0
  %v5167 = vadd.f32 %v4574, %v5166
  %5168 = vdwg.mxu0
  %5169 = vmatprep.subr.bf16.mxu0 %v4753
  %5170 = vmatpush1.bf16.msra.mxu0 %v4752
  %5171 = vmatprep.subr.bf16.mxu0 %v4755
  %5172 = vmatpush1.bf16.msra.mxu0 %v4754
  %5173 = vmatprep.subr.bf16.mxu0 %v4757
  %5174 = vmatpush1.bf16.msra.mxu0 %v4756
  %5175 = vmatprep.subr.bf16.mxu0 %v4759
  %5176 = vmatpush1.bf16.msra.mxu0 %v4758
  %5177 = vmatprep.subr.bf16.mxu0 %v4761
  %5178 = vmatpush1.bf16.msra.mxu0 %v4760
  %5179 = vmatprep.subr.bf16.mxu0 %v4763
  %5180 = vmatpush1.bf16.msra.mxu0 %v4762
  %5181 = vmatprep.subr.bf16.mxu0 %v4765
  %5182 = vmatpush1.bf16.msra.mxu0 %v4764
  %5183 = vmatprep.subr.bf16.mxu0 %v4767
  %5184 = vmatpush1.bf16.msra.mxu0 %v4766
  %5185 = vmatprep.subr.bf16.mxu0 0
  %5186 = vmatpush1.bf16.msra.mxu0 0
  %5187 = vmatprep.subr.bf16.mxu0 0
  %5188 = vmatpush1.bf16.msra.mxu0 0
  %5189 = vmatprep.subr.bf16.mxu0 0
  %5190 = vmatpush1.bf16.msra.mxu0 0
  %5191 = vmatprep.subr.bf16.mxu0 0
  %5192 = vmatpush1.bf16.msra.mxu0 0
  %5193 = vmatprep.subr.bf16.mxu0 0
  %5194 = vmatpush1.bf16.msra.mxu0 0
  %5195 = vmatprep.subr.bf16.mxu0 0
  %5196 = vmatpush1.bf16.msra.mxu0 0
  %5197 = vmatprep.subr.bf16.mxu0 0
  %5198 = vmatpush1.bf16.msra.mxu0 0
  %5199 = vmatprep.subr.bf16.mxu0 0
  %5200 = vmatpush1.bf16.msra.mxu0 0
  %5201 = vmatprep.mubr.bf16.mxu0 0
  %5202 = vmatmul.mubr.bf16.gmra.mrb[0].mxu0 %v2352
  %v5203 = vpop.f32.mrb[0].mxu0
  %v5204 = vadd.f32 %v4851, %v5203
  %v5205 = vpop.f32.mrb[0].mxu0
  %v5206 = vadd.f32 %v4853, %v5205
  %v5207 = vpop.f32.mrb[0].mxu0
  %v5208 = vadd.f32 %v4855, %v5207
  %v5209 = vpop.f32.mrb[0].mxu0
  %v5210 = vadd.f32 %v4857, %v5209
  %5211 = vmatprep.mubr.bf16.mxu0 0
  %5212 = vmatmul.mubr.bf16.gmra.mrb[0].mxu0 %v2355
  %v5213 = vpop.f32.mrb[0].mxu0
  %v5214 = vadd.f32 %v4861, %v5213
  %v5215 = vpop.f32.mrb[0].mxu0
  %v5216 = vadd.f32 %v4863, %v5215
  %v5217 = vpop.f32.mrb[0].mxu0
  %v5218 = vadd.f32 %v4865, %v5217
  %v5219 = vpop.f32.mrb[0].mxu0
  %v5220 = vadd.f32 %v4867, %v5219
  %5221 = vmatprep.mubr.bf16.mxu0 0
  %5222 = vmatmul.mubr.bf16.gmra.mrb[0].mxu0 %v2358
  %v5223 = vpop.f32.mrb[0].mxu0
  %v5224 = vadd.f32 %v4871, %v5223
  %v5225 = vpop.f32.mrb[0].mxu0
  %v5226 = vadd.f32 %v4873, %v5225
  %v5227 = vpop.f32.mrb[0].mxu0
  %v5228 = vadd.f32 %v4875, %v5227
  %v5229 = vpop.f32.mrb[0].mxu0
  %v5230 = vadd.f32 %v4877, %v5229
  %5231 = vmatprep.mubr.bf16.mxu0 0
  %5232 = vmatmul.mubr.bf16.gmra.mrb[0].mxu0 %v2361
  %v5233 = vpop.f32.mrb[0].mxu0
  %v5234 = vadd.f32 %v4881, %v5233
  %v5235 = vpop.f32.mrb[0].mxu0
  %v5236 = vadd.f32 %v4883, %v5235
  %v5237 = vpop.f32.mrb[0].mxu0
  %v5238 = vadd.f32 %v4885, %v5237
  %v5239 = vpop.f32.mrb[0].mxu0
  %v5240 = vadd.f32 %v4887, %v5239
  %5241 = vmatprep.mubr.bf16.mxu0 0
  %5242 = vmatmul.mubr.bf16.gmra.mrb[0].mxu0 %v2364
  %v5243 = vpop.f32.mrb[0].mxu0
  %v5244 = vadd.f32 %v4891, %v5243
  %v5245 = vpop.f32.mrb[0].mxu0
  %v5246 = vadd.f32 %v4893, %v5245
  %v5247 = vpop.f32.mrb[0].mxu0
  %v5248 = vadd.f32 %v4895, %v5247
  %v5249 = vpop.f32.mrb[0].mxu0
  %v5250 = vadd.f32 %v4897, %v5249
  %5251 = vmatprep.mubr.bf16.mxu0 0
  %5252 = vmatmul.mubr.bf16.gmra.mrb[0].mxu0 %v2367
  %v5253 = vpop.f32.mrb[0].mxu0
  %v5254 = vadd.f32 %v4901, %v5253
  %v5255 = vpop.f32.mrb[0].mxu0
  %v5256 = vadd.f32 %v4903, %v5255
  %v5257 = vpop.f32.mrb[0].mxu0
  %v5258 = vadd.f32 %v4905, %v5257
  %v5259 = vpop.f32.mrb[0].mxu0
  %v5260 = vadd.f32 %v4907, %v5259
  %5261 = vmatprep.mubr.bf16.mxu0 0
  %5262 = vmatmul.mubr.bf16.gmra.mrb[0].mxu0 %v2370
  %v5263 = vpop.f32.mrb[0].mxu0
  %v5264 = vadd.f32 %v4911, %v5263
  %v5265 = vpop.f32.mrb[0].mxu0
  %v5266 = vadd.f32 %v4913, %v5265
  %v5267 = vpop.f32.mrb[0].mxu0
  %v5268 = vadd.f32 %v4915, %v5267
  %v5269 = vpop.f32.mrb[0].mxu0
  %v5270 = vadd.f32 %v4917, %v5269
  %5271 = vmatprep.mubr.bf16.mxu0 0
  %5272 = vmatmul.mubr.bf16.gmra.mrb[0].mxu0 %v2373
  %v5273 = vpop.f32.mrb[0].mxu0
  %v5274 = vadd.f32 %v4921, %v5273
  %v5275 = vpop.f32.mrb[0].mxu0
  %v5276 = vadd.f32 %v4923, %v5275
  %v5277 = vpop.f32.mrb[0].mxu0
  %v5278 = vadd.f32 %v4925, %v5277
  %v5279 = vpop.f32.mrb[0].mxu0
  %v5280 = vadd.f32 %v4927, %v5279
  %5281 = vmatprep.mubr.bf16.mxu0 0
  %5282 = vmatmul.mubr.bf16.gmra.mrb[0].mxu0 %v2376
  %v5283 = vpop.f32.mrb[0].mxu0
  %v5284 = vadd.f32 %v4931, %v5283
  %v5285 = vpop.f32.mrb[0].mxu0
  %v5286 = vadd.f32 %v4933, %v5285
  %v5287 = vpop.f32.mrb[0].mxu0
  %v5288 = vadd.f32 %v4935, %v5287
  %v5289 = vpop.f32.mrb[0].mxu0
  %v5290 = vadd.f32 %v4937, %v5289
  %5291 = vmatprep.mubr.bf16.mxu0 0
  %5292 = vmatmul.mubr.bf16.gmra.mrb[0].mxu0 %v2379
  %v5293 = vpop.f32.mrb[0].mxu0
  %v5294 = vadd.f32 %v4941, %v5293
  %v5295 = vpop.f32.mrb[0].mxu0
  %v5296 = vadd.f32 %v4943, %v5295
  %v5297 = vpop.f32.mrb[0].mxu0
  %v5298 = vadd.f32 %v4945, %v5297
  %v5299 = vpop.f32.mrb[0].mxu0
  %v5300 = vadd.f32 %v4947, %v5299
  %5301 = vmatprep.mubr.bf16.mxu0 0
  %5302 = vmatmul.mubr.bf16.gmra.mrb[0].mxu0 %v2382
  %v5303 = vpop.f32.mrb[0].mxu0
  %v5304 = vadd.f32 %v4951, %v5303
  %v5305 = vpop.f32.mrb[0].mxu0
  %v5306 = vadd.f32 %v4953, %v5305
  %v5307 = vpop.f32.mrb[0].mxu0
  %v5308 = vadd.f32 %v4955, %v5307
  %v5309 = vpop.f32.mrb[0].mxu0
  %v5310 = vadd.f32 %v4957, %v5309
  %5311 = vmatprep.mubr.bf16.mxu0 0
  %5312 = vmatmul.mubr.bf16.gmra.mrb[0].mxu0 %v2385
  %v5313 = vpop.f32.mrb[0].mxu0
  %v5314 = vadd.f32 %v4961, %v5313
  %v5315 = vpop.f32.mrb[0].mxu0
  %v5316 = vadd.f32 %v4963, %v5315
  %v5317 = vpop.f32.mrb[0].mxu0
  %v5318 = vadd.f32 %v4965, %v5317
  %v5319 = vpop.f32.mrb[0].mxu0
  %v5320 = vadd.f32 %v4967, %v5319
  %5321 = vmatprep.mubr.bf16.mxu0 0
  %5322 = vmatmul.mubr.bf16.gmra.mrb[0].mxu0 %v2388
  %v5323 = vpop.f32.mrb[0].mxu0
  %v5324 = vadd.f32 %v4971, %v5323
  %v5325 = vpop.f32.mrb[0].mxu0
  %v5326 = vadd.f32 %v4973, %v5325
  %v5327 = vpop.f32.mrb[0].mxu0
  %v5328 = vadd.f32 %v4975, %v5327
  %v5329 = vpop.f32.mrb[0].mxu0
  %v5330 = vadd.f32 %v4977, %v5329
  %5331 = vmatprep.mubr.bf16.mxu0 0
  %5332 = vmatmul.mubr.bf16.gmra.mrb[0].mxu0 %v2391
  %v5333 = vpop.f32.mrb[0].mxu0
  %v5334 = vadd.f32 %v4981, %v5333
  %v5335 = vpop.f32.mrb[0].mxu0
  %v5336 = vadd.f32 %v4983, %v5335
  %v5337 = vpop.f32.mrb[0].mxu0
  %v5338 = vadd.f32 %v4985, %v5337
  %v5339 = vpop.f32.mrb[0].mxu0
  %v5340 = vadd.f32 %v4987, %v5339
  %5341 = vmatprep.mubr.bf16.mxu0 0
  %5342 = vmatmul.mubr.bf16.gmra.mrb[0].mxu0 %v2394
  %v5343 = vpop.f32.mrb[0].mxu0
  %v5344 = vadd.f32 %v4991, %v5343
  %v5345 = vpop.f32.mrb[0].mxu0
  %v5346 = vadd.f32 %v4993, %v5345
  %v5347 = vpop.f32.mrb[0].mxu0
  %v5348 = vadd.f32 %v4995, %v5347
  %v5349 = vpop.f32.mrb[0].mxu0
  %v5350 = vadd.f32 %v4997, %v5349
  %5351 = vmatprep.mubr.bf16.mxu0 0
  %5352 = vmatmul.mubr.bf16.gmra.mrb[0].mxu0 %v2397
  %v5353 = vpop.f32.mrb[0].mxu0
  %v5354 = vadd.f32 %v5001, %v5353
  %v5355 = vpop.f32.mrb[0].mxu0
  %v5356 = vadd.f32 %v5003, %v5355
  %v5357 = vpop.f32.mrb[0].mxu0
  %v5358 = vadd.f32 %v5005, %v5357
  %v5359 = vpop.f32.mrb[0].mxu0
  %v5360 = vadd.f32 %v5007, %v5359
  %5361 = vmatprep.mubr.bf16.mxu0 0
  %5362 = vmatmul.mubr.bf16.gmra.mrb[0].mxu0 %v2400
  %v5363 = vpop.f32.mrb[0].mxu0
  %v5364 = vadd.f32 %v5011, %v5363
  %v5365 = vpop.f32.mrb[0].mxu0
  %v5366 = vadd.f32 %v5013, %v5365
  %v5367 = vpop.f32.mrb[0].mxu0
  %v5368 = vadd.f32 %v5015, %v5367
  %v5369 = vpop.f32.mrb[0].mxu0
  %v5370 = vadd.f32 %v5017, %v5369
  %5371 = vmatprep.mubr.bf16.mxu0 0
  %5372 = vmatmul.mubr.bf16.gmra.mrb[0].mxu0 %v2403
  %v5373 = vpop.f32.mrb[0].mxu0
  %v5374 = vadd.f32 %v5021, %v5373
  %v5375 = vpop.f32.mrb[0].mxu0
  %v5376 = vadd.f32 %v5023, %v5375
  %v5377 = vpop.f32.mrb[0].mxu0
  %v5378 = vadd.f32 %v5025, %v5377
  %v5379 = vpop.f32.mrb[0].mxu0
  %v5380 = vadd.f32 %v5027, %v5379
  %5381 = vmatprep.mubr.bf16.mxu0 0
  %5382 = vmatmul.mubr.bf16.gmra.mrb[0].mxu0 %v2406
  %v5383 = vpop.f32.mrb[0].mxu0
  %v5384 = vadd.f32 %v5031, %v5383
  %v5385 = vpop.f32.mrb[0].mxu0
  %v5386 = vadd.f32 %v5033, %v5385
  %v5387 = vpop.f32.mrb[0].mxu0
  %v5388 = vadd.f32 %v5035, %v5387
  %v5389 = vpop.f32.mrb[0].mxu0
  %v5390 = vadd.f32 %v5037, %v5389
  %5391 = vmatprep.mubr.bf16.mxu0 0
  %5392 = vmatmul.mubr.bf16.gmra.mrb[0].mxu0 %v2409
  %v5393 = vpop.f32.mrb[0].mxu0
  %v5394 = vadd.f32 %v5041, %v5393
  %v5395 = vpop.f32.mrb[0].mxu0
  %v5396 = vadd.f32 %v5043, %v5395
  %v5397 = vpop.f32.mrb[0].mxu0
  %v5398 = vadd.f32 %v5045, %v5397
  %v5399 = vpop.f32.mrb[0].mxu0
  %v5400 = vadd.f32 %v5047, %v5399
  %5401 = vmatprep.mubr.bf16.mxu0 0
  %5402 = vmatmul.mubr.bf16.gmra.mrb[0].mxu0 %v2412
  %v5403 = vpop.f32.mrb[0].mxu0
  %v5404 = vadd.f32 %v5051, %v5403
  %v5405 = vpop.f32.mrb[0].mxu0
  %v5406 = vadd.f32 %v5053, %v5405
  %v5407 = vpop.f32.mrb[0].mxu0
  %v5408 = vadd.f32 %v5055, %v5407
  %v5409 = vpop.f32.mrb[0].mxu0
  %v5410 = vadd.f32 %v5057, %v5409
  %5411 = vmatprep.mubr.bf16.mxu0 0
  %5412 = vmatmul.mubr.bf16.gmra.mrb[0].mxu0 %v2415
  %v5413 = vpop.f32.mrb[0].mxu0
  %v5414 = vadd.f32 %v5061, %v5413
  %v5415 = vpop.f32.mrb[0].mxu0
  %v5416 = vadd.f32 %v5063, %v5415
  %v5417 = vpop.f32.mrb[0].mxu0
  %v5418 = vadd.f32 %v5065, %v5417
  %v5419 = vpop.f32.mrb[0].mxu0
  %v5420 = vadd.f32 %v5067, %v5419
  %5421 = vmatprep.mubr.bf16.mxu0 0
  %5422 = vmatmul.mubr.bf16.gmra.mrb[0].mxu0 %v2418
  %v5423 = vpop.f32.mrb[0].mxu0
  %v5424 = vadd.f32 %v5071, %v5423
  %v5425 = vpop.f32.mrb[0].mxu0
  %v5426 = vadd.f32 %v5073, %v5425
  %v5427 = vpop.f32.mrb[0].mxu0
  %v5428 = vadd.f32 %v5075, %v5427
  %v5429 = vpop.f32.mrb[0].mxu0
  %v5430 = vadd.f32 %v5077, %v5429
  %5431 = vmatprep.mubr.bf16.mxu0 0
  %5432 = vmatmul.mubr.bf16.gmra.mrb[0].mxu0 %v2421
  %v5433 = vpop.f32.mrb[0].mxu0
  %v5434 = vadd.f32 %v5081, %v5433
  %v5435 = vpop.f32.mrb[0].mxu0
  %v5436 = vadd.f32 %v5083, %v5435
  %v5437 = vpop.f32.mrb[0].mxu0
  %v5438 = vadd.f32 %v5085, %v5437
  %v5439 = vpop.f32.mrb[0].mxu0
  %v5440 = vadd.f32 %v5087, %v5439
  %5441 = vmatprep.mubr.bf16.mxu0 0
  %5442 = vmatmul.mubr.bf16.gmra.mrb[0].mxu0 %v2424
  %v5443 = vpop.f32.mrb[0].mxu0
  %v5444 = vadd.f32 %v5091, %v5443
  %v5445 = vpop.f32.mrb[0].mxu0
  %v5446 = vadd.f32 %v5093, %v5445
  %v5447 = vpop.f32.mrb[0].mxu0
  %v5448 = vadd.f32 %v5095, %v5447
  %v5449 = vpop.f32.mrb[0].mxu0
  %v5450 = vadd.f32 %v5097, %v5449
  %5451 = vmatprep.mubr.bf16.mxu0 0
  %5452 = vmatmul.mubr.bf16.gmra.mrb[0].mxu0 %v2427
  %v5453 = vpop.f32.mrb[0].mxu0
  %v5454 = vadd.f32 %v5101, %v5453
  %v5455 = vpop.f32.mrb[0].mxu0
  %v5456 = vadd.f32 %v5103, %v5455
  %v5457 = vpop.f32.mrb[0].mxu0
  %v5458 = vadd.f32 %v5105, %v5457
  %v5459 = vpop.f32.mrb[0].mxu0
  %v5460 = vadd.f32 %v5107, %v5459
  %5461 = vmatprep.mubr.bf16.mxu0 0
  %5462 = vmatmul.mubr.bf16.gmra.mrb[0].mxu0 %v2430
  %v5463 = vpop.f32.mrb[0].mxu0
  %v5464 = vadd.f32 %v5111, %v5463
  %v5465 = vpop.f32.mrb[0].mxu0
  %v5466 = vadd.f32 %v5113, %v5465
  %v5467 = vpop.f32.mrb[0].mxu0
  %v5468 = vadd.f32 %v5115, %v5467
  %v5469 = vpop.f32.mrb[0].mxu0
  %v5470 = vadd.f32 %v5117, %v5469
  %5471 = vmatprep.mubr.bf16.mxu0 0
  %5472 = vmatmul.mubr.bf16.gmra.mrb[0].mxu0 %v2433
  %v5473 = vpop.f32.mrb[0].mxu0
  %v5474 = vadd.f32 %v5121, %v5473
  %v5475 = vpop.f32.mrb[0].mxu0
  %v5476 = vadd.f32 %v5123, %v5475
  %v5477 = vpop.f32.mrb[0].mxu0
  %v5478 = vadd.f32 %v5125, %v5477
  %v5479 = vpop.f32.mrb[0].mxu0
  %v5480 = vadd.f32 %v5127, %v5479
  %5481 = vmatprep.mubr.bf16.mxu0 0
  %5482 = vmatmul.mubr.bf16.gmra.mrb[0].mxu0 %v2436
  %v5483 = vpop.f32.mrb[0].mxu0
  %v5484 = vadd.f32 %v5131, %v5483
  %v5485 = vpop.f32.mrb[0].mxu0
  %v5486 = vadd.f32 %v5133, %v5485
  %v5487 = vpop.f32.mrb[0].mxu0
  %v5488 = vadd.f32 %v5135, %v5487
  %v5489 = vpop.f32.mrb[0].mxu0
  %v5490 = vadd.f32 %v5137, %v5489
  %5491 = vmatprep.mubr.bf16.mxu0 0
  %5492 = vmatmul.mubr.bf16.gmra.mrb[0].mxu0 %v2439
  %v5493 = vpop.f32.mrb[0].mxu0
  %v5494 = vadd.f32 %v5141, %v5493
  %v5495 = vpop.f32.mrb[0].mxu0
  %v5496 = vadd.f32 %v5143, %v5495
  %v5497 = vpop.f32.mrb[0].mxu0
  %v5498 = vadd.f32 %v5145, %v5497
  %v5499 = vpop.f32.mrb[0].mxu0
  %v5500 = vadd.f32 %v5147, %v5499
  %5501 = vmatprep.mubr.bf16.mxu0 0
  %5502 = vmatmul.mubr.bf16.gmra.mrb[0].mxu0 %v2442
  %v5503 = vpop.f32.mrb[0].mxu0
  %v5504 = vadd.f32 %v5151, %v5503
  %v5505 = vpop.f32.mrb[0].mxu0
  %v5506 = vadd.f32 %v5153, %v5505
  %v5507 = vpop.f32.mrb[0].mxu0
  %v5508 = vadd.f32 %v5155, %v5507
  %v5509 = vpop.f32.mrb[0].mxu0
  %v5510 = vadd.f32 %v5157, %v5509
  %5511 = vmatprep.mubr.bf16.mxu0 0
  %5512 = vmatmul.mubr.bf16.gmra.mrb[0].mxu0 %v2445
  %v5513 = vpop.f32.mrb[0].mxu0
  %v5514 = vadd.f32 %v5161, %v5513
  %v5515 = vpop.f32.mrb[0].mxu0
  %v5516 = vadd.f32 %v5163, %v5515
  %v5517 = vpop.f32.mrb[0].mxu0
  %v5518 = vadd.f32 %v5165, %v5517
  %v5519 = vpop.f32.mrb[0].mxu0
  %v5520 = vadd.f32 %v5167, %v5519
  %5521 = vdwg.mxu0
  %s5522 = scalar_lea.vmem [#allocation2], 24
  %v5523 = vld [vmem:[%s5522] sm:$0xf]
  %v5524 = vld [vmem:[%s5522 + $0x4] sm:$0xf]
  %v5525 = vld [vmem:[%s5522 + $0xc] sm:$0xf]
  %v5526 = vld [vmem:[%s5522 + $0x10] sm:$0xf]
  %v5527 = vld [vmem:[%s5522 + $0x18] sm:$0xf]
  %v5528 = vld [vmem:[%s5522 + $0x1c] sm:$0xf]
  %v5529 = vld [vmem:[%s5522 + $0x24] sm:$0xf]
  %v5530 = vld [vmem:[%s5522 + $0x28] sm:$0xf]
  %v5531 = vld [vmem:[%s5522 + $0x30] sm:$0xf]
  %v5532 = vld [vmem:[%s5522 + $0x34] sm:$0xf]
  %v5533 = vld [vmem:[%s5522 + $0x3c] sm:$0xf]
  %v5534 = vld [vmem:[%s5522 + $0x40] sm:$0xf]
  %v5535 = vld [vmem:[%s5522 + $0x48] sm:$0xf]
  %v5536 = vld [vmem:[%s5522 + $0x4c] sm:$0xf]
  %v5537 = vld [vmem:[%s5522 + $0x54] sm:$0xf]
  %v5538 = vld [vmem:[%s5522 + $0x58] sm:$0xf]
  %v5539 = vld [vmem:[%s5522 + $0x60] sm:$0xf]
  %v5540 = vld [vmem:[%s5522 + $0x64] sm:$0xf]
  %v5541 = vld [vmem:[%s5522 + $0x6c] sm:$0xf]
  %v5542 = vld [vmem:[%s5522 + $0x70] sm:$0xf]
  %v5543 = vld [vmem:[%s5522 + $0x78] sm:$0xf]
  %v5544 = vld [vmem:[%s5522 + $0x7c] sm:$0xf]
  %v5545 = vld [vmem:[%s5522 + $0x84] sm:$0xf]
  %v5546 = vld [vmem:[%s5522 + $0x88] sm:$0xf]
  %v5547 = vld [vmem:[%s5522 + $0x90] sm:$0xf]
  %v5548 = vld [vmem:[%s5522 + $0x94] sm:$0xf]
  %v5549 = vld [vmem:[%s5522 + $0x9c] sm:$0xf]
  %v5550 = vld [vmem:[%s5522 + $0xa0] sm:$0xf]
  %v5551 = vld [vmem:[%s5522 + $0xa8] sm:$0xf]
  %v5552 = vld [vmem:[%s5522 + $0xac] sm:$0xf]
  %v5553 = vld [vmem:[%s5522 + $0xb4] sm:$0xf]
  %v5554 = vld [vmem:[%s5522 + $0xb8] sm:$0xf]
  %v5555 = vld [vmem:[%s5522 + $0xd8] sm:$0xf]
  %v5556 = vld [vmem:[%s5522 + $0xdc] sm:$0xf]
  %v5557 = vld [vmem:[%s5522 + $0xe4] sm:$0xf]
  %v5558 = vld [vmem:[%s5522 + $0xe8] sm:$0xf]
  %v5559 = vld [vmem:[%s5522 + $0xf0] sm:$0xf]
  %v5560 = vld [vmem:[%s5522 + $0xf4] sm:$0xf]
  %v5561 = vld [vmem:[%s5522 + $0xfc] sm:$0xf]
  %v5562 = vld [vmem:[%s5522 + $0x100] sm:$0xf]
  %v5563 = vld [vmem:[%s5522 + $0x108] sm:$0xf]
  %v5564 = vld [vmem:[%s5522 + $0x10c] sm:$0xf]
  %v5565 = vld [vmem:[%s5522 + $0x114] sm:$0xf]
  %v5566 = vld [vmem:[%s5522 + $0x118] sm:$0xf]
  %v5567 = vld [vmem:[%s5522 + $0x120] sm:$0xf]
  %v5568 = vld [vmem:[%s5522 + $0x124] sm:$0xf]
  %v5569 = vld [vmem:[%s5522 + $0x12c] sm:$0xf]
  %v5570 = vld [vmem:[%s5522 + $0x130] sm:$0xf]
  %v5571 = vld [vmem:[%s5522 + $0x138] sm:$0xf]
  %v5572 = vld [vmem:[%s5522 + $0x13c] sm:$0xf]
  %v5573 = vld [vmem:[%s5522 + $0x144] sm:$0xf]
  %v5574 = vld [vmem:[%s5522 + $0x148] sm:$0xf]
  %v5575 = vld [vmem:[%s5522 + $0x150] sm:$0xf]
  %v5576 = vld [vmem:[%s5522 + $0x154] sm:$0xf]
  %v5577 = vld [vmem:[%s5522 + $0x15c] sm:$0xf]
  %v5578 = vld [vmem:[%s5522 + $0x160] sm:$0xf]
  %v5579 = vld [vmem:[%s5522 + $0x168] sm:$0xf]
  %v5580 = vld [vmem:[%s5522 + $0x16c] sm:$0xf]
  %v5581 = vld [vmem:[%s5522 + $0x174] sm:$0xf]
  %v5582 = vld [vmem:[%s5522 + $0x178] sm:$0xf]
  %v5583 = vld [vmem:[%s5522 + $0x180] sm:$0xf]
  %v5584 = vld [vmem:[%s5522 + $0x184] sm:$0xf]
  %v5585 = vld [vmem:[%s5522 + $0x18c] sm:$0xf]
  %v5586 = vld [vmem:[%s5522 + $0x190] sm:$0xf]
  %v5587 = vld [vmem:[%s5522 + $0x8] sm:$0x1]
  %v5588 = vld [vmem:[%s5522 + $0x14] sm:$0x1]
  %v5589 = vld [vmem:[%s5522 + $0x20] sm:$0x1]
  %v5590 = vld [vmem:[%s5522 + $0x2c] sm:$0x1]
  %v5591 = vld [vmem:[%s5522 + $0x38] sm:$0x1]
  %v5592 = vld [vmem:[%s5522 + $0x44] sm:$0x1]
  %v5593 = vld [vmem:[%s5522 + $0x50] sm:$0x1]
  %v5594 = vld [vmem:[%s5522 + $0x5c] sm:$0x1]
  %v5595 = vld [vmem:[%s5522 + $0x68] sm:$0x1]
  %v5596 = vld [vmem:[%s5522 + $0x74] sm:$0x1]
  %v5597 = vld [vmem:[%s5522 + $0x80] sm:$0x1]
  %v5598 = vld [vmem:[%s5522 + $0x8c] sm:$0x1]
  %v5599 = vld [vmem:[%s5522 + $0x98] sm:$0x1]
  %v5600 = vld [vmem:[%s5522 + $0xa4] sm:$0x1]
  %v5601 = vld [vmem:[%s5522 + $0xb0] sm:$0x1]
  %v5602 = vld [vmem:[%s5522 + $0xbc] sm:$0x1]
  %v5603 = vld [vmem:[%s5522 + $0xe0] sm:$0x1]
  %v5604 = vld [vmem:[%s5522 + $0xec] sm:$0x1]
  %v5605 = vld [vmem:[%s5522 + $0xf8] sm:$0x1]
  %v5606 = vld [vmem:[%s5522 + $0x104] sm:$0x1]
  %v5607 = vld [vmem:[%s5522 + $0x110] sm:$0x1]
  %v5608 = vld [vmem:[%s5522 + $0x11c] sm:$0x1]
  %v5609 = vld [vmem:[%s5522 + $0x128] sm:$0x1]
  %v5610 = vld [vmem:[%s5522 + $0x134] sm:$0x1]
  %v5611 = vld [vmem:[%s5522 + $0x140] sm:$0x1]
  %v5612 = vld [vmem:[%s5522 + $0x14c] sm:$0x1]
  %v5613 = vld [vmem:[%s5522 + $0x158] sm:$0x1]
  %v5614 = vld [vmem:[%s5522 + $0x164] sm:$0x1]
  %v5615 = vld [vmem:[%s5522 + $0x170] sm:$0x1]
  %v5616 = vld [vmem:[%s5522 + $0x17c] sm:$0x1]
  %v5617 = vld [vmem:[%s5522 + $0x188] sm:$0x1]
  %v5618 = vld [vmem:[%s5522 + $0x194] sm:$0x1]
  %v5619 = vld [vmem:[%s5522] sm:$0xe]
  %v5620 = vld [vmem:[%s5522 + $0xc] sm:$0xe]
  %v5621 = vld [vmem:[%s5522 + $0x18] sm:$0xe]
  %v5622 = vld [vmem:[%s5522 + $0x24] sm:$0xe]
  %v5623 = vld [vmem:[%s5522 + $0x30] sm:$0xe]
  %v5624 = vld [vmem:[%s5522 + $0x3c] sm:$0xe]
  %v5625 = vld [vmem:[%s5522 + $0x48] sm:$0xe]
  %v5626 = vld [vmem:[%s5522 + $0x54] sm:$0xe]
  %v5627 = vld [vmem:[%s5522 + $0x60] sm:$0xe]
  %v5628 = vld [vmem:[%s5522 + $0x6c] sm:$0xe]
  %v5629 = vld [vmem:[%s5522 + $0x78] sm:$0xe]
  %v5630 = vld [vmem:[%s5522 + $0x84] sm:$0xe]
  %v5631 = vld [vmem:[%s5522 + $0x90] sm:$0xe]
  %v5632 = vld [vmem:[%s5522 + $0x9c] sm:$0xe]
  %v5633 = vld [vmem:[%s5522 + $0xa8] sm:$0xe]
  %v5634 = vld [vmem:[%s5522 + $0xb4] sm:$0xe]
  %v5635 = vld [vmem:[%s5522 + $0xd8] sm:$0xe]
  %v5636 = vld [vmem:[%s5522 + $0xe4] sm:$0xe]
  %v5637 = vld [vmem:[%s5522 + $0xf0] sm:$0xe]
  %v5638 = vld [vmem:[%s5522 + $0xfc] sm:$0xe]
  %v5639 = vld [vmem:[%s5522 + $0x108] sm:$0xe]
  %v5640 = vld [vmem:[%s5522 + $0x114] sm:$0xe]
  %v5641 = vld [vmem:[%s5522 + $0x120] sm:$0xe]
  %v5642 = vld [vmem:[%s5522 + $0x12c] sm:$0xe]
  %v5643 = vld [vmem:[%s5522 + $0x138] sm:$0xe]
  %v5644 = vld [vmem:[%s5522 + $0x144] sm:$0xe]
  %v5645 = vld [vmem:[%s5522 + $0x150] sm:$0xe]
  %v5646 = vld [vmem:[%s5522 + $0x15c] sm:$0xe]
  %v5647 = vld [vmem:[%s5522 + $0x168] sm:$0xe]
  %v5648 = vld [vmem:[%s5522 + $0x174] sm:$0xe]
  %v5649 = vld [vmem:[%s5522 + $0x180] sm:$0xe]
  %v5650 = vld [vmem:[%s5522 + $0x18c] sm:$0xe]
  %v5715 = vunpack.c.l.b16 %v5523
  %v5716 = vunpack.c.l.b16 %v5524
  %v5717 = vunpack.c.l.b16 %v5525
  %v5718 = vunpack.c.l.b16 %v5526
  %v5719 = vunpack.c.l.b16 %v5527
  %v5720 = vunpack.c.l.b16 %v5528
  %v5721 = vunpack.c.l.b16 %v5529
  %v5722 = vunpack.c.l.b16 %v5530
  %v5723 = vunpack.c.l.b16 %v5531
  %v5724 = vunpack.c.l.b16 %v5532
  %v5725 = vunpack.c.l.b16 %v5533
  %v5726 = vunpack.c.l.b16 %v5534
  %v5727 = vunpack.c.l.b16 %v5535
  %v5728 = vunpack.c.l.b16 %v5536
  %v5729 = vunpack.c.l.b16 %v5537
  %v5730 = vunpack.c.l.b16 %v5538
  %v5731 = vunpack.c.l.b16 %v5539
  %v5732 = vunpack.c.l.b16 %v5540
  %v5733 = vunpack.c.l.b16 %v5541
  %v5734 = vunpack.c.l.b16 %v5542
  %v5735 = vunpack.c.l.b16 %v5543
  %v5736 = vunpack.c.l.b16 %v5544
  %v5737 = vunpack.c.l.b16 %v5545
  %v5738 = vunpack.c.l.b16 %v5546
  %v5739 = vunpack.c.l.b16 %v5547
  %v5740 = vunpack.c.l.b16 %v5548
  %v5741 = vunpack.c.l.b16 %v5549
  %v5742 = vunpack.c.l.b16 %v5550
  %v5743 = vunpack.c.l.b16 %v5551
  %v5744 = vunpack.c.l.b16 %v5552
  %v5745 = vunpack.c.l.b16 %v5553
  %v5746 = vunpack.c.l.b16 %v5554
  %v5747 = vunpack.c.l.b16 %v5555
  %v5748 = vunpack.c.l.b16 %v5556
  %v5749 = vunpack.c.l.b16 %v5557
  %v5750 = vunpack.c.l.b16 %v5558
  %v5751 = vunpack.c.l.b16 %v5559
  %v5752 = vunpack.c.l.b16 %v5560
  %v5753 = vunpack.c.l.b16 %v5561
  %v5754 = vunpack.c.l.b16 %v5562
  %v5755 = vunpack.c.l.b16 %v5563
  %v5756 = vunpack.c.l.b16 %v5564
  %v5757 = vunpack.c.l.b16 %v5565
  %v5758 = vunpack.c.l.b16 %v5566
  %v5759 = vunpack.c.l.b16 %v5567
  %v5760 = vunpack.c.l.b16 %v5568
  %v5761 = vunpack.c.l.b16 %v5569
  %v5762 = vunpack.c.l.b16 %v5570
  %v5763 = vunpack.c.l.b16 %v5571
  %v5764 = vunpack.c.l.b16 %v5572
  %v5765 = vunpack.c.l.b16 %v5573
  %v5766 = vunpack.c.l.b16 %v5574
  %v5767 = vunpack.c.l.b16 %v5575
  %v5768 = vunpack.c.l.b16 %v5576
  %v5769 = vunpack.c.l.b16 %v5577
  %v5770 = vunpack.c.l.b16 %v5578
  %v5771 = vunpack.c.l.b16 %v5579
  %v5772 = vunpack.c.l.b16 %v5580
  %v5773 = vunpack.c.l.b16 %v5581
  %v5774 = vunpack.c.l.b16 %v5582
  %v5775 = vunpack.c.l.b16 %v5583
  %v5776 = vunpack.c.l.b16 %v5584
  %v5777 = vunpack.c.l.b16 %v5585
  %v5778 = vunpack.c.l.b16 %v5586
  %v5779 = vpack.c.b16 %v5716, %v5715
  %v5780 = vpack.c.b16 %v5718, %v5717
  %v5781 = vpack.c.b16 %v5720, %v5719
  %v5782 = vpack.c.b16 %v5722, %v5721
  %v5783 = vpack.c.b16 %v5724, %v5723
  %v5784 = vpack.c.b16 %v5726, %v5725
  %v5785 = vpack.c.b16 %v5728, %v5727
  %v5786 = vpack.c.b16 %v5730, %v5729
  %v5787 = vpack.c.b16 %v5732, %v5731
  %v5788 = vpack.c.b16 %v5734, %v5733
  %v5789 = vpack.c.b16 %v5736, %v5735
  %v5790 = vpack.c.b16 %v5738, %v5737
  %v5791 = vpack.c.b16 %v5740, %v5739
  %v5792 = vpack.c.b16 %v5742, %v5741
  %v5793 = vpack.c.b16 %v5744, %v5743
  %v5794 = vpack.c.b16 %v5746, %v5745
  %v5795 = vpack.c.b16 %v5748, %v5747
  %v5796 = vpack.c.b16 %v5750, %v5749
  %v5797 = vpack.c.b16 %v5752, %v5751
  %v5798 = vpack.c.b16 %v5754, %v5753
  %v5799 = vpack.c.b16 %v5756, %v5755
  %v5800 = vpack.c.b16 %v5758, %v5757
  %v5801 = vpack.c.b16 %v5760, %v5759
  %v5802 = vpack.c.b16 %v5762, %v5761
  %v5803 = vpack.c.b16 %v5764, %v5763
  %v5804 = vpack.c.b16 %v5766, %v5765
  %v5805 = vpack.c.b16 %v5768, %v5767
  %v5806 = vpack.c.b16 %v5770, %v5769
  %v5807 = vpack.c.b16 %v5772, %v5771
  %v5808 = vpack.c.b16 %v5774, %v5773
  %v5809 = vpack.c.b16 %v5776, %v5775
  %v5810 = vpack.c.b16 %v5778, %v5777
  %v5875 = vunpack.c.l.b16 %v5587
  %v5876 = vunpack.c.l.b16 %v5588
  %v5877 = vunpack.c.l.b16 %v5589
  %v5878 = vunpack.c.l.b16 %v5590
  %v5879 = vunpack.c.l.b16 %v5591
  %v5880 = vunpack.c.l.b16 %v5592
  %v5881 = vunpack.c.l.b16 %v5593
  %v5882 = vunpack.c.l.b16 %v5594
  %v5883 = vunpack.c.l.b16 %v5595
  %v5884 = vunpack.c.l.b16 %v5596
  %v5885 = vunpack.c.l.b16 %v5597
  %v5886 = vunpack.c.l.b16 %v5598
  %v5887 = vunpack.c.l.b16 %v5599
  %v5888 = vunpack.c.l.b16 %v5600
  %v5889 = vunpack.c.l.b16 %v5601
  %v5890 = vunpack.c.l.b16 %v5602
  %v5891 = vunpack.c.l.b16 %v5603
  %v5892 = vunpack.c.l.b16 %v5604
  %v5893 = vunpack.c.l.b16 %v5605
  %v5894 = vunpack.c.l.b16 %v5606
  %v5895 = vunpack.c.l.b16 %v5607
  %v5896 = vunpack.c.l.b16 %v5608
  %v5897 = vunpack.c.l.b16 %v5609
  %v5898 = vunpack.c.l.b16 %v5610
  %v5899 = vunpack.c.l.b16 %v5611
  %v5900 = vunpack.c.l.b16 %v5612
  %v5901 = vunpack.c.l.b16 %v5613
  %v5902 = vunpack.c.l.b16 %v5614
  %v5903 = vunpack.c.l.b16 %v5615
  %v5904 = vunpack.c.l.b16 %v5616
  %v5905 = vunpack.c.l.b16 %v5617
  %v5906 = vunpack.c.l.b16 %v5618
  %v5907 = vpack.c.b16 %v5875, %v5875
  %v5908 = vpack.c.b16 %v5876, %v5876
  %v5909 = vpack.c.b16 %v5877, %v5877
  %v5910 = vpack.c.b16 %v5878, %v5878
  %v5911 = vpack.c.b16 %v5879, %v5879
  %v5912 = vpack.c.b16 %v5880, %v5880
  %v5913 = vpack.c.b16 %v5881, %v5881
  %v5914 = vpack.c.b16 %v5882, %v5882
  %v5915 = vpack.c.b16 %v5883, %v5883
  %v5916 = vpack.c.b16 %v5884, %v5884
  %v5917 = vpack.c.b16 %v5885, %v5885
  %v5918 = vpack.c.b16 %v5886, %v5886
  %v5919 = vpack.c.b16 %v5887, %v5887
  %v5920 = vpack.c.b16 %v5888, %v5888
  %v5921 = vpack.c.b16 %v5889, %v5889
  %v5922 = vpack.c.b16 %v5890, %v5890
  %v5923 = vpack.c.b16 %v5891, %v5891
  %v5924 = vpack.c.b16 %v5892, %v5892
  %v5925 = vpack.c.b16 %v5893, %v5893
  %v5926 = vpack.c.b16 %v5894, %v5894
  %v5927 = vpack.c.b16 %v5895, %v5895
  %v5928 = vpack.c.b16 %v5896, %v5896
  %v5929 = vpack.c.b16 %v5897, %v5897
  %v5930 = vpack.c.b16 %v5898, %v5898
  %v5931 = vpack.c.b16 %v5899, %v5899
  %v5932 = vpack.c.b16 %v5900, %v5900
  %v5933 = vpack.c.b16 %v5901, %v5901
  %v5934 = vpack.c.b16 %v5902, %v5902
  %v5935 = vpack.c.b16 %v5903, %v5903
  %v5936 = vpack.c.b16 %v5904, %v5904
  %v5937 = vpack.c.b16 %v5905, %v5905
  %v5938 = vpack.c.b16 %v5906, %v5906
  %v5940 = vshrl.u32 %v5779, 16
  %v5942 = vshll.u32 %v5779, 16
  %v5944 = vrot.slane %v5942, 1
  %v5945 = vor.u32 %v5940, %v5944
  %v5947 = vshll.u32 %v5907, 16
  %v5949 = vrot.slane %v5947, 1
  %v5950 = vsel %vm1836, %v5945, %v5949
  %v5952 = vshrl.u32 %v5780, 16
  %v5954 = vshll.u32 %v5780, 16
  %v5956 = vrot.slane %v5954, 1
  %v5957 = vor.u32 %v5952, %v5956
  %v5959 = vshll.u32 %v5908, 16
  %v5961 = vrot.slane %v5959, 1
  %v5962 = vsel %vm1836, %v5957, %v5961
  %v5964 = vshrl.u32 %v5781, 16
  %v5966 = vshll.u32 %v5781, 16
  %v5968 = vrot.slane %v5966, 1
  %v5969 = vor.u32 %v5964, %v5968
  %v5971 = vshll.u32 %v5909, 16
  %v5973 = vrot.slane %v5971, 1
  %v5974 = vsel %vm1836, %v5969, %v5973
  %v5976 = vshrl.u32 %v5782, 16
  %v5978 = vshll.u32 %v5782, 16
  %v5980 = vrot.slane %v5978, 1
  %v5981 = vor.u32 %v5976, %v5980
  %v5983 = vshll.u32 %v5910, 16
  %v5985 = vrot.slane %v5983, 1
  %v5986 = vsel %vm1836, %v5981, %v5985
  %v5988 = vshrl.u32 %v5783, 16
  %v5990 = vshll.u32 %v5783, 16
  %v5992 = vrot.slane %v5990, 1
  %v5993 = vor.u32 %v5988, %v5992
  %v5995 = vshll.u32 %v5911, 16
  %v5997 = vrot.slane %v5995, 1
  %v5998 = vsel %vm1836, %v5993, %v5997
  %v6000 = vshrl.u32 %v5784, 16
  %v6002 = vshll.u32 %v5784, 16
  %v6004 = vrot.slane %v6002, 1
  %v6005 = vor.u32 %v6000, %v6004
  %v6007 = vshll.u32 %v5912, 16
  %v6009 = vrot.slane %v6007, 1
  %v6010 = vsel %vm1836, %v6005, %v6009
  %v6012 = vshrl.u32 %v5785, 16
  %v6014 = vshll.u32 %v5785, 16
  %v6016 = vrot.slane %v6014, 1
  %v6017 = vor.u32 %v6012, %v6016
  %v6019 = vshll.u32 %v5913, 16
  %v6021 = vrot.slane %v6019, 1
  %v6022 = vsel %vm1836, %v6017, %v6021
  %v6024 = vshrl.u32 %v5786, 16
  %v6026 = vshll.u32 %v5786, 16
  %v6028 = vrot.slane %v6026, 1
  %v6029 = vor.u32 %v6024, %v6028
  %v6031 = vshll.u32 %v5914, 16
  %v6033 = vrot.slane %v6031, 1
  %v6034 = vsel %vm1836, %v6029, %v6033
  %v6036 = vshrl.u32 %v5787, 16
  %v6038 = vshll.u32 %v5787, 16
  %v6040 = vrot.slane %v6038, 1
  %v6041 = vor.u32 %v6036, %v6040
  %v6043 = vshll.u32 %v5915, 16
  %v6045 = vrot.slane %v6043, 1
  %v6046 = vsel %vm1836, %v6041, %v6045
  %v6048 = vshrl.u32 %v5788, 16
  %v6050 = vshll.u32 %v5788, 16
  %v6052 = vrot.slane %v6050, 1
  %v6053 = vor.u32 %v6048, %v6052
  %v6055 = vshll.u32 %v5916, 16
  %v6057 = vrot.slane %v6055, 1
  %v6058 = vsel %vm1836, %v6053, %v6057
  %v6060 = vshrl.u32 %v5789, 16
  %v6062 = vshll.u32 %v5789, 16
  %v6064 = vrot.slane %v6062, 1
  %v6065 = vor.u32 %v6060, %v6064
  %v6067 = vshll.u32 %v5917, 16
  %v6069 = vrot.slane %v6067, 1
  %v6070 = vsel %vm1836, %v6065, %v6069
  %v6072 = vshrl.u32 %v5790, 16
  %v6074 = vshll.u32 %v5790, 16
  %v6076 = vrot.slane %v6074, 1
  %v6077 = vor.u32 %v6072, %v6076
  %v6079 = vshll.u32 %v5918, 16
  %v6081 = vrot.slane %v6079, 1
  %v6082 = vsel %vm1836, %v6077, %v6081
  %v6084 = vshrl.u32 %v5791, 16
  %v6086 = vshll.u32 %v5791, 16
  %v6088 = vrot.slane %v6086, 1
  %v6089 = vor.u32 %v6084, %v6088
  %v6091 = vshll.u32 %v5919, 16
  %v6093 = vrot.slane %v6091, 1
  %v6094 = vsel %vm1836, %v6089, %v6093
  %v6096 = vshrl.u32 %v5792, 16
  %v6098 = vshll.u32 %v5792, 16
  %v6100 = vrot.slane %v6098, 1
  %v6101 = vor.u32 %v6096, %v6100
  %v6103 = vshll.u32 %v5920, 16
  %v6105 = vrot.slane %v6103, 1
  %v6106 = vsel %vm1836, %v6101, %v6105
  %v6108 = vshrl.u32 %v5793, 16
  %v6110 = vshll.u32 %v5793, 16
  %v6112 = vrot.slane %v6110, 1
  %v6113 = vor.u32 %v6108, %v6112
  %v6115 = vshll.u32 %v5921, 16
  %v6117 = vrot.slane %v6115, 1
  %v6118 = vsel %vm1836, %v6113, %v6117
  %v6120 = vshrl.u32 %v5794, 16
  %v6122 = vshll.u32 %v5794, 16
  %v6124 = vrot.slane %v6122, 1
  %v6125 = vor.u32 %v6120, %v6124
  %v6127 = vshll.u32 %v5922, 16
  %v6129 = vrot.slane %v6127, 1
  %v6130 = vsel %vm1836, %v6125, %v6129
  %v6132 = vshrl.u32 %v5795, 16
  %v6134 = vshll.u32 %v5795, 16
  %v6136 = vrot.slane %v6134, 1
  %v6137 = vor.u32 %v6132, %v6136
  %v6139 = vshll.u32 %v5923, 16
  %v6141 = vrot.slane %v6139, 1
  %v6142 = vsel %vm1836, %v6137, %v6141
  %v6144 = vshrl.u32 %v5796, 16
  %v6146 = vshll.u32 %v5796, 16
  %v6148 = vrot.slane %v6146, 1
  %v6149 = vor.u32 %v6144, %v6148
  %v6151 = vshll.u32 %v5924, 16
  %v6153 = vrot.slane %v6151, 1
  %v6154 = vsel %vm1836, %v6149, %v6153
  %v6156 = vshrl.u32 %v5797, 16
  %v6158 = vshll.u32 %v5797, 16
  %v6160 = vrot.slane %v6158, 1
  %v6161 = vor.u32 %v6156, %v6160
  %v6163 = vshll.u32 %v5925, 16
  %v6165 = vrot.slane %v6163, 1
  %v6166 = vsel %vm1836, %v6161, %v6165
  %v6168 = vshrl.u32 %v5798, 16
  %v6170 = vshll.u32 %v5798, 16
  %v6172 = vrot.slane %v6170, 1
  %v6173 = vor.u32 %v6168, %v6172
  %v6175 = vshll.u32 %v5926, 16
  %v6177 = vrot.slane %v6175, 1
  %v6178 = vsel %vm1836, %v6173, %v6177
  %v6180 = vshrl.u32 %v5799, 16
  %v6182 = vshll.u32 %v5799, 16
  %v6184 = vrot.slane %v6182, 1
  %v6185 = vor.u32 %v6180, %v6184
  %v6187 = vshll.u32 %v5927, 16
  %v6189 = vrot.slane %v6187, 1
  %v6190 = vsel %vm1836, %v6185, %v6189
  %v6192 = vshrl.u32 %v5800, 16
  %v6194 = vshll.u32 %v5800, 16
  %v6196 = vrot.slane %v6194, 1
  %v6197 = vor.u32 %v6192, %v6196
  %v6199 = vshll.u32 %v5928, 16
  %v6201 = vrot.slane %v6199, 1
  %v6202 = vsel %vm1836, %v6197, %v6201
  %v6204 = vshrl.u32 %v5801, 16
  %v6206 = vshll.u32 %v5801, 16
  %v6208 = vrot.slane %v6206, 1
  %v6209 = vor.u32 %v6204, %v6208
  %v6211 = vshll.u32 %v5929, 16
  %v6213 = vrot.slane %v6211, 1
  %v6214 = vsel %vm1836, %v6209, %v6213
  %v6216 = vshrl.u32 %v5802, 16
  %v6218 = vshll.u32 %v5802, 16
  %v6220 = vrot.slane %v6218, 1
  %v6221 = vor.u32 %v6216, %v6220
  %v6223 = vshll.u32 %v5930, 16
  %v6225 = vrot.slane %v6223, 1
  %v6226 = vsel %vm1836, %v6221, %v6225
  %v6228 = vshrl.u32 %v5803, 16
  %v6230 = vshll.u32 %v5803, 16
  %v6232 = vrot.slane %v6230, 1
  %v6233 = vor.u32 %v6228, %v6232
  %v6235 = vshll.u32 %v5931, 16
  %v6237 = vrot.slane %v6235, 1
  %v6238 = vsel %vm1836, %v6233, %v6237
  %v6240 = vshrl.u32 %v5804, 16
  %v6242 = vshll.u32 %v5804, 16
  %v6244 = vrot.slane %v6242, 1
  %v6245 = vor.u32 %v6240, %v6244
  %v6247 = vshll.u32 %v5932, 16
  %v6249 = vrot.slane %v6247, 1
  %v6250 = vsel %vm1836, %v6245, %v6249
  %v6252 = vshrl.u32 %v5805, 16
  %v6254 = vshll.u32 %v5805, 16
  %v6256 = vrot.slane %v6254, 1
  %v6257 = vor.u32 %v6252, %v6256
  %v6259 = vshll.u32 %v5933, 16
  %v6261 = vrot.slane %v6259, 1
  %v6262 = vsel %vm1836, %v6257, %v6261
  %v6264 = vshrl.u32 %v5806, 16
  %v6266 = vshll.u32 %v5806, 16
  %v6268 = vrot.slane %v6266, 1
  %v6269 = vor.u32 %v6264, %v6268
  %v6271 = vshll.u32 %v5934, 16
  %v6273 = vrot.slane %v6271, 1
  %v6274 = vsel %vm1836, %v6269, %v6273
  %v6276 = vshrl.u32 %v5807, 16
  %v6278 = vshll.u32 %v5807, 16
  %v6280 = vrot.slane %v6278, 1
  %v6281 = vor.u32 %v6276, %v6280
  %v6283 = vshll.u32 %v5935, 16
  %v6285 = vrot.slane %v6283, 1
  %v6286 = vsel %vm1836, %v6281, %v6285
  %v6288 = vshrl.u32 %v5808, 16
  %v6290 = vshll.u32 %v5808, 16
  %v6292 = vrot.slane %v6290, 1
  %v6293 = vor.u32 %v6288, %v6292
  %v6295 = vshll.u32 %v5936, 16
  %v6297 = vrot.slane %v6295, 1
  %v6298 = vsel %vm1836, %v6293, %v6297
  %v6300 = vshrl.u32 %v5809, 16
  %v6302 = vshll.u32 %v5809, 16
  %v6304 = vrot.slane %v6302, 1
  %v6305 = vor.u32 %v6300, %v6304
  %v6307 = vshll.u32 %v5937, 16
  %v6309 = vrot.slane %v6307, 1
  %v6310 = vsel %vm1836, %v6305, %v6309
  %v6312 = vshrl.u32 %v5810, 16
  %v6314 = vshll.u32 %v5810, 16
  %v6316 = vrot.slane %v6314, 1
  %v6317 = vor.u32 %v6312, %v6316
  %v6319 = vshll.u32 %v5938, 16
  %v6321 = vrot.slane %v6319, 1
  %v6322 = vsel %vm1836, %v6317, %v6321
  %v6387 = vunpack.c.l.b16 %v5619
  %v6388 = vunpack.c.l.b16 %v5620
  %v6389 = vunpack.c.l.b16 %v5621
  %v6390 = vunpack.c.l.b16 %v5622
  %v6391 = vunpack.c.l.b16 %v5623
  %v6392 = vunpack.c.l.b16 %v5624
  %v6393 = vunpack.c.l.b16 %v5625
  %v6394 = vunpack.c.l.b16 %v5626
  %v6395 = vunpack.c.l.b16 %v5627
  %v6396 = vunpack.c.l.b16 %v5628
  %v6397 = vunpack.c.l.b16 %v5629
  %v6398 = vunpack.c.l.b16 %v5630
  %v6399 = vunpack.c.l.b16 %v5631
  %v6400 = vunpack.c.l.b16 %v5632
  %v6401 = vunpack.c.l.b16 %v5633
  %v6402 = vunpack.c.l.b16 %v5634
  %v6403 = vunpack.c.l.b16 %v5635
  %v6404 = vunpack.c.l.b16 %v5636
  %v6405 = vunpack.c.l.b16 %v5637
  %v6406 = vunpack.c.l.b16 %v5638
  %v6407 = vunpack.c.l.b16 %v5639
  %v6408 = vunpack.c.l.b16 %v5640
  %v6409 = vunpack.c.l.b16 %v5641
  %v6410 = vunpack.c.l.b16 %v5642
  %v6411 = vunpack.c.l.b16 %v5643
  %v6412 = vunpack.c.l.b16 %v5644
  %v6413 = vunpack.c.l.b16 %v5645
  %v6414 = vunpack.c.l.b16 %v5646
  %v6415 = vunpack.c.l.b16 %v5647
  %v6416 = vunpack.c.l.b16 %v5648
  %v6417 = vunpack.c.l.b16 %v5649
  %v6418 = vunpack.c.l.b16 %v5650
  %v6419 = vpack.c.b16 %v5716, %v6387
  %v6420 = vpack.c.b16 %v5718, %v6388
  %v6421 = vpack.c.b16 %v5720, %v6389
  %v6422 = vpack.c.b16 %v5722, %v6390
  %v6423 = vpack.c.b16 %v5724, %v6391
  %v6424 = vpack.c.b16 %v5726, %v6392
  %v6425 = vpack.c.b16 %v5728, %v6393
  %v6426 = vpack.c.b16 %v5730, %v6394
  %v6427 = vpack.c.b16 %v5732, %v6395
  %v6428 = vpack.c.b16 %v5734, %v6396
  %v6429 = vpack.c.b16 %v5736, %v6397
  %v6430 = vpack.c.b16 %v5738, %v6398
  %v6431 = vpack.c.b16 %v5740, %v6399
  %v6432 = vpack.c.b16 %v5742, %v6400
  %v6433 = vpack.c.b16 %v5744, %v6401
  %v6434 = vpack.c.b16 %v5746, %v6402
  %v6435 = vpack.c.b16 %v5748, %v6403
  %v6436 = vpack.c.b16 %v5750, %v6404
  %v6437 = vpack.c.b16 %v5752, %v6405
  %v6438 = vpack.c.b16 %v5754, %v6406
  %v6439 = vpack.c.b16 %v5756, %v6407
  %v6440 = vpack.c.b16 %v5758, %v6408
  %v6441 = vpack.c.b16 %v5760, %v6409
  %v6442 = vpack.c.b16 %v5762, %v6410
  %v6443 = vpack.c.b16 %v5764, %v6411
  %v6444 = vpack.c.b16 %v5766, %v6412
  %v6445 = vpack.c.b16 %v5768, %v6413
  %v6446 = vpack.c.b16 %v5770, %v6414
  %v6447 = vpack.c.b16 %v5772, %v6415
  %v6448 = vpack.c.b16 %v5774, %v6416
  %v6449 = vpack.c.b16 %v5776, %v6417
  %v6450 = vpack.c.b16 %v5778, %v6418
  %v6451 = vrot.slane %v6419, 1
  %v6452 = vrot.slane %v5907, 1
  %v6453 = vsel %vm2349, %v6451, %v6452
  %v6454 = vrot.slane %v6420, 1
  %v6455 = vrot.slane %v5908, 1
  %v6456 = vsel %vm2349, %v6454, %v6455
  %v6457 = vrot.slane %v6421, 1
  %v6458 = vrot.slane %v5909, 1
  %v6459 = vsel %vm2349, %v6457, %v6458
  %v6460 = vrot.slane %v6422, 1
  %v6461 = vrot.slane %v5910, 1
  %v6462 = vsel %vm2349, %v6460, %v6461
  %v6463 = vrot.slane %v6423, 1
  %v6464 = vrot.slane %v5911, 1
  %v6465 = vsel %vm2349, %v6463, %v6464
  %v6466 = vrot.slane %v6424, 1
  %v6467 = vrot.slane %v5912, 1
  %v6468 = vsel %vm2349, %v6466, %v6467
  %v6469 = vrot.slane %v6425, 1
  %v6470 = vrot.slane %v5913, 1
  %v6471 = vsel %vm2349, %v6469, %v6470
  %v6472 = vrot.slane %v6426, 1
  %v6473 = vrot.slane %v5914, 1
  %v6474 = vsel %vm2349, %v6472, %v6473
  %v6475 = vrot.slane %v6427, 1
  %v6476 = vrot.slane %v5915, 1
  %v6477 = vsel %vm2349, %v6475, %v6476
  %v6478 = vrot.slane %v6428, 1
  %v6479 = vrot.slane %v5916, 1
  %v6480 = vsel %vm2349, %v6478, %v6479
  %v6481 = vrot.slane %v6429, 1
  %v6482 = vrot.slane %v5917, 1
  %v6483 = vsel %vm2349, %v6481, %v6482
  %v6484 = vrot.slane %v6430, 1
  %v6485 = vrot.slane %v5918, 1
  %v6486 = vsel %vm2349, %v6484, %v6485
  %v6487 = vrot.slane %v6431, 1
  %v6488 = vrot.slane %v5919, 1
  %v6489 = vsel %vm2349, %v6487, %v6488
  %v6490 = vrot.slane %v6432, 1
  %v6491 = vrot.slane %v5920, 1
  %v6492 = vsel %vm2349, %v6490, %v6491
  %v6493 = vrot.slane %v6433, 1
  %v6494 = vrot.slane %v5921, 1
  %v6495 = vsel %vm2349, %v6493, %v6494
  %v6496 = vrot.slane %v6434, 1
  %v6497 = vrot.slane %v5922, 1
  %v6498 = vsel %vm2349, %v6496, %v6497
  %v6499 = vrot.slane %v6435, 1
  %v6500 = vrot.slane %v5923, 1
  %v6501 = vsel %vm2349, %v6499, %v6500
  %v6502 = vrot.slane %v6436, 1
  %v6503 = vrot.slane %v5924, 1
  %v6504 = vsel %vm2349, %v6502, %v6503
  %v6505 = vrot.slane %v6437, 1
  %v6506 = vrot.slane %v5925, 1
  %v6507 = vsel %vm2349, %v6505, %v6506
  %v6508 = vrot.slane %v6438, 1
  %v6509 = vrot.slane %v5926, 1
  %v6510 = vsel %vm2349, %v6508, %v6509
  %v6511 = vrot.slane %v6439, 1
  %v6512 = vrot.slane %v5927, 1
  %v6513 = vsel %vm2349, %v6511, %v6512
  %v6514 = vrot.slane %v6440, 1
  %v6515 = vrot.slane %v5928, 1
  %v6516 = vsel %vm2349, %v6514, %v6515
  %v6517 = vrot.slane %v6441, 1
  %v6518 = vrot.slane %v5929, 1
  %v6519 = vsel %vm2349, %v6517, %v6518
  %v6520 = vrot.slane %v6442, 1
  %v6521 = vrot.slane %v5930, 1
  %v6522 = vsel %vm2349, %v6520, %v6521
  %v6523 = vrot.slane %v6443, 1
  %v6524 = vrot.slane %v5931, 1
  %v6525 = vsel %vm2349, %v6523, %v6524
  %v6526 = vrot.slane %v6444, 1
  %v6527 = vrot.slane %v5932, 1
  %v6528 = vsel %vm2349, %v6526, %v6527
  %v6529 = vrot.slane %v6445, 1
  %v6530 = vrot.slane %v5933, 1
  %v6531 = vsel %vm2349, %v6529, %v6530
  %v6532 = vrot.slane %v6446, 1
  %v6533 = vrot.slane %v5934, 1
  %v6534 = vsel %vm2349, %v6532, %v6533
  %v6535 = vrot.slane %v6447, 1
  %v6536 = vrot.slane %v5935, 1
  %v6537 = vsel %vm2349, %v6535, %v6536
  %v6538 = vrot.slane %v6448, 1
  %v6539 = vrot.slane %v5936, 1
  %v6540 = vsel %vm2349, %v6538, %v6539
  %v6541 = vrot.slane %v6449, 1
  %v6542 = vrot.slane %v5937, 1
  %v6543 = vsel %vm2349, %v6541, %v6542
  %v6544 = vrot.slane %v6450, 1
  %v6545 = vrot.slane %v5938, 1
  %v6546 = vsel %vm2349, %v6544, %v6545
  %v6579 = vld [vmem:[%s1 + $0x300] sm:$0xff]
  %v6580 = vld [vmem:[%s1 + $0x308] sm:$0xff]
  %v6581 = vld [vmem:[%s1 + $0x310] sm:$0xff]
  %v6582 = vld [vmem:[%s1 + $0x318] sm:$0xff]
  %v6583 = vld [vmem:[%s1 + $0x320] sm:$0xff]
  %v6584 = vld [vmem:[%s1 + $0x328] sm:$0xff]
  %v6585 = vld [vmem:[%s1 + $0x330] sm:$0xff]
  %v6586 = vld [vmem:[%s1 + $0x338] sm:$0xff]
  %v6587 = vld [vmem:[%s1 + $0x340] sm:$0xff]
  %v6588 = vld [vmem:[%s1 + $0x348] sm:$0xff]
  %v6589 = vld [vmem:[%s1 + $0x350] sm:$0xff]
  %v6590 = vld [vmem:[%s1 + $0x358] sm:$0xff]
  %v6591 = vld [vmem:[%s1 + $0x360] sm:$0xff]
  %v6592 = vld [vmem:[%s1 + $0x368] sm:$0xff]
  %v6593 = vld [vmem:[%s1 + $0x370] sm:$0xff]
  %v6594 = vld [vmem:[%s1 + $0x378] sm:$0xff]
  %v6595 = vld [vmem:[%s1 + $0x380] sm:$0xff]
  %v6596 = vld [vmem:[%s1 + $0x388] sm:$0xff]
  %v6597 = vld [vmem:[%s1 + $0x390] sm:$0xff]
  %v6598 = vld [vmem:[%s1 + $0x398] sm:$0xff]
  %v6599 = vld [vmem:[%s1 + $0x3a0] sm:$0xff]
  %v6600 = vld [vmem:[%s1 + $0x3a8] sm:$0xff]
  %v6601 = vld [vmem:[%s1 + $0x3b0] sm:$0xff]
  %v6602 = vld [vmem:[%s1 + $0x3b8] sm:$0xff]
  %v6603 = vld [vmem:[%s1 + $0x3c0] sm:$0xff]
  %v6604 = vld [vmem:[%s1 + $0x3c8] sm:$0xff]
  %v6605 = vld [vmem:[%s1 + $0x3d0] sm:$0xff]
  %v6606 = vld [vmem:[%s1 + $0x3d8] sm:$0xff]
  %v6607 = vld [vmem:[%s1 + $0x3e0] sm:$0xff]
  %v6608 = vld [vmem:[%s1 + $0x3e8] sm:$0xff]
  %v6609 = vld [vmem:[%s1 + $0x3f0] sm:$0xff]
  %v6610 = vld [vmem:[%s1 + $0x3f8] sm:$0xff]
  %v6611 = vld [vmem:[%s1 + $0x400] sm:$0xff]
  %v6612 = vld [vmem:[%s1 + $0x408] sm:$0xff]
  %v6613 = vld [vmem:[%s1 + $0x410] sm:$0xff]
  %v6614 = vld [vmem:[%s1 + $0x418] sm:$0xff]
  %v6615 = vld [vmem:[%s1 + $0x420] sm:$0xff]
  %v6616 = vld [vmem:[%s1 + $0x428] sm:$0xff]
  %v6617 = vld [vmem:[%s1 + $0x430] sm:$0xff]
  %v6618 = vld [vmem:[%s1 + $0x438] sm:$0xff]
  %v6619 = vld [vmem:[%s1 + $0x440] sm:$0xff]
  %v6620 = vld [vmem:[%s1 + $0x448] sm:$0xff]
  %v6621 = vld [vmem:[%s1 + $0x450] sm:$0xff]
  %v6622 = vld [vmem:[%s1 + $0x458] sm:$0xff]
  %v6623 = vld [vmem:[%s1 + $0x460] sm:$0xff]
  %v6624 = vld [vmem:[%s1 + $0x468] sm:$0xff]
  %v6625 = vld [vmem:[%s1 + $0x470] sm:$0xff]
  %v6626 = vld [vmem:[%s1 + $0x478] sm:$0xff]
  %v6675 = vunpack.c.l.b16 %v6579
  %v6676 = vunpack.c.h.b16 %v6579
  %v6677 = vunpack.c.l.b16 %v6580
  %v6678 = vunpack.c.h.b16 %v6580
  %v6679 = vunpack.c.l.b16 %v6581
  %v6680 = vunpack.c.h.b16 %v6581
  %v6681 = vunpack.c.l.b16 %v6582
  %v6682 = vunpack.c.h.b16 %v6582
  %v6683 = vunpack.c.l.b16 %v6583
  %v6684 = vunpack.c.h.b16 %v6583
  %v6685 = vunpack.c.l.b16 %v6584
  %v6686 = vunpack.c.h.b16 %v6584
  %v6687 = vunpack.c.l.b16 %v6585
  %v6688 = vunpack.c.h.b16 %v6585
  %v6689 = vunpack.c.l.b16 %v6586
  %v6690 = vunpack.c.h.b16 %v6586
  %v6691 = vunpack.c.l.b16 %v6587
  %v6692 = vunpack.c.h.b16 %v6587
  %v6693 = vunpack.c.l.b16 %v6588
  %v6694 = vunpack.c.h.b16 %v6588
  %v6695 = vunpack.c.l.b16 %v6589
  %v6696 = vunpack.c.h.b16 %v6589
  %v6697 = vunpack.c.l.b16 %v6590
  %v6698 = vunpack.c.h.b16 %v6590
  %v6699 = vunpack.c.l.b16 %v6591
  %v6700 = vunpack.c.h.b16 %v6591
  %v6701 = vunpack.c.l.b16 %v6592
  %v6702 = vunpack.c.h.b16 %v6592
  %v6703 = vunpack.c.l.b16 %v6593
  %v6704 = vunpack.c.h.b16 %v6593
  %v6705 = vunpack.c.l.b16 %v6594
  %v6706 = vunpack.c.h.b16 %v6594
  %v6707 = vunpack.c.l.b16 %v6595
  %v6708 = vunpack.c.h.b16 %v6595
  %v6709 = vunpack.c.l.b16 %v6596
  %v6710 = vunpack.c.h.b16 %v6596
  %v6711 = vunpack.c.l.b16 %v6597
  %v6712 = vunpack.c.h.b16 %v6597
  %v6713 = vunpack.c.l.b16 %v6598
  %v6714 = vunpack.c.h.b16 %v6598
  %v6715 = vunpack.c.l.b16 %v6599
  %v6716 = vunpack.c.h.b16 %v6599
  %v6717 = vunpack.c.l.b16 %v6600
  %v6718 = vunpack.c.h.b16 %v6600
  %v6719 = vunpack.c.l.b16 %v6601
  %v6720 = vunpack.c.h.b16 %v6601
  %v6721 = vunpack.c.l.b16 %v6602
  %v6722 = vunpack.c.h.b16 %v6602
  %v6723 = vunpack.c.l.b16 %v6603
  %v6724 = vunpack.c.h.b16 %v6603
  %v6725 = vunpack.c.l.b16 %v6604
  %v6726 = vunpack.c.h.b16 %v6604
  %v6727 = vunpack.c.l.b16 %v6605
  %v6728 = vunpack.c.h.b16 %v6605
  %v6729 = vunpack.c.l.b16 %v6606
  %v6730 = vunpack.c.h.b16 %v6606
  %v6731 = vunpack.c.l.b16 %v6607
  %v6732 = vunpack.c.h.b16 %v6607
  %v6733 = vunpack.c.l.b16 %v6608
  %v6734 = vunpack.c.h.b16 %v6608
  %v6735 = vunpack.c.l.b16 %v6609
  %v6736 = vunpack.c.h.b16 %v6609
  %v6737 = vunpack.c.l.b16 %v6610
  %v6738 = vunpack.c.h.b16 %v6610
  %v6739 = vunpack.c.l.b16 %v6611
  %v6740 = vunpack.c.h.b16 %v6611
  %v6741 = vunpack.c.l.b16 %v6612
  %v6742 = vunpack.c.h.b16 %v6612
  %v6743 = vunpack.c.l.b16 %v6613
  %v6744 = vunpack.c.h.b16 %v6613
  %v6745 = vunpack.c.l.b16 %v6614
  %v6746 = vunpack.c.h.b16 %v6614
  %v6747 = vunpack.c.l.b16 %v6615
  %v6748 = vunpack.c.h.b16 %v6615
  %v6749 = vunpack.c.l.b16 %v6616
  %v6750 = vunpack.c.h.b16 %v6616
  %v6751 = vunpack.c.l.b16 %v6617
  %v6752 = vunpack.c.h.b16 %v6617
  %v6753 = vunpack.c.l.b16 %v6618
  %v6754 = vunpack.c.h.b16 %v6618
  %v6755 = vunpack.c.l.b16 %v6619
  %v6756 = vunpack.c.h.b16 %v6619
  %v6757 = vunpack.c.l.b16 %v6620
  %v6758 = vunpack.c.h.b16 %v6620
  %v6759 = vunpack.c.l.b16 %v6621
  %v6760 = vunpack.c.h.b16 %v6621
  %v6761 = vunpack.c.l.b16 %v6622
  %v6762 = vunpack.c.h.b16 %v6622
  %v6763 = vunpack.c.l.b16 %v6623
  %v6764 = vunpack.c.h.b16 %v6623
  %v6765 = vunpack.c.l.b16 %v6624
  %v6766 = vunpack.c.h.b16 %v6624
  %v6767 = vunpack.c.l.b16 %v6625
  %v6768 = vunpack.c.h.b16 %v6625
  %v6769 = vunpack.c.l.b16 %v6626
  %v6770 = vunpack.c.h.b16 %v6626
  %v6771 = vpack.c.b16 %v6677, %v6675
  %v6772 = vpack.c.b16 %v6678, %v6676
  %v6773 = vpack.c.b16 %v6681, %v6679
  %v6774 = vpack.c.b16 %v6682, %v6680
  %v6775 = vpack.c.b16 %v6685, %v6683
  %v6776 = vpack.c.b16 %v6686, %v6684
  %v6777 = vpack.c.b16 %v6689, %v6687
  %v6778 = vpack.c.b16 %v6690, %v6688
  %v6779 = vpack.c.b16 %v6693, %v6691
  %v6780 = vpack.c.b16 %v6694, %v6692
  %v6781 = vpack.c.b16 %v6697, %v6695
  %v6782 = vpack.c.b16 %v6698, %v6696
  %v6783 = vpack.c.b16 %v6701, %v6699
  %v6784 = vpack.c.b16 %v6702, %v6700
  %v6785 = vpack.c.b16 %v6705, %v6703
  %v6786 = vpack.c.b16 %v6706, %v6704
  %v6787 = vpack.c.b16 %v6709, %v6707
  %v6788 = vpack.c.b16 %v6710, %v6708
  %v6789 = vpack.c.b16 %v6713, %v6711
  %v6790 = vpack.c.b16 %v6714, %v6712
  %v6791 = vpack.c.b16 %v6717, %v6715
  %v6792 = vpack.c.b16 %v6718, %v6716
  %v6793 = vpack.c.b16 %v6721, %v6719
  %v6794 = vpack.c.b16 %v6722, %v6720
  %v6795 = vpack.c.b16 %v6725, %v6723
  %v6796 = vpack.c.b16 %v6726, %v6724
  %v6797 = vpack.c.b16 %v6729, %v6727
  %v6798 = vpack.c.b16 %v6730, %v6728
  %v6799 = vpack.c.b16 %v6733, %v6731
  %v6800 = vpack.c.b16 %v6734, %v6732
  %v6801 = vpack.c.b16 %v6737, %v6735
  %v6802 = vpack.c.b16 %v6738, %v6736
  %v6803 = vpack.c.b16 %v6741, %v6739
  %v6804 = vpack.c.b16 %v6742, %v6740
  %v6805 = vpack.c.b16 %v6745, %v6743
  %v6806 = vpack.c.b16 %v6746, %v6744
  %v6807 = vpack.c.b16 %v6749, %v6747
  %v6808 = vpack.c.b16 %v6750, %v6748
  %v6809 = vpack.c.b16 %v6753, %v6751
  %v6810 = vpack.c.b16 %v6754, %v6752
  %v6811 = vpack.c.b16 %v6757, %v6755
  %v6812 = vpack.c.b16 %v6758, %v6756
  %v6813 = vpack.c.b16 %v6761, %v6759
  %v6814 = vpack.c.b16 %v6762, %v6760
  %v6815 = vpack.c.b16 %v6765, %v6763
  %v6816 = vpack.c.b16 %v6766, %v6764
  %v6817 = vpack.c.b16 %v6769, %v6767
  %v6818 = vpack.c.b16 %v6770, %v6768
  %6867 = vmatprep.subr.bf16.mxu0 %v6772
  %6868 = vmatpush1.bf16.msra.mxu0 %v6771
  %6869 = vmatprep.subr.bf16.mxu0 %v6774
  %6870 = vmatpush1.bf16.msra.mxu0 %v6773
  %6871 = vmatprep.subr.bf16.mxu0 %v6776
  %6872 = vmatpush1.bf16.msra.mxu0 %v6775
  %6873 = vmatprep.subr.bf16.mxu0 %v6778
  %6874 = vmatpush1.bf16.msra.mxu0 %v6777
  %6875 = vmatprep.subr.bf16.mxu0 %v6780
  %6876 = vmatpush1.bf16.msra.mxu0 %v6779
  %6877 = vmatprep.subr.bf16.mxu0 %v6782
  %6878 = vmatpush1.bf16.msra.mxu0 %v6781
  %6879 = vmatprep.subr.bf16.mxu0 %v6784
  %6880 = vmatpush1.bf16.msra.mxu0 %v6783
  %6881 = vmatprep.subr.bf16.mxu0 %v6786
  %6882 = vmatpush1.bf16.msra.mxu0 %v6785
  %6883 = vmatprep.subr.bf16.mxu0 %v6788
  %6884 = vmatpush1.bf16.msra.mxu0 %v6787
  %6885 = vmatprep.subr.bf16.mxu0 %v6790
  %6886 = vmatpush1.bf16.msra.mxu0 %v6789
  %6887 = vmatprep.subr.bf16.mxu0 %v6792
  %6888 = vmatpush1.bf16.msra.mxu0 %v6791
  %6889 = vmatprep.subr.bf16.mxu0 %v6794
  %6890 = vmatpush1.bf16.msra.mxu0 %v6793
  %6891 = vmatprep.subr.bf16.mxu0 %v6796
  %6892 = vmatpush1.bf16.msra.mxu0 %v6795
  %6893 = vmatprep.subr.bf16.mxu0 %v6798
  %6894 = vmatpush1.bf16.msra.mxu0 %v6797
  %6895 = vmatprep.subr.bf16.mxu0 %v6800
  %6896 = vmatpush1.bf16.msra.mxu0 %v6799
  %6897 = vmatprep.subr.bf16.mxu0 %v6802
  %6898 = vmatpush1.bf16.msra.mxu0 %v6801
  %6899 = vmatprep.mubr.bf16.mxu0 %v5950
  %6900 = vmatmul.mubr.bf16.gmra.mrb[0].mxu0 %v5779
  %v6901 = vpop.f32.mrb[0].mxu0
  %v6902 = vadd.f32 0.0, %v6901
  %v6903 = vpop.f32.mrb[0].mxu0
  %v6904 = vadd.f32 0.0, %v6903
  %v6905 = vpop.f32.mrb[0].mxu0
  %v6906 = vadd.f32 0.0, %v6905
  %v6907 = vpop.f32.mrb[0].mxu0
  %v6908 = vadd.f32 0.0, %v6907
  %6909 = vmatprep.mubr.bf16.mxu0 %v5962
  %6910 = vmatmul.mubr.bf16.gmra.mrb[0].mxu0 %v5780
  %v6911 = vpop.f32.mrb[0].mxu0
  %v6912 = vadd.f32 0.0, %v6911
  %v6913 = vpop.f32.mrb[0].mxu0
  %v6914 = vadd.f32 0.0, %v6913
  %v6915 = vpop.f32.mrb[0].mxu0
  %v6916 = vadd.f32 0.0, %v6915
  %v6917 = vpop.f32.mrb[0].mxu0
  %v6918 = vadd.f32 0.0, %v6917
  %6919 = vmatprep.mubr.bf16.mxu0 %v5974
  %6920 = vmatmul.mubr.bf16.gmra.mrb[0].mxu0 %v5781
  %v6921 = vpop.f32.mrb[0].mxu0
  %v6922 = vadd.f32 0.0, %v6921
  %v6923 = vpop.f32.mrb[0].mxu0
  %v6924 = vadd.f32 0.0, %v6923
  %v6925 = vpop.f32.mrb[0].mxu0
  %v6926 = vadd.f32 0.0, %v6925
  %v6927 = vpop.f32.mrb[0].mxu0
  %v6928 = vadd.f32 0.0, %v6927
  %6929 = vmatprep.mubr.bf16.mxu0 %v5986
  %6930 = vmatmul.mubr.bf16.gmra.mrb[0].mxu0 %v5782
  %v6931 = vpop.f32.mrb[0].mxu0
  %v6932 = vadd.f32 0.0, %v6931
  %v6933 = vpop.f32.mrb[0].mxu0
  %v6934 = vadd.f32 0.0, %v6933
  %v6935 = vpop.f32.mrb[0].mxu0
  %v6936 = vadd.f32 0.0, %v6935
  %v6937 = vpop.f32.mrb[0].mxu0
  %v6938 = vadd.f32 0.0, %v6937
  %6939 = vmatprep.mubr.bf16.mxu0 %v5998
  %6940 = vmatmul.mubr.bf16.gmra.mrb[0].mxu0 %v5783
  %v6941 = vpop.f32.mrb[0].mxu0
  %v6942 = vadd.f32 0.0, %v6941
  %v6943 = vpop.f32.mrb[0].mxu0
  %v6944 = vadd.f32 0.0, %v6943
  %v6945 = vpop.f32.mrb[0].mxu0
  %v6946 = vadd.f32 0.0, %v6945
  %v6947 = vpop.f32.mrb[0].mxu0
  %v6948 = vadd.f32 0.0, %v6947
  %6949 = vmatprep.mubr.bf16.mxu0 %v6010
  %6950 = vmatmul.mubr.bf16.gmra.mrb[0].mxu0 %v5784
  %v6951 = vpop.f32.mrb[0].mxu0
  %v6952 = vadd.f32 0.0, %v6951
  %v6953 = vpop.f32.mrb[0].mxu0
  %v6954 = vadd.f32 0.0, %v6953
  %v6955 = vpop.f32.mrb[0].mxu0
  %v6956 = vadd.f32 0.0, %v6955
  %v6957 = vpop.f32.mrb[0].mxu0
  %v6958 = vadd.f32 0.0, %v6957
  %6959 = vmatprep.mubr.bf16.mxu0 %v6022
  %6960 = vmatmul.mubr.bf16.gmra.mrb[0].mxu0 %v5785
  %v6961 = vpop.f32.mrb[0].mxu0
  %v6962 = vadd.f32 0.0, %v6961
  %v6963 = vpop.f32.mrb[0].mxu0
  %v6964 = vadd.f32 0.0, %v6963
  %v6965 = vpop.f32.mrb[0].mxu0
  %v6966 = vadd.f32 0.0, %v6965
  %v6967 = vpop.f32.mrb[0].mxu0
  %v6968 = vadd.f32 0.0, %v6967
  %6969 = vmatprep.mubr.bf16.mxu0 %v6034
  %6970 = vmatmul.mubr.bf16.gmra.mrb[0].mxu0 %v5786
  %v6971 = vpop.f32.mrb[0].mxu0
  %v6972 = vadd.f32 0.0, %v6971
  %v6973 = vpop.f32.mrb[0].mxu0
  %v6974 = vadd.f32 0.0, %v6973
  %v6975 = vpop.f32.mrb[0].mxu0
  %v6976 = vadd.f32 0.0, %v6975
  %v6977 = vpop.f32.mrb[0].mxu0
  %v6978 = vadd.f32 0.0, %v6977
  %6979 = vmatprep.mubr.bf16.mxu0 %v6046
  %6980 = vmatmul.mubr.bf16.gmra.mrb[0].mxu0 %v5787
  %v6981 = vpop.f32.mrb[0].mxu0
  %v6982 = vadd.f32 0.0, %v6981
  %v6983 = vpop.f32.mrb[0].mxu0
  %v6984 = vadd.f32 0.0, %v6983
  %v6985 = vpop.f32.mrb[0].mxu0
  %v6986 = vadd.f32 0.0, %v6985
  %v6987 = vpop.f32.mrb[0].mxu0
  %v6988 = vadd.f32 0.0, %v6987
  %6989 = vmatprep.mubr.bf16.mxu0 %v6058
  %6990 = vmatmul.mubr.bf16.gmra.mrb[0].mxu0 %v5788
  %v6991 = vpop.f32.mrb[0].mxu0
  %v6992 = vadd.f32 0.0, %v6991
  %v6993 = vpop.f32.mrb[0].mxu0
  %v6994 = vadd.f32 0.0, %v6993
  %v6995 = vpop.f32.mrb[0].mxu0
  %v6996 = vadd.f32 0.0, %v6995
  %v6997 = vpop.f32.mrb[0].mxu0
  %v6998 = vadd.f32 0.0, %v6997
  %6999 = vmatprep.mubr.bf16.mxu0 %v6070
  %7000 = vmatmul.mubr.bf16.gmra.mrb[0].mxu0 %v5789
  %v7001 = vpop.f32.mrb[0].mxu0
  %v7002 = vadd.f32 0.0, %v7001
  %v7003 = vpop.f32.mrb[0].mxu0
  %v7004 = vadd.f32 0.0, %v7003
  %v7005 = vpop.f32.mrb[0].mxu0
  %v7006 = vadd.f32 0.0, %v7005
  %v7007 = vpop.f32.mrb[0].mxu0
  %v7008 = vadd.f32 0.0, %v7007
  %7009 = vmatprep.mubr.bf16.mxu0 %v6082
  %7010 = vmatmul.mubr.bf16.gmra.mrb[0].mxu0 %v5790
  %v7011 = vpop.f32.mrb[0].mxu0
  %v7012 = vadd.f32 0.0, %v7011
  %v7013 = vpop.f32.mrb[0].mxu0
  %v7014 = vadd.f32 0.0, %v7013
  %v7015 = vpop.f32.mrb[0].mxu0
  %v7016 = vadd.f32 0.0, %v7015
  %v7017 = vpop.f32.mrb[0].mxu0
  %v7018 = vadd.f32 0.0, %v7017
  %7019 = vmatprep.mubr.bf16.mxu0 %v6094
  %7020 = vmatmul.mubr.bf16.gmra.mrb[0].mxu0 %v5791
  %v7021 = vpop.f32.mrb[0].mxu0
  %v7022 = vadd.f32 0.0, %v7021
  %v7023 = vpop.f32.mrb[0].mxu0
  %v7024 = vadd.f32 0.0, %v7023
  %v7025 = vpop.f32.mrb[0].mxu0
  %v7026 = vadd.f32 0.0, %v7025
  %v7027 = vpop.f32.mrb[0].mxu0
  %v7028 = vadd.f32 0.0, %v7027
  %7029 = vmatprep.mubr.bf16.mxu0 %v6106
  %7030 = vmatmul.mubr.bf16.gmra.mrb[0].mxu0 %v5792
  %v7031 = vpop.f32.mrb[0].mxu0
  %v7032 = vadd.f32 0.0, %v7031
  %v7033 = vpop.f32.mrb[0].mxu0
  %v7034 = vadd.f32 0.0, %v7033
  %v7035 = vpop.f32.mrb[0].mxu0
  %v7036 = vadd.f32 0.0, %v7035
  %v7037 = vpop.f32.mrb[0].mxu0
  %v7038 = vadd.f32 0.0, %v7037
  %7039 = vmatprep.mubr.bf16.mxu0 %v6118
  %7040 = vmatmul.mubr.bf16.gmra.mrb[0].mxu0 %v5793
  %v7041 = vpop.f32.mrb[0].mxu0
  %v7042 = vadd.f32 0.0, %v7041
  %v7043 = vpop.f32.mrb[0].mxu0
  %v7044 = vadd.f32 0.0, %v7043
  %v7045 = vpop.f32.mrb[0].mxu0
  %v7046 = vadd.f32 0.0, %v7045
  %v7047 = vpop.f32.mrb[0].mxu0
  %v7048 = vadd.f32 0.0, %v7047
  %7049 = vmatprep.mubr.bf16.mxu0 %v6130
  %7050 = vmatmul.mubr.bf16.gmra.mrb[0].mxu0 %v5794
  %v7051 = vpop.f32.mrb[0].mxu0
  %v7052 = vadd.f32 0.0, %v7051
  %v7053 = vpop.f32.mrb[0].mxu0
  %v7054 = vadd.f32 0.0, %v7053
  %v7055 = vpop.f32.mrb[0].mxu0
  %v7056 = vadd.f32 0.0, %v7055
  %v7057 = vpop.f32.mrb[0].mxu0
  %v7058 = vadd.f32 0.0, %v7057
  %7059 = vmatprep.mubr.bf16.mxu0 %v6142
  %7060 = vmatmul.mubr.bf16.gmra.mrb[0].mxu0 %v5795
  %v7061 = vpop.f32.mrb[0].mxu0
  %v7062 = vadd.f32 0.0, %v7061
  %v7063 = vpop.f32.mrb[0].mxu0
  %v7064 = vadd.f32 0.0, %v7063
  %v7065 = vpop.f32.mrb[0].mxu0
  %v7066 = vadd.f32 0.0, %v7065
  %v7067 = vpop.f32.mrb[0].mxu0
  %v7068 = vadd.f32 0.0, %v7067
  %7069 = vmatprep.mubr.bf16.mxu0 %v6154
  %7070 = vmatmul.mubr.bf16.gmra.mrb[0].mxu0 %v5796
  %v7071 = vpop.f32.mrb[0].mxu0
  %v7072 = vadd.f32 0.0, %v7071
  %v7073 = vpop.f32.mrb[0].mxu0
  %v7074 = vadd.f32 0.0, %v7073
  %v7075 = vpop.f32.mrb[0].mxu0
  %v7076 = vadd.f32 0.0, %v7075
  %v7077 = vpop.f32.mrb[0].mxu0
  %v7078 = vadd.f32 0.0, %v7077
  %7079 = vmatprep.mubr.bf16.mxu0 %v6166
  %7080 = vmatmul.mubr.bf16.gmra.mrb[0].mxu0 %v5797
  %v7081 = vpop.f32.mrb[0].mxu0
  %v7082 = vadd.f32 0.0, %v7081
  %v7083 = vpop.f32.mrb[0].mxu0
  %v7084 = vadd.f32 0.0, %v7083
  %v7085 = vpop.f32.mrb[0].mxu0
  %v7086 = vadd.f32 0.0, %v7085
  %v7087 = vpop.f32.mrb[0].mxu0
  %v7088 = vadd.f32 0.0, %v7087
  %7089 = vmatprep.mubr.bf16.mxu0 %v6178
  %7090 = vmatmul.mubr.bf16.gmra.mrb[0].mxu0 %v5798
  %v7091 = vpop.f32.mrb[0].mxu0
  %v7092 = vadd.f32 0.0, %v7091
  %v7093 = vpop.f32.mrb[0].mxu0
  %v7094 = vadd.f32 0.0, %v7093
  %v7095 = vpop.f32.mrb[0].mxu0
  %v7096 = vadd.f32 0.0, %v7095
  %v7097 = vpop.f32.mrb[0].mxu0
  %v7098 = vadd.f32 0.0, %v7097
  %7099 = vmatprep.mubr.bf16.mxu0 %v6190
  %7100 = vmatmul.mubr.bf16.gmra.mrb[0].mxu0 %v5799
  %v7101 = vpop.f32.mrb[0].mxu0
  %v7102 = vadd.f32 0.0, %v7101
  %v7103 = vpop.f32.mrb[0].mxu0
  %v7104 = vadd.f32 0.0, %v7103
  %v7105 = vpop.f32.mrb[0].mxu0
  %v7106 = vadd.f32 0.0, %v7105
  %v7107 = vpop.f32.mrb[0].mxu0
  %v7108 = vadd.f32 0.0, %v7107
  %7109 = vmatprep.mubr.bf16.mxu0 %v6202
  %7110 = vmatmul.mubr.bf16.gmra.mrb[0].mxu0 %v5800
  %v7111 = vpop.f32.mrb[0].mxu0
  %v7112 = vadd.f32 0.0, %v7111
  %v7113 = vpop.f32.mrb[0].mxu0
  %v7114 = vadd.f32 0.0, %v7113
  %v7115 = vpop.f32.mrb[0].mxu0
  %v7116 = vadd.f32 0.0, %v7115
  %v7117 = vpop.f32.mrb[0].mxu0
  %v7118 = vadd.f32 0.0, %v7117
  %7119 = vmatprep.mubr.bf16.mxu0 %v6214
  %7120 = vmatmul.mubr.bf16.gmra.mrb[0].mxu0 %v5801
  %v7121 = vpop.f32.mrb[0].mxu0
  %v7122 = vadd.f32 0.0, %v7121
  %v7123 = vpop.f32.mrb[0].mxu0
  %v7124 = vadd.f32 0.0, %v7123
  %v7125 = vpop.f32.mrb[0].mxu0
  %v7126 = vadd.f32 0.0, %v7125
  %v7127 = vpop.f32.mrb[0].mxu0
  %v7128 = vadd.f32 0.0, %v7127
  %7129 = vmatprep.mubr.bf16.mxu0 %v6226
  %7130 = vmatmul.mubr.bf16.gmra.mrb[0].mxu0 %v5802
  %v7131 = vpop.f32.mrb[0].mxu0
  %v7132 = vadd.f32 0.0, %v7131
  %v7133 = vpop.f32.mrb[0].mxu0
  %v7134 = vadd.f32 0.0, %v7133
  %v7135 = vpop.f32.mrb[0].mxu0
  %v7136 = vadd.f32 0.0, %v7135
  %v7137 = vpop.f32.mrb[0].mxu0
  %v7138 = vadd.f32 0.0, %v7137
  %7139 = vmatprep.mubr.bf16.mxu0 %v6238
  %7140 = vmatmul.mubr.bf16.gmra.mrb[0].mxu0 %v5803
  %v7141 = vpop.f32.mrb[0].mxu0
  %v7142 = vadd.f32 0.0, %v7141
  %v7143 = vpop.f32.mrb[0].mxu0
  %v7144 = vadd.f32 0.0, %v7143
  %v7145 = vpop.f32.mrb[0].mxu0
  %v7146 = vadd.f32 0.0, %v7145
  %v7147 = vpop.f32.mrb[0].mxu0
  %v7148 = vadd.f32 0.0, %v7147
  %7149 = vmatprep.mubr.bf16.mxu0 %v6250
  %7150 = vmatmul.mubr.bf16.gmra.mrb[0].mxu0 %v5804
  %v7151 = vpop.f32.mrb[0].mxu0
  %v7152 = vadd.f32 0.0, %v7151
  %v7153 = vpop.f32.mrb[0].mxu0
  %v7154 = vadd.f32 0.0, %v7153
  %v7155 = vpop.f32.mrb[0].mxu0
  %v7156 = vadd.f32 0.0, %v7155
  %v7157 = vpop.f32.mrb[0].mxu0
  %v7158 = vadd.f32 0.0, %v7157
  %7159 = vmatprep.mubr.bf16.mxu0 %v6262
  %7160 = vmatmul.mubr.bf16.gmra.mrb[0].mxu0 %v5805
  %v7161 = vpop.f32.mrb[0].mxu0
  %v7162 = vadd.f32 0.0, %v7161
  %v7163 = vpop.f32.mrb[0].mxu0
  %v7164 = vadd.f32 0.0, %v7163
  %v7165 = vpop.f32.mrb[0].mxu0
  %v7166 = vadd.f32 0.0, %v7165
  %v7167 = vpop.f32.mrb[0].mxu0
  %v7168 = vadd.f32 0.0, %v7167
  %7169 = vmatprep.mubr.bf16.mxu0 %v6274
  %7170 = vmatmul.mubr.bf16.gmra.mrb[0].mxu0 %v5806
  %v7171 = vpop.f32.mrb[0].mxu0
  %v7172 = vadd.f32 0.0, %v7171
  %v7173 = vpop.f32.mrb[0].mxu0
  %v7174 = vadd.f32 0.0, %v7173
  %v7175 = vpop.f32.mrb[0].mxu0
  %v7176 = vadd.f32 0.0, %v7175
  %v7177 = vpop.f32.mrb[0].mxu0
  %v7178 = vadd.f32 0.0, %v7177
  %7179 = vmatprep.mubr.bf16.mxu0 %v6286
  %7180 = vmatmul.mubr.bf16.gmra.mrb[0].mxu0 %v5807
  %v7181 = vpop.f32.mrb[0].mxu0
  %v7182 = vadd.f32 0.0, %v7181
  %v7183 = vpop.f32.mrb[0].mxu0
  %v7184 = vadd.f32 0.0, %v7183
  %v7185 = vpop.f32.mrb[0].mxu0
  %v7186 = vadd.f32 0.0, %v7185
  %v7187 = vpop.f32.mrb[0].mxu0
  %v7188 = vadd.f32 0.0, %v7187
  %7189 = vmatprep.mubr.bf16.mxu0 %v6298
  %7190 = vmatmul.mubr.bf16.gmra.mrb[0].mxu0 %v5808
  %v7191 = vpop.f32.mrb[0].mxu0
  %v7192 = vadd.f32 0.0, %v7191
  %v7193 = vpop.f32.mrb[0].mxu0
  %v7194 = vadd.f32 0.0, %v7193
  %v7195 = vpop.f32.mrb[0].mxu0
  %v7196 = vadd.f32 0.0, %v7195
  %v7197 = vpop.f32.mrb[0].mxu0
  %v7198 = vadd.f32 0.0, %v7197
  %7199 = vmatprep.mubr.bf16.mxu0 %v6310
  %7200 = vmatmul.mubr.bf16.gmra.mrb[0].mxu0 %v5809
  %v7201 = vpop.f32.mrb[0].mxu0
  %v7202 = vadd.f32 0.0, %v7201
  %v7203 = vpop.f32.mrb[0].mxu0
  %v7204 = vadd.f32 0.0, %v7203
  %v7205 = vpop.f32.mrb[0].mxu0
  %v7206 = vadd.f32 0.0, %v7205
  %v7207 = vpop.f32.mrb[0].mxu0
  %v7208 = vadd.f32 0.0, %v7207
  %7209 = vmatprep.mubr.bf16.mxu0 %v6322
  %7210 = vmatmul.mubr.bf16.gmra.mrb[0].mxu0 %v5810
  %v7211 = vpop.f32.mrb[0].mxu0
  %v7212 = vadd.f32 0.0, %v7211
  %v7213 = vpop.f32.mrb[0].mxu0
  %v7214 = vadd.f32 0.0, %v7213
  %v7215 = vpop.f32.mrb[0].mxu0
  %v7216 = vadd.f32 0.0, %v7215
  %v7217 = vpop.f32.mrb[0].mxu0
  %v7218 = vadd.f32 0.0, %v7217
  %7219 = vdwg.mxu0
  %7220 = vmatprep.subr.bf16.mxu0 %v6804
  %7221 = vmatpush1.bf16.msra.mxu0 %v6803
  %7222 = vmatprep.subr.bf16.mxu0 %v6806
  %7223 = vmatpush1.bf16.msra.mxu0 %v6805
  %7224 = vmatprep.subr.bf16.mxu0 %v6808
  %7225 = vmatpush1.bf16.msra.mxu0 %v6807
  %7226 = vmatprep.subr.bf16.mxu0 %v6810
  %7227 = vmatpush1.bf16.msra.mxu0 %v6809
  %7228 = vmatprep.subr.bf16.mxu0 %v6812
  %7229 = vmatpush1.bf16.msra.mxu0 %v6811
  %7230 = vmatprep.subr.bf16.mxu0 %v6814
  %7231 = vmatpush1.bf16.msra.mxu0 %v6813
  %7232 = vmatprep.subr.bf16.mxu0 %v6816
  %7233 = vmatpush1.bf16.msra.mxu0 %v6815
  %7234 = vmatprep.subr.bf16.mxu0 %v6818
  %7235 = vmatpush1.bf16.msra.mxu0 %v6817
  %7236 = vmatprep.subr.bf16.mxu0 0
  %7237 = vmatpush1.bf16.msra.mxu0 0
  %7238 = vmatprep.subr.bf16.mxu0 0
  %7239 = vmatpush1.bf16.msra.mxu0 0
  %7240 = vmatprep.subr.bf16.mxu0 0
  %7241 = vmatpush1.bf16.msra.mxu0 0
  %7242 = vmatprep.subr.bf16.mxu0 0
  %7243 = vmatpush1.bf16.msra.mxu0 0
  %7244 = vmatprep.subr.bf16.mxu0 0
  %7245 = vmatpush1.bf16.msra.mxu0 0
  %7246 = vmatprep.subr.bf16.mxu0 0
  %7247 = vmatpush1.bf16.msra.mxu0 0
  %7248 = vmatprep.subr.bf16.mxu0 0
  %7249 = vmatpush1.bf16.msra.mxu0 0
  %7250 = vmatprep.subr.bf16.mxu0 0
  %7251 = vmatpush1.bf16.msra.mxu0 0
  %7252 = vmatprep.mubr.bf16.mxu0 0
  %7253 = vmatmul.mubr.bf16.gmra.mrb[0].mxu0 %v6453
  %v7254 = vpop.f32.mrb[0].mxu0
  %v7255 = vadd.f32 %v6902, %v7254
  %v7256 = vpop.f32.mrb[0].mxu0
  %v7257 = vadd.f32 %v6904, %v7256
  %v7258 = vpop.f32.mrb[0].mxu0
  %v7259 = vadd.f32 %v6906, %v7258
  %v7260 = vpop.f32.mrb[0].mxu0
  %v7261 = vadd.f32 %v6908, %v7260
  %7262 = vmatprep.mubr.bf16.mxu0 0
  %7263 = vmatmul.mubr.bf16.gmra.mrb[0].mxu0 %v6456
  %v7264 = vpop.f32.mrb[0].mxu0
  %v7265 = vadd.f32 %v6912, %v7264
  %v7266 = vpop.f32.mrb[0].mxu0
  %v7267 = vadd.f32 %v6914, %v7266
  %v7268 = vpop.f32.mrb[0].mxu0
  %v7269 = vadd.f32 %v6916, %v7268
  %v7270 = vpop.f32.mrb[0].mxu0
  %v7271 = vadd.f32 %v6918, %v7270
  %7272 = vmatprep.mubr.bf16.mxu0 0
  %7273 = vmatmul.mubr.bf16.gmra.mrb[0].mxu0 %v6459
  %v7274 = vpop.f32.mrb[0].mxu0
  %v7275 = vadd.f32 %v6922, %v7274
  %v7276 = vpop.f32.mrb[0].mxu0
  %v7277 = vadd.f32 %v6924, %v7276
  %v7278 = vpop.f32.mrb[0].mxu0
  %v7279 = vadd.f32 %v6926, %v7278
  %v7280 = vpop.f32.mrb[0].mxu0
  %v7281 = vadd.f32 %v6928, %v7280
  %7282 = vmatprep.mubr.bf16.mxu0 0
  %7283 = vmatmul.mubr.bf16.gmra.mrb[0].mxu0 %v6462
  %v7284 = vpop.f32.mrb[0].mxu0
  %v7285 = vadd.f32 %v6932, %v7284
  %v7286 = vpop.f32.mrb[0].mxu0
  %v7287 = vadd.f32 %v6934, %v7286
  %v7288 = vpop.f32.mrb[0].mxu0
  %v7289 = vadd.f32 %v6936, %v7288
  %v7290 = vpop.f32.mrb[0].mxu0
  %v7291 = vadd.f32 %v6938, %v7290
  %7292 = vmatprep.mubr.bf16.mxu0 0
  %7293 = vmatmul.mubr.bf16.gmra.mrb[0].mxu0 %v6465
  %v7294 = vpop.f32.mrb[0].mxu0
  %v7295 = vadd.f32 %v6942, %v7294
  %v7296 = vpop.f32.mrb[0].mxu0
  %v7297 = vadd.f32 %v6944, %v7296
  %v7298 = vpop.f32.mrb[0].mxu0
  %v7299 = vadd.f32 %v6946, %v7298
  %v7300 = vpop.f32.mrb[0].mxu0
  %v7301 = vadd.f32 %v6948, %v7300
  %7302 = vmatprep.mubr.bf16.mxu0 0
  %7303 = vmatmul.mubr.bf16.gmra.mrb[0].mxu0 %v6468
  %v7304 = vpop.f32.mrb[0].mxu0
  %v7305 = vadd.f32 %v6952, %v7304
  %v7306 = vpop.f32.mrb[0].mxu0
  %v7307 = vadd.f32 %v6954, %v7306
  %v7308 = vpop.f32.mrb[0].mxu0
  %v7309 = vadd.f32 %v6956, %v7308
  %v7310 = vpop.f32.mrb[0].mxu0
  %v7311 = vadd.f32 %v6958, %v7310
  %7312 = vmatprep.mubr.bf16.mxu0 0
  %7313 = vmatmul.mubr.bf16.gmra.mrb[0].mxu0 %v6471
  %v7314 = vpop.f32.mrb[0].mxu0
  %v7315 = vadd.f32 %v6962, %v7314
  %v7316 = vpop.f32.mrb[0].mxu0
  %v7317 = vadd.f32 %v6964, %v7316
  %v7318 = vpop.f32.mrb[0].mxu0
  %v7319 = vadd.f32 %v6966, %v7318
  %v7320 = vpop.f32.mrb[0].mxu0
  %v7321 = vadd.f32 %v6968, %v7320
  %7322 = vmatprep.mubr.bf16.mxu0 0
  %7323 = vmatmul.mubr.bf16.gmra.mrb[0].mxu0 %v6474
  %v7324 = vpop.f32.mrb[0].mxu0
  %v7325 = vadd.f32 %v6972, %v7324
  %v7326 = vpop.f32.mrb[0].mxu0
  %v7327 = vadd.f32 %v6974, %v7326
  %v7328 = vpop.f32.mrb[0].mxu0
  %v7329 = vadd.f32 %v6976, %v7328
  %v7330 = vpop.f32.mrb[0].mxu0
  %v7331 = vadd.f32 %v6978, %v7330
  %7332 = vmatprep.mubr.bf16.mxu0 0
  %7333 = vmatmul.mubr.bf16.gmra.mrb[0].mxu0 %v6477
  %v7334 = vpop.f32.mrb[0].mxu0
  %v7335 = vadd.f32 %v6982, %v7334
  %v7336 = vpop.f32.mrb[0].mxu0
  %v7337 = vadd.f32 %v6984, %v7336
  %v7338 = vpop.f32.mrb[0].mxu0
  %v7339 = vadd.f32 %v6986, %v7338
  %v7340 = vpop.f32.mrb[0].mxu0
  %v7341 = vadd.f32 %v6988, %v7340
  %7342 = vmatprep.mubr.bf16.mxu0 0
  %7343 = vmatmul.mubr.bf16.gmra.mrb[0].mxu0 %v6480
  %v7344 = vpop.f32.mrb[0].mxu0
  %v7345 = vadd.f32 %v6992, %v7344
  %v7346 = vpop.f32.mrb[0].mxu0
  %v7347 = vadd.f32 %v6994, %v7346
  %v7348 = vpop.f32.mrb[0].mxu0
  %v7349 = vadd.f32 %v6996, %v7348
  %v7350 = vpop.f32.mrb[0].mxu0
  %v7351 = vadd.f32 %v6998, %v7350
  %7352 = vmatprep.mubr.bf16.mxu0 0
  %7353 = vmatmul.mubr.bf16.gmra.mrb[0].mxu0 %v6483
  %v7354 = vpop.f32.mrb[0].mxu0
  %v7355 = vadd.f32 %v7002, %v7354
  %v7356 = vpop.f32.mrb[0].mxu0
  %v7357 = vadd.f32 %v7004, %v7356
  %v7358 = vpop.f32.mrb[0].mxu0
  %v7359 = vadd.f32 %v7006, %v7358
  %v7360 = vpop.f32.mrb[0].mxu0
  %v7361 = vadd.f32 %v7008, %v7360
  %7362 = vmatprep.mubr.bf16.mxu0 0
  %7363 = vmatmul.mubr.bf16.gmra.mrb[0].mxu0 %v6486
  %v7364 = vpop.f32.mrb[0].mxu0
  %v7365 = vadd.f32 %v7012, %v7364
  %v7366 = vpop.f32.mrb[0].mxu0
  %v7367 = vadd.f32 %v7014, %v7366
  %v7368 = vpop.f32.mrb[0].mxu0
  %v7369 = vadd.f32 %v7016, %v7368
  %v7370 = vpop.f32.mrb[0].mxu0
  %v7371 = vadd.f32 %v7018, %v7370
  %7372 = vmatprep.mubr.bf16.mxu0 0
  %7373 = vmatmul.mubr.bf16.gmra.mrb[0].mxu0 %v6489
  %v7374 = vpop.f32.mrb[0].mxu0
  %v7375 = vadd.f32 %v7022, %v7374
  %v7376 = vpop.f32.mrb[0].mxu0
  %v7377 = vadd.f32 %v7024, %v7376
  %v7378 = vpop.f32.mrb[0].mxu0
  %v7379 = vadd.f32 %v7026, %v7378
  %v7380 = vpop.f32.mrb[0].mxu0
  %v7381 = vadd.f32 %v7028, %v7380
  %7382 = vmatprep.mubr.bf16.mxu0 0
  %7383 = vmatmul.mubr.bf16.gmra.mrb[0].mxu0 %v6492
  %v7384 = vpop.f32.mrb[0].mxu0
  %v7385 = vadd.f32 %v7032, %v7384
  %v7386 = vpop.f32.mrb[0].mxu0
  %v7387 = vadd.f32 %v7034, %v7386
  %v7388 = vpop.f32.mrb[0].mxu0
  %v7389 = vadd.f32 %v7036, %v7388
  %v7390 = vpop.f32.mrb[0].mxu0
  %v7391 = vadd.f32 %v7038, %v7390
  %7392 = vmatprep.mubr.bf16.mxu0 0
  %7393 = vmatmul.mubr.bf16.gmra.mrb[0].mxu0 %v6495
  %v7394 = vpop.f32.mrb[0].mxu0
  %v7395 = vadd.f32 %v7042, %v7394
  %v7396 = vpop.f32.mrb[0].mxu0
  %v7397 = vadd.f32 %v7044, %v7396
  %v7398 = vpop.f32.mrb[0].mxu0
  %v7399 = vadd.f32 %v7046, %v7398
  %v7400 = vpop.f32.mrb[0].mxu0
  %v7401 = vadd.f32 %v7048, %v7400
  %7402 = vmatprep.mubr.bf16.mxu0 0
  %7403 = vmatmul.mubr.bf16.gmra.mrb[0].mxu0 %v6498
  %v7404 = vpop.f32.mrb[0].mxu0
  %v7405 = vadd.f32 %v7052, %v7404
  %v7406 = vpop.f32.mrb[0].mxu0
  %v7407 = vadd.f32 %v7054, %v7406
  %v7408 = vpop.f32.mrb[0].mxu0
  %v7409 = vadd.f32 %v7056, %v7408
  %v7410 = vpop.f32.mrb[0].mxu0
  %v7411 = vadd.f32 %v7058, %v7410
  %7412 = vmatprep.mubr.bf16.mxu0 0
  %7413 = vmatmul.mubr.bf16.gmra.mrb[0].mxu0 %v6501
  %v7414 = vpop.f32.mrb[0].mxu0
  %v7415 = vadd.f32 %v7062, %v7414
  %v7416 = vpop.f32.mrb[0].mxu0
  %v7417 = vadd.f32 %v7064, %v7416
  %v7418 = vpop.f32.mrb[0].mxu0
  %v7419 = vadd.f32 %v7066, %v7418
  %v7420 = vpop.f32.mrb[0].mxu0
  %v7421 = vadd.f32 %v7068, %v7420
  %7422 = vmatprep.mubr.bf16.mxu0 0
  %7423 = vmatmul.mubr.bf16.gmra.mrb[0].mxu0 %v6504
  %v7424 = vpop.f32.mrb[0].mxu0
  %v7425 = vadd.f32 %v7072, %v7424
  %v7426 = vpop.f32.mrb[0].mxu0
  %v7427 = vadd.f32 %v7074, %v7426
  %v7428 = vpop.f32.mrb[0].mxu0
  %v7429 = vadd.f32 %v7076, %v7428
  %v7430 = vpop.f32.mrb[0].mxu0
  %v7431 = vadd.f32 %v7078, %v7430
  %7432 = vmatprep.mubr.bf16.mxu0 0
  %7433 = vmatmul.mubr.bf16.gmra.mrb[0].mxu0 %v6507
  %v7434 = vpop.f32.mrb[0].mxu0
  %v7435 = vadd.f32 %v7082, %v7434
  %v7436 = vpop.f32.mrb[0].mxu0
  %v7437 = vadd.f32 %v7084, %v7436
  %v7438 = vpop.f32.mrb[0].mxu0
  %v7439 = vadd.f32 %v7086, %v7438
  %v7440 = vpop.f32.mrb[0].mxu0
  %v7441 = vadd.f32 %v7088, %v7440
  %7442 = vmatprep.mubr.bf16.mxu0 0
  %7443 = vmatmul.mubr.bf16.gmra.mrb[0].mxu0 %v6510
  %v7444 = vpop.f32.mrb[0].mxu0
  %v7445 = vadd.f32 %v7092, %v7444
  %v7446 = vpop.f32.mrb[0].mxu0
  %v7447 = vadd.f32 %v7094, %v7446
  %v7448 = vpop.f32.mrb[0].mxu0
  %v7449 = vadd.f32 %v7096, %v7448
  %v7450 = vpop.f32.mrb[0].mxu0
  %v7451 = vadd.f32 %v7098, %v7450
  %7452 = vmatprep.mubr.bf16.mxu0 0
  %7453 = vmatmul.mubr.bf16.gmra.mrb[0].mxu0 %v6513
  %v7454 = vpop.f32.mrb[0].mxu0
  %v7455 = vadd.f32 %v7102, %v7454
  %v7456 = vpop.f32.mrb[0].mxu0
  %v7457 = vadd.f32 %v7104, %v7456
  %v7458 = vpop.f32.mrb[0].mxu0
  %v7459 = vadd.f32 %v7106, %v7458
  %v7460 = vpop.f32.mrb[0].mxu0
  %v7461 = vadd.f32 %v7108, %v7460
  %7462 = vmatprep.mubr.bf16.mxu0 0
  %7463 = vmatmul.mubr.bf16.gmra.mrb[0].mxu0 %v6516
  %v7464 = vpop.f32.mrb[0].mxu0
  %v7465 = vadd.f32 %v7112, %v7464
  %v7466 = vpop.f32.mrb[0].mxu0
  %v7467 = vadd.f32 %v7114, %v7466
  %v7468 = vpop.f32.mrb[0].mxu0
  %v7469 = vadd.f32 %v7116, %v7468
  %v7470 = vpop.f32.mrb[0].mxu0
  %v7471 = vadd.f32 %v7118, %v7470
  %7472 = vmatprep.mubr.bf16.mxu0 0
  %7473 = vmatmul.mubr.bf16.gmra.mrb[0].mxu0 %v6519
  %v7474 = vpop.f32.mrb[0].mxu0
  %v7475 = vadd.f32 %v7122, %v7474
  %v7476 = vpop.f32.mrb[0].mxu0
  %v7477 = vadd.f32 %v7124, %v7476
  %v7478 = vpop.f32.mrb[0].mxu0
  %v7479 = vadd.f32 %v7126, %v7478
  %v7480 = vpop.f32.mrb[0].mxu0
  %v7481 = vadd.f32 %v7128, %v7480
  %7482 = vmatprep.mubr.bf16.mxu0 0
  %7483 = vmatmul.mubr.bf16.gmra.mrb[0].mxu0 %v6522
  %v7484 = vpop.f32.mrb[0].mxu0
  %v7485 = vadd.f32 %v7132, %v7484
  %v7486 = vpop.f32.mrb[0].mxu0
  %v7487 = vadd.f32 %v7134, %v7486
  %v7488 = vpop.f32.mrb[0].mxu0
  %v7489 = vadd.f32 %v7136, %v7488
  %v7490 = vpop.f32.mrb[0].mxu0
  %v7491 = vadd.f32 %v7138, %v7490
  %7492 = vmatprep.mubr.bf16.mxu0 0
  %7493 = vmatmul.mubr.bf16.gmra.mrb[0].mxu0 %v6525
  %v7494 = vpop.f32.mrb[0].mxu0
  %v7495 = vadd.f32 %v7142, %v7494
  %v7496 = vpop.f32.mrb[0].mxu0
  %v7497 = vadd.f32 %v7144, %v7496
  %v7498 = vpop.f32.mrb[0].mxu0
  %v7499 = vadd.f32 %v7146, %v7498
  %v7500 = vpop.f32.mrb[0].mxu0
  %v7501 = vadd.f32 %v7148, %v7500
  %7502 = vmatprep.mubr.bf16.mxu0 0
  %7503 = vmatmul.mubr.bf16.gmra.mrb[0].mxu0 %v6528
  %v7504 = vpop.f32.mrb[0].mxu0
  %v7505 = vadd.f32 %v7152, %v7504
  %v7506 = vpop.f32.mrb[0].mxu0
  %v7507 = vadd.f32 %v7154, %v7506
  %v7508 = vpop.f32.mrb[0].mxu0
  %v7509 = vadd.f32 %v7156, %v7508
  %v7510 = vpop.f32.mrb[0].mxu0
  %v7511 = vadd.f32 %v7158, %v7510
  %7512 = vmatprep.mubr.bf16.mxu0 0
  %7513 = vmatmul.mubr.bf16.gmra.mrb[0].mxu0 %v6531
  %v7514 = vpop.f32.mrb[0].mxu0
  %v7515 = vadd.f32 %v7162, %v7514
  %v7516 = vpop.f32.mrb[0].mxu0
  %v7517 = vadd.f32 %v7164, %v7516
  %v7518 = vpop.f32.mrb[0].mxu0
  %v7519 = vadd.f32 %v7166, %v7518
  %v7520 = vpop.f32.mrb[0].mxu0
  %v7521 = vadd.f32 %v7168, %v7520
  %7522 = vmatprep.mubr.bf16.mxu0 0
  %7523 = vmatmul.mubr.bf16.gmra.mrb[0].mxu0 %v6534
  %v7524 = vpop.f32.mrb[0].mxu0
  %v7525 = vadd.f32 %v7172, %v7524
  %v7526 = vpop.f32.mrb[0].mxu0
  %v7527 = vadd.f32 %v7174, %v7526
  %v7528 = vpop.f32.mrb[0].mxu0
  %v7529 = vadd.f32 %v7176, %v7528
  %v7530 = vpop.f32.mrb[0].mxu0
  %v7531 = vadd.f32 %v7178, %v7530
  %7532 = vmatprep.mubr.bf16.mxu0 0
  %7533 = vmatmul.mubr.bf16.gmra.mrb[0].mxu0 %v6537
  %v7534 = vpop.f32.mrb[0].mxu0
  %v7535 = vadd.f32 %v7182, %v7534
  %v7536 = vpop.f32.mrb[0].mxu0
  %v7537 = vadd.f32 %v7184, %v7536
  %v7538 = vpop.f32.mrb[0].mxu0
  %v7539 = vadd.f32 %v7186, %v7538
  %v7540 = vpop.f32.mrb[0].mxu0
  %v7541 = vadd.f32 %v7188, %v7540
  %7542 = vmatprep.mubr.bf16.mxu0 0
  %7543 = vmatmul.mubr.bf16.gmra.mrb[0].mxu0 %v6540
  %v7544 = vpop.f32.mrb[0].mxu0
  %v7545 = vadd.f32 %v7192, %v7544
  %v7546 = vpop.f32.mrb[0].mxu0
  %v7547 = vadd.f32 %v7194, %v7546
  %v7548 = vpop.f32.mrb[0].mxu0
  %v7549 = vadd.f32 %v7196, %v7548
  %v7550 = vpop.f32.mrb[0].mxu0
  %v7551 = vadd.f32 %v7198, %v7550
  %7552 = vmatprep.mubr.bf16.mxu0 0
  %7553 = vmatmul.mubr.bf16.gmra.mrb[0].mxu0 %v6543
  %v7554 = vpop.f32.mrb[0].mxu0
  %v7555 = vadd.f32 %v7202, %v7554
  %v7556 = vpop.f32.mrb[0].mxu0
  %v7557 = vadd.f32 %v7204, %v7556
  %v7558 = vpop.f32.mrb[0].mxu0
  %v7559 = vadd.f32 %v7206, %v7558
  %v7560 = vpop.f32.mrb[0].mxu0
  %v7561 = vadd.f32 %v7208, %v7560
  %7562 = vmatprep.mubr.bf16.mxu0 0
  %7563 = vmatmul.mubr.bf16.gmra.mrb[0].mxu0 %v6546
  %v7564 = vpop.f32.mrb[0].mxu0
  %v7565 = vadd.f32 %v7212, %v7564
  %v7566 = vpop.f32.mrb[0].mxu0
  %v7567 = vadd.f32 %v7214, %v7566
  %v7568 = vpop.f32.mrb[0].mxu0
  %v7569 = vadd.f32 %v7216, %v7568
  %v7570 = vpop.f32.mrb[0].mxu0
  %v7571 = vadd.f32 %v7218, %v7570
  %7572 = vdwg.mxu0
  %v7573 = vadd.f32 %v5204, %v7255
  %v7574 = vadd.f32 %v5206, %v7257
  %v7575 = vadd.f32 %v5208, %v7259
  %v7576 = vadd.f32 %v5210, %v7261
  %v7577 = vadd.f32 %v5214, %v7265
  %v7578 = vadd.f32 %v5216, %v7267
  %v7579 = vadd.f32 %v5218, %v7269
  %v7580 = vadd.f32 %v5220, %v7271
  %v7581 = vadd.f32 %v5224, %v7275
  %v7582 = vadd.f32 %v5226, %v7277
  %v7583 = vadd.f32 %v5228, %v7279
  %v7584 = vadd.f32 %v5230, %v7281
  %v7585 = vadd.f32 %v5234, %v7285
  %v7586 = vadd.f32 %v5236, %v7287
  %v7587 = vadd.f32 %v5238, %v7289
  %v7588 = vadd.f32 %v5240, %v7291
  %v7589 = vadd.f32 %v5244, %v7295
  %v7590 = vadd.f32 %v5246, %v7297
  %v7591 = vadd.f32 %v5248, %v7299
  %v7592 = vadd.f32 %v5250, %v7301
  %v7593 = vadd.f32 %v5254, %v7305
  %v7594 = vadd.f32 %v5256, %v7307
  %v7595 = vadd.f32 %v5258, %v7309
  %v7596 = vadd.f32 %v5260, %v7311
  %v7597 = vadd.f32 %v5264, %v7315
  %v7598 = vadd.f32 %v5266, %v7317
  %v7599 = vadd.f32 %v5268, %v7319
  %v7600 = vadd.f32 %v5270, %v7321
  %v7601 = vadd.f32 %v5274, %v7325
  %v7602 = vadd.f32 %v5276, %v7327
  %v7603 = vadd.f32 %v5278, %v7329
  %v7604 = vadd.f32 %v5280, %v7331
  %v7605 = vadd.f32 %v5284, %v7335
  %v7606 = vadd.f32 %v5286, %v7337
  %v7607 = vadd.f32 %v5288, %v7339
  %v7608 = vadd.f32 %v5290, %v7341
  %v7609 = vadd.f32 %v5294, %v7345
  %v7610 = vadd.f32 %v5296, %v7347
  %v7611 = vadd.f32 %v5298, %v7349
  %v7612 = vadd.f32 %v5300, %v7351
  %v7613 = vadd.f32 %v5304, %v7355
  %v7614 = vadd.f32 %v5306, %v7357
  %v7615 = vadd.f32 %v5308, %v7359
  %v7616 = vadd.f32 %v5310, %v7361
  %v7617 = vadd.f32 %v5314, %v7365
  %v7618 = vadd.f32 %v5316, %v7367
  %v7619 = vadd.f32 %v5318, %v7369
  %v7620 = vadd.f32 %v5320, %v7371
  %v7621 = vadd.f32 %v5324, %v7375
  %v7622 = vadd.f32 %v5326, %v7377
  %v7623 = vadd.f32 %v5328, %v7379
  %v7624 = vadd.f32 %v5330, %v7381
  %v7625 = vadd.f32 %v5334, %v7385
  %v7626 = vadd.f32 %v5336, %v7387
  %v7627 = vadd.f32 %v5338, %v7389
  %v7628 = vadd.f32 %v5340, %v7391
  %v7629 = vadd.f32 %v5344, %v7395
  %v7630 = vadd.f32 %v5346, %v7397
  %v7631 = vadd.f32 %v5348, %v7399
  %v7632 = vadd.f32 %v5350, %v7401
  %v7633 = vadd.f32 %v5354, %v7405
  %v7634 = vadd.f32 %v5356, %v7407
  %v7635 = vadd.f32 %v5358, %v7409
  %v7636 = vadd.f32 %v5360, %v7411
  %v7637 = vadd.f32 %v5364, %v7415
  %v7638 = vadd.f32 %v5366, %v7417
  %v7639 = vadd.f32 %v5368, %v7419
  %v7640 = vadd.f32 %v5370, %v7421
  %v7641 = vadd.f32 %v5374, %v7425
  %v7642 = vadd.f32 %v5376, %v7427
  %v7643 = vadd.f32 %v5378, %v7429
  %v7644 = vadd.f32 %v5380, %v7431
  %v7645 = vadd.f32 %v5384, %v7435
  %v7646 = vadd.f32 %v5386, %v7437
  %v7647 = vadd.f32 %v5388, %v7439
  %v7648 = vadd.f32 %v5390, %v7441
  %v7649 = vadd.f32 %v5394, %v7445
  %v7650 = vadd.f32 %v5396, %v7447
  %v7651 = vadd.f32 %v5398, %v7449
  %v7652 = vadd.f32 %v5400, %v7451
  %v7653 = vadd.f32 %v5404, %v7455
  %v7654 = vadd.f32 %v5406, %v7457
  %v7655 = vadd.f32 %v5408, %v7459
  %v7656 = vadd.f32 %v5410, %v7461
  %v7657 = vadd.f32 %v5414, %v7465
  %v7658 = vadd.f32 %v5416, %v7467
  %v7659 = vadd.f32 %v5418, %v7469
  %v7660 = vadd.f32 %v5420, %v7471
  %v7661 = vadd.f32 %v5424, %v7475
  %v7662 = vadd.f32 %v5426, %v7477
  %v7663 = vadd.f32 %v5428, %v7479
  %v7664 = vadd.f32 %v5430, %v7481
  %v7665 = vadd.f32 %v5434, %v7485
  %v7666 = vadd.f32 %v5436, %v7487
  %v7667 = vadd.f32 %v5438, %v7489
  %v7668 = vadd.f32 %v5440, %v7491
  %v7669 = vadd.f32 %v5444, %v7495
  %v7670 = vadd.f32 %v5446, %v7497
  %v7671 = vadd.f32 %v5448, %v7499
  %v7672 = vadd.f32 %v5450, %v7501
  %v7673 = vadd.f32 %v5454, %v7505
  %v7674 = vadd.f32 %v5456, %v7507
  %v7675 = vadd.f32 %v5458, %v7509
  %v7676 = vadd.f32 %v5460, %v7511
  %v7677 = vadd.f32 %v5464, %v7515
  %v7678 = vadd.f32 %v5466, %v7517
  %v7679 = vadd.f32 %v5468, %v7519
  %v7680 = vadd.f32 %v5470, %v7521
  %v7681 = vadd.f32 %v5474, %v7525
  %v7682 = vadd.f32 %v5476, %v7527
  %v7683 = vadd.f32 %v5478, %v7529
  %v7684 = vadd.f32 %v5480, %v7531
  %v7685 = vadd.f32 %v5484, %v7535
  %v7686 = vadd.f32 %v5486, %v7537
  %v7687 = vadd.f32 %v5488, %v7539
  %v7688 = vadd.f32 %v5490, %v7541
  %v7689 = vadd.f32 %v5494, %v7545
  %v7690 = vadd.f32 %v5496, %v7547
  %v7691 = vadd.f32 %v5498, %v7549
  %v7692 = vadd.f32 %v5500, %v7551
  %v7693 = vadd.f32 %v5504, %v7555
  %v7694 = vadd.f32 %v5506, %v7557
  %v7695 = vadd.f32 %v5508, %v7559
  %v7696 = vadd.f32 %v5510, %v7561
  %v7697 = vadd.f32 %v5514, %v7565
  %v7698 = vadd.f32 %v5516, %v7567
  %v7699 = vadd.f32 %v5518, %v7569
  %v7700 = vadd.f32 %v5520, %v7571
  %v7701 = vld [vmem:[%s2] sm:$0x1]
  %v7703 = vlaneseq
  %v7704 = vshrl.u32 %v7703, 7
  %v7705 = vsub.s32 0, %v7704
  %v7706 = vrot.slane %v7701, %v7705
  %v7708 = vadd.f32 %v7573, %v7706
  %v7709 = vadd.f32 %v7575, %v7706
  %v7710 = vadd.f32 %v7577, %v7706
  %v7711 = vadd.f32 %v7579, %v7706
  %v7712 = vadd.f32 %v7581, %v7706
  %v7713 = vadd.f32 %v7583, %v7706
  %v7714 = vadd.f32 %v7585, %v7706
  %v7715 = vadd.f32 %v7587, %v7706
  %v7716 = vadd.f32 %v7589, %v7706
  %v7717 = vadd.f32 %v7591, %v7706
  %v7718 = vadd.f32 %v7593, %v7706
  %v7719 = vadd.f32 %v7595, %v7706
  %v7720 = vadd.f32 %v7597, %v7706
  %v7721 = vadd.f32 %v7599, %v7706
  %v7722 = vadd.f32 %v7601, %v7706
  %v7723 = vadd.f32 %v7603, %v7706
  %v7724 = vadd.f32 %v7605, %v7706
  %v7725 = vadd.f32 %v7607, %v7706
  %v7726 = vadd.f32 %v7609, %v7706
  %v7727 = vadd.f32 %v7611, %v7706
  %v7728 = vadd.f32 %v7613, %v7706
  %v7729 = vadd.f32 %v7615, %v7706
  %v7730 = vadd.f32 %v7617, %v7706
  %v7731 = vadd.f32 %v7619, %v7706
  %v7732 = vadd.f32 %v7621, %v7706
  %v7733 = vadd.f32 %v7623, %v7706
  %v7734 = vadd.f32 %v7625, %v7706
  %v7735 = vadd.f32 %v7627, %v7706
  %v7736 = vadd.f32 %v7629, %v7706
  %v7737 = vadd.f32 %v7631, %v7706
  %v7738 = vadd.f32 %v7633, %v7706
  %v7739 = vadd.f32 %v7635, %v7706
  %v7740 = vadd.f32 %v7637, %v7706
  %v7741 = vadd.f32 %v7639, %v7706
  %v7742 = vadd.f32 %v7641, %v7706
  %v7743 = vadd.f32 %v7643, %v7706
  %v7744 = vadd.f32 %v7645, %v7706
  %v7745 = vadd.f32 %v7647, %v7706
  %v7746 = vadd.f32 %v7649, %v7706
  %v7747 = vadd.f32 %v7651, %v7706
  %v7748 = vadd.f32 %v7653, %v7706
  %v7749 = vadd.f32 %v7655, %v7706
  %v7750 = vadd.f32 %v7657, %v7706
  %v7751 = vadd.f32 %v7659, %v7706
  %v7752 = vadd.f32 %v7661, %v7706
  %v7753 = vadd.f32 %v7663, %v7706
  %v7754 = vadd.f32 %v7665, %v7706
  %v7755 = vadd.f32 %v7667, %v7706
  %v7756 = vadd.f32 %v7669, %v7706
  %v7757 = vadd.f32 %v7671, %v7706
  %v7758 = vadd.f32 %v7673, %v7706
  %v7759 = vadd.f32 %v7675, %v7706
  %v7760 = vadd.f32 %v7677, %v7706
  %v7761 = vadd.f32 %v7679, %v7706
  %v7762 = vadd.f32 %v7681, %v7706
  %v7763 = vadd.f32 %v7683, %v7706
  %v7764 = vadd.f32 %v7685, %v7706
  %v7765 = vadd.f32 %v7687, %v7706
  %v7766 = vadd.f32 %v7689, %v7706
  %v7767 = vadd.f32 %v7691, %v7706
  %v7768 = vadd.f32 %v7693, %v7706
  %v7769 = vadd.f32 %v7695, %v7706
  %v7770 = vadd.f32 %v7697, %v7706
  %v7771 = vadd.f32 %v7699, %v7706
  %v7772 = vmax.f32 %v7708, 0.0
  %v7773 = vmax.f32 %v7709, 0.0
  %v7774 = vmax.f32 %v7710, 0.0
  %v7775 = vmax.f32 %v7711, 0.0
  %v7776 = vmax.f32 %v7712, 0.0
  %v7777 = vmax.f32 %v7713, 0.0
  %v7778 = vmax.f32 %v7714, 0.0
  %v7779 = vmax.f32 %v7715, 0.0
  %v7780 = vmax.f32 %v7716, 0.0
  %v7781 = vmax.f32 %v7717, 0.0
  %v7782 = vmax.f32 %v7718, 0.0
  %v7783 = vmax.f32 %v7719, 0.0
  %v7784 = vmax.f32 %v7720, 0.0
  %v7785 = vmax.f32 %v7721, 0.0
  %v7786 = vmax.f32 %v7722, 0.0
  %v7787 = vmax.f32 %v7723, 0.0
  %v7788 = vmax.f32 %v7724, 0.0
  %v7789 = vmax.f32 %v7725, 0.0
  %v7790 = vmax.f32 %v7726, 0.0
  %v7791 = vmax.f32 %v7727, 0.0
  %v7792 = vmax.f32 %v7728, 0.0
  %v7793 = vmax.f32 %v7729, 0.0
  %v7794 = vmax.f32 %v7730, 0.0
  %v7795 = vmax.f32 %v7731, 0.0
  %v7796 = vmax.f32 %v7732, 0.0
  %v7797 = vmax.f32 %v7733, 0.0
  %v7798 = vmax.f32 %v7734, 0.0
  %v7799 = vmax.f32 %v7735, 0.0
  %v7800 = vmax.f32 %v7736, 0.0
  %v7801 = vmax.f32 %v7737, 0.0
  %v7802 = vmax.f32 %v7738, 0.0
  %v7803 = vmax.f32 %v7739, 0.0
  %v7804 = vmax.f32 %v7740, 0.0
  %v7805 = vmax.f32 %v7741, 0.0
  %v7806 = vmax.f32 %v7742, 0.0
  %v7807 = vmax.f32 %v7743, 0.0
  %v7808 = vmax.f32 %v7744, 0.0
  %v7809 = vmax.f32 %v7745, 0.0
  %v7810 = vmax.f32 %v7746, 0.0
  %v7811 = vmax.f32 %v7747, 0.0
  %v7812 = vmax.f32 %v7748, 0.0
  %v7813 = vmax.f32 %v7749, 0.0
  %v7814 = vmax.f32 %v7750, 0.0
  %v7815 = vmax.f32 %v7751, 0.0
  %v7816 = vmax.f32 %v7752, 0.0
  %v7817 = vmax.f32 %v7753, 0.0
  %v7818 = vmax.f32 %v7754, 0.0
  %v7819 = vmax.f32 %v7755, 0.0
  %v7820 = vmax.f32 %v7756, 0.0
  %v7821 = vmax.f32 %v7757, 0.0
  %v7822 = vmax.f32 %v7758, 0.0
  %v7823 = vmax.f32 %v7759, 0.0
  %v7824 = vmax.f32 %v7760, 0.0
  %v7825 = vmax.f32 %v7761, 0.0
  %v7826 = vmax.f32 %v7762, 0.0
  %v7827 = vmax.f32 %v7763, 0.0
  %v7828 = vmax.f32 %v7764, 0.0
  %v7829 = vmax.f32 %v7765, 0.0
  %v7830 = vmax.f32 %v7766, 0.0
  %v7831 = vmax.f32 %v7767, 0.0
  %v7832 = vmax.f32 %v7768, 0.0
  %v7833 = vmax.f32 %v7769, 0.0
  %v7834 = vmax.f32 %v7770, 0.0
  %v7835 = vmax.f32 %v7771, 0.0
  %v7836 = vld [vmem:[%s5] sm:$0x1]
  %v7838 = vlaneseq
  %v7839 = vshrl.u32 %v7838, 7
  %v7840 = vsub.s32 0, %v7839
  %v7841 = vrot.slane %v7836, %v7840
  %v7843 = vadd.f32 %v7574, %v7841
  %v7844 = vadd.f32 %v7576, %v7841
  %v7845 = vadd.f32 %v7578, %v7841
  %v7846 = vadd.f32 %v7580, %v7841
  %v7847 = vadd.f32 %v7582, %v7841
  %v7848 = vadd.f32 %v7584, %v7841
  %v7849 = vadd.f32 %v7586, %v7841
  %v7850 = vadd.f32 %v7588, %v7841
  %v7851 = vadd.f32 %v7590, %v7841
  %v7852 = vadd.f32 %v7592, %v7841
  %v7853 = vadd.f32 %v7594, %v7841
  %v7854 = vadd.f32 %v7596, %v7841
  %v7855 = vadd.f32 %v7598, %v7841
  %v7856 = vadd.f32 %v7600, %v7841
  %v7857 = vadd.f32 %v7602, %v7841
  %v7858 = vadd.f32 %v7604, %v7841
  %v7859 = vadd.f32 %v7606, %v7841
  %v7860 = vadd.f32 %v7608, %v7841
  %v7861 = vadd.f32 %v7610, %v7841
  %v7862 = vadd.f32 %v7612, %v7841
  %v7863 = vadd.f32 %v7614, %v7841
  %v7864 = vadd.f32 %v7616, %v7841
  %v7865 = vadd.f32 %v7618, %v7841
  %v7866 = vadd.f32 %v7620, %v7841
  %v7867 = vadd.f32 %v7622, %v7841
  %v7868 = vadd.f32 %v7624, %v7841
  %v7869 = vadd.f32 %v7626, %v7841
  %v7870 = vadd.f32 %v7628, %v7841
  %v7871 = vadd.f32 %v7630, %v7841
  %v7872 = vadd.f32 %v7632, %v7841
  %v7873 = vadd.f32 %v7634, %v7841
  %v7874 = vadd.f32 %v7636, %v7841
  %v7875 = vadd.f32 %v7638, %v7841
  %v7876 = vadd.f32 %v7640, %v7841
  %v7877 = vadd.f32 %v7642, %v7841
  %v7878 = vadd.f32 %v7644, %v7841
  %v7879 = vadd.f32 %v7646, %v7841
  %v7880 = vadd.f32 %v7648, %v7841
  %v7881 = vadd.f32 %v7650, %v7841
  %v7882 = vadd.f32 %v7652, %v7841
  %v7883 = vadd.f32 %v7654, %v7841
  %v7884 = vadd.f32 %v7656, %v7841
  %v7885 = vadd.f32 %v7658, %v7841
  %v7886 = vadd.f32 %v7660, %v7841
  %v7887 = vadd.f32 %v7662, %v7841
  %v7888 = vadd.f32 %v7664, %v7841
  %v7889 = vadd.f32 %v7666, %v7841
  %v7890 = vadd.f32 %v7668, %v7841
  %v7891 = vadd.f32 %v7670, %v7841
  %v7892 = vadd.f32 %v7672, %v7841
  %v7893 = vadd.f32 %v7674, %v7841
  %v7894 = vadd.f32 %v7676, %v7841
  %v7895 = vadd.f32 %v7678, %v7841
  %v7896 = vadd.f32 %v7680, %v7841
  %v7897 = vadd.f32 %v7682, %v7841
  %v7898 = vadd.f32 %v7684, %v7841
  %v7899 = vadd.f32 %v7686, %v7841
  %v7900 = vadd.f32 %v7688, %v7841
  %v7901 = vadd.f32 %v7690, %v7841
  %v7902 = vadd.f32 %v7692, %v7841
  %v7903 = vadd.f32 %v7694, %v7841
  %v7904 = vadd.f32 %v7696, %v7841
  %v7905 = vadd.f32 %v7698, %v7841
  %v7906 = vadd.f32 %v7700, %v7841
  %v7907 = vpack.c.bf16 %v7773, %v7772
  %v7908 = vpack.c.bf16 %v7775, %v7774
  %v7909 = vpack.c.bf16 %v7777, %v7776
  %v7910 = vpack.c.bf16 %v7779, %v7778
  %v7911 = vpack.c.bf16 %v7781, %v7780
  %v7912 = vpack.c.bf16 %v7783, %v7782
  %v7913 = vpack.c.bf16 %v7785, %v7784
  %v7914 = vpack.c.bf16 %v7787, %v7786
  %v7915 = vpack.c.bf16 %v7789, %v7788
  %v7916 = vpack.c.bf16 %v7791, %v7790
  %v7917 = vpack.c.bf16 %v7793, %v7792
  %v7918 = vpack.c.bf16 %v7795, %v7794
  %v7919 = vpack.c.bf16 %v7797, %v7796
  %v7920 = vpack.c.bf16 %v7799, %v7798
  %v7921 = vpack.c.bf16 %v7801, %v7800
  %v7922 = vpack.c.bf16 %v7803, %v7802
  %v7923 = vpack.c.bf16 %v7805, %v7804
  %v7924 = vpack.c.bf16 %v7807, %v7806
  %v7925 = vpack.c.bf16 %v7809, %v7808
  %v7926 = vpack.c.bf16 %v7811, %v7810
  %v7927 = vpack.c.bf16 %v7813, %v7812
  %v7928 = vpack.c.bf16 %v7815, %v7814
  %v7929 = vpack.c.bf16 %v7817, %v7816
  %v7930 = vpack.c.bf16 %v7819, %v7818
  %v7931 = vpack.c.bf16 %v7821, %v7820
  %v7932 = vpack.c.bf16 %v7823, %v7822
  %v7933 = vpack.c.bf16 %v7825, %v7824
  %v7934 = vpack.c.bf16 %v7827, %v7826
  %v7935 = vpack.c.bf16 %v7829, %v7828
  %v7936 = vpack.c.bf16 %v7831, %v7830
  %v7937 = vpack.c.bf16 %v7833, %v7832
  %v7938 = vpack.c.bf16 %v7835, %v7834
  %v7971 = vunpack.c.l.b16 %v7907
  %v7972 = vunpack.c.h.b16 %v7907
  %v7973 = vunpack.c.l.b16 %v7908
  %v7974 = vunpack.c.h.b16 %v7908
  %v7975 = vunpack.c.l.b16 %v7909
  %v7976 = vunpack.c.h.b16 %v7909
  %v7977 = vunpack.c.l.b16 %v7910
  %v7978 = vunpack.c.h.b16 %v7910
  %v7979 = vunpack.c.l.b16 %v7911
  %v7980 = vunpack.c.h.b16 %v7911
  %v7981 = vunpack.c.l.b16 %v7912
  %v7982 = vunpack.c.h.b16 %v7912
  %v7983 = vunpack.c.l.b16 %v7913
  %v7984 = vunpack.c.h.b16 %v7913
  %v7985 = vunpack.c.l.b16 %v7914
  %v7986 = vunpack.c.h.b16 %v7914
  %v7987 = vunpack.c.l.b16 %v7915
  %v7988 = vunpack.c.h.b16 %v7915
  %v7989 = vunpack.c.l.b16 %v7916
  %v7990 = vunpack.c.h.b16 %v7916
  %v7991 = vunpack.c.l.b16 %v7917
  %v7992 = vunpack.c.h.b16 %v7917
  %v7993 = vunpack.c.l.b16 %v7918
  %v7994 = vunpack.c.h.b16 %v7918
  %v7995 = vunpack.c.l.b16 %v7919
  %v7996 = vunpack.c.h.b16 %v7919
  %v7997 = vunpack.c.l.b16 %v7920
  %v7998 = vunpack.c.h.b16 %v7920
  %v7999 = vunpack.c.l.b16 %v7921
  %v8000 = vunpack.c.h.b16 %v7921
  %v8001 = vunpack.c.l.b16 %v7922
  %v8002 = vunpack.c.h.b16 %v7922
  %v8003 = vunpack.c.l.b16 %v7923
  %v8004 = vunpack.c.h.b16 %v7923
  %v8005 = vunpack.c.l.b16 %v7924
  %v8006 = vunpack.c.h.b16 %v7924
  %v8007 = vunpack.c.l.b16 %v7925
  %v8008 = vunpack.c.h.b16 %v7925
  %v8009 = vunpack.c.l.b16 %v7926
  %v8010 = vunpack.c.h.b16 %v7926
  %v8011 = vunpack.c.l.b16 %v7927
  %v8012 = vunpack.c.h.b16 %v7927
  %v8013 = vunpack.c.l.b16 %v7928
  %v8014 = vunpack.c.h.b16 %v7928
  %v8015 = vunpack.c.l.b16 %v7929
  %v8016 = vunpack.c.h.b16 %v7929
  %v8017 = vunpack.c.l.b16 %v7930
  %v8018 = vunpack.c.h.b16 %v7930
  %v8019 = vunpack.c.l.b16 %v7931
  %v8020 = vunpack.c.h.b16 %v7931
  %v8021 = vunpack.c.l.b16 %v7932
  %v8022 = vunpack.c.h.b16 %v7932
  %v8023 = vunpack.c.l.b16 %v7933
  %v8024 = vunpack.c.h.b16 %v7933
  %v8025 = vunpack.c.l.b16 %v7934
  %v8026 = vunpack.c.h.b16 %v7934
  %v8027 = vunpack.c.l.b16 %v7935
  %v8028 = vunpack.c.h.b16 %v7935
  %v8029 = vunpack.c.l.b16 %v7936
  %v8030 = vunpack.c.h.b16 %v7936
  %v8031 = vunpack.c.l.b16 %v7937
  %v8032 = vunpack.c.h.b16 %v7937
  %v8033 = vunpack.c.l.b16 %v7938
  %v8034 = vunpack.c.h.b16 %v7938
  %v8035 = vpack.c.b16 %v7971, %v7971
  %v8036 = vpack.c.b16 %v7972, %v7972
  %v8037 = vpack.c.b16 %v7973, %v7973
  %v8038 = vpack.c.b16 %v7974, %v7974
  %v8039 = vpack.c.b16 %v7975, %v7975
  %v8040 = vpack.c.b16 %v7976, %v7976
  %v8041 = vpack.c.b16 %v7977, %v7977
  %v8042 = vpack.c.b16 %v7978, %v7978
  %v8043 = vpack.c.b16 %v7979, %v7979
  %v8044 = vpack.c.b16 %v7980, %v7980
  %v8045 = vpack.c.b16 %v7981, %v7981
  %v8046 = vpack.c.b16 %v7982, %v7982
  %v8047 = vpack.c.b16 %v7983, %v7983
  %v8048 = vpack.c.b16 %v7984, %v7984
  %v8049 = vpack.c.b16 %v7985, %v7985
  %v8050 = vpack.c.b16 %v7986, %v7986
  %v8051 = vpack.c.b16 %v7987, %v7987
  %v8052 = vpack.c.b16 %v7988, %v7988
  %v8053 = vpack.c.b16 %v7989, %v7989
  %v8054 = vpack.c.b16 %v7990, %v7990
  %v8055 = vpack.c.b16 %v7991, %v7991
  %v8056 = vpack.c.b16 %v7992, %v7992
  %v8057 = vpack.c.b16 %v7993, %v7993
  %v8058 = vpack.c.b16 %v7994, %v7994
  %v8059 = vpack.c.b16 %v7995, %v7995
  %v8060 = vpack.c.b16 %v7996, %v7996
  %v8061 = vpack.c.b16 %v7997, %v7997
  %v8062 = vpack.c.b16 %v7998, %v7998
  %v8063 = vpack.c.b16 %v7999, %v7999
  %v8064 = vpack.c.b16 %v8000, %v8000
  %v8065 = vpack.c.b16 %v8001, %v8001
  %v8066 = vpack.c.b16 %v8002, %v8002
  %v8067 = vpack.c.b16 %v8003, %v8003
  %v8068 = vpack.c.b16 %v8004, %v8004
  %v8069 = vpack.c.b16 %v8005, %v8005
  %v8070 = vpack.c.b16 %v8006, %v8006
  %v8071 = vpack.c.b16 %v8007, %v8007
  %v8072 = vpack.c.b16 %v8008, %v8008
  %v8073 = vpack.c.b16 %v8009, %v8009
  %v8074 = vpack.c.b16 %v8010, %v8010
  %v8075 = vpack.c.b16 %v8011, %v8011
  %v8076 = vpack.c.b16 %v8012, %v8012
  %v8077 = vpack.c.b16 %v8013, %v8013
  %v8078 = vpack.c.b16 %v8014, %v8014
  %v8079 = vpack.c.b16 %v8015, %v8015
  %v8080 = vpack.c.b16 %v8016, %v8016
  %v8081 = vpack.c.b16 %v8017, %v8017
  %v8082 = vpack.c.b16 %v8018, %v8018
  %v8083 = vpack.c.b16 %v8019, %v8019
  %v8084 = vpack.c.b16 %v8020, %v8020
  %v8085 = vpack.c.b16 %v8021, %v8021
  %v8086 = vpack.c.b16 %v8022, %v8022
  %v8087 = vpack.c.b16 %v8023, %v8023
  %v8088 = vpack.c.b16 %v8024, %v8024
  %v8089 = vpack.c.b16 %v8025, %v8025
  %v8090 = vpack.c.b16 %v8026, %v8026
  %v8091 = vpack.c.b16 %v8027, %v8027
  %v8092 = vpack.c.b16 %v8028, %v8028
  %v8093 = vpack.c.b16 %v8029, %v8029
  %v8094 = vpack.c.b16 %v8030, %v8030
  %v8095 = vpack.c.b16 %v8031, %v8031
  %v8096 = vpack.c.b16 %v8032, %v8032
  %v8097 = vpack.c.b16 %v8033, %v8033
  %v8098 = vpack.c.b16 %v8034, %v8034
  %v8100 = vshrl.u32 %v8035, 16
  %v8102 = vrot.slane %v8100, 7
  %v8103 = vshll.u32 %v8035, 16
  %v8105 = vor.u32 %v8102, %v8103
  %v8106 = vrot.slane %v8102, 4
  %v8108 = vshrl.u32 %v8036, 16
  %v8110 = vrot.slane %v8108, 7
  %v8111 = vshll.u32 %v8036, 16
  %v8113 = vor.u32 %v8110, %v8111
  %v8114 = vsel %vm552, %v8106, %v8113
  %v8115 = vrot.slane %v8110, 4
  %v8117 = vshrl.u32 %v8037, 16
  %v8119 = vrot.slane %v8117, 7
  %v8120 = vshll.u32 %v8037, 16
  %v8122 = vor.u32 %v8119, %v8120
  %v8123 = vrot.slane %v8119, 4
  %v8125 = vshrl.u32 %v8038, 16
  %v8127 = vrot.slane %v8125, 7
  %v8128 = vshll.u32 %v8038, 16
  %v8130 = vor.u32 %v8127, %v8128
  %v8131 = vsel %vm552, %v8123, %v8130
  %v8132 = vrot.slane %v8127, 4
  %v8134 = vshrl.u32 %v8039, 16
  %v8136 = vrot.slane %v8134, 7
  %v8137 = vshll.u32 %v8039, 16
  %v8139 = vor.u32 %v8136, %v8137
  %v8140 = vrot.slane %v8136, 4
  %v8142 = vshrl.u32 %v8040, 16
  %v8144 = vrot.slane %v8142, 7
  %v8145 = vshll.u32 %v8040, 16
  %v8147 = vor.u32 %v8144, %v8145
  %v8148 = vsel %vm552, %v8140, %v8147
  %v8149 = vrot.slane %v8144, 4
  %v8151 = vshrl.u32 %v8041, 16
  %v8153 = vrot.slane %v8151, 7
  %v8154 = vshll.u32 %v8041, 16
  %v8156 = vor.u32 %v8153, %v8154
  %v8157 = vrot.slane %v8153, 4
  %v8159 = vshrl.u32 %v8042, 16
  %v8161 = vrot.slane %v8159, 7
  %v8162 = vshll.u32 %v8042, 16
  %v8164 = vor.u32 %v8161, %v8162
  %v8165 = vsel %vm552, %v8157, %v8164
  %v8166 = vrot.slane %v8161, 4
  %v8168 = vshrl.u32 %v8043, 16
  %v8170 = vrot.slane %v8168, 7
  %v8171 = vshll.u32 %v8043, 16
  %v8173 = vor.u32 %v8170, %v8171
  %v8174 = vrot.slane %v8170, 4
  %v8176 = vshrl.u32 %v8044, 16
  %v8178 = vrot.slane %v8176, 7
  %v8179 = vshll.u32 %v8044, 16
  %v8181 = vor.u32 %v8178, %v8179
  %v8182 = vsel %vm552, %v8174, %v8181
  %v8183 = vrot.slane %v8178, 4
  %v8185 = vshrl.u32 %v8045, 16
  %v8187 = vrot.slane %v8185, 7
  %v8188 = vshll.u32 %v8045, 16
  %v8190 = vor.u32 %v8187, %v8188
  %v8191 = vrot.slane %v8187, 4
  %v8193 = vshrl.u32 %v8046, 16
  %v8195 = vrot.slane %v8193, 7
  %v8196 = vshll.u32 %v8046, 16
  %v8198 = vor.u32 %v8195, %v8196
  %v8199 = vsel %vm552, %v8191, %v8198
  %v8200 = vrot.slane %v8195, 4
  %v8202 = vshrl.u32 %v8047, 16
  %v8204 = vrot.slane %v8202, 7
  %v8205 = vshll.u32 %v8047, 16
  %v8207 = vor.u32 %v8204, %v8205
  %v8208 = vrot.slane %v8204, 4
  %v8210 = vshrl.u32 %v8048, 16
  %v8212 = vrot.slane %v8210, 7
  %v8213 = vshll.u32 %v8048, 16
  %v8215 = vor.u32 %v8212, %v8213
  %v8216 = vsel %vm552, %v8208, %v8215
  %v8217 = vrot.slane %v8212, 4
  %v8219 = vshrl.u32 %v8049, 16
  %v8221 = vrot.slane %v8219, 7
  %v8222 = vshll.u32 %v8049, 16
  %v8224 = vor.u32 %v8221, %v8222
  %v8225 = vrot.slane %v8221, 4
  %v8227 = vshrl.u32 %v8050, 16
  %v8229 = vrot.slane %v8227, 7
  %v8230 = vshll.u32 %v8050, 16
  %v8232 = vor.u32 %v8229, %v8230
  %v8233 = vsel %vm552, %v8225, %v8232
  %v8234 = vrot.slane %v8229, 4
  %v8236 = vshrl.u32 %v8051, 16
  %v8238 = vrot.slane %v8236, 7
  %v8239 = vshll.u32 %v8051, 16
  %v8241 = vor.u32 %v8238, %v8239
  %v8242 = vrot.slane %v8238, 4
  %v8244 = vshrl.u32 %v8052, 16
  %v8246 = vrot.slane %v8244, 7
  %v8247 = vshll.u32 %v8052, 16
  %v8249 = vor.u32 %v8246, %v8247
  %v8250 = vsel %vm552, %v8242, %v8249
  %v8251 = vrot.slane %v8246, 4
  %v8253 = vshrl.u32 %v8053, 16
  %v8255 = vrot.slane %v8253, 7
  %v8256 = vshll.u32 %v8053, 16
  %v8258 = vor.u32 %v8255, %v8256
  %v8259 = vrot.slane %v8255, 4
  %v8261 = vshrl.u32 %v8054, 16
  %v8263 = vrot.slane %v8261, 7
  %v8264 = vshll.u32 %v8054, 16
  %v8266 = vor.u32 %v8263, %v8264
  %v8267 = vsel %vm552, %v8259, %v8266
  %v8268 = vrot.slane %v8263, 4
  %v8270 = vshrl.u32 %v8055, 16
  %v8272 = vrot.slane %v8270, 7
  %v8273 = vshll.u32 %v8055, 16
  %v8275 = vor.u32 %v8272, %v8273
  %v8276 = vrot.slane %v8272, 4
  %v8278 = vshrl.u32 %v8056, 16
  %v8280 = vrot.slane %v8278, 7
  %v8281 = vshll.u32 %v8056, 16
  %v8283 = vor.u32 %v8280, %v8281
  %v8284 = vsel %vm552, %v8276, %v8283
  %v8285 = vrot.slane %v8280, 4
  %v8287 = vshrl.u32 %v8057, 16
  %v8289 = vrot.slane %v8287, 7
  %v8290 = vshll.u32 %v8057, 16
  %v8292 = vor.u32 %v8289, %v8290
  %v8293 = vrot.slane %v8289, 4
  %v8295 = vshrl.u32 %v8058, 16
  %v8297 = vrot.slane %v8295, 7
  %v8298 = vshll.u32 %v8058, 16
  %v8300 = vor.u32 %v8297, %v8298
  %v8301 = vsel %vm552, %v8293, %v8300
  %v8302 = vrot.slane %v8297, 4
  %v8304 = vshrl.u32 %v8059, 16
  %v8306 = vrot.slane %v8304, 7
  %v8307 = vshll.u32 %v8059, 16
  %v8309 = vor.u32 %v8306, %v8307
  %v8310 = vrot.slane %v8306, 4
  %v8312 = vshrl.u32 %v8060, 16
  %v8314 = vrot.slane %v8312, 7
  %v8315 = vshll.u32 %v8060, 16
  %v8317 = vor.u32 %v8314, %v8315
  %v8318 = vsel %vm552, %v8310, %v8317
  %v8319 = vrot.slane %v8314, 4
  %v8321 = vshrl.u32 %v8061, 16
  %v8323 = vrot.slane %v8321, 7
  %v8324 = vshll.u32 %v8061, 16
  %v8326 = vor.u32 %v8323, %v8324
  %v8327 = vrot.slane %v8323, 4
  %v8329 = vshrl.u32 %v8062, 16
  %v8331 = vrot.slane %v8329, 7
  %v8332 = vshll.u32 %v8062, 16
  %v8334 = vor.u32 %v8331, %v8332
  %v8335 = vsel %vm552, %v8327, %v8334
  %v8336 = vrot.slane %v8331, 4
  %v8338 = vshrl.u32 %v8063, 16
  %v8340 = vrot.slane %v8338, 7
  %v8341 = vshll.u32 %v8063, 16
  %v8343 = vor.u32 %v8340, %v8341
  %v8344 = vrot.slane %v8340, 4
  %v8346 = vshrl.u32 %v8064, 16
  %v8348 = vrot.slane %v8346, 7
  %v8349 = vshll.u32 %v8064, 16
  %v8351 = vor.u32 %v8348, %v8349
  %v8352 = vsel %vm552, %v8344, %v8351
  %v8353 = vrot.slane %v8348, 4
  %v8355 = vshrl.u32 %v8065, 16
  %v8357 = vrot.slane %v8355, 7
  %v8358 = vshll.u32 %v8065, 16
  %v8360 = vor.u32 %v8357, %v8358
  %v8361 = vrot.slane %v8357, 4
  %v8363 = vshrl.u32 %v8066, 16
  %v8365 = vrot.slane %v8363, 7
  %v8366 = vshll.u32 %v8066, 16
  %v8368 = vor.u32 %v8365, %v8366
  %v8369 = vsel %vm552, %v8361, %v8368
  %v8370 = vrot.slane %v8365, 4
  %v8372 = vshrl.u32 %v8067, 16
  %v8374 = vrot.slane %v8372, 7
  %v8375 = vshll.u32 %v8067, 16
  %v8377 = vor.u32 %v8374, %v8375
  %v8378 = vrot.slane %v8374, 4
  %v8380 = vshrl.u32 %v8068, 16
  %v8382 = vrot.slane %v8380, 7
  %v8383 = vshll.u32 %v8068, 16
  %v8385 = vor.u32 %v8382, %v8383
  %v8386 = vsel %vm552, %v8378, %v8385
  %v8387 = vrot.slane %v8382, 4
  %v8389 = vshrl.u32 %v8069, 16
  %v8391 = vrot.slane %v8389, 7
  %v8392 = vshll.u32 %v8069, 16
  %v8394 = vor.u32 %v8391, %v8392
  %v8395 = vrot.slane %v8391, 4
  %v8397 = vshrl.u32 %v8070, 16
  %v8399 = vrot.slane %v8397, 7
  %v8400 = vshll.u32 %v8070, 16
  %v8402 = vor.u32 %v8399, %v8400
  %v8403 = vsel %vm552, %v8395, %v8402
  %v8404 = vrot.slane %v8399, 4
  %v8406 = vshrl.u32 %v8071, 16
  %v8408 = vrot.slane %v8406, 7
  %v8409 = vshll.u32 %v8071, 16
  %v8411 = vor.u32 %v8408, %v8409
  %v8412 = vrot.slane %v8408, 4
  %v8414 = vshrl.u32 %v8072, 16
  %v8416 = vrot.slane %v8414, 7
  %v8417 = vshll.u32 %v8072, 16
  %v8419 = vor.u32 %v8416, %v8417
  %v8420 = vsel %vm552, %v8412, %v8419
  %v8421 = vrot.slane %v8416, 4
  %v8423 = vshrl.u32 %v8073, 16
  %v8425 = vrot.slane %v8423, 7
  %v8426 = vshll.u32 %v8073, 16
  %v8428 = vor.u32 %v8425, %v8426
  %v8429 = vrot.slane %v8425, 4
  %v8431 = vshrl.u32 %v8074, 16
  %v8433 = vrot.slane %v8431, 7
  %v8434 = vshll.u32 %v8074, 16
  %v8436 = vor.u32 %v8433, %v8434
  %v8437 = vsel %vm552, %v8429, %v8436
  %v8438 = vrot.slane %v8433, 4
  %v8440 = vshrl.u32 %v8075, 16
  %v8442 = vrot.slane %v8440, 7
  %v8443 = vshll.u32 %v8075, 16
  %v8445 = vor.u32 %v8442, %v8443
  %v8446 = vrot.slane %v8442, 4
  %v8448 = vshrl.u32 %v8076, 16
  %v8450 = vrot.slane %v8448, 7
  %v8451 = vshll.u32 %v8076, 16
  %v8453 = vor.u32 %v8450, %v8451
  %v8454 = vsel %vm552, %v8446, %v8453
  %v8455 = vrot.slane %v8450, 4
  %v8457 = vshrl.u32 %v8077, 16
  %v8459 = vrot.slane %v8457, 7
  %v8460 = vshll.u32 %v8077, 16
  %v8462 = vor.u32 %v8459, %v8460
  %v8463 = vrot.slane %v8459, 4
  %v8465 = vshrl.u32 %v8078, 16
  %v8467 = vrot.slane %v8465, 7
  %v8468 = vshll.u32 %v8078, 16
  %v8470 = vor.u32 %v8467, %v8468
  %v8471 = vsel %vm552, %v8463, %v8470
  %v8472 = vrot.slane %v8467, 4
  %v8474 = vshrl.u32 %v8079, 16
  %v8476 = vrot.slane %v8474, 7
  %v8477 = vshll.u32 %v8079, 16
  %v8479 = vor.u32 %v8476, %v8477
  %v8480 = vrot.slane %v8476, 4
  %v8482 = vshrl.u32 %v8080, 16
  %v8484 = vrot.slane %v8482, 7
  %v8485 = vshll.u32 %v8080, 16
  %v8487 = vor.u32 %v8484, %v8485
  %v8488 = vsel %vm552, %v8480, %v8487
  %v8489 = vrot.slane %v8484, 4
  %v8491 = vshrl.u32 %v8081, 16
  %v8493 = vrot.slane %v8491, 7
  %v8494 = vshll.u32 %v8081, 16
  %v8496 = vor.u32 %v8493, %v8494
  %v8497 = vrot.slane %v8493, 4
  %v8499 = vshrl.u32 %v8082, 16
  %v8501 = vrot.slane %v8499, 7
  %v8502 = vshll.u32 %v8082, 16
  %v8504 = vor.u32 %v8501, %v8502
  %v8505 = vsel %vm552, %v8497, %v8504
  %v8506 = vrot.slane %v8501, 4
  %v8508 = vshrl.u32 %v8083, 16
  %v8510 = vrot.slane %v8508, 7
  %v8511 = vshll.u32 %v8083, 16
  %v8513 = vor.u32 %v8510, %v8511
  %v8514 = vrot.slane %v8510, 4
  %v8516 = vshrl.u32 %v8084, 16
  %v8518 = vrot.slane %v8516, 7
  %v8519 = vshll.u32 %v8084, 16
  %v8521 = vor.u32 %v8518, %v8519
  %v8522 = vsel %vm552, %v8514, %v8521
  %v8523 = vrot.slane %v8518, 4
  %v8525 = vshrl.u32 %v8085, 16
  %v8527 = vrot.slane %v8525, 7
  %v8528 = vshll.u32 %v8085, 16
  %v8530 = vor.u32 %v8527, %v8528
  %v8531 = vrot.slane %v8527, 4
  %v8533 = vshrl.u32 %v8086, 16
  %v8535 = vrot.slane %v8533, 7
  %v8536 = vshll.u32 %v8086, 16
  %v8538 = vor.u32 %v8535, %v8536
  %v8539 = vsel %vm552, %v8531, %v8538
  %v8540 = vrot.slane %v8535, 4
  %v8542 = vshrl.u32 %v8087, 16
  %v8544 = vrot.slane %v8542, 7
  %v8545 = vshll.u32 %v8087, 16
  %v8547 = vor.u32 %v8544, %v8545
  %v8548 = vrot.slane %v8544, 4
  %v8550 = vshrl.u32 %v8088, 16
  %v8552 = vrot.slane %v8550, 7
  %v8553 = vshll.u32 %v8088, 16
  %v8555 = vor.u32 %v8552, %v8553
  %v8556 = vsel %vm552, %v8548, %v8555
  %v8557 = vrot.slane %v8552, 4
  %v8559 = vshrl.u32 %v8089, 16
  %v8561 = vrot.slane %v8559, 7
  %v8562 = vshll.u32 %v8089, 16
  %v8564 = vor.u32 %v8561, %v8562
  %v8565 = vrot.slane %v8561, 4
  %v8567 = vshrl.u32 %v8090, 16
  %v8569 = vrot.slane %v8567, 7
  %v8570 = vshll.u32 %v8090, 16
  %v8572 = vor.u32 %v8569, %v8570
  %v8573 = vsel %vm552, %v8565, %v8572
  %v8574 = vrot.slane %v8569, 4
  %v8576 = vshrl.u32 %v8091, 16
  %v8578 = vrot.slane %v8576, 7
  %v8579 = vshll.u32 %v8091, 16
  %v8581 = vor.u32 %v8578, %v8579
  %v8582 = vrot.slane %v8578, 4
  %v8584 = vshrl.u32 %v8092, 16
  %v8586 = vrot.slane %v8584, 7
  %v8587 = vshll.u32 %v8092, 16
  %v8589 = vor.u32 %v8586, %v8587
  %v8590 = vsel %vm552, %v8582, %v8589
  %v8591 = vrot.slane %v8586, 4
  %v8593 = vshrl.u32 %v8093, 16
  %v8595 = vrot.slane %v8593, 7
  %v8596 = vshll.u32 %v8093, 16
  %v8598 = vor.u32 %v8595, %v8596
  %v8599 = vrot.slane %v8595, 4
  %v8601 = vshrl.u32 %v8094, 16
  %v8603 = vrot.slane %v8601, 7
  %v8604 = vshll.u32 %v8094, 16
  %v8606 = vor.u32 %v8603, %v8604
  %v8607 = vsel %vm552, %v8599, %v8606
  %v8608 = vrot.slane %v8603, 4
  %v8610 = vshrl.u32 %v8095, 16
  %v8612 = vrot.slane %v8610, 7
  %v8613 = vshll.u32 %v8095, 16
  %v8615 = vor.u32 %v8612, %v8613
  %v8616 = vrot.slane %v8612, 4
  %v8618 = vshrl.u32 %v8096, 16
  %v8620 = vrot.slane %v8618, 7
  %v8621 = vshll.u32 %v8096, 16
  %v8623 = vor.u32 %v8620, %v8621
  %v8624 = vsel %vm552, %v8616, %v8623
  %v8625 = vrot.slane %v8620, 4
  %v8627 = vshrl.u32 %v8097, 16
  %v8629 = vrot.slane %v8627, 7
  %v8630 = vshll.u32 %v8097, 16
  %v8632 = vor.u32 %v8629, %v8630
  %v8633 = vrot.slane %v8629, 4
  %v8635 = vshrl.u32 %v8098, 16
  %v8637 = vrot.slane %v8635, 7
  %v8638 = vshll.u32 %v8098, 16
  %v8640 = vor.u32 %v8637, %v8638
  %v8641 = vsel %vm552, %v8633, %v8640
  %v8642 = vrot.slane %v8637, 4
  %s8739 = scalar_lea.vmem [#allocation3], 12
  %v8740 = vld [vmem:[%s8739] sm:$0xf]
  %v8741 = vsel %vm1195, %v8105, %v8740
  %8742 = vst [vmem:[%s8739] sm:$0xf] %v8741
  %8743 = vst [vmem:[%s8739 + $0x4] sm:$0xf] %v8114
  %v8744 = vld [vmem:[%s8739 + $0x8] sm:$0x1]
  %v8745 = vsel %vm39, %v8115, %v8744
  %8746 = vst [vmem:[%s8739 + $0x8] sm:$0x1] %v8745
  %v8747 = vld [vmem:[%s8739 + $0xc] sm:$0xf]
  %v8748 = vsel %vm1195, %v8122, %v8747
  %8749 = vst [vmem:[%s8739 + $0xc] sm:$0xf] %v8748
  %8750 = vst [vmem:[%s8739 + $0x10] sm:$0xf] %v8131
  %v8751 = vld [vmem:[%s8739 + $0x14] sm:$0x1]
  %v8752 = vsel %vm39, %v8132, %v8751
  %8753 = vst [vmem:[%s8739 + $0x14] sm:$0x1] %v8752
  %v8754 = vld [vmem:[%s8739 + $0x18] sm:$0xf]
  %v8755 = vsel %vm1195, %v8139, %v8754
  %8756 = vst [vmem:[%s8739 + $0x18] sm:$0xf] %v8755
  %8757 = vst [vmem:[%s8739 + $0x1c] sm:$0xf] %v8148
  %v8758 = vld [vmem:[%s8739 + $0x20] sm:$0x1]
  %v8759 = vsel %vm39, %v8149, %v8758
  %8760 = vst [vmem:[%s8739 + $0x20] sm:$0x1] %v8759
  %v8761 = vld [vmem:[%s8739 + $0x24] sm:$0xf]
  %v8762 = vsel %vm1195, %v8156, %v8761
  %8763 = vst [vmem:[%s8739 + $0x24] sm:$0xf] %v8762
  %8764 = vst [vmem:[%s8739 + $0x28] sm:$0xf] %v8165
  %v8765 = vld [vmem:[%s8739 + $0x2c] sm:$0x1]
  %v8766 = vsel %vm39, %v8166, %v8765
  %8767 = vst [vmem:[%s8739 + $0x2c] sm:$0x1] %v8766
  %v8768 = vld [vmem:[%s8739 + $0x30] sm:$0xf]
  %v8769 = vsel %vm1195, %v8173, %v8768
  %8770 = vst [vmem:[%s8739 + $0x30] sm:$0xf] %v8769
  %8771 = vst [vmem:[%s8739 + $0x34] sm:$0xf] %v8182
  %v8772 = vld [vmem:[%s8739 + $0x38] sm:$0x1]
  %v8773 = vsel %vm39, %v8183, %v8772
  %8774 = vst [vmem:[%s8739 + $0x38] sm:$0x1] %v8773
  %v8775 = vld [vmem:[%s8739 + $0x3c] sm:$0xf]
  %v8776 = vsel %vm1195, %v8190, %v8775
  %8777 = vst [vmem:[%s8739 + $0x3c] sm:$0xf] %v8776
  %8778 = vst [vmem:[%s8739 + $0x40] sm:$0xf] %v8199
  %v8779 = vld [vmem:[%s8739 + $0x44] sm:$0x1]
  %v8780 = vsel %vm39, %v8200, %v8779
  %8781 = vst [vmem:[%s8739 + $0x44] sm:$0x1] %v8780
  %v8782 = vld [vmem:[%s8739 + $0x48] sm:$0xf]
  %v8783 = vsel %vm1195, %v8207, %v8782
  %8784 = vst [vmem:[%s8739 + $0x48] sm:$0xf] %v8783
  %8785 = vst [vmem:[%s8739 + $0x4c] sm:$0xf] %v8216
  %v8786 = vld [vmem:[%s8739 + $0x50] sm:$0x1]
  %v8787 = vsel %vm39, %v8217, %v8786
  %8788 = vst [vmem:[%s8739 + $0x50] sm:$0x1] %v8787
  %v8789 = vld [vmem:[%s8739 + $0x54] sm:$0xf]
  %v8790 = vsel %vm1195, %v8224, %v8789
  %8791 = vst [vmem:[%s8739 + $0x54] sm:$0xf] %v8790
  %8792 = vst [vmem:[%s8739 + $0x58] sm:$0xf] %v8233
  %v8793 = vld [vmem:[%s8739 + $0x5c] sm:$0x1]
  %v8794 = vsel %vm39, %v8234, %v8793
  %8795 = vst [vmem:[%s8739 + $0x5c] sm:$0x1] %v8794
  %v8796 = vld [vmem:[%s8739 + $0x60] sm:$0xf]
  %v8797 = vsel %vm1195, %v8241, %v8796
  %8798 = vst [vmem:[%s8739 + $0x60] sm:$0xf] %v8797
  %8799 = vst [vmem:[%s8739 + $0x64] sm:$0xf] %v8250
  %v8800 = vld [vmem:[%s8739 + $0x68] sm:$0x1]
  %v8801 = vsel %vm39, %v8251, %v8800
  %8802 = vst [vmem:[%s8739 + $0x68] sm:$0x1] %v8801
  %v8803 = vld [vmem:[%s8739 + $0x6c] sm:$0xf]
  %v8804 = vsel %vm1195, %v8258, %v8803
  %8805 = vst [vmem:[%s8739 + $0x6c] sm:$0xf] %v8804
  %8806 = vst [vmem:[%s8739 + $0x70] sm:$0xf] %v8267
  %v8807 = vld [vmem:[%s8739 + $0x74] sm:$0x1]
  %v8808 = vsel %vm39, %v8268, %v8807
  %8809 = vst [vmem:[%s8739 + $0x74] sm:$0x1] %v8808
  %v8810 = vld [vmem:[%s8739 + $0x78] sm:$0xf]
  %v8811 = vsel %vm1195, %v8275, %v8810
  %8812 = vst [vmem:[%s8739 + $0x78] sm:$0xf] %v8811
  %8813 = vst [vmem:[%s8739 + $0x7c] sm:$0xf] %v8284
  %v8814 = vld [vmem:[%s8739 + $0x80] sm:$0x1]
  %v8815 = vsel %vm39, %v8285, %v8814
  %8816 = vst [vmem:[%s8739 + $0x80] sm:$0x1] %v8815
  %v8817 = vld [vmem:[%s8739 + $0x84] sm:$0xf]
  %v8818 = vsel %vm1195, %v8292, %v8817
  %8819 = vst [vmem:[%s8739 + $0x84] sm:$0xf] %v8818
  %8820 = vst [vmem:[%s8739 + $0x88] sm:$0xf] %v8301
  %v8821 = vld [vmem:[%s8739 + $0x8c] sm:$0x1]
  %v8822 = vsel %vm39, %v8302, %v8821
  %8823 = vst [vmem:[%s8739 + $0x8c] sm:$0x1] %v8822
  %v8824 = vld [vmem:[%s8739 + $0x90] sm:$0xf]
  %v8825 = vsel %vm1195, %v8309, %v8824
  %8826 = vst [vmem:[%s8739 + $0x90] sm:$0xf] %v8825
  %8827 = vst [vmem:[%s8739 + $0x94] sm:$0xf] %v8318
  %v8828 = vld [vmem:[%s8739 + $0x98] sm:$0x1]
  %v8829 = vsel %vm39, %v8319, %v8828
  %8830 = vst [vmem:[%s8739 + $0x98] sm:$0x1] %v8829
  %v8831 = vld [vmem:[%s8739 + $0x9c] sm:$0xf]
  %v8832 = vsel %vm1195, %v8326, %v8831
  %8833 = vst [vmem:[%s8739 + $0x9c] sm:$0xf] %v8832
  %8834 = vst [vmem:[%s8739 + $0xa0] sm:$0xf] %v8335
  %v8835 = vld [vmem:[%s8739 + $0xa4] sm:$0x1]
  %v8836 = vsel %vm39, %v8336, %v8835
  %8837 = vst [vmem:[%s8739 + $0xa4] sm:$0x1] %v8836
  %v8838 = vld [vmem:[%s8739 + $0xa8] sm:$0xf]
  %v8839 = vsel %vm1195, %v8343, %v8838
  %8840 = vst [vmem:[%s8739 + $0xa8] sm:$0xf] %v8839
  %8841 = vst [vmem:[%s8739 + $0xac] sm:$0xf] %v8352
  %v8842 = vld [vmem:[%s8739 + $0xb0] sm:$0x1]
  %v8843 = vsel %vm39, %v8353, %v8842
  %8844 = vst [vmem:[%s8739 + $0xb0] sm:$0x1] %v8843
  %v8845 = vld [vmem:[%s8739 + $0xb4] sm:$0xf]
  %v8846 = vsel %vm1195, %v8360, %v8845
  %8847 = vst [vmem:[%s8739 + $0xb4] sm:$0xf] %v8846
  %8848 = vst [vmem:[%s8739 + $0xb8] sm:$0xf] %v8369
  %v8849 = vld [vmem:[%s8739 + $0xbc] sm:$0x1]
  %v8850 = vsel %vm39, %v8370, %v8849
  %8851 = vst [vmem:[%s8739 + $0xbc] sm:$0x1] %v8850
  %v8852 = vld [vmem:[%s8739 + $0xd8] sm:$0xf]
  %v8853 = vsel %vm1195, %v8377, %v8852
  %8854 = vst [vmem:[%s8739 + $0xd8] sm:$0xf] %v8853
  %8855 = vst [vmem:[%s8739 + $0xdc] sm:$0xf] %v8386
  %v8856 = vld [vmem:[%s8739 + $0xe0] sm:$0x1]
  %v8857 = vsel %vm39, %v8387, %v8856
  %8858 = vst [vmem:[%s8739 + $0xe0] sm:$0x1] %v8857
  %v8859 = vld [vmem:[%s8739 + $0xe4] sm:$0xf]
  %v8860 = vsel %vm1195, %v8394, %v8859
  %8861 = vst [vmem:[%s8739 + $0xe4] sm:$0xf] %v8860
  %8862 = vst [vmem:[%s8739 + $0xe8] sm:$0xf] %v8403
  %v8863 = vld [vmem:[%s8739 + $0xec] sm:$0x1]
  %v8864 = vsel %vm39, %v8404, %v8863
  %8865 = vst [vmem:[%s8739 + $0xec] sm:$0x1] %v8864
  %v8866 = vld [vmem:[%s8739 + $0xf0] sm:$0xf]
  %v8867 = vsel %vm1195, %v8411, %v8866
  %8868 = vst [vmem:[%s8739 + $0xf0] sm:$0xf] %v8867
  %8869 = vst [vmem:[%s8739 + $0xf4] sm:$0xf] %v8420
  %v8870 = vld [vmem:[%s8739 + $0xf8] sm:$0x1]
  %v8871 = vsel %vm39, %v8421, %v8870
  %8872 = vst [vmem:[%s8739 + $0xf8] sm:$0x1] %v8871
  %v8873 = vld [vmem:[%s8739 + $0xfc] sm:$0xf]
  %v8874 = vsel %vm1195, %v8428, %v8873
  %8875 = vst [vmem:[%s8739 + $0xfc] sm:$0xf] %v8874
  %8876 = vst [vmem:[%s8739 + $0x100] sm:$0xf] %v8437
  %v8877 = vld [vmem:[%s8739 + $0x104] sm:$0x1]
  %v8878 = vsel %vm39, %v8438, %v8877
  %8879 = vst [vmem:[%s8739 + $0x104] sm:$0x1] %v8878
  %v8880 = vld [vmem:[%s8739 + $0x108] sm:$0xf]
  %v8881 = vsel %vm1195, %v8445, %v8880
  %8882 = vst [vmem:[%s8739 + $0x108] sm:$0xf] %v8881
  %8883 = vst [vmem:[%s8739 + $0x10c] sm:$0xf] %v8454
  %v8884 = vld [vmem:[%s8739 + $0x110] sm:$0x1]
  %v8885 = vsel %vm39, %v8455, %v8884
  %8886 = vst [vmem:[%s8739 + $0x110] sm:$0x1] %v8885
  %v8887 = vld [vmem:[%s8739 + $0x114] sm:$0xf]
  %v8888 = vsel %vm1195, %v8462, %v8887
  %8889 = vst [vmem:[%s8739 + $0x114] sm:$0xf] %v8888
  %8890 = vst [vmem:[%s8739 + $0x118] sm:$0xf] %v8471
  %v8891 = vld [vmem:[%s8739 + $0x11c] sm:$0x1]
  %v8892 = vsel %vm39, %v8472, %v8891
  %8893 = vst [vmem:[%s8739 + $0x11c] sm:$0x1] %v8892
  %v8894 = vld [vmem:[%s8739 + $0x120] sm:$0xf]
  %v8895 = vsel %vm1195, %v8479, %v8894
  %8896 = vst [vmem:[%s8739 + $0x120] sm:$0xf] %v8895
  %8897 = vst [vmem:[%s8739 + $0x124] sm:$0xf] %v8488
  %v8898 = vld [vmem:[%s8739 + $0x128] sm:$0x1]
  %v8899 = vsel %vm39, %v8489, %v8898
  %8900 = vst [vmem:[%s8739 + $0x128] sm:$0x1] %v8899
  %v8901 = vld [vmem:[%s8739 + $0x12c] sm:$0xf]
  %v8902 = vsel %vm1195, %v8496, %v8901
  %8903 = vst [vmem:[%s8739 + $0x12c] sm:$0xf] %v8902
  %8904 = vst [vmem:[%s8739 + $0x130] sm:$0xf] %v8505
  %v8905 = vld [vmem:[%s8739 + $0x134] sm:$0x1]
  %v8906 = vsel %vm39, %v8506, %v8905
  %8907 = vst [vmem:[%s8739 + $0x134] sm:$0x1] %v8906
  %v8908 = vld [vmem:[%s8739 + $0x138] sm:$0xf]
  %v8909 = vsel %vm1195, %v8513, %v8908
  %8910 = vst [vmem:[%s8739 + $0x138] sm:$0xf] %v8909
  %8911 = vst [vmem:[%s8739 + $0x13c] sm:$0xf] %v8522
  %v8912 = vld [vmem:[%s8739 + $0x140] sm:$0x1]
  %v8913 = vsel %vm39, %v8523, %v8912
  %8914 = vst [vmem:[%s8739 + $0x140] sm:$0x1] %v8913
  %v8915 = vld [vmem:[%s8739 + $0x144] sm:$0xf]
  %v8916 = vsel %vm1195, %v8530, %v8915
  %8917 = vst [vmem:[%s8739 + $0x144] sm:$0xf] %v8916
  %8918 = vst [vmem:[%s8739 + $0x148] sm:$0xf] %v8539
  %v8919 = vld [vmem:[%s8739 + $0x14c] sm:$0x1]
  %v8920 = vsel %vm39, %v8540, %v8919
  %8921 = vst [vmem:[%s8739 + $0x14c] sm:$0x1] %v8920
  %v8922 = vld [vmem:[%s8739 + $0x150] sm:$0xf]
  %v8923 = vsel %vm1195, %v8547, %v8922
  %8924 = vst [vmem:[%s8739 + $0x150] sm:$0xf] %v8923
  %8925 = vst [vmem:[%s8739 + $0x154] sm:$0xf] %v8556
  %v8926 = vld [vmem:[%s8739 + $0x158] sm:$0x1]
  %v8927 = vsel %vm39, %v8557, %v8926
  %8928 = vst [vmem:[%s8739 + $0x158] sm:$0x1] %v8927
  %v8929 = vld [vmem:[%s8739 + $0x15c] sm:$0xf]
  %v8930 = vsel %vm1195, %v8564, %v8929
  %8931 = vst [vmem:[%s8739 + $0x15c] sm:$0xf] %v8930
  %8932 = vst [vmem:[%s8739 + $0x160] sm:$0xf] %v8573
  %v8933 = vld [vmem:[%s8739 + $0x164] sm:$0x1]
  %v8934 = vsel %vm39, %v8574, %v8933
  %8935 = vst [vmem:[%s8739 + $0x164] sm:$0x1] %v8934
  %v8936 = vld [vmem:[%s8739 + $0x168] sm:$0xf]
  %v8937 = vsel %vm1195, %v8581, %v8936
  %8938 = vst [vmem:[%s8739 + $0x168] sm:$0xf] %v8937
  %8939 = vst [vmem:[%s8739 + $0x16c] sm:$0xf] %v8590
  %v8940 = vld [vmem:[%s8739 + $0x170] sm:$0x1]
  %v8941 = vsel %vm39, %v8591, %v8940
  %8942 = vst [vmem:[%s8739 + $0x170] sm:$0x1] %v8941
  %v8943 = vld [vmem:[%s8739 + $0x174] sm:$0xf]
  %v8944 = vsel %vm1195, %v8598, %v8943
  %8945 = vst [vmem:[%s8739 + $0x174] sm:$0xf] %v8944
  %8946 = vst [vmem:[%s8739 + $0x178] sm:$0xf] %v8607
  %v8947 = vld [vmem:[%s8739 + $0x17c] sm:$0x1]
  %v8948 = vsel %vm39, %v8608, %v8947
  %8949 = vst [vmem:[%s8739 + $0x17c] sm:$0x1] %v8948
  %v8950 = vld [vmem:[%s8739 + $0x180] sm:$0xf]
  %v8951 = vsel %vm1195, %v8615, %v8950
  %8952 = vst [vmem:[%s8739 + $0x180] sm:$0xf] %v8951
  %8953 = vst [vmem:[%s8739 + $0x184] sm:$0xf] %v8624
  %v8954 = vld [vmem:[%s8739 + $0x188] sm:$0x1]
  %v8955 = vsel %vm39, %v8625, %v8954
  %8956 = vst [vmem:[%s8739 + $0x188] sm:$0x1] %v8955
  %v8957 = vld [vmem:[%s8739 + $0x18c] sm:$0xf]
  %v8958 = vsel %vm1195, %v8632, %v8957
  %8959 = vst [vmem:[%s8739 + $0x18c] sm:$0xf] %v8958
  %8960 = vst [vmem:[%s8739 + $0x190] sm:$0xf] %v8641
  %v8961 = vld [vmem:[%s8739 + $0x194] sm:$0x1]
  %v8962 = vsel %vm39, %v8642, %v8961
  %8963 = vst [vmem:[%s8739 + $0x194] sm:$0x1] %v8962
  %v8964 = vld [vmem:[#allocation3] sm:$0xf]
  %v8965 = vld [vmem:[#allocation3 + $0x4] sm:$0xf]
  %v8966 = vld [vmem:[#allocation3 + $0xc] sm:$0xf]
  %v8967 = vld [vmem:[#allocation3 + $0x10] sm:$0xf]
  %v8968 = vld [vmem:[#allocation3 + $0x18] sm:$0xf]
  %v8969 = vld [vmem:[#allocation3 + $0x1c] sm:$0xf]
  %v8970 = vld [vmem:[#allocation3 + $0x24] sm:$0xf]
  %v8971 = vld [vmem:[#allocation3 + $0x28] sm:$0xf]
  %v8972 = vld [vmem:[#allocation3 + $0x30] sm:$0xf]
  %v8973 = vld [vmem:[#allocation3 + $0x34] sm:$0xf]
  %v8974 = vld [vmem:[#allocation3 + $0x3c] sm:$0xf]
  %v8975 = vld [vmem:[#allocation3 + $0x40] sm:$0xf]
  %v8976 = vld [vmem:[#allocation3 + $0x48] sm:$0xf]
  %v8977 = vld [vmem:[#allocation3 + $0x4c] sm:$0xf]
  %v8978 = vld [vmem:[#allocation3 + $0x54] sm:$0xf]
  %v8979 = vld [vmem:[#allocation3 + $0x58] sm:$0xf]
  %v8980 = vld [vmem:[#allocation3 + $0x60] sm:$0xf]
  %v8981 = vld [vmem:[#allocation3 + $0x64] sm:$0xf]
  %v8982 = vld [vmem:[#allocation3 + $0x6c] sm:$0xf]
  %v8983 = vld [vmem:[#allocation3 + $0x70] sm:$0xf]
  %v8984 = vld [vmem:[#allocation3 + $0x78] sm:$0xf]
  %v8985 = vld [vmem:[#allocation3 + $0x7c] sm:$0xf]
  %v8986 = vld [vmem:[#allocation3 + $0x84] sm:$0xf]
  %v8987 = vld [vmem:[#allocation3 + $0x88] sm:$0xf]
  %v8988 = vld [vmem:[#allocation3 + $0x90] sm:$0xf]
  %v8989 = vld [vmem:[#allocation3 + $0x94] sm:$0xf]
  %v8990 = vld [vmem:[#allocation3 + $0x9c] sm:$0xf]
  %v8991 = vld [vmem:[#allocation3 + $0xa0] sm:$0xf]
  %v8992 = vld [vmem:[#allocation3 + $0xa8] sm:$0xf]
  %v8993 = vld [vmem:[#allocation3 + $0xac] sm:$0xf]
  %v8994 = vld [vmem:[#allocation3 + $0xb4] sm:$0xf]
  %v8995 = vld [vmem:[#allocation3 + $0xb8] sm:$0xf]
  %v8996 = vld [vmem:[#allocation3 + $0xd8] sm:$0xf]
  %v8997 = vld [vmem:[#allocation3 + $0xdc] sm:$0xf]
  %v8998 = vld [vmem:[#allocation3 + $0xe4] sm:$0xf]
  %v8999 = vld [vmem:[#allocation3 + $0xe8] sm:$0xf]
  %v9000 = vld [vmem:[#allocation3 + $0xf0] sm:$0xf]
  %v9001 = vld [vmem:[#allocation3 + $0xf4] sm:$0xf]
  %v9002 = vld [vmem:[#allocation3 + $0xfc] sm:$0xf]
  %v9003 = vld [vmem:[#allocation3 + $0x100] sm:$0xf]
  %v9004 = vld [vmem:[#allocation3 + $0x108] sm:$0xf]
  %v9005 = vld [vmem:[#allocation3 + $0x10c] sm:$0xf]
  %v9006 = vld [vmem:[#allocation3 + $0x114] sm:$0xf]
  %v9007 = vld [vmem:[#allocation3 + $0x118] sm:$0xf]
  %v9008 = vld [vmem:[#allocation3 + $0x120] sm:$0xf]
  %v9009 = vld [vmem:[#allocation3 + $0x124] sm:$0xf]
  %v9010 = vld [vmem:[#allocation3 + $0x12c] sm:$0xf]
  %v9011 = vld [vmem:[#allocation3 + $0x130] sm:$0xf]
  %v9012 = vld [vmem:[#allocation3 + $0x138] sm:$0xf]
  %v9013 = vld [vmem:[#allocation3 + $0x13c] sm:$0xf]
  %v9014 = vld [vmem:[#allocation3 + $0x144] sm:$0xf]
  %v9015 = vld [vmem:[#allocation3 + $0x148] sm:$0xf]
  %v9016 = vld [vmem:[#allocation3 + $0x150] sm:$0xf]
  %v9017 = vld [vmem:[#allocation3 + $0x154] sm:$0xf]
  %v9018 = vld [vmem:[#allocation3 + $0x15c] sm:$0xf]
  %v9019 = vld [vmem:[#allocation3 + $0x160] sm:$0xf]
  %v9020 = vld [vmem:[#allocation3 + $0x168] sm:$0xf]
  %v9021 = vld [vmem:[#allocation3 + $0x16c] sm:$0xf]
  %v9022 = vld [vmem:[#allocation3 + $0x174] sm:$0xf]
  %v9023 = vld [vmem:[#allocation3 + $0x178] sm:$0xf]
  %v9024 = vld [vmem:[#allocation3 + $0x180] sm:$0xf]
  %v9025 = vld [vmem:[#allocation3 + $0x184] sm:$0xf]
  %v9026 = vld [vmem:[#allocation3 + $0x18c] sm:$0xf]
  %v9027 = vld [vmem:[#allocation3 + $0x190] sm:$0xf]
  %v9028 = vld [vmem:[#allocation3 + $0x8] sm:$0x1]
  %v9029 = vld [vmem:[#allocation3 + $0x14] sm:$0x1]
  %v9030 = vld [vmem:[#allocation3 + $0x20] sm:$0x1]
  %v9031 = vld [vmem:[#allocation3 + $0x2c] sm:$0x1]
  %v9032 = vld [vmem:[#allocation3 + $0x38] sm:$0x1]
  %v9033 = vld [vmem:[#allocation3 + $0x44] sm:$0x1]
  %v9034 = vld [vmem:[#allocation3 + $0x50] sm:$0x1]
  %v9035 = vld [vmem:[#allocation3 + $0x5c] sm:$0x1]
  %v9036 = vld [vmem:[#allocation3 + $0x68] sm:$0x1]
  %v9037 = vld [vmem:[#allocation3 + $0x74] sm:$0x1]
  %v9038 = vld [vmem:[#allocation3 + $0x80] sm:$0x1]
  %v9039 = vld [vmem:[#allocation3 + $0x8c] sm:$0x1]
  %v9040 = vld [vmem:[#allocation3 + $0x98] sm:$0x1]
  %v9041 = vld [vmem:[#allocation3 + $0xa4] sm:$0x1]
  %v9042 = vld [vmem:[#allocation3 + $0xb0] sm:$0x1]
  %v9043 = vld [vmem:[#allocation3 + $0xbc] sm:$0x1]
  %v9044 = vld [vmem:[#allocation3 + $0xe0] sm:$0x1]
  %v9045 = vld [vmem:[#allocation3 + $0xec] sm:$0x1]
  %v9046 = vld [vmem:[#allocation3 + $0xf8] sm:$0x1]
  %v9047 = vld [vmem:[#allocation3 + $0x104] sm:$0x1]
  %v9048 = vld [vmem:[#allocation3 + $0x110] sm:$0x1]
  %v9049 = vld [vmem:[#allocation3 + $0x11c] sm:$0x1]
  %v9050 = vld [vmem:[#allocation3 + $0x128] sm:$0x1]
  %v9051 = vld [vmem:[#allocation3 + $0x134] sm:$0x1]
  %v9052 = vld [vmem:[#allocation3 + $0x140] sm:$0x1]
  %v9053 = vld [vmem:[#allocation3 + $0x14c] sm:$0x1]
  %v9054 = vld [vmem:[#allocation3 + $0x158] sm:$0x1]
  %v9055 = vld [vmem:[#allocation3 + $0x164] sm:$0x1]
  %v9056 = vld [vmem:[#allocation3 + $0x170] sm:$0x1]
  %v9057 = vld [vmem:[#allocation3 + $0x17c] sm:$0x1]
  %v9058 = vld [vmem:[#allocation3 + $0x188] sm:$0x1]
  %v9059 = vld [vmem:[#allocation3 + $0x194] sm:$0x1]
  %v9060 = vld [vmem:[#allocation3] sm:$0xe]
  %v9061 = vld [vmem:[#allocation3 + $0xc] sm:$0xe]
  %v9062 = vld [vmem:[#allocation3 + $0x18] sm:$0xe]
  %v9063 = vld [vmem:[#allocation3 + $0x24] sm:$0xe]
  %v9064 = vld [vmem:[#allocation3 + $0x30] sm:$0xe]
  %v9065 = vld [vmem:[#allocation3 + $0x3c] sm:$0xe]
  %v9066 = vld [vmem:[#allocation3 + $0x48] sm:$0xe]
  %v9067 = vld [vmem:[#allocation3 + $0x54] sm:$0xe]
  %v9068 = vld [vmem:[#allocation3 + $0x60] sm:$0xe]
  %v9069 = vld [vmem:[#allocation3 + $0x6c] sm:$0xe]
  %v9070 = vld [vmem:[#allocation3 + $0x78] sm:$0xe]
  %v9071 = vld [vmem:[#allocation3 + $0x84] sm:$0xe]
  %v9072 = vld [vmem:[#allocation3 + $0x90] sm:$0xe]
  %v9073 = vld [vmem:[#allocation3 + $0x9c] sm:$0xe]
  %v9074 = vld [vmem:[#allocation3 + $0xa8] sm:$0xe]
  %v9075 = vld [vmem:[#allocation3 + $0xb4] sm:$0xe]
  %v9076 = vld [vmem:[#allocation3 + $0xd8] sm:$0xe]
  %v9077 = vld [vmem:[#allocation3 + $0xe4] sm:$0xe]
  %v9078 = vld [vmem:[#allocation3 + $0xf0] sm:$0xe]
  %v9079 = vld [vmem:[#allocation3 + $0xfc] sm:$0xe]
  %v9080 = vld [vmem:[#allocation3 + $0x108] sm:$0xe]
  %v9081 = vld [vmem:[#allocation3 + $0x114] sm:$0xe]
  %v9082 = vld [vmem:[#allocation3 + $0x120] sm:$0xe]
  %v9083 = vld [vmem:[#allocation3 + $0x12c] sm:$0xe]
  %v9084 = vld [vmem:[#allocation3 + $0x138] sm:$0xe]
  %v9085 = vld [vmem:[#allocation3 + $0x144] sm:$0xe]
  %v9086 = vld [vmem:[#allocation3 + $0x150] sm:$0xe]
  %v9087 = vld [vmem:[#allocation3 + $0x15c] sm:$0xe]
  %v9088 = vld [vmem:[#allocation3 + $0x168] sm:$0xe]
  %v9089 = vld [vmem:[#allocation3 + $0x174] sm:$0xe]
  %v9090 = vld [vmem:[#allocation3 + $0x180] sm:$0xe]
  %v9091 = vld [vmem:[#allocation3 + $0x18c] sm:$0xe]
  %v9156 = vunpack.c.l.b16 %v8964
  %v9157 = vunpack.c.l.b16 %v8965
  %v9158 = vunpack.c.l.b16 %v8966
  %v9159 = vunpack.c.l.b16 %v8967
  %v9160 = vunpack.c.l.b16 %v8968
  %v9161 = vunpack.c.l.b16 %v8969
  %v9162 = vunpack.c.l.b16 %v8970
  %v9163 = vunpack.c.l.b16 %v8971
  %v9164 = vunpack.c.l.b16 %v8972
  %v9165 = vunpack.c.l.b16 %v8973
  %v9166 = vunpack.c.l.b16 %v8974
  %v9167 = vunpack.c.l.b16 %v8975
  %v9168 = vunpack.c.l.b16 %v8976
  %v9169 = vunpack.c.l.b16 %v8977
  %v9170 = vunpack.c.l.b16 %v8978
  %v9171 = vunpack.c.l.b16 %v8979
  %v9172 = vunpack.c.l.b16 %v8980
  %v9173 = vunpack.c.l.b16 %v8981
  %v9174 = vunpack.c.l.b16 %v8982
  %v9175 = vunpack.c.l.b16 %v8983
  %v9176 = vunpack.c.l.b16 %v8984
  %v9177 = vunpack.c.l.b16 %v8985
  %v9178 = vunpack.c.l.b16 %v8986
  %v9179 = vunpack.c.l.b16 %v8987
  %v9180 = vunpack.c.l.b16 %v8988
  %v9181 = vunpack.c.l.b16 %v8989
  %v9182 = vunpack.c.l.b16 %v8990
  %v9183 = vunpack.c.l.b16 %v8991
  %v9184 = vunpack.c.l.b16 %v8992
  %v9185 = vunpack.c.l.b16 %v8993
  %v9186 = vunpack.c.l.b16 %v8994
  %v9187 = vunpack.c.l.b16 %v8995
  %v9188 = vunpack.c.l.b16 %v8996
  %v9189 = vunpack.c.l.b16 %v8997
  %v9190 = vunpack.c.l.b16 %v8998
  %v9191 = vunpack.c.l.b16 %v8999
  %v9192 = vunpack.c.l.b16 %v9000
  %v9193 = vunpack.c.l.b16 %v9001
  %v9194 = vunpack.c.l.b16 %v9002
  %v9195 = vunpack.c.l.b16 %v9003
  %v9196 = vunpack.c.l.b16 %v9004
  %v9197 = vunpack.c.l.b16 %v9005
  %v9198 = vunpack.c.l.b16 %v9006
  %v9199 = vunpack.c.l.b16 %v9007
  %v9200 = vunpack.c.l.b16 %v9008
  %v9201 = vunpack.c.l.b16 %v9009
  %v9202 = vunpack.c.l.b16 %v9010
  %v9203 = vunpack.c.l.b16 %v9011
  %v9204 = vunpack.c.l.b16 %v9012
  %v9205 = vunpack.c.l.b16 %v9013
  %v9206 = vunpack.c.l.b16 %v9014
  %v9207 = vunpack.c.l.b16 %v9015
  %v9208 = vunpack.c.l.b16 %v9016
  %v9209 = vunpack.c.l.b16 %v9017
  %v9210 = vunpack.c.l.b16 %v9018
  %v9211 = vunpack.c.l.b16 %v9019
  %v9212 = vunpack.c.l.b16 %v9020
  %v9213 = vunpack.c.l.b16 %v9021
  %v9214 = vunpack.c.l.b16 %v9022
  %v9215 = vunpack.c.l.b16 %v9023
  %v9216 = vunpack.c.l.b16 %v9024
  %v9217 = vunpack.c.l.b16 %v9025
  %v9218 = vunpack.c.l.b16 %v9026
  %v9219 = vunpack.c.l.b16 %v9027
  %v9220 = vpack.c.b16 %v9157, %v9156
  %v9221 = vpack.c.b16 %v9159, %v9158
  %v9222 = vpack.c.b16 %v9161, %v9160
  %v9223 = vpack.c.b16 %v9163, %v9162
  %v9224 = vpack.c.b16 %v9165, %v9164
  %v9225 = vpack.c.b16 %v9167, %v9166
  %v9226 = vpack.c.b16 %v9169, %v9168
  %v9227 = vpack.c.b16 %v9171, %v9170
  %v9228 = vpack.c.b16 %v9173, %v9172
  %v9229 = vpack.c.b16 %v9175, %v9174
  %v9230 = vpack.c.b16 %v9177, %v9176
  %v9231 = vpack.c.b16 %v9179, %v9178
  %v9232 = vpack.c.b16 %v9181, %v9180
  %v9233 = vpack.c.b16 %v9183, %v9182
  %v9234 = vpack.c.b16 %v9185, %v9184
  %v9235 = vpack.c.b16 %v9187, %v9186
  %v9236 = vpack.c.b16 %v9189, %v9188
  %v9237 = vpack.c.b16 %v9191, %v9190
  %v9238 = vpack.c.b16 %v9193, %v9192
  %v9239 = vpack.c.b16 %v9195, %v9194
  %v9240 = vpack.c.b16 %v9197, %v9196
  %v9241 = vpack.c.b16 %v9199, %v9198
  %v9242 = vpack.c.b16 %v9201, %v9200
  %v9243 = vpack.c.b16 %v9203, %v9202
  %v9244 = vpack.c.b16 %v9205, %v9204
  %v9245 = vpack.c.b16 %v9207, %v9206
  %v9246 = vpack.c.b16 %v9209, %v9208
  %v9247 = vpack.c.b16 %v9211, %v9210
  %v9248 = vpack.c.b16 %v9213, %v9212
  %v9249 = vpack.c.b16 %v9215, %v9214
  %v9250 = vpack.c.b16 %v9217, %v9216
  %v9251 = vpack.c.b16 %v9219, %v9218
  %v9316 = vunpack.c.l.b16 %v9028
  %v9317 = vunpack.c.l.b16 %v9029
  %v9318 = vunpack.c.l.b16 %v9030
  %v9319 = vunpack.c.l.b16 %v9031
  %v9320 = vunpack.c.l.b16 %v9032
  %v9321 = vunpack.c.l.b16 %v9033
  %v9322 = vunpack.c.l.b16 %v9034
  %v9323 = vunpack.c.l.b16 %v9035
  %v9324 = vunpack.c.l.b16 %v9036
  %v9325 = vunpack.c.l.b16 %v9037
  %v9326 = vunpack.c.l.b16 %v9038
  %v9327 = vunpack.c.l.b16 %v9039
  %v9328 = vunpack.c.l.b16 %v9040
  %v9329 = vunpack.c.l.b16 %v9041
  %v9330 = vunpack.c.l.b16 %v9042
  %v9331 = vunpack.c.l.b16 %v9043
  %v9332 = vunpack.c.l.b16 %v9044
  %v9333 = vunpack.c.l.b16 %v9045
  %v9334 = vunpack.c.l.b16 %v9046
  %v9335 = vunpack.c.l.b16 %v9047
  %v9336 = vunpack.c.l.b16 %v9048
  %v9337 = vunpack.c.l.b16 %v9049
  %v9338 = vunpack.c.l.b16 %v9050
  %v9339 = vunpack.c.l.b16 %v9051
  %v9340 = vunpack.c.l.b16 %v9052
  %v9341 = vunpack.c.l.b16 %v9053
  %v9342 = vunpack.c.l.b16 %v9054
  %v9343 = vunpack.c.l.b16 %v9055
  %v9344 = vunpack.c.l.b16 %v9056
  %v9345 = vunpack.c.l.b16 %v9057
  %v9346 = vunpack.c.l.b16 %v9058
  %v9347 = vunpack.c.l.b16 %v9059
  %v9348 = vpack.c.b16 %v9316, %v9316
  %v9349 = vpack.c.b16 %v9317, %v9317
  %v9350 = vpack.c.b16 %v9318, %v9318
  %v9351 = vpack.c.b16 %v9319, %v9319
  %v9352 = vpack.c.b16 %v9320, %v9320
  %v9353 = vpack.c.b16 %v9321, %v9321
  %v9354 = vpack.c.b16 %v9322, %v9322
  %v9355 = vpack.c.b16 %v9323, %v9323
  %v9356 = vpack.c.b16 %v9324, %v9324
  %v9357 = vpack.c.b16 %v9325, %v9325
  %v9358 = vpack.c.b16 %v9326, %v9326
  %v9359 = vpack.c.b16 %v9327, %v9327
  %v9360 = vpack.c.b16 %v9328, %v9328
  %v9361 = vpack.c.b16 %v9329, %v9329
  %v9362 = vpack.c.b16 %v9330, %v9330
  %v9363 = vpack.c.b16 %v9331, %v9331
  %v9364 = vpack.c.b16 %v9332, %v9332
  %v9365 = vpack.c.b16 %v9333, %v9333
  %v9366 = vpack.c.b16 %v9334, %v9334
  %v9367 = vpack.c.b16 %v9335, %v9335
  %v9368 = vpack.c.b16 %v9336, %v9336
  %v9369 = vpack.c.b16 %v9337, %v9337
  %v9370 = vpack.c.b16 %v9338, %v9338
  %v9371 = vpack.c.b16 %v9339, %v9339
  %v9372 = vpack.c.b16 %v9340, %v9340
  %v9373 = vpack.c.b16 %v9341, %v9341
  %v9374 = vpack.c.b16 %v9342, %v9342
  %v9375 = vpack.c.b16 %v9343, %v9343
  %v9376 = vpack.c.b16 %v9344, %v9344
  %v9377 = vpack.c.b16 %v9345, %v9345
  %v9378 = vpack.c.b16 %v9346, %v9346
  %v9379 = vpack.c.b16 %v9347, %v9347
  %v9381 = vshrl.u32 %v9220, 16
  %v9383 = vshll.u32 %v9220, 16
  %v9385 = vrot.slane %v9383, 1
  %v9386 = vor.u32 %v9381, %v9385
  %v9388 = vshll.u32 %v9348, 16
  %v9390 = vrot.slane %v9388, 1
  %v9391 = vsel %vm1836, %v9386, %v9390
  %v9393 = vshrl.u32 %v9221, 16
  %v9395 = vshll.u32 %v9221, 16
  %v9397 = vrot.slane %v9395, 1
  %v9398 = vor.u32 %v9393, %v9397
  %v9400 = vshll.u32 %v9349, 16
  %v9402 = vrot.slane %v9400, 1
  %v9403 = vsel %vm1836, %v9398, %v9402
  %v9405 = vshrl.u32 %v9222, 16
  %v9407 = vshll.u32 %v9222, 16
  %v9409 = vrot.slane %v9407, 1
  %v9410 = vor.u32 %v9405, %v9409
  %v9412 = vshll.u32 %v9350, 16
  %v9414 = vrot.slane %v9412, 1
  %v9415 = vsel %vm1836, %v9410, %v9414
  %v9417 = vshrl.u32 %v9223, 16
  %v9419 = vshll.u32 %v9223, 16
  %v9421 = vrot.slane %v9419, 1
  %v9422 = vor.u32 %v9417, %v9421
  %v9424 = vshll.u32 %v9351, 16
  %v9426 = vrot.slane %v9424, 1
  %v9427 = vsel %vm1836, %v9422, %v9426
  %v9429 = vshrl.u32 %v9224, 16
  %v9431 = vshll.u32 %v9224, 16
  %v9433 = vrot.slane %v9431, 1
  %v9434 = vor.u32 %v9429, %v9433
  %v9436 = vshll.u32 %v9352, 16
  %v9438 = vrot.slane %v9436, 1
  %v9439 = vsel %vm1836, %v9434, %v9438
  %v9441 = vshrl.u32 %v9225, 16
  %v9443 = vshll.u32 %v9225, 16
  %v9445 = vrot.slane %v9443, 1
  %v9446 = vor.u32 %v9441, %v9445
  %v9448 = vshll.u32 %v9353, 16
  %v9450 = vrot.slane %v9448, 1
  %v9451 = vsel %vm1836, %v9446, %v9450
  %v9453 = vshrl.u32 %v9226, 16
  %v9455 = vshll.u32 %v9226, 16
  %v9457 = vrot.slane %v9455, 1
  %v9458 = vor.u32 %v9453, %v9457
  %v9460 = vshll.u32 %v9354, 16
  %v9462 = vrot.slane %v9460, 1
  %v9463 = vsel %vm1836, %v9458, %v9462
  %v9465 = vshrl.u32 %v9227, 16
  %v9467 = vshll.u32 %v9227, 16
  %v9469 = vrot.slane %v9467, 1
  %v9470 = vor.u32 %v9465, %v9469
  %v9472 = vshll.u32 %v9355, 16
  %v9474 = vrot.slane %v9472, 1
  %v9475 = vsel %vm1836, %v9470, %v9474
  %v9477 = vshrl.u32 %v9228, 16
  %v9479 = vshll.u32 %v9228, 16
  %v9481 = vrot.slane %v9479, 1
  %v9482 = vor.u32 %v9477, %v9481
  %v9484 = vshll.u32 %v9356, 16
  %v9486 = vrot.slane %v9484, 1
  %v9487 = vsel %vm1836, %v9482, %v9486
  %v9489 = vshrl.u32 %v9229, 16
  %v9491 = vshll.u32 %v9229, 16
  %v9493 = vrot.slane %v9491, 1
  %v9494 = vor.u32 %v9489, %v9493
  %v9496 = vshll.u32 %v9357, 16
  %v9498 = vrot.slane %v9496, 1
  %v9499 = vsel %vm1836, %v9494, %v9498
  %v9501 = vshrl.u32 %v9230, 16
  %v9503 = vshll.u32 %v9230, 16
  %v9505 = vrot.slane %v9503, 1
  %v9506 = vor.u32 %v9501, %v9505
  %v9508 = vshll.u32 %v9358, 16
  %v9510 = vrot.slane %v9508, 1
  %v9511 = vsel %vm1836, %v9506, %v9510
  %v9513 = vshrl.u32 %v9231, 16
  %v9515 = vshll.u32 %v9231, 16
  %v9517 = vrot.slane %v9515, 1
  %v9518 = vor.u32 %v9513, %v9517
  %v9520 = vshll.u32 %v9359, 16
  %v9522 = vrot.slane %v9520, 1
  %v9523 = vsel %vm1836, %v9518, %v9522
  %v9525 = vshrl.u32 %v9232, 16
  %v9527 = vshll.u32 %v9232, 16
  %v9529 = vrot.slane %v9527, 1
  %v9530 = vor.u32 %v9525, %v9529
  %v9532 = vshll.u32 %v9360, 16
  %v9534 = vrot.slane %v9532, 1
  %v9535 = vsel %vm1836, %v9530, %v9534
  %v9537 = vshrl.u32 %v9233, 16
  %v9539 = vshll.u32 %v9233, 16
  %v9541 = vrot.slane %v9539, 1
  %v9542 = vor.u32 %v9537, %v9541
  %v9544 = vshll.u32 %v9361, 16
  %v9546 = vrot.slane %v9544, 1
  %v9547 = vsel %vm1836, %v9542, %v9546
  %v9549 = vshrl.u32 %v9234, 16
  %v9551 = vshll.u32 %v9234, 16
  %v9553 = vrot.slane %v9551, 1
  %v9554 = vor.u32 %v9549, %v9553
  %v9556 = vshll.u32 %v9362, 16
  %v9558 = vrot.slane %v9556, 1
  %v9559 = vsel %vm1836, %v9554, %v9558
  %v9561 = vshrl.u32 %v9235, 16
  %v9563 = vshll.u32 %v9235, 16
  %v9565 = vrot.slane %v9563, 1
  %v9566 = vor.u32 %v9561, %v9565
  %v9568 = vshll.u32 %v9363, 16
  %v9570 = vrot.slane %v9568, 1
  %v9571 = vsel %vm1836, %v9566, %v9570
  %v9573 = vshrl.u32 %v9236, 16
  %v9575 = vshll.u32 %v9236, 16
  %v9577 = vrot.slane %v9575, 1
  %v9578 = vor.u32 %v9573, %v9577
  %v9580 = vshll.u32 %v9364, 16
  %v9582 = vrot.slane %v9580, 1
  %v9583 = vsel %vm1836, %v9578, %v9582
  %v9585 = vshrl.u32 %v9237, 16
  %v9587 = vshll.u32 %v9237, 16
  %v9589 = vrot.slane %v9587, 1
  %v9590 = vor.u32 %v9585, %v9589
  %v9592 = vshll.u32 %v9365, 16
  %v9594 = vrot.slane %v9592, 1
  %v9595 = vsel %vm1836, %v9590, %v9594
  %v9597 = vshrl.u32 %v9238, 16
  %v9599 = vshll.u32 %v9238, 16
  %v9601 = vrot.slane %v9599, 1
  %v9602 = vor.u32 %v9597, %v9601
  %v9604 = vshll.u32 %v9366, 16
  %v9606 = vrot.slane %v9604, 1
  %v9607 = vsel %vm1836, %v9602, %v9606
  %v9609 = vshrl.u32 %v9239, 16
  %v9611 = vshll.u32 %v9239, 16
  %v9613 = vrot.slane %v9611, 1
  %v9614 = vor.u32 %v9609, %v9613
  %v9616 = vshll.u32 %v9367, 16
  %v9618 = vrot.slane %v9616, 1
  %v9619 = vsel %vm1836, %v9614, %v9618
  %v9621 = vshrl.u32 %v9240, 16
  %v9623 = vshll.u32 %v9240, 16
  %v9625 = vrot.slane %v9623, 1
  %v9626 = vor.u32 %v9621, %v9625
  %v9628 = vshll.u32 %v9368, 16
  %v9630 = vrot.slane %v9628, 1
  %v9631 = vsel %vm1836, %v9626, %v9630
  %v9633 = vshrl.u32 %v9241, 16
  %v9635 = vshll.u32 %v9241, 16
  %v9637 = vrot.slane %v9635, 1
  %v9638 = vor.u32 %v9633, %v9637
  %v9640 = vshll.u32 %v9369, 16
  %v9642 = vrot.slane %v9640, 1
  %v9643 = vsel %vm1836, %v9638, %v9642
  %v9645 = vshrl.u32 %v9242, 16
  %v9647 = vshll.u32 %v9242, 16
  %v9649 = vrot.slane %v9647, 1
  %v9650 = vor.u32 %v9645, %v9649
  %v9652 = vshll.u32 %v9370, 16
  %v9654 = vrot.slane %v9652, 1
  %v9655 = vsel %vm1836, %v9650, %v9654
  %v9657 = vshrl.u32 %v9243, 16
  %v9659 = vshll.u32 %v9243, 16
  %v9661 = vrot.slane %v9659, 1
  %v9662 = vor.u32 %v9657, %v9661
  %v9664 = vshll.u32 %v9371, 16
  %v9666 = vrot.slane %v9664, 1
  %v9667 = vsel %vm1836, %v9662, %v9666
  %v9669 = vshrl.u32 %v9244, 16
  %v9671 = vshll.u32 %v9244, 16
  %v9673 = vrot.slane %v9671, 1
  %v9674 = vor.u32 %v9669, %v9673
  %v9676 = vshll.u32 %v9372, 16
  %v9678 = vrot.slane %v9676, 1
  %v9679 = vsel %vm1836, %v9674, %v9678
  %v9681 = vshrl.u32 %v9245, 16
  %v9683 = vshll.u32 %v9245, 16
  %v9685 = vrot.slane %v9683, 1
  %v9686 = vor.u32 %v9681, %v9685
  %v9688 = vshll.u32 %v9373, 16
  %v9690 = vrot.slane %v9688, 1
  %v9691 = vsel %vm1836, %v9686, %v9690
  %v9693 = vshrl.u32 %v9246, 16
  %v9695 = vshll.u32 %v9246, 16
  %v9697 = vrot.slane %v9695, 1
  %v9698 = vor.u32 %v9693, %v9697
  %v9700 = vshll.u32 %v9374, 16
  %v9702 = vrot.slane %v9700, 1
  %v9703 = vsel %vm1836, %v9698, %v9702
  %v9705 = vshrl.u32 %v9247, 16
  %v9707 = vshll.u32 %v9247, 16
  %v9709 = vrot.slane %v9707, 1
  %v9710 = vor.u32 %v9705, %v9709
  %v9712 = vshll.u32 %v9375, 16
  %v9714 = vrot.slane %v9712, 1
  %v9715 = vsel %vm1836, %v9710, %v9714
  %v9717 = vshrl.u32 %v9248, 16
  %v9719 = vshll.u32 %v9248, 16
  %v9721 = vrot.slane %v9719, 1
  %v9722 = vor.u32 %v9717, %v9721
  %v9724 = vshll.u32 %v9376, 16
  %v9726 = vrot.slane %v9724, 1
  %v9727 = vsel %vm1836, %v9722, %v9726
  %v9729 = vshrl.u32 %v9249, 16
  %v9731 = vshll.u32 %v9249, 16
  %v9733 = vrot.slane %v9731, 1
  %v9734 = vor.u32 %v9729, %v9733
  %v9736 = vshll.u32 %v9377, 16
  %v9738 = vrot.slane %v9736, 1
  %v9739 = vsel %vm1836, %v9734, %v9738
  %v9741 = vshrl.u32 %v9250, 16
  %v9743 = vshll.u32 %v9250, 16
  %v9745 = vrot.slane %v9743, 1
  %v9746 = vor.u32 %v9741, %v9745
  %v9748 = vshll.u32 %v9378, 16
  %v9750 = vrot.slane %v9748, 1
  %v9751 = vsel %vm1836, %v9746, %v9750
  %v9753 = vshrl.u32 %v9251, 16
  %v9755 = vshll.u32 %v9251, 16
  %v9757 = vrot.slane %v9755, 1
  %v9758 = vor.u32 %v9753, %v9757
  %v9760 = vshll.u32 %v9379, 16
  %v9762 = vrot.slane %v9760, 1
  %v9763 = vsel %vm1836, %v9758, %v9762
  %v9828 = vunpack.c.l.b16 %v9060
  %v9829 = vunpack.c.l.b16 %v9061
  %v9830 = vunpack.c.l.b16 %v9062
  %v9831 = vunpack.c.l.b16 %v9063
  %v9832 = vunpack.c.l.b16 %v9064
  %v9833 = vunpack.c.l.b16 %v9065
  %v9834 = vunpack.c.l.b16 %v9066
  %v9835 = vunpack.c.l.b16 %v9067
  %v9836 = vunpack.c.l.b16 %v9068
  %v9837 = vunpack.c.l.b16 %v9069
  %v9838 = vunpack.c.l.b16 %v9070
  %v9839 = vunpack.c.l.b16 %v9071
  %v9840 = vunpack.c.l.b16 %v9072
  %v9841 = vunpack.c.l.b16 %v9073
  %v9842 = vunpack.c.l.b16 %v9074
  %v9843 = vunpack.c.l.b16 %v9075
  %v9844 = vunpack.c.l.b16 %v9076
  %v9845 = vunpack.c.l.b16 %v9077
  %v9846 = vunpack.c.l.b16 %v9078
  %v9847 = vunpack.c.l.b16 %v9079
  %v9848 = vunpack.c.l.b16 %v9080
  %v9849 = vunpack.c.l.b16 %v9081
  %v9850 = vunpack.c.l.b16 %v9082
  %v9851 = vunpack.c.l.b16 %v9083
  %v9852 = vunpack.c.l.b16 %v9084
  %v9853 = vunpack.c.l.b16 %v9085
  %v9854 = vunpack.c.l.b16 %v9086
  %v9855 = vunpack.c.l.b16 %v9087
  %v9856 = vunpack.c.l.b16 %v9088
  %v9857 = vunpack.c.l.b16 %v9089
  %v9858 = vunpack.c.l.b16 %v9090
  %v9859 = vunpack.c.l.b16 %v9091
  %v9860 = vpack.c.b16 %v9157, %v9828
  %v9861 = vpack.c.b16 %v9159, %v9829
  %v9862 = vpack.c.b16 %v9161, %v9830
  %v9863 = vpack.c.b16 %v9163, %v9831
  %v9864 = vpack.c.b16 %v9165, %v9832
  %v9865 = vpack.c.b16 %v9167, %v9833
  %v9866 = vpack.c.b16 %v9169, %v9834
  %v9867 = vpack.c.b16 %v9171, %v9835
  %v9868 = vpack.c.b16 %v9173, %v9836
  %v9869 = vpack.c.b16 %v9175, %v9837
  %v9870 = vpack.c.b16 %v9177, %v9838
  %v9871 = vpack.c.b16 %v9179, %v9839
  %v9872 = vpack.c.b16 %v9181, %v9840
  %v9873 = vpack.c.b16 %v9183, %v9841
  %v9874 = vpack.c.b16 %v9185, %v9842
  %v9875 = vpack.c.b16 %v9187, %v9843
  %v9876 = vpack.c.b16 %v9189, %v9844
  %v9877 = vpack.c.b16 %v9191, %v9845
  %v9878 = vpack.c.b16 %v9193, %v9846
  %v9879 = vpack.c.b16 %v9195, %v9847
  %v9880 = vpack.c.b16 %v9197, %v9848
  %v9881 = vpack.c.b16 %v9199, %v9849
  %v9882 = vpack.c.b16 %v9201, %v9850
  %v9883 = vpack.c.b16 %v9203, %v9851
  %v9884 = vpack.c.b16 %v9205, %v9852
  %v9885 = vpack.c.b16 %v9207, %v9853
  %v9886 = vpack.c.b16 %v9209, %v9854
  %v9887 = vpack.c.b16 %v9211, %v9855
  %v9888 = vpack.c.b16 %v9213, %v9856
  %v9889 = vpack.c.b16 %v9215, %v9857
  %v9890 = vpack.c.b16 %v9217, %v9858
  %v9891 = vpack.c.b16 %v9219, %v9859
  %v9892 = vrot.slane %v9860, 1
  %v9893 = vrot.slane %v9348, 1
  %v9894 = vsel %vm2349, %v9892, %v9893
  %v9895 = vrot.slane %v9861, 1
  %v9896 = vrot.slane %v9349, 1
  %v9897 = vsel %vm2349, %v9895, %v9896
  %v9898 = vrot.slane %v9862, 1
  %v9899 = vrot.slane %v9350, 1
  %v9900 = vsel %vm2349, %v9898, %v9899
  %v9901 = vrot.slane %v9863, 1
  %v9902 = vrot.slane %v9351, 1
  %v9903 = vsel %vm2349, %v9901, %v9902
  %v9904 = vrot.slane %v9864, 1
  %v9905 = vrot.slane %v9352, 1
  %v9906 = vsel %vm2349, %v9904, %v9905
  %v9907 = vrot.slane %v9865, 1
  %v9908 = vrot.slane %v9353, 1
  %v9909 = vsel %vm2349, %v9907, %v9908
  %v9910 = vrot.slane %v9866, 1
  %v9911 = vrot.slane %v9354, 1
  %v9912 = vsel %vm2349, %v9910, %v9911
  %v9913 = vrot.slane %v9867, 1
  %v9914 = vrot.slane %v9355, 1
  %v9915 = vsel %vm2349, %v9913, %v9914
  %v9916 = vrot.slane %v9868, 1
  %v9917 = vrot.slane %v9356, 1
  %v9918 = vsel %vm2349, %v9916, %v9917
  %v9919 = vrot.slane %v9869, 1
  %v9920 = vrot.slane %v9357, 1
  %v9921 = vsel %vm2349, %v9919, %v9920
  %v9922 = vrot.slane %v9870, 1
  %v9923 = vrot.slane %v9358, 1
  %v9924 = vsel %vm2349, %v9922, %v9923
  %v9925 = vrot.slane %v9871, 1
  %v9926 = vrot.slane %v9359, 1
  %v9927 = vsel %vm2349, %v9925, %v9926
  %v9928 = vrot.slane %v9872, 1
  %v9929 = vrot.slane %v9360, 1
  %v9930 = vsel %vm2349, %v9928, %v9929
  %v9931 = vrot.slane %v9873, 1
  %v9932 = vrot.slane %v9361, 1
  %v9933 = vsel %vm2349, %v9931, %v9932
  %v9934 = vrot.slane %v9874, 1
  %v9935 = vrot.slane %v9362, 1
  %v9936 = vsel %vm2349, %v9934, %v9935
  %v9937 = vrot.slane %v9875, 1
  %v9938 = vrot.slane %v9363, 1
  %v9939 = vsel %vm2349, %v9937, %v9938
  %v9940 = vrot.slane %v9876, 1
  %v9941 = vrot.slane %v9364, 1
  %v9942 = vsel %vm2349, %v9940, %v9941
  %v9943 = vrot.slane %v9877, 1
  %v9944 = vrot.slane %v9365, 1
  %v9945 = vsel %vm2349, %v9943, %v9944
  %v9946 = vrot.slane %v9878, 1
  %v9947 = vrot.slane %v9366, 1
  %v9948 = vsel %vm2349, %v9946, %v9947
  %v9949 = vrot.slane %v9879, 1
  %v9950 = vrot.slane %v9367, 1
  %v9951 = vsel %vm2349, %v9949, %v9950
  %v9952 = vrot.slane %v9880, 1
  %v9953 = vrot.slane %v9368, 1
  %v9954 = vsel %vm2349, %v9952, %v9953
  %v9955 = vrot.slane %v9881, 1
  %v9956 = vrot.slane %v9369, 1
  %v9957 = vsel %vm2349, %v9955, %v9956
  %v9958 = vrot.slane %v9882, 1
  %v9959 = vrot.slane %v9370, 1
  %v9960 = vsel %vm2349, %v9958, %v9959
  %v9961 = vrot.slane %v9883, 1
  %v9962 = vrot.slane %v9371, 1
  %v9963 = vsel %vm2349, %v9961, %v9962
  %v9964 = vrot.slane %v9884, 1
  %v9965 = vrot.slane %v9372, 1
  %v9966 = vsel %vm2349, %v9964, %v9965
  %v9967 = vrot.slane %v9885, 1
  %v9968 = vrot.slane %v9373, 1
  %v9969 = vsel %vm2349, %v9967, %v9968
  %v9970 = vrot.slane %v9886, 1
  %v9971 = vrot.slane %v9374, 1
  %v9972 = vsel %vm2349, %v9970, %v9971
  %v9973 = vrot.slane %v9887, 1
  %v9974 = vrot.slane %v9375, 1
  %v9975 = vsel %vm2349, %v9973, %v9974
  %v9976 = vrot.slane %v9888, 1
  %v9977 = vrot.slane %v9376, 1
  %v9978 = vsel %vm2349, %v9976, %v9977
  %v9979 = vrot.slane %v9889, 1
  %v9980 = vrot.slane %v9377, 1
  %v9981 = vsel %vm2349, %v9979, %v9980
  %v9982 = vrot.slane %v9890, 1
  %v9983 = vrot.slane %v9378, 1
  %v9984 = vsel %vm2349, %v9982, %v9983
  %v9985 = vrot.slane %v9891, 1
  %v9986 = vrot.slane %v9379, 1
  %v9987 = vsel %vm2349, %v9985, %v9986
  %v10020 = vld [vmem:[%s3] sm:$0xf]
  %v10021 = vld [vmem:[%s3 + $0x4] sm:$0xf]
  %v10022 = vld [vmem:[%s3 + $0x8] sm:$0xf]
  %v10023 = vld [vmem:[%s3 + $0xc] sm:$0xf]
  %v10024 = vld [vmem:[%s3 + $0x10] sm:$0xf]
  %v10025 = vld [vmem:[%s3 + $0x14] sm:$0xf]
  %v10026 = vld [vmem:[%s3 + $0x18] sm:$0xf]
  %v10027 = vld [vmem:[%s3 + $0x1c] sm:$0xf]
  %v10028 = vld [vmem:[%s3 + $0x20] sm:$0xf]
  %v10029 = vld [vmem:[%s3 + $0x24] sm:$0xf]
  %v10030 = vld [vmem:[%s3 + $0x28] sm:$0xf]
  %v10031 = vld [vmem:[%s3 + $0x2c] sm:$0xf]
  %v10032 = vld [vmem:[%s3 + $0x30] sm:$0xf]
  %v10033 = vld [vmem:[%s3 + $0x34] sm:$0xf]
  %v10034 = vld [vmem:[%s3 + $0x38] sm:$0xf]
  %v10035 = vld [vmem:[%s3 + $0x3c] sm:$0xf]
  %v10036 = vld [vmem:[%s3 + $0x40] sm:$0xf]
  %v10037 = vld [vmem:[%s3 + $0x44] sm:$0xf]
  %v10038 = vld [vmem:[%s3 + $0x48] sm:$0xf]
  %v10039 = vld [vmem:[%s3 + $0x4c] sm:$0xf]
  %v10040 = vld [vmem:[%s3 + $0x50] sm:$0xf]
  %v10041 = vld [vmem:[%s3 + $0x54] sm:$0xf]
  %v10042 = vld [vmem:[%s3 + $0x58] sm:$0xf]
  %v10043 = vld [vmem:[%s3 + $0x5c] sm:$0xf]
  %v10044 = vld [vmem:[%s3 + $0x60] sm:$0xf]
  %v10045 = vld [vmem:[%s3 + $0x64] sm:$0xf]
  %v10046 = vld [vmem:[%s3 + $0x68] sm:$0xf]
  %v10047 = vld [vmem:[%s3 + $0x6c] sm:$0xf]
  %v10048 = vld [vmem:[%s3 + $0x70] sm:$0xf]
  %v10049 = vld [vmem:[%s3 + $0x74] sm:$0xf]
  %v10050 = vld [vmem:[%s3 + $0x78] sm:$0xf]
  %v10051 = vld [vmem:[%s3 + $0x7c] sm:$0xf]
  %v10052 = vld [vmem:[%s3 + $0x80] sm:$0xf]
  %v10053 = vld [vmem:[%s3 + $0x84] sm:$0xf]
  %v10054 = vld [vmem:[%s3 + $0x88] sm:$0xf]
  %v10055 = vld [vmem:[%s3 + $0x8c] sm:$0xf]
  %v10056 = vld [vmem:[%s3 + $0x90] sm:$0xf]
  %v10057 = vld [vmem:[%s3 + $0x94] sm:$0xf]
  %v10058 = vld [vmem:[%s3 + $0x98] sm:$0xf]
  %v10059 = vld [vmem:[%s3 + $0x9c] sm:$0xf]
  %v10060 = vld [vmem:[%s3 + $0xa0] sm:$0xf]
  %v10061 = vld [vmem:[%s3 + $0xa4] sm:$0xf]
  %v10062 = vld [vmem:[%s3 + $0xa8] sm:$0xf]
  %v10063 = vld [vmem:[%s3 + $0xac] sm:$0xf]
  %v10064 = vld [vmem:[%s3 + $0xb0] sm:$0xf]
  %v10065 = vld [vmem:[%s3 + $0xb4] sm:$0xf]
  %v10066 = vld [vmem:[%s3 + $0xb8] sm:$0xf]
  %v10067 = vld [vmem:[%s3 + $0xbc] sm:$0xf]
  %v10068 = vld [vmem:[%s8739] sm:$0xf]
  %v10069 = vld [vmem:[%s8739 + $0x4] sm:$0xf]
  %v10070 = vld [vmem:[%s8739 + $0xc] sm:$0xf]
  %v10071 = vld [vmem:[%s8739 + $0x10] sm:$0xf]
  %v10072 = vld [vmem:[%s8739 + $0x18] sm:$0xf]
  %v10073 = vld [vmem:[%s8739 + $0x1c] sm:$0xf]
  %v10074 = vld [vmem:[%s8739 + $0x24] sm:$0xf]
  %v10075 = vld [vmem:[%s8739 + $0x28] sm:$0xf]
  %v10076 = vld [vmem:[%s8739 + $0x30] sm:$0xf]
  %v10077 = vld [vmem:[%s8739 + $0x34] sm:$0xf]
  %v10078 = vld [vmem:[%s8739 + $0x3c] sm:$0xf]
  %v10079 = vld [vmem:[%s8739 + $0x40] sm:$0xf]
  %v10080 = vld [vmem:[%s8739 + $0x48] sm:$0xf]
  %v10081 = vld [vmem:[%s8739 + $0x4c] sm:$0xf]
  %v10082 = vld [vmem:[%s8739 + $0x54] sm:$0xf]
  %v10083 = vld [vmem:[%s8739 + $0x58] sm:$0xf]
  %v10084 = vld [vmem:[%s8739 + $0x60] sm:$0xf]
  %v10085 = vld [vmem:[%s8739 + $0x64] sm:$0xf]
  %v10086 = vld [vmem:[%s8739 + $0x6c] sm:$0xf]
  %v10087 = vld [vmem:[%s8739 + $0x70] sm:$0xf]
  %v10088 = vld [vmem:[%s8739 + $0x78] sm:$0xf]
  %v10089 = vld [vmem:[%s8739 + $0x7c] sm:$0xf]
  %v10090 = vld [vmem:[%s8739 + $0x84] sm:$0xf]
  %v10091 = vld [vmem:[%s8739 + $0x88] sm:$0xf]
  %v10092 = vld [vmem:[%s8739 + $0x90] sm:$0xf]
  %v10093 = vld [vmem:[%s8739 + $0x94] sm:$0xf]
  %v10094 = vld [vmem:[%s8739 + $0x9c] sm:$0xf]
  %v10095 = vld [vmem:[%s8739 + $0xa0] sm:$0xf]
  %v10096 = vld [vmem:[%s8739 + $0xa8] sm:$0xf]
  %v10097 = vld [vmem:[%s8739 + $0xac] sm:$0xf]
  %v10098 = vld [vmem:[%s8739 + $0xb4] sm:$0xf]
  %v10099 = vld [vmem:[%s8739 + $0xb8] sm:$0xf]
  %v10100 = vld [vmem:[%s8739 + $0xd8] sm:$0xf]
  %v10101 = vld [vmem:[%s8739 + $0xdc] sm:$0xf]
  %v10102 = vld [vmem:[%s8739 + $0xe4] sm:$0xf]
  %v10103 = vld [vmem:[%s8739 + $0xe8] sm:$0xf]
  %v10104 = vld [vmem:[%s8739 + $0xf0] sm:$0xf]
  %v10105 = vld [vmem:[%s8739 + $0xf4] sm:$0xf]
  %v10106 = vld [vmem:[%s8739 + $0xfc] sm:$0xf]
  %v10107 = vld [vmem:[%s8739 + $0x100] sm:$0xf]
  %v10108 = vld [vmem:[%s8739 + $0x108] sm:$0xf]
  %v10109 = vld [vmem:[%s8739 + $0x10c] sm:$0xf]
  %v10110 = vld [vmem:[%s8739 + $0x114] sm:$0xf]
  %v10111 = vld [vmem:[%s8739 + $0x118] sm:$0xf]
  %v10112 = vld [vmem:[%s8739 + $0x120] sm:$0xf]
  %v10113 = vld [vmem:[%s8739 + $0x124] sm:$0xf]
  %v10114 = vld [vmem:[%s8739 + $0x12c] sm:$0xf]
  %v10115 = vld [vmem:[%s8739 + $0x130] sm:$0xf]
  %v10116 = vld [vmem:[%s8739 + $0x138] sm:$0xf]
  %v10117 = vld [vmem:[%s8739 + $0x13c] sm:$0xf]
  %v10118 = vld [vmem:[%s8739 + $0x144] sm:$0xf]
  %v10119 = vld [vmem:[%s8739 + $0x148] sm:$0xf]
  %v10120 = vld [vmem:[%s8739 + $0x150] sm:$0xf]
  %v10121 = vld [vmem:[%s8739 + $0x154] sm:$0xf]
  %v10122 = vld [vmem:[%s8739 + $0x15c] sm:$0xf]
  %v10123 = vld [vmem:[%s8739 + $0x160] sm:$0xf]
  %v10124 = vld [vmem:[%s8739 + $0x168] sm:$0xf]
  %v10125 = vld [vmem:[%s8739 + $0x16c] sm:$0xf]
  %v10126 = vld [vmem:[%s8739 + $0x174] sm:$0xf]
  %v10127 = vld [vmem:[%s8739 + $0x178] sm:$0xf]
  %v10128 = vld [vmem:[%s8739 + $0x180] sm:$0xf]
  %v10129 = vld [vmem:[%s8739 + $0x184] sm:$0xf]
  %v10130 = vld [vmem:[%s8739 + $0x18c] sm:$0xf]
  %v10131 = vld [vmem:[%s8739 + $0x190] sm:$0xf]
  %v10132 = vld [vmem:[%s8739 + $0x8] sm:$0x1]
  %v10133 = vld [vmem:[%s8739 + $0x14] sm:$0x1]
  %v10134 = vld [vmem:[%s8739 + $0x20] sm:$0x1]
  %v10135 = vld [vmem:[%s8739 + $0x2c] sm:$0x1]
  %v10136 = vld [vmem:[%s8739 + $0x38] sm:$0x1]
  %v10137 = vld [vmem:[%s8739 + $0x44] sm:$0x1]
  %v10138 = vld [vmem:[%s8739 + $0x50] sm:$0x1]
  %v10139 = vld [vmem:[%s8739 + $0x5c] sm:$0x1]
  %v10140 = vld [vmem:[%s8739 + $0x68] sm:$0x1]
  %v10141 = vld [vmem:[%s8739 + $0x74] sm:$0x1]
  %v10142 = vld [vmem:[%s8739 + $0x80] sm:$0x1]
  %v10143 = vld [vmem:[%s8739 + $0x8c] sm:$0x1]
  %v10144 = vld [vmem:[%s8739 + $0x98] sm:$0x1]
  %v10145 = vld [vmem:[%s8739 + $0xa4] sm:$0x1]
  %v10146 = vld [vmem:[%s8739 + $0xb0] sm:$0x1]
  %v10147 = vld [vmem:[%s8739 + $0xbc] sm:$0x1]
  %v10148 = vld [vmem:[%s8739 + $0xe0] sm:$0x1]
  %v10149 = vld [vmem:[%s8739 + $0xec] sm:$0x1]
  %v10150 = vld [vmem:[%s8739 + $0xf8] sm:$0x1]
  %v10151 = vld [vmem:[%s8739 + $0x104] sm:$0x1]
  %v10152 = vld [vmem:[%s8739 + $0x110] sm:$0x1]
  %v10153 = vld [vmem:[%s8739 + $0x11c] sm:$0x1]
  %v10154 = vld [vmem:[%s8739 + $0x128] sm:$0x1]
  %v10155 = vld [vmem:[%s8739 + $0x134] sm:$0x1]
  %v10156 = vld [vmem:[%s8739 + $0x140] sm:$0x1]
  %v10157 = vld [vmem:[%s8739 + $0x14c] sm:$0x1]
  %v10158 = vld [vmem:[%s8739 + $0x158] sm:$0x1]
  %v10159 = vld [vmem:[%s8739 + $0x164] sm:$0x1]
  %v10160 = vld [vmem:[%s8739 + $0x170] sm:$0x1]
  %v10161 = vld [vmem:[%s8739 + $0x17c] sm:$0x1]
  %v10162 = vld [vmem:[%s8739 + $0x188] sm:$0x1]
  %v10163 = vld [vmem:[%s8739 + $0x194] sm:$0x1]
  %v10164 = vld [vmem:[%s8739] sm:$0xe]
  %v10165 = vld [vmem:[%s8739 + $0xc] sm:$0xe]
  %v10166 = vld [vmem:[%s8739 + $0x18] sm:$0xe]
  %v10167 = vld [vmem:[%s8739 + $0x24] sm:$0xe]
  %v10168 = vld [vmem:[%s8739 + $0x30] sm:$0xe]
  %v10169 = vld [vmem:[%s8739 + $0x3c] sm:$0xe]
  %v10170 = vld [vmem:[%s8739 + $0x48] sm:$0xe]
  %v10171 = vld [vmem:[%s8739 + $0x54] sm:$0xe]
  %v10172 = vld [vmem:[%s8739 + $0x60] sm:$0xe]
  %v10173 = vld [vmem:[%s8739 + $0x6c] sm:$0xe]
  %v10174 = vld [vmem:[%s8739 + $0x78] sm:$0xe]
  %v10175 = vld [vmem:[%s8739 + $0x84] sm:$0xe]
  %v10176 = vld [vmem:[%s8739 + $0x90] sm:$0xe]
  %v10177 = vld [vmem:[%s8739 + $0x9c] sm:$0xe]
  %v10178 = vld [vmem:[%s8739 + $0xa8] sm:$0xe]
  %v10179 = vld [vmem:[%s8739 + $0xb4] sm:$0xe]
  %v10180 = vld [vmem:[%s8739 + $0xd8] sm:$0xe]
  %v10181 = vld [vmem:[%s8739 + $0xe4] sm:$0xe]
  %v10182 = vld [vmem:[%s8739 + $0xf0] sm:$0xe]
  %v10183 = vld [vmem:[%s8739 + $0xfc] sm:$0xe]
  %v10184 = vld [vmem:[%s8739 + $0x108] sm:$0xe]
  %v10185 = vld [vmem:[%s8739 + $0x114] sm:$0xe]
  %v10186 = vld [vmem:[%s8739 + $0x120] sm:$0xe]
  %v10187 = vld [vmem:[%s8739 + $0x12c] sm:$0xe]
  %v10188 = vld [vmem:[%s8739 + $0x138] sm:$0xe]
  %v10189 = vld [vmem:[%s8739 + $0x144] sm:$0xe]
  %v10190 = vld [vmem:[%s8739 + $0x150] sm:$0xe]
  %v10191 = vld [vmem:[%s8739 + $0x15c] sm:$0xe]
  %v10192 = vld [vmem:[%s8739 + $0x168] sm:$0xe]
  %v10193 = vld [vmem:[%s8739 + $0x174] sm:$0xe]
  %v10194 = vld [vmem:[%s8739 + $0x180] sm:$0xe]
  %v10195 = vld [vmem:[%s8739 + $0x18c] sm:$0xe]
  %v10260 = vunpack.c.l.b16 %v10068
  %v10261 = vunpack.c.l.b16 %v10069
  %v10262 = vunpack.c.l.b16 %v10070
  %v10263 = vunpack.c.l.b16 %v10071
  %v10264 = vunpack.c.l.b16 %v10072
  %v10265 = vunpack.c.l.b16 %v10073
  %v10266 = vunpack.c.l.b16 %v10074
  %v10267 = vunpack.c.l.b16 %v10075
  %v10268 = vunpack.c.l.b16 %v10076
  %v10269 = vunpack.c.l.b16 %v10077
  %v10270 = vunpack.c.l.b16 %v10078
  %v10271 = vunpack.c.l.b16 %v10079
  %v10272 = vunpack.c.l.b16 %v10080
  %v10273 = vunpack.c.l.b16 %v10081
  %v10274 = vunpack.c.l.b16 %v10082
  %v10275 = vunpack.c.l.b16 %v10083
  %v10276 = vunpack.c.l.b16 %v10084
  %v10277 = vunpack.c.l.b16 %v10085
  %v10278 = vunpack.c.l.b16 %v10086
  %v10279 = vunpack.c.l.b16 %v10087
  %v10280 = vunpack.c.l.b16 %v10088
  %v10281 = vunpack.c.l.b16 %v10089
  %v10282 = vunpack.c.l.b16 %v10090
  %v10283 = vunpack.c.l.b16 %v10091
  %v10284 = vunpack.c.l.b16 %v10092
  %v10285 = vunpack.c.l.b16 %v10093
  %v10286 = vunpack.c.l.b16 %v10094
  %v10287 = vunpack.c.l.b16 %v10095
  %v10288 = vunpack.c.l.b16 %v10096
  %v10289 = vunpack.c.l.b16 %v10097
  %v10290 = vunpack.c.l.b16 %v10098
  %v10291 = vunpack.c.l.b16 %v10099
  %v10292 = vunpack.c.l.b16 %v10100
  %v10293 = vunpack.c.l.b16 %v10101
  %v10294 = vunpack.c.l.b16 %v10102
  %v10295 = vunpack.c.l.b16 %v10103
  %v10296 = vunpack.c.l.b16 %v10104
  %v10297 = vunpack.c.l.b16 %v10105
  %v10298 = vunpack.c.l.b16 %v10106
  %v10299 = vunpack.c.l.b16 %v10107
  %v10300 = vunpack.c.l.b16 %v10108
  %v10301 = vunpack.c.l.b16 %v10109
  %v10302 = vunpack.c.l.b16 %v10110
  %v10303 = vunpack.c.l.b16 %v10111
  %v10304 = vunpack.c.l.b16 %v10112
  %v10305 = vunpack.c.l.b16 %v10113
  %v10306 = vunpack.c.l.b16 %v10114
  %v10307 = vunpack.c.l.b16 %v10115
  %v10308 = vunpack.c.l.b16 %v10116
  %v10309 = vunpack.c.l.b16 %v10117
  %v10310 = vunpack.c.l.b16 %v10118
  %v10311 = vunpack.c.l.b16 %v10119
  %v10312 = vunpack.c.l.b16 %v10120
  %v10313 = vunpack.c.l.b16 %v10121
  %v10314 = vunpack.c.l.b16 %v10122
  %v10315 = vunpack.c.l.b16 %v10123
  %v10316 = vunpack.c.l.b16 %v10124
  %v10317 = vunpack.c.l.b16 %v10125
  %v10318 = vunpack.c.l.b16 %v10126
  %v10319 = vunpack.c.l.b16 %v10127
  %v10320 = vunpack.c.l.b16 %v10128
  %v10321 = vunpack.c.l.b16 %v10129
  %v10322 = vunpack.c.l.b16 %v10130
  %v10323 = vunpack.c.l.b16 %v10131
  %v10324 = vpack.c.b16 %v10261, %v10260
  %v10325 = vpack.c.b16 %v10263, %v10262
  %v10326 = vpack.c.b16 %v10265, %v10264
  %v10327 = vpack.c.b16 %v10267, %v10266
  %v10328 = vpack.c.b16 %v10269, %v10268
  %v10329 = vpack.c.b16 %v10271, %v10270
  %v10330 = vpack.c.b16 %v10273, %v10272
  %v10331 = vpack.c.b16 %v10275, %v10274
  %v10332 = vpack.c.b16 %v10277, %v10276
  %v10333 = vpack.c.b16 %v10279, %v10278
  %v10334 = vpack.c.b16 %v10281, %v10280
  %v10335 = vpack.c.b16 %v10283, %v10282
  %v10336 = vpack.c.b16 %v10285, %v10284
  %v10337 = vpack.c.b16 %v10287, %v10286
  %v10338 = vpack.c.b16 %v10289, %v10288
  %v10339 = vpack.c.b16 %v10291, %v10290
  %v10340 = vpack.c.b16 %v10293, %v10292
  %v10341 = vpack.c.b16 %v10295, %v10294
  %v10342 = vpack.c.b16 %v10297, %v10296
  %v10343 = vpack.c.b16 %v10299, %v10298
  %v10344 = vpack.c.b16 %v10301, %v10300
  %v10345 = vpack.c.b16 %v10303, %v10302
  %v10346 = vpack.c.b16 %v10305, %v10304
  %v10347 = vpack.c.b16 %v10307, %v10306
  %v10348 = vpack.c.b16 %v10309, %v10308
  %v10349 = vpack.c.b16 %v10311, %v10310
  %v10350 = vpack.c.b16 %v10313, %v10312
  %v10351 = vpack.c.b16 %v10315, %v10314
  %v10352 = vpack.c.b16 %v10317, %v10316
  %v10353 = vpack.c.b16 %v10319, %v10318
  %v10354 = vpack.c.b16 %v10321, %v10320
  %v10355 = vpack.c.b16 %v10323, %v10322
  %v10420 = vunpack.c.l.b16 %v10132
  %v10421 = vunpack.c.l.b16 %v10133
  %v10422 = vunpack.c.l.b16 %v10134
  %v10423 = vunpack.c.l.b16 %v10135
  %v10424 = vunpack.c.l.b16 %v10136
  %v10425 = vunpack.c.l.b16 %v10137
  %v10426 = vunpack.c.l.b16 %v10138
  %v10427 = vunpack.c.l.b16 %v10139
  %v10428 = vunpack.c.l.b16 %v10140
  %v10429 = vunpack.c.l.b16 %v10141
  %v10430 = vunpack.c.l.b16 %v10142
  %v10431 = vunpack.c.l.b16 %v10143
  %v10432 = vunpack.c.l.b16 %v10144
  %v10433 = vunpack.c.l.b16 %v10145
  %v10434 = vunpack.c.l.b16 %v10146
  %v10435 = vunpack.c.l.b16 %v10147
  %v10436 = vunpack.c.l.b16 %v10148
  %v10437 = vunpack.c.l.b16 %v10149
  %v10438 = vunpack.c.l.b16 %v10150
  %v10439 = vunpack.c.l.b16 %v10151
  %v10440 = vunpack.c.l.b16 %v10152
  %v10441 = vunpack.c.l.b16 %v10153
  %v10442 = vunpack.c.l.b16 %v10154
  %v10443 = vunpack.c.l.b16 %v10155
  %v10444 = vunpack.c.l.b16 %v10156
  %v10445 = vunpack.c.l.b16 %v10157
  %v10446 = vunpack.c.l.b16 %v10158
  %v10447 = vunpack.c.l.b16 %v10159
  %v10448 = vunpack.c.l.b16 %v10160
  %v10449 = vunpack.c.l.b16 %v10161
  %v10450 = vunpack.c.l.b16 %v10162
  %v10451 = vunpack.c.l.b16 %v10163
  %v10452 = vpack.c.b16 %v10420, %v10420
  %v10453 = vpack.c.b16 %v10421, %v10421
  %v10454 = vpack.c.b16 %v10422, %v10422
  %v10455 = vpack.c.b16 %v10423, %v10423
  %v10456 = vpack.c.b16 %v10424, %v10424
  %v10457 = vpack.c.b16 %v10425, %v10425
  %v10458 = vpack.c.b16 %v10426, %v10426
  %v10459 = vpack.c.b16 %v10427, %v10427
  %v10460 = vpack.c.b16 %v10428, %v10428
  %v10461 = vpack.c.b16 %v10429, %v10429
  %v10462 = vpack.c.b16 %v10430, %v10430
  %v10463 = vpack.c.b16 %v10431, %v10431
  %v10464 = vpack.c.b16 %v10432, %v10432
  %v10465 = vpack.c.b16 %v10433, %v10433
  %v10466 = vpack.c.b16 %v10434, %v10434
  %v10467 = vpack.c.b16 %v10435, %v10435
  %v10468 = vpack.c.b16 %v10436, %v10436
  %v10469 = vpack.c.b16 %v10437, %v10437
  %v10470 = vpack.c.b16 %v10438, %v10438
  %v10471 = vpack.c.b16 %v10439, %v10439
  %v10472 = vpack.c.b16 %v10440, %v10440
  %v10473 = vpack.c.b16 %v10441, %v10441
  %v10474 = vpack.c.b16 %v10442, %v10442
  %v10475 = vpack.c.b16 %v10443, %v10443
  %v10476 = vpack.c.b16 %v10444, %v10444
  %v10477 = vpack.c.b16 %v10445, %v10445
  %v10478 = vpack.c.b16 %v10446, %v10446
  %v10479 = vpack.c.b16 %v10447, %v10447
  %v10480 = vpack.c.b16 %v10448, %v10448
  %v10481 = vpack.c.b16 %v10449, %v10449
  %v10482 = vpack.c.b16 %v10450, %v10450
  %v10483 = vpack.c.b16 %v10451, %v10451
  %v10485 = vshrl.u32 %v10324, 16
  %v10487 = vshll.u32 %v10324, 16
  %v10489 = vrot.slane %v10487, 1
  %v10490 = vor.u32 %v10485, %v10489
  %v10492 = vshll.u32 %v10452, 16
  %v10494 = vrot.slane %v10492, 1
  %v10495 = vsel %vm1836, %v10490, %v10494
  %v10497 = vshrl.u32 %v10325, 16
  %v10499 = vshll.u32 %v10325, 16
  %v10501 = vrot.slane %v10499, 1
  %v10502 = vor.u32 %v10497, %v10501
  %v10504 = vshll.u32 %v10453, 16
  %v10506 = vrot.slane %v10504, 1
  %v10507 = vsel %vm1836, %v10502, %v10506
  %v10509 = vshrl.u32 %v10326, 16
  %v10511 = vshll.u32 %v10326, 16
  %v10513 = vrot.slane %v10511, 1
  %v10514 = vor.u32 %v10509, %v10513
  %v10516 = vshll.u32 %v10454, 16
  %v10518 = vrot.slane %v10516, 1
  %v10519 = vsel %vm1836, %v10514, %v10518
  %v10521 = vshrl.u32 %v10327, 16
  %v10523 = vshll.u32 %v10327, 16
  %v10525 = vrot.slane %v10523, 1
  %v10526 = vor.u32 %v10521, %v10525
  %v10528 = vshll.u32 %v10455, 16
  %v10530 = vrot.slane %v10528, 1
  %v10531 = vsel %vm1836, %v10526, %v10530
  %v10533 = vshrl.u32 %v10328, 16
  %v10535 = vshll.u32 %v10328, 16
  %v10537 = vrot.slane %v10535, 1
  %v10538 = vor.u32 %v10533, %v10537
  %v10540 = vshll.u32 %v10456, 16
  %v10542 = vrot.slane %v10540, 1
  %v10543 = vsel %vm1836, %v10538, %v10542
  %v10545 = vshrl.u32 %v10329, 16
  %v10547 = vshll.u32 %v10329, 16
  %v10549 = vrot.slane %v10547, 1
  %v10550 = vor.u32 %v10545, %v10549
  %v10552 = vshll.u32 %v10457, 16
  %v10554 = vrot.slane %v10552, 1
  %v10555 = vsel %vm1836, %v10550, %v10554
  %v10557 = vshrl.u32 %v10330, 16
  %v10559 = vshll.u32 %v10330, 16
  %v10561 = vrot.slane %v10559, 1
  %v10562 = vor.u32 %v10557, %v10561
  %v10564 = vshll.u32 %v10458, 16
  %v10566 = vrot.slane %v10564, 1
  %v10567 = vsel %vm1836, %v10562, %v10566
  %v10569 = vshrl.u32 %v10331, 16
  %v10571 = vshll.u32 %v10331, 16
  %v10573 = vrot.slane %v10571, 1
  %v10574 = vor.u32 %v10569, %v10573
  %v10576 = vshll.u32 %v10459, 16
  %v10578 = vrot.slane %v10576, 1
  %v10579 = vsel %vm1836, %v10574, %v10578
  %v10581 = vshrl.u32 %v10332, 16
  %v10583 = vshll.u32 %v10332, 16
  %v10585 = vrot.slane %v10583, 1
  %v10586 = vor.u32 %v10581, %v10585
  %v10588 = vshll.u32 %v10460, 16
  %v10590 = vrot.slane %v10588, 1
  %v10591 = vsel %vm1836, %v10586, %v10590
  %v10593 = vshrl.u32 %v10333, 16
  %v10595 = vshll.u32 %v10333, 16
  %v10597 = vrot.slane %v10595, 1
  %v10598 = vor.u32 %v10593, %v10597
  %v10600 = vshll.u32 %v10461, 16
  %v10602 = vrot.slane %v10600, 1
  %v10603 = vsel %vm1836, %v10598, %v10602
  %v10605 = vshrl.u32 %v10334, 16
  %v10607 = vshll.u32 %v10334, 16
  %v10609 = vrot.slane %v10607, 1
  %v10610 = vor.u32 %v10605, %v10609
  %v10612 = vshll.u32 %v10462, 16
  %v10614 = vrot.slane %v10612, 1
  %v10615 = vsel %vm1836, %v10610, %v10614
  %v10617 = vshrl.u32 %v10335, 16
  %v10619 = vshll.u32 %v10335, 16
  %v10621 = vrot.slane %v10619, 1
  %v10622 = vor.u32 %v10617, %v10621
  %v10624 = vshll.u32 %v10463, 16
  %v10626 = vrot.slane %v10624, 1
  %v10627 = vsel %vm1836, %v10622, %v10626
  %v10629 = vshrl.u32 %v10336, 16
  %v10631 = vshll.u32 %v10336, 16
  %v10633 = vrot.slane %v10631, 1
  %v10634 = vor.u32 %v10629, %v10633
  %v10636 = vshll.u32 %v10464, 16
  %v10638 = vrot.slane %v10636, 1
  %v10639 = vsel %vm1836, %v10634, %v10638
  %v10641 = vshrl.u32 %v10337, 16
  %v10643 = vshll.u32 %v10337, 16
  %v10645 = vrot.slane %v10643, 1
  %v10646 = vor.u32 %v10641, %v10645
  %v10648 = vshll.u32 %v10465, 16
  %v10650 = vrot.slane %v10648, 1
  %v10651 = vsel %vm1836, %v10646, %v10650
  %v10653 = vshrl.u32 %v10338, 16
  %v10655 = vshll.u32 %v10338, 16
  %v10657 = vrot.slane %v10655, 1
  %v10658 = vor.u32 %v10653, %v10657
  %v10660 = vshll.u32 %v10466, 16
  %v10662 = vrot.slane %v10660, 1
  %v10663 = vsel %vm1836, %v10658, %v10662
  %v10665 = vshrl.u32 %v10339, 16
  %v10667 = vshll.u32 %v10339, 16
  %v10669 = vrot.slane %v10667, 1
  %v10670 = vor.u32 %v10665, %v10669
  %v10672 = vshll.u32 %v10467, 16
  %v10674 = vrot.slane %v10672, 1
  %v10675 = vsel %vm1836, %v10670, %v10674
  %v10677 = vshrl.u32 %v10340, 16
  %v10679 = vshll.u32 %v10340, 16
  %v10681 = vrot.slane %v10679, 1
  %v10682 = vor.u32 %v10677, %v10681
  %v10684 = vshll.u32 %v10468, 16
  %v10686 = vrot.slane %v10684, 1
  %v10687 = vsel %vm1836, %v10682, %v10686
  %v10689 = vshrl.u32 %v10341, 16
  %v10691 = vshll.u32 %v10341, 16
  %v10693 = vrot.slane %v10691, 1
  %v10694 = vor.u32 %v10689, %v10693
  %v10696 = vshll.u32 %v10469, 16
  %v10698 = vrot.slane %v10696, 1
  %v10699 = vsel %vm1836, %v10694, %v10698
  %v10701 = vshrl.u32 %v10342, 16
  %v10703 = vshll.u32 %v10342, 16
  %v10705 = vrot.slane %v10703, 1
  %v10706 = vor.u32 %v10701, %v10705
  %v10708 = vshll.u32 %v10470, 16
  %v10710 = vrot.slane %v10708, 1
  %v10711 = vsel %vm1836, %v10706, %v10710
  %v10713 = vshrl.u32 %v10343, 16
  %v10715 = vshll.u32 %v10343, 16
  %v10717 = vrot.slane %v10715, 1
  %v10718 = vor.u32 %v10713, %v10717
  %v10720 = vshll.u32 %v10471, 16
  %v10722 = vrot.slane %v10720, 1
  %v10723 = vsel %vm1836, %v10718, %v10722
  %v10725 = vshrl.u32 %v10344, 16
  %v10727 = vshll.u32 %v10344, 16
  %v10729 = vrot.slane %v10727, 1
  %v10730 = vor.u32 %v10725, %v10729
  %v10732 = vshll.u32 %v10472, 16
  %v10734 = vrot.slane %v10732, 1
  %v10735 = vsel %vm1836, %v10730, %v10734
  %v10737 = vshrl.u32 %v10345, 16
  %v10739 = vshll.u32 %v10345, 16
  %v10741 = vrot.slane %v10739, 1
  %v10742 = vor.u32 %v10737, %v10741
  %v10744 = vshll.u32 %v10473, 16
  %v10746 = vrot.slane %v10744, 1
  %v10747 = vsel %vm1836, %v10742, %v10746
  %v10749 = vshrl.u32 %v10346, 16
  %v10751 = vshll.u32 %v10346, 16
  %v10753 = vrot.slane %v10751, 1
  %v10754 = vor.u32 %v10749, %v10753
  %v10756 = vshll.u32 %v10474, 16
  %v10758 = vrot.slane %v10756, 1
  %v10759 = vsel %vm1836, %v10754, %v10758
  %v10761 = vshrl.u32 %v10347, 16
  %v10763 = vshll.u32 %v10347, 16
  %v10765 = vrot.slane %v10763, 1
  %v10766 = vor.u32 %v10761, %v10765
  %v10768 = vshll.u32 %v10475, 16
  %v10770 = vrot.slane %v10768, 1
  %v10771 = vsel %vm1836, %v10766, %v10770
  %v10773 = vshrl.u32 %v10348, 16
  %v10775 = vshll.u32 %v10348, 16
  %v10777 = vrot.slane %v10775, 1
  %v10778 = vor.u32 %v10773, %v10777
  %v10780 = vshll.u32 %v10476, 16
  %v10782 = vrot.slane %v10780, 1
  %v10783 = vsel %vm1836, %v10778, %v10782
  %v10785 = vshrl.u32 %v10349, 16
  %v10787 = vshll.u32 %v10349, 16
  %v10789 = vrot.slane %v10787, 1
  %v10790 = vor.u32 %v10785, %v10789
  %v10792 = vshll.u32 %v10477, 16
  %v10794 = vrot.slane %v10792, 1
  %v10795 = vsel %vm1836, %v10790, %v10794
  %v10797 = vshrl.u32 %v10350, 16
  %v10799 = vshll.u32 %v10350, 16
  %v10801 = vrot.slane %v10799, 1
  %v10802 = vor.u32 %v10797, %v10801
  %v10804 = vshll.u32 %v10478, 16
  %v10806 = vrot.slane %v10804, 1
  %v10807 = vsel %vm1836, %v10802, %v10806
  %v10809 = vshrl.u32 %v10351, 16
  %v10811 = vshll.u32 %v10351, 16
  %v10813 = vrot.slane %v10811, 1
  %v10814 = vor.u32 %v10809, %v10813
  %v10816 = vshll.u32 %v10479, 16
  %v10818 = vrot.slane %v10816, 1
  %v10819 = vsel %vm1836, %v10814, %v10818
  %v10821 = vshrl.u32 %v10352, 16
  %v10823 = vshll.u32 %v10352, 16
  %v10825 = vrot.slane %v10823, 1
  %v10826 = vor.u32 %v10821, %v10825
  %v10828 = vshll.u32 %v10480, 16
  %v10830 = vrot.slane %v10828, 1
  %v10831 = vsel %vm1836, %v10826, %v10830
  %v10833 = vshrl.u32 %v10353, 16
  %v10835 = vshll.u32 %v10353, 16
  %v10837 = vrot.slane %v10835, 1
  %v10838 = vor.u32 %v10833, %v10837
  %v10840 = vshll.u32 %v10481, 16
  %v10842 = vrot.slane %v10840, 1
  %v10843 = vsel %vm1836, %v10838, %v10842
  %v10845 = vshrl.u32 %v10354, 16
  %v10847 = vshll.u32 %v10354, 16
  %v10849 = vrot.slane %v10847, 1
  %v10850 = vor.u32 %v10845, %v10849
  %v10852 = vshll.u32 %v10482, 16
  %v10854 = vrot.slane %v10852, 1
  %v10855 = vsel %vm1836, %v10850, %v10854
  %v10857 = vshrl.u32 %v10355, 16
  %v10859 = vshll.u32 %v10355, 16
  %v10861 = vrot.slane %v10859, 1
  %v10862 = vor.u32 %v10857, %v10861
  %v10864 = vshll.u32 %v10483, 16
  %v10866 = vrot.slane %v10864, 1
  %v10867 = vsel %vm1836, %v10862, %v10866
  %v10932 = vunpack.c.l.b16 %v10164
  %v10933 = vunpack.c.l.b16 %v10165
  %v10934 = vunpack.c.l.b16 %v10166
  %v10935 = vunpack.c.l.b16 %v10167
  %v10936 = vunpack.c.l.b16 %v10168
  %v10937 = vunpack.c.l.b16 %v10169
  %v10938 = vunpack.c.l.b16 %v10170
  %v10939 = vunpack.c.l.b16 %v10171
  %v10940 = vunpack.c.l.b16 %v10172
  %v10941 = vunpack.c.l.b16 %v10173
  %v10942 = vunpack.c.l.b16 %v10174
  %v10943 = vunpack.c.l.b16 %v10175
  %v10944 = vunpack.c.l.b16 %v10176
  %v10945 = vunpack.c.l.b16 %v10177
  %v10946 = vunpack.c.l.b16 %v10178
  %v10947 = vunpack.c.l.b16 %v10179
  %v10948 = vunpack.c.l.b16 %v10180
  %v10949 = vunpack.c.l.b16 %v10181
  %v10950 = vunpack.c.l.b16 %v10182
  %v10951 = vunpack.c.l.b16 %v10183
  %v10952 = vunpack.c.l.b16 %v10184
  %v10953 = vunpack.c.l.b16 %v10185
  %v10954 = vunpack.c.l.b16 %v10186
  %v10955 = vunpack.c.l.b16 %v10187
  %v10956 = vunpack.c.l.b16 %v10188
  %v10957 = vunpack.c.l.b16 %v10189
  %v10958 = vunpack.c.l.b16 %v10190
  %v10959 = vunpack.c.l.b16 %v10191
  %v10960 = vunpack.c.l.b16 %v10192
  %v10961 = vunpack.c.l.b16 %v10193
  %v10962 = vunpack.c.l.b16 %v10194
  %v10963 = vunpack.c.l.b16 %v10195
  %v10964 = vpack.c.b16 %v10261, %v10932
  %v10965 = vpack.c.b16 %v10263, %v10933
  %v10966 = vpack.c.b16 %v10265, %v10934
  %v10967 = vpack.c.b16 %v10267, %v10935
  %v10968 = vpack.c.b16 %v10269, %v10936
  %v10969 = vpack.c.b16 %v10271, %v10937
  %v10970 = vpack.c.b16 %v10273, %v10938
  %v10971 = vpack.c.b16 %v10275, %v10939
  %v10972 = vpack.c.b16 %v10277, %v10940
  %v10973 = vpack.c.b16 %v10279, %v10941
  %v10974 = vpack.c.b16 %v10281, %v10942
  %v10975 = vpack.c.b16 %v10283, %v10943
  %v10976 = vpack.c.b16 %v10285, %v10944
  %v10977 = vpack.c.b16 %v10287, %v10945
  %v10978 = vpack.c.b16 %v10289, %v10946
  %v10979 = vpack.c.b16 %v10291, %v10947
  %v10980 = vpack.c.b16 %v10293, %v10948
  %v10981 = vpack.c.b16 %v10295, %v10949
  %v10982 = vpack.c.b16 %v10297, %v10950
  %v10983 = vpack.c.b16 %v10299, %v10951
  %v10984 = vpack.c.b16 %v10301, %v10952
  %v10985 = vpack.c.b16 %v10303, %v10953
  %v10986 = vpack.c.b16 %v10305, %v10954
  %v10987 = vpack.c.b16 %v10307, %v10955
  %v10988 = vpack.c.b16 %v10309, %v10956
  %v10989 = vpack.c.b16 %v10311, %v10957
  %v10990 = vpack.c.b16 %v10313, %v10958
  %v10991 = vpack.c.b16 %v10315, %v10959
  %v10992 = vpack.c.b16 %v10317, %v10960
  %v10993 = vpack.c.b16 %v10319, %v10961
  %v10994 = vpack.c.b16 %v10321, %v10962
  %v10995 = vpack.c.b16 %v10323, %v10963
  %v10996 = vrot.slane %v10964, 1
  %v10997 = vrot.slane %v10452, 1
  %v10998 = vsel %vm2349, %v10996, %v10997
  %v10999 = vrot.slane %v10965, 1
  %v11000 = vrot.slane %v10453, 1
  %v11001 = vsel %vm2349, %v10999, %v11000
  %v11002 = vrot.slane %v10966, 1
  %v11003 = vrot.slane %v10454, 1
  %v11004 = vsel %vm2349, %v11002, %v11003
  %v11005 = vrot.slane %v10967, 1
  %v11006 = vrot.slane %v10455, 1
  %v11007 = vsel %vm2349, %v11005, %v11006
  %v11008 = vrot.slane %v10968, 1
  %v11009 = vrot.slane %v10456, 1
  %v11010 = vsel %vm2349, %v11008, %v11009
  %v11011 = vrot.slane %v10969, 1
  %v11012 = vrot.slane %v10457, 1
  %v11013 = vsel %vm2349, %v11011, %v11012
  %v11014 = vrot.slane %v10970, 1
  %v11015 = vrot.slane %v10458, 1
  %v11016 = vsel %vm2349, %v11014, %v11015
  %v11017 = vrot.slane %v10971, 1
  %v11018 = vrot.slane %v10459, 1
  %v11019 = vsel %vm2349, %v11017, %v11018
  %v11020 = vrot.slane %v10972, 1
  %v11021 = vrot.slane %v10460, 1
  %v11022 = vsel %vm2349, %v11020, %v11021
  %v11023 = vrot.slane %v10973, 1
  %v11024 = vrot.slane %v10461, 1
  %v11025 = vsel %vm2349, %v11023, %v11024
  %v11026 = vrot.slane %v10974, 1
  %v11027 = vrot.slane %v10462, 1
  %v11028 = vsel %vm2349, %v11026, %v11027
  %v11029 = vrot.slane %v10975, 1
  %v11030 = vrot.slane %v10463, 1
  %v11031 = vsel %vm2349, %v11029, %v11030
  %v11032 = vrot.slane %v10976, 1
  %v11033 = vrot.slane %v10464, 1
  %v11034 = vsel %vm2349, %v11032, %v11033
  %v11035 = vrot.slane %v10977, 1
  %v11036 = vrot.slane %v10465, 1
  %v11037 = vsel %vm2349, %v11035, %v11036
  %v11038 = vrot.slane %v10978, 1
  %v11039 = vrot.slane %v10466, 1
  %v11040 = vsel %vm2349, %v11038, %v11039
  %v11041 = vrot.slane %v10979, 1
  %v11042 = vrot.slane %v10467, 1
  %v11043 = vsel %vm2349, %v11041, %v11042
  %v11044 = vrot.slane %v10980, 1
  %v11045 = vrot.slane %v10468, 1
  %v11046 = vsel %vm2349, %v11044, %v11045
  %v11047 = vrot.slane %v10981, 1
  %v11048 = vrot.slane %v10469, 1
  %v11049 = vsel %vm2349, %v11047, %v11048
  %v11050 = vrot.slane %v10982, 1
  %v11051 = vrot.slane %v10470, 1
  %v11052 = vsel %vm2349, %v11050, %v11051
  %v11053 = vrot.slane %v10983, 1
  %v11054 = vrot.slane %v10471, 1
  %v11055 = vsel %vm2349, %v11053, %v11054
  %v11056 = vrot.slane %v10984, 1
  %v11057 = vrot.slane %v10472, 1
  %v11058 = vsel %vm2349, %v11056, %v11057
  %v11059 = vrot.slane %v10985, 1
  %v11060 = vrot.slane %v10473, 1
  %v11061 = vsel %vm2349, %v11059, %v11060
  %v11062 = vrot.slane %v10986, 1
  %v11063 = vrot.slane %v10474, 1
  %v11064 = vsel %vm2349, %v11062, %v11063
  %v11065 = vrot.slane %v10987, 1
  %v11066 = vrot.slane %v10475, 1
  %v11067 = vsel %vm2349, %v11065, %v11066
  %v11068 = vrot.slane %v10988, 1
  %v11069 = vrot.slane %v10476, 1
  %v11070 = vsel %vm2349, %v11068, %v11069
  %v11071 = vrot.slane %v10989, 1
  %v11072 = vrot.slane %v10477, 1
  %v11073 = vsel %vm2349, %v11071, %v11072
  %v11074 = vrot.slane %v10990, 1
  %v11075 = vrot.slane %v10478, 1
  %v11076 = vsel %vm2349, %v11074, %v11075
  %v11077 = vrot.slane %v10991, 1
  %v11078 = vrot.slane %v10479, 1
  %v11079 = vsel %vm2349, %v11077, %v11078
  %v11080 = vrot.slane %v10992, 1
  %v11081 = vrot.slane %v10480, 1
  %v11082 = vsel %vm2349, %v11080, %v11081
  %v11083 = vrot.slane %v10993, 1
  %v11084 = vrot.slane %v10481, 1
  %v11085 = vsel %vm2349, %v11083, %v11084
  %v11086 = vrot.slane %v10994, 1
  %v11087 = vrot.slane %v10482, 1
  %v11088 = vsel %vm2349, %v11086, %v11087
  %v11089 = vrot.slane %v10995, 1
  %v11090 = vrot.slane %v10483, 1
  %v11091 = vsel %vm2349, %v11089, %v11090
  %v11124 = vld [vmem:[%s3 + $0xc0] sm:$0xf]
  %v11125 = vld [vmem:[%s3 + $0xc4] sm:$0xf]
  %v11126 = vld [vmem:[%s3 + $0xc8] sm:$0xf]
  %v11127 = vld [vmem:[%s3 + $0xcc] sm:$0xf]
  %v11128 = vld [vmem:[%s3 + $0xd0] sm:$0xf]
  %v11129 = vld [vmem:[%s3 + $0xd4] sm:$0xf]
  %v11130 = vld [vmem:[%s3 + $0xd8] sm:$0xf]
  %v11131 = vld [vmem:[%s3 + $0xdc] sm:$0xf]
  %v11132 = vld [vmem:[%s3 + $0xe0] sm:$0xf]
  %v11133 = vld [vmem:[%s3 + $0xe4] sm:$0xf]
  %v11134 = vld [vmem:[%s3 + $0xe8] sm:$0xf]
  %v11135 = vld [vmem:[%s3 + $0xec] sm:$0xf]
  %v11136 = vld [vmem:[%s3 + $0xf0] sm:$0xf]
  %v11137 = vld [vmem:[%s3 + $0xf4] sm:$0xf]
  %v11138 = vld [vmem:[%s3 + $0xf8] sm:$0xf]
  %v11139 = vld [vmem:[%s3 + $0xfc] sm:$0xf]
  %v11140 = vld [vmem:[%s3 + $0x100] sm:$0xf]
  %v11141 = vld [vmem:[%s3 + $0x104] sm:$0xf]
  %v11142 = vld [vmem:[%s3 + $0x108] sm:$0xf]
  %v11143 = vld [vmem:[%s3 + $0x10c] sm:$0xf]
  %v11144 = vld [vmem:[%s3 + $0x110] sm:$0xf]
  %v11145 = vld [vmem:[%s3 + $0x114] sm:$0xf]
  %v11146 = vld [vmem:[%s3 + $0x118] sm:$0xf]
  %v11147 = vld [vmem:[%s3 + $0x11c] sm:$0xf]
  %v11148 = vld [vmem:[%s3 + $0x120] sm:$0xf]
  %v11149 = vld [vmem:[%s3 + $0x124] sm:$0xf]
  %v11150 = vld [vmem:[%s3 + $0x128] sm:$0xf]
  %v11151 = vld [vmem:[%s3 + $0x12c] sm:$0xf]
  %v11152 = vld [vmem:[%s3 + $0x130] sm:$0xf]
  %v11153 = vld [vmem:[%s3 + $0x134] sm:$0xf]
  %v11154 = vld [vmem:[%s3 + $0x138] sm:$0xf]
  %v11155 = vld [vmem:[%s3 + $0x13c] sm:$0xf]
  %v11156 = vld [vmem:[%s3 + $0x140] sm:$0xf]
  %v11157 = vld [vmem:[%s3 + $0x144] sm:$0xf]
  %v11158 = vld [vmem:[%s3 + $0x148] sm:$0xf]
  %v11159 = vld [vmem:[%s3 + $0x14c] sm:$0xf]
  %v11160 = vld [vmem:[%s3 + $0x150] sm:$0xf]
  %v11161 = vld [vmem:[%s3 + $0x154] sm:$0xf]
  %v11162 = vld [vmem:[%s3 + $0x158] sm:$0xf]
  %v11163 = vld [vmem:[%s3 + $0x15c] sm:$0xf]
  %v11164 = vld [vmem:[%s3 + $0x160] sm:$0xf]
  %v11165 = vld [vmem:[%s3 + $0x164] sm:$0xf]
  %v11166 = vld [vmem:[%s3 + $0x168] sm:$0xf]
  %v11167 = vld [vmem:[%s3 + $0x16c] sm:$0xf]
  %v11168 = vld [vmem:[%s3 + $0x170] sm:$0xf]
  %v11169 = vld [vmem:[%s3 + $0x174] sm:$0xf]
  %v11170 = vld [vmem:[%s3 + $0x178] sm:$0xf]
  %v11171 = vld [vmem:[%s3 + $0x17c] sm:$0xf]
  %v11220 = vunpack.c.l.b16 %v11124
  %v11221 = vunpack.c.l.b16 %v11125
  %v11222 = vunpack.c.l.b16 %v11126
  %v11223 = vunpack.c.l.b16 %v11127
  %v11224 = vunpack.c.l.b16 %v11128
  %v11225 = vunpack.c.l.b16 %v11129
  %v11226 = vunpack.c.l.b16 %v11130
  %v11227 = vunpack.c.l.b16 %v11131
  %v11228 = vunpack.c.l.b16 %v11132
  %v11229 = vunpack.c.l.b16 %v11133
  %v11230 = vunpack.c.l.b16 %v11134
  %v11231 = vunpack.c.l.b16 %v11135
  %v11232 = vunpack.c.l.b16 %v11136
  %v11233 = vunpack.c.l.b16 %v11137
  %v11234 = vunpack.c.l.b16 %v11138
  %v11235 = vunpack.c.l.b16 %v11139
  %v11236 = vunpack.c.l.b16 %v11140
  %v11237 = vunpack.c.l.b16 %v11141
  %v11238 = vunpack.c.l.b16 %v11142
  %v11239 = vunpack.c.l.b16 %v11143
  %v11240 = vunpack.c.l.b16 %v11144
  %v11241 = vunpack.c.l.b16 %v11145
  %v11242 = vunpack.c.l.b16 %v11146
  %v11243 = vunpack.c.l.b16 %v11147
  %v11244 = vunpack.c.l.b16 %v11148
  %v11245 = vunpack.c.l.b16 %v11149
  %v11246 = vunpack.c.l.b16 %v11150
  %v11247 = vunpack.c.l.b16 %v11151
  %v11248 = vunpack.c.l.b16 %v11152
  %v11249 = vunpack.c.l.b16 %v11153
  %v11250 = vunpack.c.l.b16 %v11154
  %v11251 = vunpack.c.l.b16 %v11155
  %v11252 = vunpack.c.l.b16 %v11156
  %v11253 = vunpack.c.l.b16 %v11157
  %v11254 = vunpack.c.l.b16 %v11158
  %v11255 = vunpack.c.l.b16 %v11159
  %v11256 = vunpack.c.l.b16 %v11160
  %v11257 = vunpack.c.l.b16 %v11161
  %v11258 = vunpack.c.l.b16 %v11162
  %v11259 = vunpack.c.l.b16 %v11163
  %v11260 = vunpack.c.l.b16 %v11164
  %v11261 = vunpack.c.l.b16 %v11165
  %v11262 = vunpack.c.l.b16 %v11166
  %v11263 = vunpack.c.l.b16 %v11167
  %v11264 = vunpack.c.l.b16 %v11168
  %v11265 = vunpack.c.l.b16 %v11169
  %v11266 = vunpack.c.l.b16 %v11170
  %v11267 = vunpack.c.l.b16 %v11171
  %v11268 = vpack.c.b16 %v11221, %v11220
  %v11269 = vpack.c.b16 %v11223, %v11222
  %v11270 = vpack.c.b16 %v11225, %v11224
  %v11271 = vpack.c.b16 %v11227, %v11226
  %v11272 = vpack.c.b16 %v11229, %v11228
  %v11273 = vpack.c.b16 %v11231, %v11230
  %v11274 = vpack.c.b16 %v11233, %v11232
  %v11275 = vpack.c.b16 %v11235, %v11234
  %v11276 = vpack.c.b16 %v11237, %v11236
  %v11277 = vpack.c.b16 %v11239, %v11238
  %v11278 = vpack.c.b16 %v11241, %v11240
  %v11279 = vpack.c.b16 %v11243, %v11242
  %v11280 = vpack.c.b16 %v11245, %v11244
  %v11281 = vpack.c.b16 %v11247, %v11246
  %v11282 = vpack.c.b16 %v11249, %v11248
  %v11283 = vpack.c.b16 %v11251, %v11250
  %v11284 = vpack.c.b16 %v11253, %v11252
  %v11285 = vpack.c.b16 %v11255, %v11254
  %v11286 = vpack.c.b16 %v11257, %v11256
  %v11287 = vpack.c.b16 %v11259, %v11258
  %v11288 = vpack.c.b16 %v11261, %v11260
  %v11289 = vpack.c.b16 %v11263, %v11262
  %v11290 = vpack.c.b16 %v11265, %v11264
  %v11291 = vpack.c.b16 %v11267, %v11266
  %11316 = vmatprep.subr.bf16.mxu0 0
  %11317 = vmatpush1.bf16.msra.mxu0 %v11268
  %11318 = vmatprep.subr.bf16.mxu0 0
  %11319 = vmatpush1.bf16.msra.mxu0 %v11269
  %11320 = vmatprep.subr.bf16.mxu0 0
  %11321 = vmatpush1.bf16.msra.mxu0 %v11270
  %11322 = vmatprep.subr.bf16.mxu0 0
  %11323 = vmatpush1.bf16.msra.mxu0 %v11271
  %11324 = vmatprep.subr.bf16.mxu0 0
  %11325 = vmatpush1.bf16.msra.mxu0 %v11272
  %11326 = vmatprep.subr.bf16.mxu0 0
  %11327 = vmatpush1.bf16.msra.mxu0 %v11273
  %11328 = vmatprep.subr.bf16.mxu0 0
  %11329 = vmatpush1.bf16.msra.mxu0 %v11274
  %11330 = vmatprep.subr.bf16.mxu0 0
  %11331 = vmatpush1.bf16.msra.mxu0 %v11275
  %11332 = vmatprep.subr.bf16.mxu0 0
  %11333 = vmatpush1.bf16.msra.mxu0 %v11276
  %11334 = vmatprep.subr.bf16.mxu0 0
  %11335 = vmatpush1.bf16.msra.mxu0 %v11277
  %11336 = vmatprep.subr.bf16.mxu0 0
  %11337 = vmatpush1.bf16.msra.mxu0 %v11278
  %11338 = vmatprep.subr.bf16.mxu0 0
  %11339 = vmatpush1.bf16.msra.mxu0 %v11279
  %11340 = vmatprep.subr.bf16.mxu0 0
  %11341 = vmatpush1.bf16.msra.mxu0 %v11280
  %11342 = vmatprep.subr.bf16.mxu0 0
  %11343 = vmatpush1.bf16.msra.mxu0 %v11281
  %11344 = vmatprep.subr.bf16.mxu0 0
  %11345 = vmatpush1.bf16.msra.mxu0 %v11282
  %11346 = vmatprep.subr.bf16.mxu0 0
  %11347 = vmatpush1.bf16.msra.mxu0 %v11283
  %11348 = vmatprep.mubr.bf16.mxu0 %v10495
  %11349 = vmatmul.mubr.bf16.gmra.mrb[0].mxu0 %v10324
  %v11350 = vpop.f32.mrb[0].mxu0
  %v11351 = vadd.f32 0.0, %v11350
  %v11352 = vpop.f32.mrb[0].mxu0
  %v11353 = vpop.f32.mrb[0].mxu0
  %v11354 = vadd.f32 0.0, %v11353
  %v11355 = vpop.f32.mrb[0].mxu0
  %11356 = vmatprep.mubr.bf16.mxu0 %v10507
  %11357 = vmatmul.mubr.bf16.gmra.mrb[0].mxu0 %v10325
  %v11358 = vpop.f32.mrb[0].mxu0
  %v11359 = vadd.f32 0.0, %v11358
  %v11360 = vpop.f32.mrb[0].mxu0
  %v11361 = vpop.f32.mrb[0].mxu0
  %v11362 = vadd.f32 0.0, %v11361
  %v11363 = vpop.f32.mrb[0].mxu0
  %11364 = vmatprep.mubr.bf16.mxu0 %v10519
  %11365 = vmatmul.mubr.bf16.gmra.mrb[0].mxu0 %v10326
  %v11366 = vpop.f32.mrb[0].mxu0
  %v11367 = vadd.f32 0.0, %v11366
  %v11368 = vpop.f32.mrb[0].mxu0
  %v11369 = vpop.f32.mrb[0].mxu0
  %v11370 = vadd.f32 0.0, %v11369
  %v11371 = vpop.f32.mrb[0].mxu0
  %11372 = vmatprep.mubr.bf16.mxu0 %v10531
  %11373 = vmatmul.mubr.bf16.gmra.mrb[0].mxu0 %v10327
  %v11374 = vpop.f32.mrb[0].mxu0
  %v11375 = vadd.f32 0.0, %v11374
  %v11376 = vpop.f32.mrb[0].mxu0
  %v11377 = vpop.f32.mrb[0].mxu0
  %v11378 = vadd.f32 0.0, %v11377
  %v11379 = vpop.f32.mrb[0].mxu0
  %11380 = vmatprep.mubr.bf16.mxu0 %v10543
  %11381 = vmatmul.mubr.bf16.gmra.mrb[0].mxu0 %v10328
  %v11382 = vpop.f32.mrb[0].mxu0
  %v11383 = vadd.f32 0.0, %v11382
  %v11384 = vpop.f32.mrb[0].mxu0
  %v11385 = vpop.f32.mrb[0].mxu0
  %v11386 = vadd.f32 0.0, %v11385
  %v11387 = vpop.f32.mrb[0].mxu0
  %11388 = vmatprep.mubr.bf16.mxu0 %v10555
  %11389 = vmatmul.mubr.bf16.gmra.mrb[0].mxu0 %v10329
  %v11390 = vpop.f32.mrb[0].mxu0
  %v11391 = vadd.f32 0.0, %v11390
  %v11392 = vpop.f32.mrb[0].mxu0
  %v11393 = vpop.f32.mrb[0].mxu0
  %v11394 = vadd.f32 0.0, %v11393
  %v11395 = vpop.f32.mrb[0].mxu0
  %11396 = vmatprep.mubr.bf16.mxu0 %v10567
  %11397 = vmatmul.mubr.bf16.gmra.mrb[0].mxu0 %v10330
  %v11398 = vpop.f32.mrb[0].mxu0
  %v11399 = vadd.f32 0.0, %v11398
  %v11400 = vpop.f32.mrb[0].mxu0
  %v11401 = vpop.f32.mrb[0].mxu0
  %v11402 = vadd.f32 0.0, %v11401
  %v11403 = vpop.f32.mrb[0].mxu0
  %11404 = vmatprep.mubr.bf16.mxu0 %v10579
  %11405 = vmatmul.mubr.bf16.gmra.mrb[0].mxu0 %v10331
  %v11406 = vpop.f32.mrb[0].mxu0
  %v11407 = vadd.f32 0.0, %v11406
  %v11408 = vpop.f32.mrb[0].mxu0
  %v11409 = vpop.f32.mrb[0].mxu0
  %v11410 = vadd.f32 0.0, %v11409
  %v11411 = vpop.f32.mrb[0].mxu0
  %11412 = vmatprep.mubr.bf16.mxu0 %v10591
  %11413 = vmatmul.mubr.bf16.gmra.mrb[0].mxu0 %v10332
  %v11414 = vpop.f32.mrb[0].mxu0
  %v11415 = vadd.f32 0.0, %v11414
  %v11416 = vpop.f32.mrb[0].mxu0
  %v11417 = vpop.f32.mrb[0].mxu0
  %v11418 = vadd.f32 0.0, %v11417
  %v11419 = vpop.f32.mrb[0].mxu0
  %11420 = vmatprep.mubr.bf16.mxu0 %v10603
  %11421 = vmatmul.mubr.bf16.gmra.mrb[0].mxu0 %v10333
  %v11422 = vpop.f32.mrb[0].mxu0
  %v11423 = vadd.f32 0.0, %v11422
  %v11424 = vpop.f32.mrb[0].mxu0
  %v11425 = vpop.f32.mrb[0].mxu0
  %v11426 = vadd.f32 0.0, %v11425
  %v11427 = vpop.f32.mrb[0].mxu0
  %11428 = vmatprep.mubr.bf16.mxu0 %v10615
  %11429 = vmatmul.mubr.bf16.gmra.mrb[0].mxu0 %v10334
  %v11430 = vpop.f32.mrb[0].mxu0
  %v11431 = vadd.f32 0.0, %v11430
  %v11432 = vpop.f32.mrb[0].mxu0
  %v11433 = vpop.f32.mrb[0].mxu0
  %v11434 = vadd.f32 0.0, %v11433
  %v11435 = vpop.f32.mrb[0].mxu0
  %11436 = vmatprep.mubr.bf16.mxu0 %v10627
  %11437 = vmatmul.mubr.bf16.gmra.mrb[0].mxu0 %v10335
  %v11438 = vpop.f32.mrb[0].mxu0
  %v11439 = vadd.f32 0.0, %v11438
  %v11440 = vpop.f32.mrb[0].mxu0
  %v11441 = vpop.f32.mrb[0].mxu0
  %v11442 = vadd.f32 0.0, %v11441
  %v11443 = vpop.f32.mrb[0].mxu0
  %11444 = vmatprep.mubr.bf16.mxu0 %v10639
  %11445 = vmatmul.mubr.bf16.gmra.mrb[0].mxu0 %v10336
  %v11446 = vpop.f32.mrb[0].mxu0
  %v11447 = vadd.f32 0.0, %v11446
  %v11448 = vpop.f32.mrb[0].mxu0
  %v11449 = vpop.f32.mrb[0].mxu0
  %v11450 = vadd.f32 0.0, %v11449
  %v11451 = vpop.f32.mrb[0].mxu0
  %11452 = vmatprep.mubr.bf16.mxu0 %v10651
  %11453 = vmatmul.mubr.bf16.gmra.mrb[0].mxu0 %v10337
  %v11454 = vpop.f32.mrb[0].mxu0
  %v11455 = vadd.f32 0.0, %v11454
  %v11456 = vpop.f32.mrb[0].mxu0
  %v11457 = vpop.f32.mrb[0].mxu0
  %v11458 = vadd.f32 0.0, %v11457
  %v11459 = vpop.f32.mrb[0].mxu0
  %11460 = vmatprep.mubr.bf16.mxu0 %v10663
  %11461 = vmatmul.mubr.bf16.gmra.mrb[0].mxu0 %v10338
  %v11462 = vpop.f32.mrb[0].mxu0
  %v11463 = vadd.f32 0.0, %v11462
  %v11464 = vpop.f32.mrb[0].mxu0
  %v11465 = vpop.f32.mrb[0].mxu0
  %v11466 = vadd.f32 0.0, %v11465
  %v11467 = vpop.f32.mrb[0].mxu0
  %11468 = vmatprep.mubr.bf16.mxu0 %v10675
  %11469 = vmatmul.mubr.bf16.gmra.mrb[0].mxu0 %v10339
  %v11470 = vpop.f32.mrb[0].mxu0
  %v11471 = vadd.f32 0.0, %v11470
  %v11472 = vpop.f32.mrb[0].mxu0
  %v11473 = vpop.f32.mrb[0].mxu0
  %v11474 = vadd.f32 0.0, %v11473
  %v11475 = vpop.f32.mrb[0].mxu0
  %11476 = vmatprep.mubr.bf16.mxu0 %v10687
  %11477 = vmatmul.mubr.bf16.gmra.mrb[0].mxu0 %v10340
  %v11478 = vpop.f32.mrb[0].mxu0
  %v11479 = vadd.f32 0.0, %v11478
  %v11480 = vpop.f32.mrb[0].mxu0
  %v11481 = vpop.f32.mrb[0].mxu0
  %v11482 = vadd.f32 0.0, %v11481
  %v11483 = vpop.f32.mrb[0].mxu0
  %11484 = vmatprep.mubr.bf16.mxu0 %v10699
  %11485 = vmatmul.mubr.bf16.gmra.mrb[0].mxu0 %v10341
  %v11486 = vpop.f32.mrb[0].mxu0
  %v11487 = vadd.f32 0.0, %v11486
  %v11488 = vpop.f32.mrb[0].mxu0
  %v11489 = vpop.f32.mrb[0].mxu0
  %v11490 = vadd.f32 0.0, %v11489
  %v11491 = vpop.f32.mrb[0].mxu0
  %11492 = vmatprep.mubr.bf16.mxu0 %v10711
  %11493 = vmatmul.mubr.bf16.gmra.mrb[0].mxu0 %v10342
  %v11494 = vpop.f32.mrb[0].mxu0
  %v11495 = vadd.f32 0.0, %v11494
  %v11496 = vpop.f32.mrb[0].mxu0
  %v11497 = vpop.f32.mrb[0].mxu0
  %v11498 = vadd.f32 0.0, %v11497
  %v11499 = vpop.f32.mrb[0].mxu0
  %11500 = vmatprep.mubr.bf16.mxu0 %v10723
  %11501 = vmatmul.mubr.bf16.gmra.mrb[0].mxu0 %v10343
  %v11502 = vpop.f32.mrb[0].mxu0
  %v11503 = vadd.f32 0.0, %v11502
  %v11504 = vpop.f32.mrb[0].mxu0
  %v11505 = vpop.f32.mrb[0].mxu0
  %v11506 = vadd.f32 0.0, %v11505
  %v11507 = vpop.f32.mrb[0].mxu0
  %11508 = vmatprep.mubr.bf16.mxu0 %v10735
  %11509 = vmatmul.mubr.bf16.gmra.mrb[0].mxu0 %v10344
  %v11510 = vpop.f32.mrb[0].mxu0
  %v11511 = vadd.f32 0.0, %v11510
  %v11512 = vpop.f32.mrb[0].mxu0
  %v11513 = vpop.f32.mrb[0].mxu0
  %v11514 = vadd.f32 0.0, %v11513
  %v11515 = vpop.f32.mrb[0].mxu0
  %11516 = vmatprep.mubr.bf16.mxu0 %v10747
  %11517 = vmatmul.mubr.bf16.gmra.mrb[0].mxu0 %v10345
  %v11518 = vpop.f32.mrb[0].mxu0
  %v11519 = vadd.f32 0.0, %v11518
  %v11520 = vpop.f32.mrb[0].mxu0
  %v11521 = vpop.f32.mrb[0].mxu0
  %v11522 = vadd.f32 0.0, %v11521
  %v11523 = vpop.f32.mrb[0].mxu0
  %11524 = vmatprep.mubr.bf16.mxu0 %v10759
  %11525 = vmatmul.mubr.bf16.gmra.mrb[0].mxu0 %v10346
  %v11526 = vpop.f32.mrb[0].mxu0
  %v11527 = vadd.f32 0.0, %v11526
  %v11528 = vpop.f32.mrb[0].mxu0
  %v11529 = vpop.f32.mrb[0].mxu0
  %v11530 = vadd.f32 0.0, %v11529
  %v11531 = vpop.f32.mrb[0].mxu0
  %11532 = vmatprep.mubr.bf16.mxu0 %v10771
  %11533 = vmatmul.mubr.bf16.gmra.mrb[0].mxu0 %v10347
  %v11534 = vpop.f32.mrb[0].mxu0
  %v11535 = vadd.f32 0.0, %v11534
  %v11536 = vpop.f32.mrb[0].mxu0
  %v11537 = vpop.f32.mrb[0].mxu0
  %v11538 = vadd.f32 0.0, %v11537
  %v11539 = vpop.f32.mrb[0].mxu0
  %11540 = vmatprep.mubr.bf16.mxu0 %v10783
  %11541 = vmatmul.mubr.bf16.gmra.mrb[0].mxu0 %v10348
  %v11542 = vpop.f32.mrb[0].mxu0
  %v11543 = vadd.f32 0.0, %v11542
  %v11544 = vpop.f32.mrb[0].mxu0
  %v11545 = vpop.f32.mrb[0].mxu0
  %v11546 = vadd.f32 0.0, %v11545
  %v11547 = vpop.f32.mrb[0].mxu0
  %11548 = vmatprep.mubr.bf16.mxu0 %v10795
  %11549 = vmatmul.mubr.bf16.gmra.mrb[0].mxu0 %v10349
  %v11550 = vpop.f32.mrb[0].mxu0
  %v11551 = vadd.f32 0.0, %v11550
  %v11552 = vpop.f32.mrb[0].mxu0
  %v11553 = vpop.f32.mrb[0].mxu0
  %v11554 = vadd.f32 0.0, %v11553
  %v11555 = vpop.f32.mrb[0].mxu0
  %11556 = vmatprep.mubr.bf16.mxu0 %v10807
  %11557 = vmatmul.mubr.bf16.gmra.mrb[0].mxu0 %v10350
  %v11558 = vpop.f32.mrb[0].mxu0
  %v11559 = vadd.f32 0.0, %v11558
  %v11560 = vpop.f32.mrb[0].mxu0
  %v11561 = vpop.f32.mrb[0].mxu0
  %v11562 = vadd.f32 0.0, %v11561
  %v11563 = vpop.f32.mrb[0].mxu0
  %11564 = vmatprep.mubr.bf16.mxu0 %v10819
  %11565 = vmatmul.mubr.bf16.gmra.mrb[0].mxu0 %v10351
  %v11566 = vpop.f32.mrb[0].mxu0
  %v11567 = vadd.f32 0.0, %v11566
  %v11568 = vpop.f32.mrb[0].mxu0
  %v11569 = vpop.f32.mrb[0].mxu0
  %v11570 = vadd.f32 0.0, %v11569
  %v11571 = vpop.f32.mrb[0].mxu0
  %11572 = vmatprep.mubr.bf16.mxu0 %v10831
  %11573 = vmatmul.mubr.bf16.gmra.mrb[0].mxu0 %v10352
  %v11574 = vpop.f32.mrb[0].mxu0
  %v11575 = vadd.f32 0.0, %v11574
  %v11576 = vpop.f32.mrb[0].mxu0
  %v11577 = vpop.f32.mrb[0].mxu0
  %v11578 = vadd.f32 0.0, %v11577
  %v11579 = vpop.f32.mrb[0].mxu0
  %11580 = vmatprep.mubr.bf16.mxu0 %v10843
  %11581 = vmatmul.mubr.bf16.gmra.mrb[0].mxu0 %v10353
  %v11582 = vpop.f32.mrb[0].mxu0
  %v11583 = vadd.f32 0.0, %v11582
  %v11584 = vpop.f32.mrb[0].mxu0
  %v11585 = vpop.f32.mrb[0].mxu0
  %v11586 = vadd.f32 0.0, %v11585
  %v11587 = vpop.f32.mrb[0].mxu0
  %11588 = vmatprep.mubr.bf16.mxu0 %v10855
  %11589 = vmatmul.mubr.bf16.gmra.mrb[0].mxu0 %v10354
  %v11590 = vpop.f32.mrb[0].mxu0
  %v11591 = vadd.f32 0.0, %v11590
  %v11592 = vpop.f32.mrb[0].mxu0
  %v11593 = vpop.f32.mrb[0].mxu0
  %v11594 = vadd.f32 0.0, %v11593
  %v11595 = vpop.f32.mrb[0].mxu0
  %11596 = vmatprep.mubr.bf16.mxu0 %v10867
  %11597 = vmatmul.mubr.bf16.gmra.mrb[0].mxu0 %v10355
  %v11598 = vpop.f32.mrb[0].mxu0
  %v11599 = vadd.f32 0.0, %v11598
  %v11600 = vpop.f32.mrb[0].mxu0
  %v11601 = vpop.f32.mrb[0].mxu0
  %v11602 = vadd.f32 0.0, %v11601
  %v11603 = vpop.f32.mrb[0].mxu0
  %11604 = vdwg.mxu0
  %11605 = vmatprep.subr.bf16.mxu0 0
  %11606 = vmatpush1.bf16.msra.mxu0 %v11284
  %11607 = vmatprep.subr.bf16.mxu0 0
  %11608 = vmatpush1.bf16.msra.mxu0 %v11285
  %11609 = vmatprep.subr.bf16.mxu0 0
  %11610 = vmatpush1.bf16.msra.mxu0 %v11286
  %11611 = vmatprep.subr.bf16.mxu0 0
  %11612 = vmatpush1.bf16.msra.mxu0 %v11287
  %11613 = vmatprep.subr.bf16.mxu0 0
  %11614 = vmatpush1.bf16.msra.mxu0 %v11288
  %11615 = vmatprep.subr.bf16.mxu0 0
  %11616 = vmatpush1.bf16.msra.mxu0 %v11289
  %11617 = vmatprep.subr.bf16.mxu0 0
  %11618 = vmatpush1.bf16.msra.mxu0 %v11290
  %11619 = vmatprep.subr.bf16.mxu0 0
  %11620 = vmatpush1.bf16.msra.mxu0 %v11291
  %11621 = vmatprep.subr.bf16.mxu0 0
  %11622 = vmatpush1.bf16.msra.mxu0 0
  %11623 = vmatprep.subr.bf16.mxu0 0
  %11624 = vmatpush1.bf16.msra.mxu0 0
  %11625 = vmatprep.subr.bf16.mxu0 0
  %11626 = vmatpush1.bf16.msra.mxu0 0
  %11627 = vmatprep.subr.bf16.mxu0 0
  %11628 = vmatpush1.bf16.msra.mxu0 0
  %11629 = vmatprep.subr.bf16.mxu0 0
  %11630 = vmatpush1.bf16.msra.mxu0 0
  %11631 = vmatprep.subr.bf16.mxu0 0
  %11632 = vmatpush1.bf16.msra.mxu0 0
  %11633 = vmatprep.subr.bf16.mxu0 0
  %11634 = vmatpush1.bf16.msra.mxu0 0
  %11635 = vmatprep.subr.bf16.mxu0 0
  %11636 = vmatpush1.bf16.msra.mxu0 0
  %11637 = vmatprep.mubr.bf16.mxu0 0
  %11638 = vmatmul.mubr.bf16.gmra.mrb[0].mxu0 %v10998
  %v11639 = vpop.f32.mrb[0].mxu0
  %v11640 = vadd.f32 %v11351, %v11639
  %v11641 = vpop.f32.mrb[0].mxu0
  %v11642 = vpop.f32.mrb[0].mxu0
  %v11643 = vadd.f32 %v11354, %v11642
  %v11644 = vpop.f32.mrb[0].mxu0
  %11645 = vmatprep.mubr.bf16.mxu0 0
  %11646 = vmatmul.mubr.bf16.gmra.mrb[0].mxu0 %v11001
  %v11647 = vpop.f32.mrb[0].mxu0
  %v11648 = vadd.f32 %v11359, %v11647
  %v11649 = vpop.f32.mrb[0].mxu0
  %v11650 = vpop.f32.mrb[0].mxu0
  %v11651 = vadd.f32 %v11362, %v11650
  %v11652 = vpop.f32.mrb[0].mxu0
  %11653 = vmatprep.mubr.bf16.mxu0 0
  %11654 = vmatmul.mubr.bf16.gmra.mrb[0].mxu0 %v11004
  %v11655 = vpop.f32.mrb[0].mxu0
  %v11656 = vadd.f32 %v11367, %v11655
  %v11657 = vpop.f32.mrb[0].mxu0
  %v11658 = vpop.f32.mrb[0].mxu0
  %v11659 = vadd.f32 %v11370, %v11658
  %v11660 = vpop.f32.mrb[0].mxu0
  %11661 = vmatprep.mubr.bf16.mxu0 0
  %11662 = vmatmul.mubr.bf16.gmra.mrb[0].mxu0 %v11007
  %v11663 = vpop.f32.mrb[0].mxu0
  %v11664 = vadd.f32 %v11375, %v11663
  %v11665 = vpop.f32.mrb[0].mxu0
  %v11666 = vpop.f32.mrb[0].mxu0
  %v11667 = vadd.f32 %v11378, %v11666
  %v11668 = vpop.f32.mrb[0].mxu0
  %11669 = vmatprep.mubr.bf16.mxu0 0
  %11670 = vmatmul.mubr.bf16.gmra.mrb[0].mxu0 %v11010
  %v11671 = vpop.f32.mrb[0].mxu0
  %v11672 = vadd.f32 %v11383, %v11671
  %v11673 = vpop.f32.mrb[0].mxu0
  %v11674 = vpop.f32.mrb[0].mxu0
  %v11675 = vadd.f32 %v11386, %v11674
  %v11676 = vpop.f32.mrb[0].mxu0
  %11677 = vmatprep.mubr.bf16.mxu0 0
  %11678 = vmatmul.mubr.bf16.gmra.mrb[0].mxu0 %v11013
  %v11679 = vpop.f32.mrb[0].mxu0
  %v11680 = vadd.f32 %v11391, %v11679
  %v11681 = vpop.f32.mrb[0].mxu0
  %v11682 = vpop.f32.mrb[0].mxu0
  %v11683 = vadd.f32 %v11394, %v11682
  %v11684 = vpop.f32.mrb[0].mxu0
  %11685 = vmatprep.mubr.bf16.mxu0 0
  %11686 = vmatmul.mubr.bf16.gmra.mrb[0].mxu0 %v11016
  %v11687 = vpop.f32.mrb[0].mxu0
  %v11688 = vadd.f32 %v11399, %v11687
  %v11689 = vpop.f32.mrb[0].mxu0
  %v11690 = vpop.f32.mrb[0].mxu0
  %v11691 = vadd.f32 %v11402, %v11690
  %v11692 = vpop.f32.mrb[0].mxu0
  %11693 = vmatprep.mubr.bf16.mxu0 0
  %11694 = vmatmul.mubr.bf16.gmra.mrb[0].mxu0 %v11019
  %v11695 = vpop.f32.mrb[0].mxu0
  %v11696 = vadd.f32 %v11407, %v11695
  %v11697 = vpop.f32.mrb[0].mxu0
  %v11698 = vpop.f32.mrb[0].mxu0
  %v11699 = vadd.f32 %v11410, %v11698
  %v11700 = vpop.f32.mrb[0].mxu0
  %11701 = vmatprep.mubr.bf16.mxu0 0
  %11702 = vmatmul.mubr.bf16.gmra.mrb[0].mxu0 %v11022
  %v11703 = vpop.f32.mrb[0].mxu0
  %v11704 = vadd.f32 %v11415, %v11703
  %v11705 = vpop.f32.mrb[0].mxu0
  %v11706 = vpop.f32.mrb[0].mxu0
  %v11707 = vadd.f32 %v11418, %v11706
  %v11708 = vpop.f32.mrb[0].mxu0
  %11709 = vmatprep.mubr.bf16.mxu0 0
  %11710 = vmatmul.mubr.bf16.gmra.mrb[0].mxu0 %v11025
  %v11711 = vpop.f32.mrb[0].mxu0
  %v11712 = vadd.f32 %v11423, %v11711
  %v11713 = vpop.f32.mrb[0].mxu0
  %v11714 = vpop.f32.mrb[0].mxu0
  %v11715 = vadd.f32 %v11426, %v11714
  %v11716 = vpop.f32.mrb[0].mxu0
  %11717 = vmatprep.mubr.bf16.mxu0 0
  %11718 = vmatmul.mubr.bf16.gmra.mrb[0].mxu0 %v11028
  %v11719 = vpop.f32.mrb[0].mxu0
  %v11720 = vadd.f32 %v11431, %v11719
  %v11721 = vpop.f32.mrb[0].mxu0
  %v11722 = vpop.f32.mrb[0].mxu0
  %v11723 = vadd.f32 %v11434, %v11722
  %v11724 = vpop.f32.mrb[0].mxu0
  %11725 = vmatprep.mubr.bf16.mxu0 0
  %11726 = vmatmul.mubr.bf16.gmra.mrb[0].mxu0 %v11031
  %v11727 = vpop.f32.mrb[0].mxu0
  %v11728 = vadd.f32 %v11439, %v11727
  %v11729 = vpop.f32.mrb[0].mxu0
  %v11730 = vpop.f32.mrb[0].mxu0
  %v11731 = vadd.f32 %v11442, %v11730
  %v11732 = vpop.f32.mrb[0].mxu0
  %11733 = vmatprep.mubr.bf16.mxu0 0
  %11734 = vmatmul.mubr.bf16.gmra.mrb[0].mxu0 %v11034
  %v11735 = vpop.f32.mrb[0].mxu0
  %v11736 = vadd.f32 %v11447, %v11735
  %v11737 = vpop.f32.mrb[0].mxu0
  %v11738 = vpop.f32.mrb[0].mxu0
  %v11739 = vadd.f32 %v11450, %v11738
  %v11740 = vpop.f32.mrb[0].mxu0
  %11741 = vmatprep.mubr.bf16.mxu0 0
  %11742 = vmatmul.mubr.bf16.gmra.mrb[0].mxu0 %v11037
  %v11743 = vpop.f32.mrb[0].mxu0
  %v11744 = vadd.f32 %v11455, %v11743
  %v11745 = vpop.f32.mrb[0].mxu0
  %v11746 = vpop.f32.mrb[0].mxu0
  %v11747 = vadd.f32 %v11458, %v11746
  %v11748 = vpop.f32.mrb[0].mxu0
  %11749 = vmatprep.mubr.bf16.mxu0 0
  %11750 = vmatmul.mubr.bf16.gmra.mrb[0].mxu0 %v11040
  %v11751 = vpop.f32.mrb[0].mxu0
  %v11752 = vadd.f32 %v11463, %v11751
  %v11753 = vpop.f32.mrb[0].mxu0
  %v11754 = vpop.f32.mrb[0].mxu0
  %v11755 = vadd.f32 %v11466, %v11754
  %v11756 = vpop.f32.mrb[0].mxu0
  %11757 = vmatprep.mubr.bf16.mxu0 0
  %11758 = vmatmul.mubr.bf16.gmra.mrb[0].mxu0 %v11043
  %v11759 = vpop.f32.mrb[0].mxu0
  %v11760 = vadd.f32 %v11471, %v11759
  %v11761 = vpop.f32.mrb[0].mxu0
  %v11762 = vpop.f32.mrb[0].mxu0
  %v11763 = vadd.f32 %v11474, %v11762
  %v11764 = vpop.f32.mrb[0].mxu0
  %11765 = vmatprep.mubr.bf16.mxu0 0
  %11766 = vmatmul.mubr.bf16.gmra.mrb[0].mxu0 %v11046
  %v11767 = vpop.f32.mrb[0].mxu0
  %v11768 = vadd.f32 %v11479, %v11767
  %v11769 = vpop.f32.mrb[0].mxu0
  %v11770 = vpop.f32.mrb[0].mxu0
  %v11771 = vadd.f32 %v11482, %v11770
  %v11772 = vpop.f32.mrb[0].mxu0
  %11773 = vmatprep.mubr.bf16.mxu0 0
  %11774 = vmatmul.mubr.bf16.gmra.mrb[0].mxu0 %v11049
  %v11775 = vpop.f32.mrb[0].mxu0
  %v11776 = vadd.f32 %v11487, %v11775
  %v11777 = vpop.f32.mrb[0].mxu0
  %v11778 = vpop.f32.mrb[0].mxu0
  %v11779 = vadd.f32 %v11490, %v11778
  %v11780 = vpop.f32.mrb[0].mxu0
  %11781 = vmatprep.mubr.bf16.mxu0 0
  %11782 = vmatmul.mubr.bf16.gmra.mrb[0].mxu0 %v11052
  %v11783 = vpop.f32.mrb[0].mxu0
  %v11784 = vadd.f32 %v11495, %v11783
  %v11785 = vpop.f32.mrb[0].mxu0
  %v11786 = vpop.f32.mrb[0].mxu0
  %v11787 = vadd.f32 %v11498, %v11786
  %v11788 = vpop.f32.mrb[0].mxu0
  %11789 = vmatprep.mubr.bf16.mxu0 0
  %11790 = vmatmul.mubr.bf16.gmra.mrb[0].mxu0 %v11055
  %v11791 = vpop.f32.mrb[0].mxu0
  %v11792 = vadd.f32 %v11503, %v11791
  %v11793 = vpop.f32.mrb[0].mxu0
  %v11794 = vpop.f32.mrb[0].mxu0
  %v11795 = vadd.f32 %v11506, %v11794
  %v11796 = vpop.f32.mrb[0].mxu0
  %11797 = vmatprep.mubr.bf16.mxu0 0
  %11798 = vmatmul.mubr.bf16.gmra.mrb[0].mxu0 %v11058
  %v11799 = vpop.f32.mrb[0].mxu0
  %v11800 = vadd.f32 %v11511, %v11799
  %v11801 = vpop.f32.mrb[0].mxu0
  %v11802 = vpop.f32.mrb[0].mxu0
  %v11803 = vadd.f32 %v11514, %v11802
  %v11804 = vpop.f32.mrb[0].mxu0
  %11805 = vmatprep.mubr.bf16.mxu0 0
  %11806 = vmatmul.mubr.bf16.gmra.mrb[0].mxu0 %v11061
  %v11807 = vpop.f32.mrb[0].mxu0
  %v11808 = vadd.f32 %v11519, %v11807
  %v11809 = vpop.f32.mrb[0].mxu0
  %v11810 = vpop.f32.mrb[0].mxu0
  %v11811 = vadd.f32 %v11522, %v11810
  %v11812 = vpop.f32.mrb[0].mxu0
  %11813 = vmatprep.mubr.bf16.mxu0 0
  %11814 = vmatmul.mubr.bf16.gmra.mrb[0].mxu0 %v11064
  %v11815 = vpop.f32.mrb[0].mxu0
  %v11816 = vadd.f32 %v11527, %v11815
  %v11817 = vpop.f32.mrb[0].mxu0
  %v11818 = vpop.f32.mrb[0].mxu0
  %v11819 = vadd.f32 %v11530, %v11818
  %v11820 = vpop.f32.mrb[0].mxu0
  %11821 = vmatprep.mubr.bf16.mxu0 0
  %11822 = vmatmul.mubr.bf16.gmra.mrb[0].mxu0 %v11067
  %v11823 = vpop.f32.mrb[0].mxu0
  %v11824 = vadd.f32 %v11535, %v11823
  %v11825 = vpop.f32.mrb[0].mxu0
  %v11826 = vpop.f32.mrb[0].mxu0
  %v11827 = vadd.f32 %v11538, %v11826
  %v11828 = vpop.f32.mrb[0].mxu0
  %11829 = vmatprep.mubr.bf16.mxu0 0
  %11830 = vmatmul.mubr.bf16.gmra.mrb[0].mxu0 %v11070
  %v11831 = vpop.f32.mrb[0].mxu0
  %v11832 = vadd.f32 %v11543, %v11831
  %v11833 = vpop.f32.mrb[0].mxu0
  %v11834 = vpop.f32.mrb[0].mxu0
  %v11835 = vadd.f32 %v11546, %v11834
  %v11836 = vpop.f32.mrb[0].mxu0
  %11837 = vmatprep.mubr.bf16.mxu0 0
  %11838 = vmatmul.mubr.bf16.gmra.mrb[0].mxu0 %v11073
  %v11839 = vpop.f32.mrb[0].mxu0
  %v11840 = vadd.f32 %v11551, %v11839
  %v11841 = vpop.f32.mrb[0].mxu0
  %v11842 = vpop.f32.mrb[0].mxu0
  %v11843 = vadd.f32 %v11554, %v11842
  %v11844 = vpop.f32.mrb[0].mxu0
  %11845 = vmatprep.mubr.bf16.mxu0 0
  %11846 = vmatmul.mubr.bf16.gmra.mrb[0].mxu0 %v11076
  %v11847 = vpop.f32.mrb[0].mxu0
  %v11848 = vadd.f32 %v11559, %v11847
  %v11849 = vpop.f32.mrb[0].mxu0
  %v11850 = vpop.f32.mrb[0].mxu0
  %v11851 = vadd.f32 %v11562, %v11850
  %v11852 = vpop.f32.mrb[0].mxu0
  %11853 = vmatprep.mubr.bf16.mxu0 0
  %11854 = vmatmul.mubr.bf16.gmra.mrb[0].mxu0 %v11079
  %v11855 = vpop.f32.mrb[0].mxu0
  %v11856 = vadd.f32 %v11567, %v11855
  %v11857 = vpop.f32.mrb[0].mxu0
  %v11858 = vpop.f32.mrb[0].mxu0
  %v11859 = vadd.f32 %v11570, %v11858
  %v11860 = vpop.f32.mrb[0].mxu0
  %11861 = vmatprep.mubr.bf16.mxu0 0
  %11862 = vmatmul.mubr.bf16.gmra.mrb[0].mxu0 %v11082
  %v11863 = vpop.f32.mrb[0].mxu0
  %v11864 = vadd.f32 %v11575, %v11863
  %v11865 = vpop.f32.mrb[0].mxu0
  %v11866 = vpop.f32.mrb[0].mxu0
  %v11867 = vadd.f32 %v11578, %v11866
  %v11868 = vpop.f32.mrb[0].mxu0
  %11869 = vmatprep.mubr.bf16.mxu0 0
  %11870 = vmatmul.mubr.bf16.gmra.mrb[0].mxu0 %v11085
  %v11871 = vpop.f32.mrb[0].mxu0
  %v11872 = vadd.f32 %v11583, %v11871
  %v11873 = vpop.f32.mrb[0].mxu0
  %v11874 = vpop.f32.mrb[0].mxu0
  %v11875 = vadd.f32 %v11586, %v11874
  %v11876 = vpop.f32.mrb[0].mxu0
  %11877 = vmatprep.mubr.bf16.mxu0 0
  %11878 = vmatmul.mubr.bf16.gmra.mrb[0].mxu0 %v11088
  %v11879 = vpop.f32.mrb[0].mxu0
  %v11880 = vadd.f32 %v11591, %v11879
  %v11881 = vpop.f32.mrb[0].mxu0
  %v11882 = vpop.f32.mrb[0].mxu0
  %v11883 = vadd.f32 %v11594, %v11882
  %v11884 = vpop.f32.mrb[0].mxu0
  %11885 = vmatprep.mubr.bf16.mxu0 0
  %11886 = vmatmul.mubr.bf16.gmra.mrb[0].mxu0 %v11091
  %v11887 = vpop.f32.mrb[0].mxu0
  %v11888 = vadd.f32 %v11599, %v11887
  %v11889 = vpop.f32.mrb[0].mxu0
  %v11890 = vpop.f32.mrb[0].mxu0
  %v11891 = vadd.f32 %v11602, %v11890
  %v11892 = vpop.f32.mrb[0].mxu0
  %11893 = vdwg.mxu0
  %v11942 = vunpack.c.l.b16 %v10020
  %v11943 = vunpack.c.l.b16 %v10021
  %v11944 = vunpack.c.l.b16 %v10022
  %v11945 = vunpack.c.l.b16 %v10023
  %v11946 = vunpack.c.l.b16 %v10024
  %v11947 = vunpack.c.l.b16 %v10025
  %v11948 = vunpack.c.l.b16 %v10026
  %v11949 = vunpack.c.l.b16 %v10027
  %v11950 = vunpack.c.l.b16 %v10028
  %v11951 = vunpack.c.l.b16 %v10029
  %v11952 = vunpack.c.l.b16 %v10030
  %v11953 = vunpack.c.l.b16 %v10031
  %v11954 = vunpack.c.l.b16 %v10032
  %v11955 = vunpack.c.l.b16 %v10033
  %v11956 = vunpack.c.l.b16 %v10034
  %v11957 = vunpack.c.l.b16 %v10035
  %v11958 = vunpack.c.l.b16 %v10036
  %v11959 = vunpack.c.l.b16 %v10037
  %v11960 = vunpack.c.l.b16 %v10038
  %v11961 = vunpack.c.l.b16 %v10039
  %v11962 = vunpack.c.l.b16 %v10040
  %v11963 = vunpack.c.l.b16 %v10041
  %v11964 = vunpack.c.l.b16 %v10042
  %v11965 = vunpack.c.l.b16 %v10043
  %v11966 = vunpack.c.l.b16 %v10044
  %v11967 = vunpack.c.l.b16 %v10045
  %v11968 = vunpack.c.l.b16 %v10046
  %v11969 = vunpack.c.l.b16 %v10047
  %v11970 = vunpack.c.l.b16 %v10048
  %v11971 = vunpack.c.l.b16 %v10049
  %v11972 = vunpack.c.l.b16 %v10050
  %v11973 = vunpack.c.l.b16 %v10051
  %v11974 = vunpack.c.l.b16 %v10052
  %v11975 = vunpack.c.l.b16 %v10053
  %v11976 = vunpack.c.l.b16 %v10054
  %v11977 = vunpack.c.l.b16 %v10055
  %v11978 = vunpack.c.l.b16 %v10056
  %v11979 = vunpack.c.l.b16 %v10057
  %v11980 = vunpack.c.l.b16 %v10058
  %v11981 = vunpack.c.l.b16 %v10059
  %v11982 = vunpack.c.l.b16 %v10060
  %v11983 = vunpack.c.l.b16 %v10061
  %v11984 = vunpack.c.l.b16 %v10062
  %v11985 = vunpack.c.l.b16 %v10063
  %v11986 = vunpack.c.l.b16 %v10064
  %v11987 = vunpack.c.l.b16 %v10065
  %v11988 = vunpack.c.l.b16 %v10066
  %v11989 = vunpack.c.l.b16 %v10067
  %v11990 = vpack.c.b16 %v11943, %v11942
  %v11991 = vpack.c.b16 %v11945, %v11944
  %v11992 = vpack.c.b16 %v11947, %v11946
  %v11993 = vpack.c.b16 %v11949, %v11948
  %v11994 = vpack.c.b16 %v11951, %v11950
  %v11995 = vpack.c.b16 %v11953, %v11952
  %v11996 = vpack.c.b16 %v11955, %v11954
  %v11997 = vpack.c.b16 %v11957, %v11956
  %v11998 = vpack.c.b16 %v11959, %v11958
  %v11999 = vpack.c.b16 %v11961, %v11960
  %v12000 = vpack.c.b16 %v11963, %v11962
  %v12001 = vpack.c.b16 %v11965, %v11964
  %v12002 = vpack.c.b16 %v11967, %v11966
  %v12003 = vpack.c.b16 %v11969, %v11968
  %v12004 = vpack.c.b16 %v11971, %v11970
  %v12005 = vpack.c.b16 %v11973, %v11972
  %v12006 = vpack.c.b16 %v11975, %v11974
  %v12007 = vpack.c.b16 %v11977, %v11976
  %v12008 = vpack.c.b16 %v11979, %v11978
  %v12009 = vpack.c.b16 %v11981, %v11980
  %v12010 = vpack.c.b16 %v11983, %v11982
  %v12011 = vpack.c.b16 %v11985, %v11984
  %v12012 = vpack.c.b16 %v11987, %v11986
  %v12013 = vpack.c.b16 %v11989, %v11988
  %12038 = vmatprep.subr.bf16.mxu0 0
  %12039 = vmatpush1.bf16.msra.mxu0 %v11990
  %12040 = vmatprep.subr.bf16.mxu0 0
  %12041 = vmatpush1.bf16.msra.mxu0 %v11991
  %12042 = vmatprep.subr.bf16.mxu0 0
  %12043 = vmatpush1.bf16.msra.mxu0 %v11992
  %12044 = vmatprep.subr.bf16.mxu0 0
  %12045 = vmatpush1.bf16.msra.mxu0 %v11993
  %12046 = vmatprep.subr.bf16.mxu0 0
  %12047 = vmatpush1.bf16.msra.mxu0 %v11994
  %12048 = vmatprep.subr.bf16.mxu0 0
  %12049 = vmatpush1.bf16.msra.mxu0 %v11995
  %12050 = vmatprep.subr.bf16.mxu0 0
  %12051 = vmatpush1.bf16.msra.mxu0 %v11996
  %12052 = vmatprep.subr.bf16.mxu0 0
  %12053 = vmatpush1.bf16.msra.mxu0 %v11997
  %12054 = vmatprep.subr.bf16.mxu0 0
  %12055 = vmatpush1.bf16.msra.mxu0 %v11998
  %12056 = vmatprep.subr.bf16.mxu0 0
  %12057 = vmatpush1.bf16.msra.mxu0 %v11999
  %12058 = vmatprep.subr.bf16.mxu0 0
  %12059 = vmatpush1.bf16.msra.mxu0 %v12000
  %12060 = vmatprep.subr.bf16.mxu0 0
  %12061 = vmatpush1.bf16.msra.mxu0 %v12001
  %12062 = vmatprep.subr.bf16.mxu0 0
  %12063 = vmatpush1.bf16.msra.mxu0 %v12002
  %12064 = vmatprep.subr.bf16.mxu0 0
  %12065 = vmatpush1.bf16.msra.mxu0 %v12003
  %12066 = vmatprep.subr.bf16.mxu0 0
  %12067 = vmatpush1.bf16.msra.mxu0 %v12004
  %12068 = vmatprep.subr.bf16.mxu0 0
  %12069 = vmatpush1.bf16.msra.mxu0 %v12005
  %12070 = vmatprep.mubr.bf16.mxu0 %v9391
  %12071 = vmatmul.mubr.bf16.gmra.mrb[0].mxu0 %v9220
  %v12072 = vpop.f32.mrb[0].mxu0
  %v12073 = vadd.f32 %v11640, %v12072
  %v12074 = vpop.f32.mrb[0].mxu0
  %v12075 = vpop.f32.mrb[0].mxu0
  %v12076 = vadd.f32 %v11643, %v12075
  %v12077 = vpop.f32.mrb[0].mxu0
  %12078 = vmatprep.mubr.bf16.mxu0 %v9403
  %12079 = vmatmul.mubr.bf16.gmra.mrb[0].mxu0 %v9221
  %v12080 = vpop.f32.mrb[0].mxu0
  %v12081 = vadd.f32 %v11648, %v12080
  %v12082 = vpop.f32.mrb[0].mxu0
  %v12083 = vpop.f32.mrb[0].mxu0
  %v12084 = vadd.f32 %v11651, %v12083
  %v12085 = vpop.f32.mrb[0].mxu0
  %12086 = vmatprep.mubr.bf16.mxu0 %v9415
  %12087 = vmatmul.mubr.bf16.gmra.mrb[0].mxu0 %v9222
  %v12088 = vpop.f32.mrb[0].mxu0
  %v12089 = vadd.f32 %v11656, %v12088
  %v12090 = vpop.f32.mrb[0].mxu0
  %v12091 = vpop.f32.mrb[0].mxu0
  %v12092 = vadd.f32 %v11659, %v12091
  %v12093 = vpop.f32.mrb[0].mxu0
  %12094 = vmatprep.mubr.bf16.mxu0 %v9427
  %12095 = vmatmul.mubr.bf16.gmra.mrb[0].mxu0 %v9223
  %v12096 = vpop.f32.mrb[0].mxu0
  %v12097 = vadd.f32 %v11664, %v12096
  %v12098 = vpop.f32.mrb[0].mxu0
  %v12099 = vpop.f32.mrb[0].mxu0
  %v12100 = vadd.f32 %v11667, %v12099
  %v12101 = vpop.f32.mrb[0].mxu0
  %12102 = vmatprep.mubr.bf16.mxu0 %v9439
  %12103 = vmatmul.mubr.bf16.gmra.mrb[0].mxu0 %v9224
  %v12104 = vpop.f32.mrb[0].mxu0
  %v12105 = vadd.f32 %v11672, %v12104
  %v12106 = vpop.f32.mrb[0].mxu0
  %v12107 = vpop.f32.mrb[0].mxu0
  %v12108 = vadd.f32 %v11675, %v12107
  %v12109 = vpop.f32.mrb[0].mxu0
  %12110 = vmatprep.mubr.bf16.mxu0 %v9451
  %12111 = vmatmul.mubr.bf16.gmra.mrb[0].mxu0 %v9225
  %v12112 = vpop.f32.mrb[0].mxu0
  %v12113 = vadd.f32 %v11680, %v12112
  %v12114 = vpop.f32.mrb[0].mxu0
  %v12115 = vpop.f32.mrb[0].mxu0
  %v12116 = vadd.f32 %v11683, %v12115
  %v12117 = vpop.f32.mrb[0].mxu0
  %12118 = vmatprep.mubr.bf16.mxu0 %v9463
  %12119 = vmatmul.mubr.bf16.gmra.mrb[0].mxu0 %v9226
  %v12120 = vpop.f32.mrb[0].mxu0
  %v12121 = vadd.f32 %v11688, %v12120
  %v12122 = vpop.f32.mrb[0].mxu0
  %v12123 = vpop.f32.mrb[0].mxu0
  %v12124 = vadd.f32 %v11691, %v12123
  %v12125 = vpop.f32.mrb[0].mxu0
  %12126 = vmatprep.mubr.bf16.mxu0 %v9475
  %12127 = vmatmul.mubr.bf16.gmra.mrb[0].mxu0 %v9227
  %v12128 = vpop.f32.mrb[0].mxu0
  %v12129 = vadd.f32 %v11696, %v12128
  %v12130 = vpop.f32.mrb[0].mxu0
  %v12131 = vpop.f32.mrb[0].mxu0
  %v12132 = vadd.f32 %v11699, %v12131
  %v12133 = vpop.f32.mrb[0].mxu0
  %12134 = vmatprep.mubr.bf16.mxu0 %v9487
  %12135 = vmatmul.mubr.bf16.gmra.mrb[0].mxu0 %v9228
  %v12136 = vpop.f32.mrb[0].mxu0
  %v12137 = vadd.f32 %v11704, %v12136
  %v12138 = vpop.f32.mrb[0].mxu0
  %v12139 = vpop.f32.mrb[0].mxu0
  %v12140 = vadd.f32 %v11707, %v12139
  %v12141 = vpop.f32.mrb[0].mxu0
  %12142 = vmatprep.mubr.bf16.mxu0 %v9499
  %12143 = vmatmul.mubr.bf16.gmra.mrb[0].mxu0 %v9229
  %v12144 = vpop.f32.mrb[0].mxu0
  %v12145 = vadd.f32 %v11712, %v12144
  %v12146 = vpop.f32.mrb[0].mxu0
  %v12147 = vpop.f32.mrb[0].mxu0
  %v12148 = vadd.f32 %v11715, %v12147
  %v12149 = vpop.f32.mrb[0].mxu0
  %12150 = vmatprep.mubr.bf16.mxu0 %v9511
  %12151 = vmatmul.mubr.bf16.gmra.mrb[0].mxu0 %v9230
  %v12152 = vpop.f32.mrb[0].mxu0
  %v12153 = vadd.f32 %v11720, %v12152
  %v12154 = vpop.f32.mrb[0].mxu0
  %v12155 = vpop.f32.mrb[0].mxu0
  %v12156 = vadd.f32 %v11723, %v12155
  %v12157 = vpop.f32.mrb[0].mxu0
  %12158 = vmatprep.mubr.bf16.mxu0 %v9523
  %12159 = vmatmul.mubr.bf16.gmra.mrb[0].mxu0 %v9231
  %v12160 = vpop.f32.mrb[0].mxu0
  %v12161 = vadd.f32 %v11728, %v12160
  %v12162 = vpop.f32.mrb[0].mxu0
  %v12163 = vpop.f32.mrb[0].mxu0
  %v12164 = vadd.f32 %v11731, %v12163
  %v12165 = vpop.f32.mrb[0].mxu0
  %12166 = vmatprep.mubr.bf16.mxu0 %v9535
  %12167 = vmatmul.mubr.bf16.gmra.mrb[0].mxu0 %v9232
  %v12168 = vpop.f32.mrb[0].mxu0
  %v12169 = vadd.f32 %v11736, %v12168
  %v12170 = vpop.f32.mrb[0].mxu0
  %v12171 = vpop.f32.mrb[0].mxu0
  %v12172 = vadd.f32 %v11739, %v12171
  %v12173 = vpop.f32.mrb[0].mxu0
  %12174 = vmatprep.mubr.bf16.mxu0 %v9547
  %12175 = vmatmul.mubr.bf16.gmra.mrb[0].mxu0 %v9233
  %v12176 = vpop.f32.mrb[0].mxu0
  %v12177 = vadd.f32 %v11744, %v12176
  %v12178 = vpop.f32.mrb[0].mxu0
  %v12179 = vpop.f32.mrb[0].mxu0
  %v12180 = vadd.f32 %v11747, %v12179
  %v12181 = vpop.f32.mrb[0].mxu0
  %12182 = vmatprep.mubr.bf16.mxu0 %v9559
  %12183 = vmatmul.mubr.bf16.gmra.mrb[0].mxu0 %v9234
  %v12184 = vpop.f32.mrb[0].mxu0
  %v12185 = vadd.f32 %v11752, %v12184
  %v12186 = vpop.f32.mrb[0].mxu0
  %v12187 = vpop.f32.mrb[0].mxu0
  %v12188 = vadd.f32 %v11755, %v12187
  %v12189 = vpop.f32.mrb[0].mxu0
  %12190 = vmatprep.mubr.bf16.mxu0 %v9571
  %12191 = vmatmul.mubr.bf16.gmra.mrb[0].mxu0 %v9235
  %v12192 = vpop.f32.mrb[0].mxu0
  %v12193 = vadd.f32 %v11760, %v12192
  %v12194 = vpop.f32.mrb[0].mxu0
  %v12195 = vpop.f32.mrb[0].mxu0
  %v12196 = vadd.f32 %v11763, %v12195
  %v12197 = vpop.f32.mrb[0].mxu0
  %12198 = vmatprep.mubr.bf16.mxu0 %v9583
  %12199 = vmatmul.mubr.bf16.gmra.mrb[0].mxu0 %v9236
  %v12200 = vpop.f32.mrb[0].mxu0
  %v12201 = vadd.f32 %v11768, %v12200
  %v12202 = vpop.f32.mrb[0].mxu0
  %v12203 = vpop.f32.mrb[0].mxu0
  %v12204 = vadd.f32 %v11771, %v12203
  %v12205 = vpop.f32.mrb[0].mxu0
  %12206 = vmatprep.mubr.bf16.mxu0 %v9595
  %12207 = vmatmul.mubr.bf16.gmra.mrb[0].mxu0 %v9237
  %v12208 = vpop.f32.mrb[0].mxu0
  %v12209 = vadd.f32 %v11776, %v12208
  %v12210 = vpop.f32.mrb[0].mxu0
  %v12211 = vpop.f32.mrb[0].mxu0
  %v12212 = vadd.f32 %v11779, %v12211
  %v12213 = vpop.f32.mrb[0].mxu0
  %12214 = vmatprep.mubr.bf16.mxu0 %v9607
  %12215 = vmatmul.mubr.bf16.gmra.mrb[0].mxu0 %v9238
  %v12216 = vpop.f32.mrb[0].mxu0
  %v12217 = vadd.f32 %v11784, %v12216
  %v12218 = vpop.f32.mrb[0].mxu0
  %v12219 = vpop.f32.mrb[0].mxu0
  %v12220 = vadd.f32 %v11787, %v12219
  %v12221 = vpop.f32.mrb[0].mxu0
  %12222 = vmatprep.mubr.bf16.mxu0 %v9619
  %12223 = vmatmul.mubr.bf16.gmra.mrb[0].mxu0 %v9239
  %v12224 = vpop.f32.mrb[0].mxu0
  %v12225 = vadd.f32 %v11792, %v12224
  %v12226 = vpop.f32.mrb[0].mxu0
  %v12227 = vpop.f32.mrb[0].mxu0
  %v12228 = vadd.f32 %v11795, %v12227
  %v12229 = vpop.f32.mrb[0].mxu0
  %12230 = vmatprep.mubr.bf16.mxu0 %v9631
  %12231 = vmatmul.mubr.bf16.gmra.mrb[0].mxu0 %v9240
  %v12232 = vpop.f32.mrb[0].mxu0
  %v12233 = vadd.f32 %v11800, %v12232
  %v12234 = vpop.f32.mrb[0].mxu0
  %v12235 = vpop.f32.mrb[0].mxu0
  %v12236 = vadd.f32 %v11803, %v12235
  %v12237 = vpop.f32.mrb[0].mxu0
  %12238 = vmatprep.mubr.bf16.mxu0 %v9643
  %12239 = vmatmul.mubr.bf16.gmra.mrb[0].mxu0 %v9241
  %v12240 = vpop.f32.mrb[0].mxu0
  %v12241 = vadd.f32 %v11808, %v12240
  %v12242 = vpop.f32.mrb[0].mxu0
  %v12243 = vpop.f32.mrb[0].mxu0
  %v12244 = vadd.f32 %v11811, %v12243
  %v12245 = vpop.f32.mrb[0].mxu0
  %12246 = vmatprep.mubr.bf16.mxu0 %v9655
  %12247 = vmatmul.mubr.bf16.gmra.mrb[0].mxu0 %v9242
  %v12248 = vpop.f32.mrb[0].mxu0
  %v12249 = vadd.f32 %v11816, %v12248
  %v12250 = vpop.f32.mrb[0].mxu0
  %v12251 = vpop.f32.mrb[0].mxu0
  %v12252 = vadd.f32 %v11819, %v12251
  %v12253 = vpop.f32.mrb[0].mxu0
  %12254 = vmatprep.mubr.bf16.mxu0 %v9667
  %12255 = vmatmul.mubr.bf16.gmra.mrb[0].mxu0 %v9243
  %v12256 = vpop.f32.mrb[0].mxu0
  %v12257 = vadd.f32 %v11824, %v12256
  %v12258 = vpop.f32.mrb[0].mxu0
  %v12259 = vpop.f32.mrb[0].mxu0
  %v12260 = vadd.f32 %v11827, %v12259
  %v12261 = vpop.f32.mrb[0].mxu0
  %12262 = vmatprep.mubr.bf16.mxu0 %v9679
  %12263 = vmatmul.mubr.bf16.gmra.mrb[0].mxu0 %v9244
  %v12264 = vpop.f32.mrb[0].mxu0
  %v12265 = vadd.f32 %v11832, %v12264
  %v12266 = vpop.f32.mrb[0].mxu0
  %v12267 = vpop.f32.mrb[0].mxu0
  %v12268 = vadd.f32 %v11835, %v12267
  %v12269 = vpop.f32.mrb[0].mxu0
  %12270 = vmatprep.mubr.bf16.mxu0 %v9691
  %12271 = vmatmul.mubr.bf16.gmra.mrb[0].mxu0 %v9245
  %v12272 = vpop.f32.mrb[0].mxu0
  %v12273 = vadd.f32 %v11840, %v12272
  %v12274 = vpop.f32.mrb[0].mxu0
  %v12275 = vpop.f32.mrb[0].mxu0
  %v12276 = vadd.f32 %v11843, %v12275
  %v12277 = vpop.f32.mrb[0].mxu0
  %12278 = vmatprep.mubr.bf16.mxu0 %v9703
  %12279 = vmatmul.mubr.bf16.gmra.mrb[0].mxu0 %v9246
  %v12280 = vpop.f32.mrb[0].mxu0
  %v12281 = vadd.f32 %v11848, %v12280
  %v12282 = vpop.f32.mrb[0].mxu0
  %v12283 = vpop.f32.mrb[0].mxu0
  %v12284 = vadd.f32 %v11851, %v12283
  %v12285 = vpop.f32.mrb[0].mxu0
  %12286 = vmatprep.mubr.bf16.mxu0 %v9715
  %12287 = vmatmul.mubr.bf16.gmra.mrb[0].mxu0 %v9247
  %v12288 = vpop.f32.mrb[0].mxu0
  %v12289 = vadd.f32 %v11856, %v12288
  %v12290 = vpop.f32.mrb[0].mxu0
  %v12291 = vpop.f32.mrb[0].mxu0
  %v12292 = vadd.f32 %v11859, %v12291
  %v12293 = vpop.f32.mrb[0].mxu0
  %12294 = vmatprep.mubr.bf16.mxu0 %v9727
  %12295 = vmatmul.mubr.bf16.gmra.mrb[0].mxu0 %v9248
  %v12296 = vpop.f32.mrb[0].mxu0
  %v12297 = vadd.f32 %v11864, %v12296
  %v12298 = vpop.f32.mrb[0].mxu0
  %v12299 = vpop.f32.mrb[0].mxu0
  %v12300 = vadd.f32 %v11867, %v12299
  %v12301 = vpop.f32.mrb[0].mxu0
  %12302 = vmatprep.mubr.bf16.mxu0 %v9739
  %12303 = vmatmul.mubr.bf16.gmra.mrb[0].mxu0 %v9249
  %v12304 = vpop.f32.mrb[0].mxu0
  %v12305 = vadd.f32 %v11872, %v12304
  %v12306 = vpop.f32.mrb[0].mxu0
  %v12307 = vpop.f32.mrb[0].mxu0
  %v12308 = vadd.f32 %v11875, %v12307
  %v12309 = vpop.f32.mrb[0].mxu0
  %12310 = vmatprep.mubr.bf16.mxu0 %v9751
  %12311 = vmatmul.mubr.bf16.gmra.mrb[0].mxu0 %v9250
  %v12312 = vpop.f32.mrb[0].mxu0
  %v12313 = vadd.f32 %v11880, %v12312
  %v12314 = vpop.f32.mrb[0].mxu0
  %v12315 = vpop.f32.mrb[0].mxu0
  %v12316 = vadd.f32 %v11883, %v12315
  %v12317 = vpop.f32.mrb[0].mxu0
  %12318 = vmatprep.mubr.bf16.mxu0 %v9763
  %12319 = vmatmul.mubr.bf16.gmra.mrb[0].mxu0 %v9251
  %v12320 = vpop.f32.mrb[0].mxu0
  %v12321 = vadd.f32 %v11888, %v12320
  %v12322 = vpop.f32.mrb[0].mxu0
  %v12323 = vpop.f32.mrb[0].mxu0
  %v12324 = vadd.f32 %v11891, %v12323
  %v12325 = vpop.f32.mrb[0].mxu0
  %12326 = vdwg.mxu0
  %12327 = vmatprep.subr.bf16.mxu0 0
  %12328 = vmatpush1.bf16.msra.mxu0 %v12006
  %12329 = vmatprep.subr.bf16.mxu0 0
  %12330 = vmatpush1.bf16.msra.mxu0 %v12007
  %12331 = vmatprep.subr.bf16.mxu0 0
  %12332 = vmatpush1.bf16.msra.mxu0 %v12008
  %12333 = vmatprep.subr.bf16.mxu0 0
  %12334 = vmatpush1.bf16.msra.mxu0 %v12009
  %12335 = vmatprep.subr.bf16.mxu0 0
  %12336 = vmatpush1.bf16.msra.mxu0 %v12010
  %12337 = vmatprep.subr.bf16.mxu0 0
  %12338 = vmatpush1.bf16.msra.mxu0 %v12011
  %12339 = vmatprep.subr.bf16.mxu0 0
  %12340 = vmatpush1.bf16.msra.mxu0 %v12012
  %12341 = vmatprep.subr.bf16.mxu0 0
  %12342 = vmatpush1.bf16.msra.mxu0 %v12013
  %12343 = vmatprep.subr.bf16.mxu0 0
  %12344 = vmatpush1.bf16.msra.mxu0 0
  %12345 = vmatprep.subr.bf16.mxu0 0
  %12346 = vmatpush1.bf16.msra.mxu0 0
  %12347 = vmatprep.subr.bf16.mxu0 0
  %12348 = vmatpush1.bf16.msra.mxu0 0
  %12349 = vmatprep.subr.bf16.mxu0 0
  %12350 = vmatpush1.bf16.msra.mxu0 0
  %12351 = vmatprep.subr.bf16.mxu0 0
  %12352 = vmatpush1.bf16.msra.mxu0 0
  %12353 = vmatprep.subr.bf16.mxu0 0
  %12354 = vmatpush1.bf16.msra.mxu0 0
  %12355 = vmatprep.subr.bf16.mxu0 0
  %12356 = vmatpush1.bf16.msra.mxu0 0
  %12357 = vmatprep.subr.bf16.mxu0 0
  %12358 = vmatpush1.bf16.msra.mxu0 0
  %12359 = vmatprep.mubr.bf16.mxu0 0
  %12360 = vmatmul.mubr.bf16.gmra.mrb[0].mxu0 %v9894
  %v12361 = vpop.f32.mrb[0].mxu0
  %v12362 = vadd.f32 %v12073, %v12361
  %v12363 = vpop.f32.mrb[0].mxu0
  %v12364 = vpop.f32.mrb[0].mxu0
  %v12365 = vadd.f32 %v12076, %v12364
  %v12366 = vpop.f32.mrb[0].mxu0
  %12367 = vmatprep.mubr.bf16.mxu0 0
  %12368 = vmatmul.mubr.bf16.gmra.mrb[0].mxu0 %v9897
  %v12369 = vpop.f32.mrb[0].mxu0
  %v12370 = vadd.f32 %v12081, %v12369
  %v12371 = vpop.f32.mrb[0].mxu0
  %v12372 = vpop.f32.mrb[0].mxu0
  %v12373 = vadd.f32 %v12084, %v12372
  %v12374 = vpop.f32.mrb[0].mxu0
  %12375 = vmatprep.mubr.bf16.mxu0 0
  %12376 = vmatmul.mubr.bf16.gmra.mrb[0].mxu0 %v9900
  %v12377 = vpop.f32.mrb[0].mxu0
  %v12378 = vadd.f32 %v12089, %v12377
  %v12379 = vpop.f32.mrb[0].mxu0
  %v12380 = vpop.f32.mrb[0].mxu0
  %v12381 = vadd.f32 %v12092, %v12380
  %v12382 = vpop.f32.mrb[0].mxu0
  %12383 = vmatprep.mubr.bf16.mxu0 0
  %12384 = vmatmul.mubr.bf16.gmra.mrb[0].mxu0 %v9903
  %v12385 = vpop.f32.mrb[0].mxu0
  %v12386 = vadd.f32 %v12097, %v12385
  %v12387 = vpop.f32.mrb[0].mxu0
  %v12388 = vpop.f32.mrb[0].mxu0
  %v12389 = vadd.f32 %v12100, %v12388
  %v12390 = vpop.f32.mrb[0].mxu0
  %12391 = vmatprep.mubr.bf16.mxu0 0
  %12392 = vmatmul.mubr.bf16.gmra.mrb[0].mxu0 %v9906
  %v12393 = vpop.f32.mrb[0].mxu0
  %v12394 = vadd.f32 %v12105, %v12393
  %v12395 = vpop.f32.mrb[0].mxu0
  %v12396 = vpop.f32.mrb[0].mxu0
  %v12397 = vadd.f32 %v12108, %v12396
  %v12398 = vpop.f32.mrb[0].mxu0
  %12399 = vmatprep.mubr.bf16.mxu0 0
  %12400 = vmatmul.mubr.bf16.gmra.mrb[0].mxu0 %v9909
  %v12401 = vpop.f32.mrb[0].mxu0
  %v12402 = vadd.f32 %v12113, %v12401
  %v12403 = vpop.f32.mrb[0].mxu0
  %v12404 = vpop.f32.mrb[0].mxu0
  %v12405 = vadd.f32 %v12116, %v12404
  %v12406 = vpop.f32.mrb[0].mxu0
  %12407 = vmatprep.mubr.bf16.mxu0 0
  %12408 = vmatmul.mubr.bf16.gmra.mrb[0].mxu0 %v9912
  %v12409 = vpop.f32.mrb[0].mxu0
  %v12410 = vadd.f32 %v12121, %v12409
  %v12411 = vpop.f32.mrb[0].mxu0
  %v12412 = vpop.f32.mrb[0].mxu0
  %v12413 = vadd.f32 %v12124, %v12412
  %v12414 = vpop.f32.mrb[0].mxu0
  %12415 = vmatprep.mubr.bf16.mxu0 0
  %12416 = vmatmul.mubr.bf16.gmra.mrb[0].mxu0 %v9915
  %v12417 = vpop.f32.mrb[0].mxu0
  %v12418 = vadd.f32 %v12129, %v12417
  %v12419 = vpop.f32.mrb[0].mxu0
  %v12420 = vpop.f32.mrb[0].mxu0
  %v12421 = vadd.f32 %v12132, %v12420
  %v12422 = vpop.f32.mrb[0].mxu0
  %12423 = vmatprep.mubr.bf16.mxu0 0
  %12424 = vmatmul.mubr.bf16.gmra.mrb[0].mxu0 %v9918
  %v12425 = vpop.f32.mrb[0].mxu0
  %v12426 = vadd.f32 %v12137, %v12425
  %v12427 = vpop.f32.mrb[0].mxu0
  %v12428 = vpop.f32.mrb[0].mxu0
  %v12429 = vadd.f32 %v12140, %v12428
  %v12430 = vpop.f32.mrb[0].mxu0
  %12431 = vmatprep.mubr.bf16.mxu0 0
  %12432 = vmatmul.mubr.bf16.gmra.mrb[0].mxu0 %v9921
  %v12433 = vpop.f32.mrb[0].mxu0
  %v12434 = vadd.f32 %v12145, %v12433
  %v12435 = vpop.f32.mrb[0].mxu0
  %v12436 = vpop.f32.mrb[0].mxu0
  %v12437 = vadd.f32 %v12148, %v12436
  %v12438 = vpop.f32.mrb[0].mxu0
  %12439 = vmatprep.mubr.bf16.mxu0 0
  %12440 = vmatmul.mubr.bf16.gmra.mrb[0].mxu0 %v9924
  %v12441 = vpop.f32.mrb[0].mxu0
  %v12442 = vadd.f32 %v12153, %v12441
  %v12443 = vpop.f32.mrb[0].mxu0
  %v12444 = vpop.f32.mrb[0].mxu0
  %v12445 = vadd.f32 %v12156, %v12444
  %v12446 = vpop.f32.mrb[0].mxu0
  %12447 = vmatprep.mubr.bf16.mxu0 0
  %12448 = vmatmul.mubr.bf16.gmra.mrb[0].mxu0 %v9927
  %v12449 = vpop.f32.mrb[0].mxu0
  %v12450 = vadd.f32 %v12161, %v12449
  %v12451 = vpop.f32.mrb[0].mxu0
  %v12452 = vpop.f32.mrb[0].mxu0
  %v12453 = vadd.f32 %v12164, %v12452
  %v12454 = vpop.f32.mrb[0].mxu0
  %12455 = vmatprep.mubr.bf16.mxu0 0
  %12456 = vmatmul.mubr.bf16.gmra.mrb[0].mxu0 %v9930
  %v12457 = vpop.f32.mrb[0].mxu0
  %v12458 = vadd.f32 %v12169, %v12457
  %v12459 = vpop.f32.mrb[0].mxu0
  %v12460 = vpop.f32.mrb[0].mxu0
  %v12461 = vadd.f32 %v12172, %v12460
  %v12462 = vpop.f32.mrb[0].mxu0
  %12463 = vmatprep.mubr.bf16.mxu0 0
  %12464 = vmatmul.mubr.bf16.gmra.mrb[0].mxu0 %v9933
  %v12465 = vpop.f32.mrb[0].mxu0
  %v12466 = vadd.f32 %v12177, %v12465
  %v12467 = vpop.f32.mrb[0].mxu0
  %v12468 = vpop.f32.mrb[0].mxu0
  %v12469 = vadd.f32 %v12180, %v12468
  %v12470 = vpop.f32.mrb[0].mxu0
  %12471 = vmatprep.mubr.bf16.mxu0 0
  %12472 = vmatmul.mubr.bf16.gmra.mrb[0].mxu0 %v9936
  %v12473 = vpop.f32.mrb[0].mxu0
  %v12474 = vadd.f32 %v12185, %v12473
  %v12475 = vpop.f32.mrb[0].mxu0
  %v12476 = vpop.f32.mrb[0].mxu0
  %v12477 = vadd.f32 %v12188, %v12476
  %v12478 = vpop.f32.mrb[0].mxu0
  %12479 = vmatprep.mubr.bf16.mxu0 0
  %12480 = vmatmul.mubr.bf16.gmra.mrb[0].mxu0 %v9939
  %v12481 = vpop.f32.mrb[0].mxu0
  %v12482 = vadd.f32 %v12193, %v12481
  %v12483 = vpop.f32.mrb[0].mxu0
  %v12484 = vpop.f32.mrb[0].mxu0
  %v12485 = vadd.f32 %v12196, %v12484
  %v12486 = vpop.f32.mrb[0].mxu0
  %12487 = vmatprep.mubr.bf16.mxu0 0
  %12488 = vmatmul.mubr.bf16.gmra.mrb[0].mxu0 %v9942
  %v12489 = vpop.f32.mrb[0].mxu0
  %v12490 = vadd.f32 %v12201, %v12489
  %v12491 = vpop.f32.mrb[0].mxu0
  %v12492 = vpop.f32.mrb[0].mxu0
  %v12493 = vadd.f32 %v12204, %v12492
  %v12494 = vpop.f32.mrb[0].mxu0
  %12495 = vmatprep.mubr.bf16.mxu0 0
  %12496 = vmatmul.mubr.bf16.gmra.mrb[0].mxu0 %v9945
  %v12497 = vpop.f32.mrb[0].mxu0
  %v12498 = vadd.f32 %v12209, %v12497
  %v12499 = vpop.f32.mrb[0].mxu0
  %v12500 = vpop.f32.mrb[0].mxu0
  %v12501 = vadd.f32 %v12212, %v12500
  %v12502 = vpop.f32.mrb[0].mxu0
  %12503 = vmatprep.mubr.bf16.mxu0 0
  %12504 = vmatmul.mubr.bf16.gmra.mrb[0].mxu0 %v9948
  %v12505 = vpop.f32.mrb[0].mxu0
  %v12506 = vadd.f32 %v12217, %v12505
  %v12507 = vpop.f32.mrb[0].mxu0
  %v12508 = vpop.f32.mrb[0].mxu0
  %v12509 = vadd.f32 %v12220, %v12508
  %v12510 = vpop.f32.mrb[0].mxu0
  %12511 = vmatprep.mubr.bf16.mxu0 0
  %12512 = vmatmul.mubr.bf16.gmra.mrb[0].mxu0 %v9951
  %v12513 = vpop.f32.mrb[0].mxu0
  %v12514 = vadd.f32 %v12225, %v12513
  %v12515 = vpop.f32.mrb[0].mxu0
  %v12516 = vpop.f32.mrb[0].mxu0
  %v12517 = vadd.f32 %v12228, %v12516
  %v12518 = vpop.f32.mrb[0].mxu0
  %12519 = vmatprep.mubr.bf16.mxu0 0
  %12520 = vmatmul.mubr.bf16.gmra.mrb[0].mxu0 %v9954
  %v12521 = vpop.f32.mrb[0].mxu0
  %v12522 = vadd.f32 %v12233, %v12521
  %v12523 = vpop.f32.mrb[0].mxu0
  %v12524 = vpop.f32.mrb[0].mxu0
  %v12525 = vadd.f32 %v12236, %v12524
  %v12526 = vpop.f32.mrb[0].mxu0
  %12527 = vmatprep.mubr.bf16.mxu0 0
  %12528 = vmatmul.mubr.bf16.gmra.mrb[0].mxu0 %v9957
  %v12529 = vpop.f32.mrb[0].mxu0
  %v12530 = vadd.f32 %v12241, %v12529
  %v12531 = vpop.f32.mrb[0].mxu0
  %v12532 = vpop.f32.mrb[0].mxu0
  %v12533 = vadd.f32 %v12244, %v12532
  %v12534 = vpop.f32.mrb[0].mxu0
  %12535 = vmatprep.mubr.bf16.mxu0 0
  %12536 = vmatmul.mubr.bf16.gmra.mrb[0].mxu0 %v9960
  %v12537 = vpop.f32.mrb[0].mxu0
  %v12538 = vadd.f32 %v12249, %v12537
  %v12539 = vpop.f32.mrb[0].mxu0
  %v12540 = vpop.f32.mrb[0].mxu0
  %v12541 = vadd.f32 %v12252, %v12540
  %v12542 = vpop.f32.mrb[0].mxu0
  %12543 = vmatprep.mubr.bf16.mxu0 0
  %12544 = vmatmul.mubr.bf16.gmra.mrb[0].mxu0 %v9963
  %v12545 = vpop.f32.mrb[0].mxu0
  %v12546 = vadd.f32 %v12257, %v12545
  %v12547 = vpop.f32.mrb[0].mxu0
  %v12548 = vpop.f32.mrb[0].mxu0
  %v12549 = vadd.f32 %v12260, %v12548
  %v12550 = vpop.f32.mrb[0].mxu0
  %12551 = vmatprep.mubr.bf16.mxu0 0
  %12552 = vmatmul.mubr.bf16.gmra.mrb[0].mxu0 %v9966
  %v12553 = vpop.f32.mrb[0].mxu0
  %v12554 = vadd.f32 %v12265, %v12553
  %v12555 = vpop.f32.mrb[0].mxu0
  %v12556 = vpop.f32.mrb[0].mxu0
  %v12557 = vadd.f32 %v12268, %v12556
  %v12558 = vpop.f32.mrb[0].mxu0
  %12559 = vmatprep.mubr.bf16.mxu0 0
  %12560 = vmatmul.mubr.bf16.gmra.mrb[0].mxu0 %v9969
  %v12561 = vpop.f32.mrb[0].mxu0
  %v12562 = vadd.f32 %v12273, %v12561
  %v12563 = vpop.f32.mrb[0].mxu0
  %v12564 = vpop.f32.mrb[0].mxu0
  %v12565 = vadd.f32 %v12276, %v12564
  %v12566 = vpop.f32.mrb[0].mxu0
  %12567 = vmatprep.mubr.bf16.mxu0 0
  %12568 = vmatmul.mubr.bf16.gmra.mrb[0].mxu0 %v9972
  %v12569 = vpop.f32.mrb[0].mxu0
  %v12570 = vadd.f32 %v12281, %v12569
  %v12571 = vpop.f32.mrb[0].mxu0
  %v12572 = vpop.f32.mrb[0].mxu0
  %v12573 = vadd.f32 %v12284, %v12572
  %v12574 = vpop.f32.mrb[0].mxu0
  %12575 = vmatprep.mubr.bf16.mxu0 0
  %12576 = vmatmul.mubr.bf16.gmra.mrb[0].mxu0 %v9975
  %v12577 = vpop.f32.mrb[0].mxu0
  %v12578 = vadd.f32 %v12289, %v12577
  %v12579 = vpop.f32.mrb[0].mxu0
  %v12580 = vpop.f32.mrb[0].mxu0
  %v12581 = vadd.f32 %v12292, %v12580
  %v12582 = vpop.f32.mrb[0].mxu0
  %12583 = vmatprep.mubr.bf16.mxu0 0
  %12584 = vmatmul.mubr.bf16.gmra.mrb[0].mxu0 %v9978
  %v12585 = vpop.f32.mrb[0].mxu0
  %v12586 = vadd.f32 %v12297, %v12585
  %v12587 = vpop.f32.mrb[0].mxu0
  %v12588 = vpop.f32.mrb[0].mxu0
  %v12589 = vadd.f32 %v12300, %v12588
  %v12590 = vpop.f32.mrb[0].mxu0
  %12591 = vmatprep.mubr.bf16.mxu0 0
  %12592 = vmatmul.mubr.bf16.gmra.mrb[0].mxu0 %v9981
  %v12593 = vpop.f32.mrb[0].mxu0
  %v12594 = vadd.f32 %v12305, %v12593
  %v12595 = vpop.f32.mrb[0].mxu0
  %v12596 = vpop.f32.mrb[0].mxu0
  %v12597 = vadd.f32 %v12308, %v12596
  %v12598 = vpop.f32.mrb[0].mxu0
  %12599 = vmatprep.mubr.bf16.mxu0 0
  %12600 = vmatmul.mubr.bf16.gmra.mrb[0].mxu0 %v9984
  %v12601 = vpop.f32.mrb[0].mxu0
  %v12602 = vadd.f32 %v12313, %v12601
  %v12603 = vpop.f32.mrb[0].mxu0
  %v12604 = vpop.f32.mrb[0].mxu0
  %v12605 = vadd.f32 %v12316, %v12604
  %v12606 = vpop.f32.mrb[0].mxu0
  %12607 = vmatprep.mubr.bf16.mxu0 0
  %12608 = vmatmul.mubr.bf16.gmra.mrb[0].mxu0 %v9987
  %v12609 = vpop.f32.mrb[0].mxu0
  %v12610 = vadd.f32 %v12321, %v12609
  %v12611 = vpop.f32.mrb[0].mxu0
  %v12612 = vpop.f32.mrb[0].mxu0
  %v12613 = vadd.f32 %v12324, %v12612
  %v12614 = vpop.f32.mrb[0].mxu0
  %12615 = vdwg.mxu0
  %s12616 = scalar_lea.vmem [#allocation3], 24
  %v12617 = vld [vmem:[%s12616] sm:$0xf]
  %v12618 = vld [vmem:[%s12616 + $0x4] sm:$0xf]
  %v12619 = vld [vmem:[%s12616 + $0xc] sm:$0xf]
  %v12620 = vld [vmem:[%s12616 + $0x10] sm:$0xf]
  %v12621 = vld [vmem:[%s12616 + $0x18] sm:$0xf]
  %v12622 = vld [vmem:[%s12616 + $0x1c] sm:$0xf]
  %v12623 = vld [vmem:[%s12616 + $0x24] sm:$0xf]
  %v12624 = vld [vmem:[%s12616 + $0x28] sm:$0xf]
  %v12625 = vld [vmem:[%s12616 + $0x30] sm:$0xf]
  %v12626 = vld [vmem:[%s12616 + $0x34] sm:$0xf]
  %v12627 = vld [vmem:[%s12616 + $0x3c] sm:$0xf]
  %v12628 = vld [vmem:[%s12616 + $0x40] sm:$0xf]
  %v12629 = vld [vmem:[%s12616 + $0x48] sm:$0xf]
  %v12630 = vld [vmem:[%s12616 + $0x4c] sm:$0xf]
  %v12631 = vld [vmem:[%s12616 + $0x54] sm:$0xf]
  %v12632 = vld [vmem:[%s12616 + $0x58] sm:$0xf]
  %v12633 = vld [vmem:[%s12616 + $0x60] sm:$0xf]
  %v12634 = vld [vmem:[%s12616 + $0x64] sm:$0xf]
  %v12635 = vld [vmem:[%s12616 + $0x6c] sm:$0xf]
  %v12636 = vld [vmem:[%s12616 + $0x70] sm:$0xf]
  %v12637 = vld [vmem:[%s12616 + $0x78] sm:$0xf]
  %v12638 = vld [vmem:[%s12616 + $0x7c] sm:$0xf]
  %v12639 = vld [vmem:[%s12616 + $0x84] sm:$0xf]
  %v12640 = vld [vmem:[%s12616 + $0x88] sm:$0xf]
  %v12641 = vld [vmem:[%s12616 + $0x90] sm:$0xf]
  %v12642 = vld [vmem:[%s12616 + $0x94] sm:$0xf]
  %v12643 = vld [vmem:[%s12616 + $0x9c] sm:$0xf]
  %v12644 = vld [vmem:[%s12616 + $0xa0] sm:$0xf]
  %v12645 = vld [vmem:[%s12616 + $0xa8] sm:$0xf]
  %v12646 = vld [vmem:[%s12616 + $0xac] sm:$0xf]
  %v12647 = vld [vmem:[%s12616 + $0xb4] sm:$0xf]
  %v12648 = vld [vmem:[%s12616 + $0xb8] sm:$0xf]
  %v12649 = vld [vmem:[%s12616 + $0xd8] sm:$0xf]
  %v12650 = vld [vmem:[%s12616 + $0xdc] sm:$0xf]
  %v12651 = vld [vmem:[%s12616 + $0xe4] sm:$0xf]
  %v12652 = vld [vmem:[%s12616 + $0xe8] sm:$0xf]
  %v12653 = vld [vmem:[%s12616 + $0xf0] sm:$0xf]
  %v12654 = vld [vmem:[%s12616 + $0xf4] sm:$0xf]
  %v12655 = vld [vmem:[%s12616 + $0xfc] sm:$0xf]
  %v12656 = vld [vmem:[%s12616 + $0x100] sm:$0xf]
  %v12657 = vld [vmem:[%s12616 + $0x108] sm:$0xf]
  %v12658 = vld [vmem:[%s12616 + $0x10c] sm:$0xf]
  %v12659 = vld [vmem:[%s12616 + $0x114] sm:$0xf]
  %v12660 = vld [vmem:[%s12616 + $0x118] sm:$0xf]
  %v12661 = vld [vmem:[%s12616 + $0x120] sm:$0xf]
  %v12662 = vld [vmem:[%s12616 + $0x124] sm:$0xf]
  %v12663 = vld [vmem:[%s12616 + $0x12c] sm:$0xf]
  %v12664 = vld [vmem:[%s12616 + $0x130] sm:$0xf]
  %v12665 = vld [vmem:[%s12616 + $0x138] sm:$0xf]
  %v12666 = vld [vmem:[%s12616 + $0x13c] sm:$0xf]
  %v12667 = vld [vmem:[%s12616 + $0x144] sm:$0xf]
  %v12668 = vld [vmem:[%s12616 + $0x148] sm:$0xf]
  %v12669 = vld [vmem:[%s12616 + $0x150] sm:$0xf]
  %v12670 = vld [vmem:[%s12616 + $0x154] sm:$0xf]
  %v12671 = vld [vmem:[%s12616 + $0x15c] sm:$0xf]
  %v12672 = vld [vmem:[%s12616 + $0x160] sm:$0xf]
  %v12673 = vld [vmem:[%s12616 + $0x168] sm:$0xf]
  %v12674 = vld [vmem:[%s12616 + $0x16c] sm:$0xf]
  %v12675 = vld [vmem:[%s12616 + $0x174] sm:$0xf]
  %v12676 = vld [vmem:[%s12616 + $0x178] sm:$0xf]
  %v12677 = vld [vmem:[%s12616 + $0x180] sm:$0xf]
  %v12678 = vld [vmem:[%s12616 + $0x184] sm:$0xf]
  %v12679 = vld [vmem:[%s12616 + $0x18c] sm:$0xf]
  %v12680 = vld [vmem:[%s12616 + $0x190] sm:$0xf]
  %v12681 = vld [vmem:[%s12616 + $0x8] sm:$0x1]
  %v12682 = vld [vmem:[%s12616 + $0x14] sm:$0x1]
  %v12683 = vld [vmem:[%s12616 + $0x20] sm:$0x1]
  %v12684 = vld [vmem:[%s12616 + $0x2c] sm:$0x1]
  %v12685 = vld [vmem:[%s12616 + $0x38] sm:$0x1]
  %v12686 = vld [vmem:[%s12616 + $0x44] sm:$0x1]
  %v12687 = vld [vmem:[%s12616 + $0x50] sm:$0x1]
  %v12688 = vld [vmem:[%s12616 + $0x5c] sm:$0x1]
  %v12689 = vld [vmem:[%s12616 + $0x68] sm:$0x1]
  %v12690 = vld [vmem:[%s12616 + $0x74] sm:$0x1]
  %v12691 = vld [vmem:[%s12616 + $0x80] sm:$0x1]
  %v12692 = vld [vmem:[%s12616 + $0x8c] sm:$0x1]
  %v12693 = vld [vmem:[%s12616 + $0x98] sm:$0x1]
  %v12694 = vld [vmem:[%s12616 + $0xa4] sm:$0x1]
  %v12695 = vld [vmem:[%s12616 + $0xb0] sm:$0x1]
  %v12696 = vld [vmem:[%s12616 + $0xbc] sm:$0x1]
  %v12697 = vld [vmem:[%s12616 + $0xe0] sm:$0x1]
  %v12698 = vld [vmem:[%s12616 + $0xec] sm:$0x1]
  %v12699 = vld [vmem:[%s12616 + $0xf8] sm:$0x1]
  %v12700 = vld [vmem:[%s12616 + $0x104] sm:$0x1]
  %v12701 = vld [vmem:[%s12616 + $0x110] sm:$0x1]
  %v12702 = vld [vmem:[%s12616 + $0x11c] sm:$0x1]
  %v12703 = vld [vmem:[%s12616 + $0x128] sm:$0x1]
  %v12704 = vld [vmem:[%s12616 + $0x134] sm:$0x1]
  %v12705 = vld [vmem:[%s12616 + $0x140] sm:$0x1]
  %v12706 = vld [vmem:[%s12616 + $0x14c] sm:$0x1]
  %v12707 = vld [vmem:[%s12616 + $0x158] sm:$0x1]
  %v12708 = vld [vmem:[%s12616 + $0x164] sm:$0x1]
  %v12709 = vld [vmem:[%s12616 + $0x170] sm:$0x1]
  %v12710 = vld [vmem:[%s12616 + $0x17c] sm:$0x1]
  %v12711 = vld [vmem:[%s12616 + $0x188] sm:$0x1]
  %v12712 = vld [vmem:[%s12616 + $0x194] sm:$0x1]
  %v12713 = vld [vmem:[%s12616] sm:$0xe]
  %v12714 = vld [vmem:[%s12616 + $0xc] sm:$0xe]
  %v12715 = vld [vmem:[%s12616 + $0x18] sm:$0xe]
  %v12716 = vld [vmem:[%s12616 + $0x24] sm:$0xe]
  %v12717 = vld [vmem:[%s12616 + $0x30] sm:$0xe]
  %v12718 = vld [vmem:[%s12616 + $0x3c] sm:$0xe]
  %v12719 = vld [vmem:[%s12616 + $0x48] sm:$0xe]
  %v12720 = vld [vmem:[%s12616 + $0x54] sm:$0xe]
  %v12721 = vld [vmem:[%s12616 + $0x60] sm:$0xe]
  %v12722 = vld [vmem:[%s12616 + $0x6c] sm:$0xe]
  %v12723 = vld [vmem:[%s12616 + $0x78] sm:$0xe]
  %v12724 = vld [vmem:[%s12616 + $0x84] sm:$0xe]
  %v12725 = vld [vmem:[%s12616 + $0x90] sm:$0xe]
  %v12726 = vld [vmem:[%s12616 + $0x9c] sm:$0xe]
  %v12727 = vld [vmem:[%s12616 + $0xa8] sm:$0xe]
  %v12728 = vld [vmem:[%s12616 + $0xb4] sm:$0xe]
  %v12729 = vld [vmem:[%s12616 + $0xd8] sm:$0xe]
  %v12730 = vld [vmem:[%s12616 + $0xe4] sm:$0xe]
  %v12731 = vld [vmem:[%s12616 + $0xf0] sm:$0xe]
  %v12732 = vld [vmem:[%s12616 + $0xfc] sm:$0xe]
  %v12733 = vld [vmem:[%s12616 + $0x108] sm:$0xe]
  %v12734 = vld [vmem:[%s12616 + $0x114] sm:$0xe]
  %v12735 = vld [vmem:[%s12616 + $0x120] sm:$0xe]
  %v12736 = vld [vmem:[%s12616 + $0x12c] sm:$0xe]
  %v12737 = vld [vmem:[%s12616 + $0x138] sm:$0xe]
  %v12738 = vld [vmem:[%s12616 + $0x144] sm:$0xe]
  %v12739 = vld [vmem:[%s12616 + $0x150] sm:$0xe]
  %v12740 = vld [vmem:[%s12616 + $0x15c] sm:$0xe]
  %v12741 = vld [vmem:[%s12616 + $0x168] sm:$0xe]
  %v12742 = vld [vmem:[%s12616 + $0x174] sm:$0xe]
  %v12743 = vld [vmem:[%s12616 + $0x180] sm:$0xe]
  %v12744 = vld [vmem:[%s12616 + $0x18c] sm:$0xe]
  %v12809 = vunpack.c.l.b16 %v12617
  %v12810 = vunpack.c.l.b16 %v12618
  %v12811 = vunpack.c.l.b16 %v12619
  %v12812 = vunpack.c.l.b16 %v12620
  %v12813 = vunpack.c.l.b16 %v12621
  %v12814 = vunpack.c.l.b16 %v12622
  %v12815 = vunpack.c.l.b16 %v12623
  %v12816 = vunpack.c.l.b16 %v12624
  %v12817 = vunpack.c.l.b16 %v12625
  %v12818 = vunpack.c.l.b16 %v12626
  %v12819 = vunpack.c.l.b16 %v12627
  %v12820 = vunpack.c.l.b16 %v12628
  %v12821 = vunpack.c.l.b16 %v12629
  %v12822 = vunpack.c.l.b16 %v12630
  %v12823 = vunpack.c.l.b16 %v12631
  %v12824 = vunpack.c.l.b16 %v12632
  %v12825 = vunpack.c.l.b16 %v12633
  %v12826 = vunpack.c.l.b16 %v12634
  %v12827 = vunpack.c.l.b16 %v12635
  %v12828 = vunpack.c.l.b16 %v12636
  %v12829 = vunpack.c.l.b16 %v12637
  %v12830 = vunpack.c.l.b16 %v12638
  %v12831 = vunpack.c.l.b16 %v12639
  %v12832 = vunpack.c.l.b16 %v12640
  %v12833 = vunpack.c.l.b16 %v12641
  %v12834 = vunpack.c.l.b16 %v12642
  %v12835 = vunpack.c.l.b16 %v12643
  %v12836 = vunpack.c.l.b16 %v12644
  %v12837 = vunpack.c.l.b16 %v12645
  %v12838 = vunpack.c.l.b16 %v12646
  %v12839 = vunpack.c.l.b16 %v12647
  %v12840 = vunpack.c.l.b16 %v12648
  %v12841 = vunpack.c.l.b16 %v12649
  %v12842 = vunpack.c.l.b16 %v12650
  %v12843 = vunpack.c.l.b16 %v12651
  %v12844 = vunpack.c.l.b16 %v12652
  %v12845 = vunpack.c.l.b16 %v12653
  %v12846 = vunpack.c.l.b16 %v12654
  %v12847 = vunpack.c.l.b16 %v12655
  %v12848 = vunpack.c.l.b16 %v12656
  %v12849 = vunpack.c.l.b16 %v12657
  %v12850 = vunpack.c.l.b16 %v12658
  %v12851 = vunpack.c.l.b16 %v12659
  %v12852 = vunpack.c.l.b16 %v12660
  %v12853 = vunpack.c.l.b16 %v12661
  %v12854 = vunpack.c.l.b16 %v12662
  %v12855 = vunpack.c.l.b16 %v12663
  %v12856 = vunpack.c.l.b16 %v12664
  %v12857 = vunpack.c.l.b16 %v12665
  %v12858 = vunpack.c.l.b16 %v12666
  %v12859 = vunpack.c.l.b16 %v12667
  %v12860 = vunpack.c.l.b16 %v12668
  %v12861 = vunpack.c.l.b16 %v12669
  %v12862 = vunpack.c.l.b16 %v12670
  %v12863 = vunpack.c.l.b16 %v12671
  %v12864 = vunpack.c.l.b16 %v12672
  %v12865 = vunpack.c.l.b16 %v12673
  %v12866 = vunpack.c.l.b16 %v12674
  %v12867 = vunpack.c.l.b16 %v12675
  %v12868 = vunpack.c.l.b16 %v12676
  %v12869 = vunpack.c.l.b16 %v12677
  %v12870 = vunpack.c.l.b16 %v12678
  %v12871 = vunpack.c.l.b16 %v12679
  %v12872 = vunpack.c.l.b16 %v12680
  %v12873 = vpack.c.b16 %v12810, %v12809
  %v12874 = vpack.c.b16 %v12812, %v12811
  %v12875 = vpack.c.b16 %v12814, %v12813
  %v12876 = vpack.c.b16 %v12816, %v12815
  %v12877 = vpack.c.b16 %v12818, %v12817
  %v12878 = vpack.c.b16 %v12820, %v12819
  %v12879 = vpack.c.b16 %v12822, %v12821
  %v12880 = vpack.c.b16 %v12824, %v12823
  %v12881 = vpack.c.b16 %v12826, %v12825
  %v12882 = vpack.c.b16 %v12828, %v12827
  %v12883 = vpack.c.b16 %v12830, %v12829
  %v12884 = vpack.c.b16 %v12832, %v12831
  %v12885 = vpack.c.b16 %v12834, %v12833
  %v12886 = vpack.c.b16 %v12836, %v12835
  %v12887 = vpack.c.b16 %v12838, %v12837
  %v12888 = vpack.c.b16 %v12840, %v12839
  %v12889 = vpack.c.b16 %v12842, %v12841
  %v12890 = vpack.c.b16 %v12844, %v12843
  %v12891 = vpack.c.b16 %v12846, %v12845
  %v12892 = vpack.c.b16 %v12848, %v12847
  %v12893 = vpack.c.b16 %v12850, %v12849
  %v12894 = vpack.c.b16 %v12852, %v12851
  %v12895 = vpack.c.b16 %v12854, %v12853
  %v12896 = vpack.c.b16 %v12856, %v12855
  %v12897 = vpack.c.b16 %v12858, %v12857
  %v12898 = vpack.c.b16 %v12860, %v12859
  %v12899 = vpack.c.b16 %v12862, %v12861
  %v12900 = vpack.c.b16 %v12864, %v12863
  %v12901 = vpack.c.b16 %v12866, %v12865
  %v12902 = vpack.c.b16 %v12868, %v12867
  %v12903 = vpack.c.b16 %v12870, %v12869
  %v12904 = vpack.c.b16 %v12872, %v12871
  %v12969 = vunpack.c.l.b16 %v12681
  %v12970 = vunpack.c.l.b16 %v12682
  %v12971 = vunpack.c.l.b16 %v12683
  %v12972 = vunpack.c.l.b16 %v12684
  %v12973 = vunpack.c.l.b16 %v12685
  %v12974 = vunpack.c.l.b16 %v12686
  %v12975 = vunpack.c.l.b16 %v12687
  %v12976 = vunpack.c.l.b16 %v12688
  %v12977 = vunpack.c.l.b16 %v12689
  %v12978 = vunpack.c.l.b16 %v12690
  %v12979 = vunpack.c.l.b16 %v12691
  %v12980 = vunpack.c.l.b16 %v12692
  %v12981 = vunpack.c.l.b16 %v12693
  %v12982 = vunpack.c.l.b16 %v12694
  %v12983 = vunpack.c.l.b16 %v12695
  %v12984 = vunpack.c.l.b16 %v12696
  %v12985 = vunpack.c.l.b16 %v12697
  %v12986 = vunpack.c.l.b16 %v12698
  %v12987 = vunpack.c.l.b16 %v12699
  %v12988 = vunpack.c.l.b16 %v12700
  %v12989 = vunpack.c.l.b16 %v12701
  %v12990 = vunpack.c.l.b16 %v12702
  %v12991 = vunpack.c.l.b16 %v12703
  %v12992 = vunpack.c.l.b16 %v12704
  %v12993 = vunpack.c.l.b16 %v12705
  %v12994 = vunpack.c.l.b16 %v12706
  %v12995 = vunpack.c.l.b16 %v12707
  %v12996 = vunpack.c.l.b16 %v12708
  %v12997 = vunpack.c.l.b16 %v12709
  %v12998 = vunpack.c.l.b16 %v12710
  %v12999 = vunpack.c.l.b16 %v12711
  %v13000 = vunpack.c.l.b16 %v12712
  %v13001 = vpack.c.b16 %v12969, %v12969
  %v13002 = vpack.c.b16 %v12970, %v12970
  %v13003 = vpack.c.b16 %v12971, %v12971
  %v13004 = vpack.c.b16 %v12972, %v12972
  %v13005 = vpack.c.b16 %v12973, %v12973
  %v13006 = vpack.c.b16 %v12974, %v12974
  %v13007 = vpack.c.b16 %v12975, %v12975
  %v13008 = vpack.c.b16 %v12976, %v12976
  %v13009 = vpack.c.b16 %v12977, %v12977
  %v13010 = vpack.c.b16 %v12978, %v12978
  %v13011 = vpack.c.b16 %v12979, %v12979
  %v13012 = vpack.c.b16 %v12980, %v12980
  %v13013 = vpack.c.b16 %v12981, %v12981
  %v13014 = vpack.c.b16 %v12982, %v12982
  %v13015 = vpack.c.b16 %v12983, %v12983
  %v13016 = vpack.c.b16 %v12984, %v12984
  %v13017 = vpack.c.b16 %v12985, %v12985
  %v13018 = vpack.c.b16 %v12986, %v12986
  %v13019 = vpack.c.b16 %v12987, %v12987
  %v13020 = vpack.c.b16 %v12988, %v12988
  %v13021 = vpack.c.b16 %v12989, %v12989
  %v13022 = vpack.c.b16 %v12990, %v12990
  %v13023 = vpack.c.b16 %v12991, %v12991
  %v13024 = vpack.c.b16 %v12992, %v12992
  %v13025 = vpack.c.b16 %v12993, %v12993
  %v13026 = vpack.c.b16 %v12994, %v12994
  %v13027 = vpack.c.b16 %v12995, %v12995
  %v13028 = vpack.c.b16 %v12996, %v12996
  %v13029 = vpack.c.b16 %v12997, %v12997
  %v13030 = vpack.c.b16 %v12998, %v12998
  %v13031 = vpack.c.b16 %v12999, %v12999
  %v13032 = vpack.c.b16 %v13000, %v13000
  %v13034 = vshrl.u32 %v12873, 16
  %v13036 = vshll.u32 %v12873, 16
  %v13038 = vrot.slane %v13036, 1
  %v13039 = vor.u32 %v13034, %v13038
  %v13041 = vshll.u32 %v13001, 16
  %v13043 = vrot.slane %v13041, 1
  %v13044 = vsel %vm1836, %v13039, %v13043
  %v13046 = vshrl.u32 %v12874, 16
  %v13048 = vshll.u32 %v12874, 16
  %v13050 = vrot.slane %v13048, 1
  %v13051 = vor.u32 %v13046, %v13050
  %v13053 = vshll.u32 %v13002, 16
  %v13055 = vrot.slane %v13053, 1
  %v13056 = vsel %vm1836, %v13051, %v13055
  %v13058 = vshrl.u32 %v12875, 16
  %v13060 = vshll.u32 %v12875, 16
  %v13062 = vrot.slane %v13060, 1
  %v13063 = vor.u32 %v13058, %v13062
  %v13065 = vshll.u32 %v13003, 16
  %v13067 = vrot.slane %v13065, 1
  %v13068 = vsel %vm1836, %v13063, %v13067
  %v13070 = vshrl.u32 %v12876, 16
  %v13072 = vshll.u32 %v12876, 16
  %v13074 = vrot.slane %v13072, 1
  %v13075 = vor.u32 %v13070, %v13074
  %v13077 = vshll.u32 %v13004, 16
  %v13079 = vrot.slane %v13077, 1
  %v13080 = vsel %vm1836, %v13075, %v13079
  %v13082 = vshrl.u32 %v12877, 16
  %v13084 = vshll.u32 %v12877, 16
  %v13086 = vrot.slane %v13084, 1
  %v13087 = vor.u32 %v13082, %v13086
  %v13089 = vshll.u32 %v13005, 16
  %v13091 = vrot.slane %v13089, 1
  %v13092 = vsel %vm1836, %v13087, %v13091
  %v13094 = vshrl.u32 %v12878, 16
  %v13096 = vshll.u32 %v12878, 16
  %v13098 = vrot.slane %v13096, 1
  %v13099 = vor.u32 %v13094, %v13098
  %v13101 = vshll.u32 %v13006, 16
  %v13103 = vrot.slane %v13101, 1
  %v13104 = vsel %vm1836, %v13099, %v13103
  %v13106 = vshrl.u32 %v12879, 16
  %v13108 = vshll.u32 %v12879, 16
  %v13110 = vrot.slane %v13108, 1
  %v13111 = vor.u32 %v13106, %v13110
  %v13113 = vshll.u32 %v13007, 16
  %v13115 = vrot.slane %v13113, 1
  %v13116 = vsel %vm1836, %v13111, %v13115
  %v13118 = vshrl.u32 %v12880, 16
  %v13120 = vshll.u32 %v12880, 16
  %v13122 = vrot.slane %v13120, 1
  %v13123 = vor.u32 %v13118, %v13122
  %v13125 = vshll.u32 %v13008, 16
  %v13127 = vrot.slane %v13125, 1
  %v13128 = vsel %vm1836, %v13123, %v13127
  %v13130 = vshrl.u32 %v12881, 16
  %v13132 = vshll.u32 %v12881, 16
  %v13134 = vrot.slane %v13132, 1
  %v13135 = vor.u32 %v13130, %v13134
  %v13137 = vshll.u32 %v13009, 16
  %v13139 = vrot.slane %v13137, 1
  %v13140 = vsel %vm1836, %v13135, %v13139
  %v13142 = vshrl.u32 %v12882, 16
  %v13144 = vshll.u32 %v12882, 16
  %v13146 = vrot.slane %v13144, 1
  %v13147 = vor.u32 %v13142, %v13146
  %v13149 = vshll.u32 %v13010, 16
  %v13151 = vrot.slane %v13149, 1
  %v13152 = vsel %vm1836, %v13147, %v13151
  %v13154 = vshrl.u32 %v12883, 16
  %v13156 = vshll.u32 %v12883, 16
  %v13158 = vrot.slane %v13156, 1
  %v13159 = vor.u32 %v13154, %v13158
  %v13161 = vshll.u32 %v13011, 16
  %v13163 = vrot.slane %v13161, 1
  %v13164 = vsel %vm1836, %v13159, %v13163
  %v13166 = vshrl.u32 %v12884, 16
  %v13168 = vshll.u32 %v12884, 16
  %v13170 = vrot.slane %v13168, 1
  %v13171 = vor.u32 %v13166, %v13170
  %v13173 = vshll.u32 %v13012, 16
  %v13175 = vrot.slane %v13173, 1
  %v13176 = vsel %vm1836, %v13171, %v13175
  %v13178 = vshrl.u32 %v12885, 16
  %v13180 = vshll.u32 %v12885, 16
  %v13182 = vrot.slane %v13180, 1
  %v13183 = vor.u32 %v13178, %v13182
  %v13185 = vshll.u32 %v13013, 16
  %v13187 = vrot.slane %v13185, 1
  %v13188 = vsel %vm1836, %v13183, %v13187
  %v13190 = vshrl.u32 %v12886, 16
  %v13192 = vshll.u32 %v12886, 16
  %v13194 = vrot.slane %v13192, 1
  %v13195 = vor.u32 %v13190, %v13194
  %v13197 = vshll.u32 %v13014, 16
  %v13199 = vrot.slane %v13197, 1
  %v13200 = vsel %vm1836, %v13195, %v13199
  %v13202 = vshrl.u32 %v12887, 16
  %v13204 = vshll.u32 %v12887, 16
  %v13206 = vrot.slane %v13204, 1
  %v13207 = vor.u32 %v13202, %v13206
  %v13209 = vshll.u32 %v13015, 16
  %v13211 = vrot.slane %v13209, 1
  %v13212 = vsel %vm1836, %v13207, %v13211
  %v13214 = vshrl.u32 %v12888, 16
  %v13216 = vshll.u32 %v12888, 16
  %v13218 = vrot.slane %v13216, 1
  %v13219 = vor.u32 %v13214, %v13218
  %v13221 = vshll.u32 %v13016, 16
  %v13223 = vrot.slane %v13221, 1
  %v13224 = vsel %vm1836, %v13219, %v13223
  %v13226 = vshrl.u32 %v12889, 16
  %v13228 = vshll.u32 %v12889, 16
  %v13230 = vrot.slane %v13228, 1
  %v13231 = vor.u32 %v13226, %v13230
  %v13233 = vshll.u32 %v13017, 16
  %v13235 = vrot.slane %v13233, 1
  %v13236 = vsel %vm1836, %v13231, %v13235
  %v13238 = vshrl.u32 %v12890, 16
  %v13240 = vshll.u32 %v12890, 16
  %v13242 = vrot.slane %v13240, 1
  %v13243 = vor.u32 %v13238, %v13242
  %v13245 = vshll.u32 %v13018, 16
  %v13247 = vrot.slane %v13245, 1
  %v13248 = vsel %vm1836, %v13243, %v13247
  %v13250 = vshrl.u32 %v12891, 16
  %v13252 = vshll.u32 %v12891, 16
  %v13254 = vrot.slane %v13252, 1
  %v13255 = vor.u32 %v13250, %v13254
  %v13257 = vshll.u32 %v13019, 16
  %v13259 = vrot.slane %v13257, 1
  %v13260 = vsel %vm1836, %v13255, %v13259
  %v13262 = vshrl.u32 %v12892, 16
  %v13264 = vshll.u32 %v12892, 16
  %v13266 = vrot.slane %v13264, 1
  %v13267 = vor.u32 %v13262, %v13266
  %v13269 = vshll.u32 %v13020, 16
  %v13271 = vrot.slane %v13269, 1
  %v13272 = vsel %vm1836, %v13267, %v13271
  %v13274 = vshrl.u32 %v12893, 16
  %v13276 = vshll.u32 %v12893, 16
  %v13278 = vrot.slane %v13276, 1
  %v13279 = vor.u32 %v13274, %v13278
  %v13281 = vshll.u32 %v13021, 16
  %v13283 = vrot.slane %v13281, 1
  %v13284 = vsel %vm1836, %v13279, %v13283
  %v13286 = vshrl.u32 %v12894, 16
  %v13288 = vshll.u32 %v12894, 16
  %v13290 = vrot.slane %v13288, 1
  %v13291 = vor.u32 %v13286, %v13290
  %v13293 = vshll.u32 %v13022, 16
  %v13295 = vrot.slane %v13293, 1
  %v13296 = vsel %vm1836, %v13291, %v13295
  %v13298 = vshrl.u32 %v12895, 16
  %v13300 = vshll.u32 %v12895, 16
  %v13302 = vrot.slane %v13300, 1
  %v13303 = vor.u32 %v13298, %v13302
  %v13305 = vshll.u32 %v13023, 16
  %v13307 = vrot.slane %v13305, 1
  %v13308 = vsel %vm1836, %v13303, %v13307
  %v13310 = vshrl.u32 %v12896, 16
  %v13312 = vshll.u32 %v12896, 16
  %v13314 = vrot.slane %v13312, 1
  %v13315 = vor.u32 %v13310, %v13314
  %v13317 = vshll.u32 %v13024, 16
  %v13319 = vrot.slane %v13317, 1
  %v13320 = vsel %vm1836, %v13315, %v13319
  %v13322 = vshrl.u32 %v12897, 16
  %v13324 = vshll.u32 %v12897, 16
  %v13326 = vrot.slane %v13324, 1
  %v13327 = vor.u32 %v13322, %v13326
  %v13329 = vshll.u32 %v13025, 16
  %v13331 = vrot.slane %v13329, 1
  %v13332 = vsel %vm1836, %v13327, %v13331
  %v13334 = vshrl.u32 %v12898, 16
  %v13336 = vshll.u32 %v12898, 16
  %v13338 = vrot.slane %v13336, 1
  %v13339 = vor.u32 %v13334, %v13338
  %v13341 = vshll.u32 %v13026, 16
  %v13343 = vrot.slane %v13341, 1
  %v13344 = vsel %vm1836, %v13339, %v13343
  %v13346 = vshrl.u32 %v12899, 16
  %v13348 = vshll.u32 %v12899, 16
  %v13350 = vrot.slane %v13348, 1
  %v13351 = vor.u32 %v13346, %v13350
  %v13353 = vshll.u32 %v13027, 16
  %v13355 = vrot.slane %v13353, 1
  %v13356 = vsel %vm1836, %v13351, %v13355
  %v13358 = vshrl.u32 %v12900, 16
  %v13360 = vshll.u32 %v12900, 16
  %v13362 = vrot.slane %v13360, 1
  %v13363 = vor.u32 %v13358, %v13362
  %v13365 = vshll.u32 %v13028, 16
  %v13367 = vrot.slane %v13365, 1
  %v13368 = vsel %vm1836, %v13363, %v13367
  %v13370 = vshrl.u32 %v12901, 16
  %v13372 = vshll.u32 %v12901, 16
  %v13374 = vrot.slane %v13372, 1
  %v13375 = vor.u32 %v13370, %v13374
  %v13377 = vshll.u32 %v13029, 16
  %v13379 = vrot.slane %v13377, 1
  %v13380 = vsel %vm1836, %v13375, %v13379
  %v13382 = vshrl.u32 %v12902, 16
  %v13384 = vshll.u32 %v12902, 16
  %v13386 = vrot.slane %v13384, 1
  %v13387 = vor.u32 %v13382, %v13386
  %v13389 = vshll.u32 %v13030, 16
  %v13391 = vrot.slane %v13389, 1
  %v13392 = vsel %vm1836, %v13387, %v13391
  %v13394 = vshrl.u32 %v12903, 16
  %v13396 = vshll.u32 %v12903, 16
  %v13398 = vrot.slane %v13396, 1
  %v13399 = vor.u32 %v13394, %v13398
  %v13401 = vshll.u32 %v13031, 16
  %v13403 = vrot.slane %v13401, 1
  %v13404 = vsel %vm1836, %v13399, %v13403
  %v13406 = vshrl.u32 %v12904, 16
  %v13408 = vshll.u32 %v12904, 16
  %v13410 = vrot.slane %v13408, 1
  %v13411 = vor.u32 %v13406, %v13410
  %v13413 = vshll.u32 %v13032, 16
  %v13415 = vrot.slane %v13413, 1
  %v13416 = vsel %vm1836, %v13411, %v13415
  %v13481 = vunpack.c.l.b16 %v12713
  %v13482 = vunpack.c.l.b16 %v12714
  %v13483 = vunpack.c.l.b16 %v12715
  %v13484 = vunpack.c.l.b16 %v12716
  %v13485 = vunpack.c.l.b16 %v12717
  %v13486 = vunpack.c.l.b16 %v12718
  %v13487 = vunpack.c.l.b16 %v12719
  %v13488 = vunpack.c.l.b16 %v12720
  %v13489 = vunpack.c.l.b16 %v12721
  %v13490 = vunpack.c.l.b16 %v12722
  %v13491 = vunpack.c.l.b16 %v12723
  %v13492 = vunpack.c.l.b16 %v12724
  %v13493 = vunpack.c.l.b16 %v12725
  %v13494 = vunpack.c.l.b16 %v12726
  %v13495 = vunpack.c.l.b16 %v12727
  %v13496 = vunpack.c.l.b16 %v12728
  %v13497 = vunpack.c.l.b16 %v12729
  %v13498 = vunpack.c.l.b16 %v12730
  %v13499 = vunpack.c.l.b16 %v12731
  %v13500 = vunpack.c.l.b16 %v12732
  %v13501 = vunpack.c.l.b16 %v12733
  %v13502 = vunpack.c.l.b16 %v12734
  %v13503 = vunpack.c.l.b16 %v12735
  %v13504 = vunpack.c.l.b16 %v12736
  %v13505 = vunpack.c.l.b16 %v12737
  %v13506 = vunpack.c.l.b16 %v12738
  %v13507 = vunpack.c.l.b16 %v12739
  %v13508 = vunpack.c.l.b16 %v12740
  %v13509 = vunpack.c.l.b16 %v12741
  %v13510 = vunpack.c.l.b16 %v12742
  %v13511 = vunpack.c.l.b16 %v12743
  %v13512 = vunpack.c.l.b16 %v12744
  %v13513 = vpack.c.b16 %v12810, %v13481
  %v13514 = vpack.c.b16 %v12812, %v13482
  %v13515 = vpack.c.b16 %v12814, %v13483
  %v13516 = vpack.c.b16 %v12816, %v13484
  %v13517 = vpack.c.b16 %v12818, %v13485
  %v13518 = vpack.c.b16 %v12820, %v13486
  %v13519 = vpack.c.b16 %v12822, %v13487
  %v13520 = vpack.c.b16 %v12824, %v13488
  %v13521 = vpack.c.b16 %v12826, %v13489
  %v13522 = vpack.c.b16 %v12828, %v13490
  %v13523 = vpack.c.b16 %v12830, %v13491
  %v13524 = vpack.c.b16 %v12832, %v13492
  %v13525 = vpack.c.b16 %v12834, %v13493
  %v13526 = vpack.c.b16 %v12836, %v13494
  %v13527 = vpack.c.b16 %v12838, %v13495
  %v13528 = vpack.c.b16 %v12840, %v13496
  %v13529 = vpack.c.b16 %v12842, %v13497
  %v13530 = vpack.c.b16 %v12844, %v13498
  %v13531 = vpack.c.b16 %v12846, %v13499
  %v13532 = vpack.c.b16 %v12848, %v13500
  %v13533 = vpack.c.b16 %v12850, %v13501
  %v13534 = vpack.c.b16 %v12852, %v13502
  %v13535 = vpack.c.b16 %v12854, %v13503
  %v13536 = vpack.c.b16 %v12856, %v13504
  %v13537 = vpack.c.b16 %v12858, %v13505
  %v13538 = vpack.c.b16 %v12860, %v13506
  %v13539 = vpack.c.b16 %v12862, %v13507
  %v13540 = vpack.c.b16 %v12864, %v13508
  %v13541 = vpack.c.b16 %v12866, %v13509
  %v13542 = vpack.c.b16 %v12868, %v13510
  %v13543 = vpack.c.b16 %v12870, %v13511
  %v13544 = vpack.c.b16 %v12872, %v13512
  %v13545 = vrot.slane %v13513, 1
  %v13546 = vrot.slane %v13001, 1
  %v13547 = vsel %vm2349, %v13545, %v13546
  %v13548 = vrot.slane %v13514, 1
  %v13549 = vrot.slane %v13002, 1
  %v13550 = vsel %vm2349, %v13548, %v13549
  %v13551 = vrot.slane %v13515, 1
  %v13552 = vrot.slane %v13003, 1
  %v13553 = vsel %vm2349, %v13551, %v13552
  %v13554 = vrot.slane %v13516, 1
  %v13555 = vrot.slane %v13004, 1
  %v13556 = vsel %vm2349, %v13554, %v13555
  %v13557 = vrot.slane %v13517, 1
  %v13558 = vrot.slane %v13005, 1
  %v13559 = vsel %vm2349, %v13557, %v13558
  %v13560 = vrot.slane %v13518, 1
  %v13561 = vrot.slane %v13006, 1
  %v13562 = vsel %vm2349, %v13560, %v13561
  %v13563 = vrot.slane %v13519, 1
  %v13564 = vrot.slane %v13007, 1
  %v13565 = vsel %vm2349, %v13563, %v13564
  %v13566 = vrot.slane %v13520, 1
  %v13567 = vrot.slane %v13008, 1
  %v13568 = vsel %vm2349, %v13566, %v13567
  %v13569 = vrot.slane %v13521, 1
  %v13570 = vrot.slane %v13009, 1
  %v13571 = vsel %vm2349, %v13569, %v13570
  %v13572 = vrot.slane %v13522, 1
  %v13573 = vrot.slane %v13010, 1
  %v13574 = vsel %vm2349, %v13572, %v13573
  %v13575 = vrot.slane %v13523, 1
  %v13576 = vrot.slane %v13011, 1
  %v13577 = vsel %vm2349, %v13575, %v13576
  %v13578 = vrot.slane %v13524, 1
  %v13579 = vrot.slane %v13012, 1
  %v13580 = vsel %vm2349, %v13578, %v13579
  %v13581 = vrot.slane %v13525, 1
  %v13582 = vrot.slane %v13013, 1
  %v13583 = vsel %vm2349, %v13581, %v13582
  %v13584 = vrot.slane %v13526, 1
  %v13585 = vrot.slane %v13014, 1
  %v13586 = vsel %vm2349, %v13584, %v13585
  %v13587 = vrot.slane %v13527, 1
  %v13588 = vrot.slane %v13015, 1
  %v13589 = vsel %vm2349, %v13587, %v13588
  %v13590 = vrot.slane %v13528, 1
  %v13591 = vrot.slane %v13016, 1
  %v13592 = vsel %vm2349, %v13590, %v13591
  %v13593 = vrot.slane %v13529, 1
  %v13594 = vrot.slane %v13017, 1
  %v13595 = vsel %vm2349, %v13593, %v13594
  %v13596 = vrot.slane %v13530, 1
  %v13597 = vrot.slane %v13018, 1
  %v13598 = vsel %vm2349, %v13596, %v13597
  %v13599 = vrot.slane %v13531, 1
  %v13600 = vrot.slane %v13019, 1
  %v13601 = vsel %vm2349, %v13599, %v13600
  %v13602 = vrot.slane %v13532, 1
  %v13603 = vrot.slane %v13020, 1
  %v13604 = vsel %vm2349, %v13602, %v13603
  %v13605 = vrot.slane %v13533, 1
  %v13606 = vrot.slane %v13021, 1
  %v13607 = vsel %vm2349, %v13605, %v13606
  %v13608 = vrot.slane %v13534, 1
  %v13609 = vrot.slane %v13022, 1
  %v13610 = vsel %vm2349, %v13608, %v13609
  %v13611 = vrot.slane %v13535, 1
  %v13612 = vrot.slane %v13023, 1
  %v13613 = vsel %vm2349, %v13611, %v13612
  %v13614 = vrot.slane %v13536, 1
  %v13615 = vrot.slane %v13024, 1
  %v13616 = vsel %vm2349, %v13614, %v13615
  %v13617 = vrot.slane %v13537, 1
  %v13618 = vrot.slane %v13025, 1
  %v13619 = vsel %vm2349, %v13617, %v13618
  %v13620 = vrot.slane %v13538, 1
  %v13621 = vrot.slane %v13026, 1
  %v13622 = vsel %vm2349, %v13620, %v13621
  %v13623 = vrot.slane %v13539, 1
  %v13624 = vrot.slane %v13027, 1
  %v13625 = vsel %vm2349, %v13623, %v13624
  %v13626 = vrot.slane %v13540, 1
  %v13627 = vrot.slane %v13028, 1
  %v13628 = vsel %vm2349, %v13626, %v13627
  %v13629 = vrot.slane %v13541, 1
  %v13630 = vrot.slane %v13029, 1
  %v13631 = vsel %vm2349, %v13629, %v13630
  %v13632 = vrot.slane %v13542, 1
  %v13633 = vrot.slane %v13030, 1
  %v13634 = vsel %vm2349, %v13632, %v13633
  %v13635 = vrot.slane %v13543, 1
  %v13636 = vrot.slane %v13031, 1
  %v13637 = vsel %vm2349, %v13635, %v13636
  %v13638 = vrot.slane %v13544, 1
  %v13639 = vrot.slane %v13032, 1
  %v13640 = vsel %vm2349, %v13638, %v13639
  %v13673 = vld [vmem:[%s3 + $0x180] sm:$0xf]
  %v13674 = vld [vmem:[%s3 + $0x184] sm:$0xf]
  %v13675 = vld [vmem:[%s3 + $0x188] sm:$0xf]
  %v13676 = vld [vmem:[%s3 + $0x18c] sm:$0xf]
  %v13677 = vld [vmem:[%s3 + $0x190] sm:$0xf]
  %v13678 = vld [vmem:[%s3 + $0x194] sm:$0xf]
  %v13679 = vld [vmem:[%s3 + $0x198] sm:$0xf]
  %v13680 = vld [vmem:[%s3 + $0x19c] sm:$0xf]
  %v13681 = vld [vmem:[%s3 + $0x1a0] sm:$0xf]
  %v13682 = vld [vmem:[%s3 + $0x1a4] sm:$0xf]
  %v13683 = vld [vmem:[%s3 + $0x1a8] sm:$0xf]
  %v13684 = vld [vmem:[%s3 + $0x1ac] sm:$0xf]
  %v13685 = vld [vmem:[%s3 + $0x1b0] sm:$0xf]
  %v13686 = vld [vmem:[%s3 + $0x1b4] sm:$0xf]
  %v13687 = vld [vmem:[%s3 + $0x1b8] sm:$0xf]
  %v13688 = vld [vmem:[%s3 + $0x1bc] sm:$0xf]
  %v13689 = vld [vmem:[%s3 + $0x1c0] sm:$0xf]
  %v13690 = vld [vmem:[%s3 + $0x1c4] sm:$0xf]
  %v13691 = vld [vmem:[%s3 + $0x1c8] sm:$0xf]
  %v13692 = vld [vmem:[%s3 + $0x1cc] sm:$0xf]
  %v13693 = vld [vmem:[%s3 + $0x1d0] sm:$0xf]
  %v13694 = vld [vmem:[%s3 + $0x1d4] sm:$0xf]
  %v13695 = vld [vmem:[%s3 + $0x1d8] sm:$0xf]
  %v13696 = vld [vmem:[%s3 + $0x1dc] sm:$0xf]
  %v13697 = vld [vmem:[%s3 + $0x1e0] sm:$0xf]
  %v13698 = vld [vmem:[%s3 + $0x1e4] sm:$0xf]
  %v13699 = vld [vmem:[%s3 + $0x1e8] sm:$0xf]
  %v13700 = vld [vmem:[%s3 + $0x1ec] sm:$0xf]
  %v13701 = vld [vmem:[%s3 + $0x1f0] sm:$0xf]
  %v13702 = vld [vmem:[%s3 + $0x1f4] sm:$0xf]
  %v13703 = vld [vmem:[%s3 + $0x1f8] sm:$0xf]
  %v13704 = vld [vmem:[%s3 + $0x1fc] sm:$0xf]
  %v13705 = vld [vmem:[%s3 + $0x200] sm:$0xf]
  %v13706 = vld [vmem:[%s3 + $0x204] sm:$0xf]
  %v13707 = vld [vmem:[%s3 + $0x208] sm:$0xf]
  %v13708 = vld [vmem:[%s3 + $0x20c] sm:$0xf]
  %v13709 = vld [vmem:[%s3 + $0x210] sm:$0xf]
  %v13710 = vld [vmem:[%s3 + $0x214] sm:$0xf]
  %v13711 = vld [vmem:[%s3 + $0x218] sm:$0xf]
  %v13712 = vld [vmem:[%s3 + $0x21c] sm:$0xf]
  %v13713 = vld [vmem:[%s3 + $0x220] sm:$0xf]
  %v13714 = vld [vmem:[%s3 + $0x224] sm:$0xf]
  %v13715 = vld [vmem:[%s3 + $0x228] sm:$0xf]
  %v13716 = vld [vmem:[%s3 + $0x22c] sm:$0xf]
  %v13717 = vld [vmem:[%s3 + $0x230] sm:$0xf]
  %v13718 = vld [vmem:[%s3 + $0x234] sm:$0xf]
  %v13719 = vld [vmem:[%s3 + $0x238] sm:$0xf]
  %v13720 = vld [vmem:[%s3 + $0x23c] sm:$0xf]
  %v13769 = vunpack.c.l.b16 %v13673
  %v13770 = vunpack.c.l.b16 %v13674
  %v13771 = vunpack.c.l.b16 %v13675
  %v13772 = vunpack.c.l.b16 %v13676
  %v13773 = vunpack.c.l.b16 %v13677
  %v13774 = vunpack.c.l.b16 %v13678
  %v13775 = vunpack.c.l.b16 %v13679
  %v13776 = vunpack.c.l.b16 %v13680
  %v13777 = vunpack.c.l.b16 %v13681
  %v13778 = vunpack.c.l.b16 %v13682
  %v13779 = vunpack.c.l.b16 %v13683
  %v13780 = vunpack.c.l.b16 %v13684
  %v13781 = vunpack.c.l.b16 %v13685
  %v13782 = vunpack.c.l.b16 %v13686
  %v13783 = vunpack.c.l.b16 %v13687
  %v13784 = vunpack.c.l.b16 %v13688
  %v13785 = vunpack.c.l.b16 %v13689
  %v13786 = vunpack.c.l.b16 %v13690
  %v13787 = vunpack.c.l.b16 %v13691
  %v13788 = vunpack.c.l.b16 %v13692
  %v13789 = vunpack.c.l.b16 %v13693
  %v13790 = vunpack.c.l.b16 %v13694
  %v13791 = vunpack.c.l.b16 %v13695
  %v13792 = vunpack.c.l.b16 %v13696
  %v13793 = vunpack.c.l.b16 %v13697
  %v13794 = vunpack.c.l.b16 %v13698
  %v13795 = vunpack.c.l.b16 %v13699
  %v13796 = vunpack.c.l.b16 %v13700
  %v13797 = vunpack.c.l.b16 %v13701
  %v13798 = vunpack.c.l.b16 %v13702
  %v13799 = vunpack.c.l.b16 %v13703
  %v13800 = vunpack.c.l.b16 %v13704
  %v13801 = vunpack.c.l.b16 %v13705
  %v13802 = vunpack.c.l.b16 %v13706
  %v13803 = vunpack.c.l.b16 %v13707
  %v13804 = vunpack.c.l.b16 %v13708
  %v13805 = vunpack.c.l.b16 %v13709
  %v13806 = vunpack.c.l.b16 %v13710
  %v13807 = vunpack.c.l.b16 %v13711
  %v13808 = vunpack.c.l.b16 %v13712
  %v13809 = vunpack.c.l.b16 %v13713
  %v13810 = vunpack.c.l.b16 %v13714
  %v13811 = vunpack.c.l.b16 %v13715
  %v13812 = vunpack.c.l.b16 %v13716
  %v13813 = vunpack.c.l.b16 %v13717
  %v13814 = vunpack.c.l.b16 %v13718
  %v13815 = vunpack.c.l.b16 %v13719
  %v13816 = vunpack.c.l.b16 %v13720
  %v13817 = vpack.c.b16 %v13770, %v13769
  %v13818 = vpack.c.b16 %v13772, %v13771
  %v13819 = vpack.c.b16 %v13774, %v13773
  %v13820 = vpack.c.b16 %v13776, %v13775
  %v13821 = vpack.c.b16 %v13778, %v13777
  %v13822 = vpack.c.b16 %v13780, %v13779
  %v13823 = vpack.c.b16 %v13782, %v13781
  %v13824 = vpack.c.b16 %v13784, %v13783
  %v13825 = vpack.c.b16 %v13786, %v13785
  %v13826 = vpack.c.b16 %v13788, %v13787
  %v13827 = vpack.c.b16 %v13790, %v13789
  %v13828 = vpack.c.b16 %v13792, %v13791
  %v13829 = vpack.c.b16 %v13794, %v13793
  %v13830 = vpack.c.b16 %v13796, %v13795
  %v13831 = vpack.c.b16 %v13798, %v13797
  %v13832 = vpack.c.b16 %v13800, %v13799
  %v13833 = vpack.c.b16 %v13802, %v13801
  %v13834 = vpack.c.b16 %v13804, %v13803
  %v13835 = vpack.c.b16 %v13806, %v13805
  %v13836 = vpack.c.b16 %v13808, %v13807
  %v13837 = vpack.c.b16 %v13810, %v13809
  %v13838 = vpack.c.b16 %v13812, %v13811
  %v13839 = vpack.c.b16 %v13814, %v13813
  %v13840 = vpack.c.b16 %v13816, %v13815
  %13865 = vmatprep.subr.bf16.mxu0 0
  %13866 = vmatpush1.bf16.msra.mxu0 %v13817
  %13867 = vmatprep.subr.bf16.mxu0 0
  %13868 = vmatpush1.bf16.msra.mxu0 %v13818
  %13869 = vmatprep.subr.bf16.mxu0 0
  %13870 = vmatpush1.bf16.msra.mxu0 %v13819
  %13871 = vmatprep.subr.bf16.mxu0 0
  %13872 = vmatpush1.bf16.msra.mxu0 %v13820
  %13873 = vmatprep.subr.bf16.mxu0 0
  %13874 = vmatpush1.bf16.msra.mxu0 %v13821
  %13875 = vmatprep.subr.bf16.mxu0 0
  %13876 = vmatpush1.bf16.msra.mxu0 %v13822
  %13877 = vmatprep.subr.bf16.mxu0 0
  %13878 = vmatpush1.bf16.msra.mxu0 %v13823
  %13879 = vmatprep.subr.bf16.mxu0 0
  %13880 = vmatpush1.bf16.msra.mxu0 %v13824
  %13881 = vmatprep.subr.bf16.mxu0 0
  %13882 = vmatpush1.bf16.msra.mxu0 %v13825
  %13883 = vmatprep.subr.bf16.mxu0 0
  %13884 = vmatpush1.bf16.msra.mxu0 %v13826
  %13885 = vmatprep.subr.bf16.mxu0 0
  %13886 = vmatpush1.bf16.msra.mxu0 %v13827
  %13887 = vmatprep.subr.bf16.mxu0 0
  %13888 = vmatpush1.bf16.msra.mxu0 %v13828
  %13889 = vmatprep.subr.bf16.mxu0 0
  %13890 = vmatpush1.bf16.msra.mxu0 %v13829
  %13891 = vmatprep.subr.bf16.mxu0 0
  %13892 = vmatpush1.bf16.msra.mxu0 %v13830
  %13893 = vmatprep.subr.bf16.mxu0 0
  %13894 = vmatpush1.bf16.msra.mxu0 %v13831
  %13895 = vmatprep.subr.bf16.mxu0 0
  %13896 = vmatpush1.bf16.msra.mxu0 %v13832
  %13897 = vmatprep.mubr.bf16.mxu0 %v13044
  %13898 = vmatmul.mubr.bf16.gmra.mrb[0].mxu0 %v12873
  %v13899 = vpop.f32.mrb[0].mxu0
  %v13900 = vadd.f32 0.0, %v13899
  %v13901 = vpop.f32.mrb[0].mxu0
  %v13902 = vpop.f32.mrb[0].mxu0
  %v13903 = vadd.f32 0.0, %v13902
  %v13904 = vpop.f32.mrb[0].mxu0
  %13905 = vmatprep.mubr.bf16.mxu0 %v13056
  %13906 = vmatmul.mubr.bf16.gmra.mrb[0].mxu0 %v12874
  %v13907 = vpop.f32.mrb[0].mxu0
  %v13908 = vadd.f32 0.0, %v13907
  %v13909 = vpop.f32.mrb[0].mxu0
  %v13910 = vpop.f32.mrb[0].mxu0
  %v13911 = vadd.f32 0.0, %v13910
  %v13912 = vpop.f32.mrb[0].mxu0
  %13913 = vmatprep.mubr.bf16.mxu0 %v13068
  %13914 = vmatmul.mubr.bf16.gmra.mrb[0].mxu0 %v12875
  %v13915 = vpop.f32.mrb[0].mxu0
  %v13916 = vadd.f32 0.0, %v13915
  %v13917 = vpop.f32.mrb[0].mxu0
  %v13918 = vpop.f32.mrb[0].mxu0
  %v13919 = vadd.f32 0.0, %v13918
  %v13920 = vpop.f32.mrb[0].mxu0
  %13921 = vmatprep.mubr.bf16.mxu0 %v13080
  %13922 = vmatmul.mubr.bf16.gmra.mrb[0].mxu0 %v12876
  %v13923 = vpop.f32.mrb[0].mxu0
  %v13924 = vadd.f32 0.0, %v13923
  %v13925 = vpop.f32.mrb[0].mxu0
  %v13926 = vpop.f32.mrb[0].mxu0
  %v13927 = vadd.f32 0.0, %v13926
  %v13928 = vpop.f32.mrb[0].mxu0
  %13929 = vmatprep.mubr.bf16.mxu0 %v13092
  %13930 = vmatmul.mubr.bf16.gmra.mrb[0].mxu0 %v12877
  %v13931 = vpop.f32.mrb[0].mxu0
  %v13932 = vadd.f32 0.0, %v13931
  %v13933 = vpop.f32.mrb[0].mxu0
  %v13934 = vpop.f32.mrb[0].mxu0
  %v13935 = vadd.f32 0.0, %v13934
  %v13936 = vpop.f32.mrb[0].mxu0
  %13937 = vmatprep.mubr.bf16.mxu0 %v13104
  %13938 = vmatmul.mubr.bf16.gmra.mrb[0].mxu0 %v12878
  %v13939 = vpop.f32.mrb[0].mxu0
  %v13940 = vadd.f32 0.0, %v13939
  %v13941 = vpop.f32.mrb[0].mxu0
  %v13942 = vpop.f32.mrb[0].mxu0
  %v13943 = vadd.f32 0.0, %v13942
  %v13944 = vpop.f32.mrb[0].mxu0
  %13945 = vmatprep.mubr.bf16.mxu0 %v13116
  %13946 = vmatmul.mubr.bf16.gmra.mrb[0].mxu0 %v12879
  %v13947 = vpop.f32.mrb[0].mxu0
  %v13948 = vadd.f32 0.0, %v13947
  %v13949 = vpop.f32.mrb[0].mxu0
  %v13950 = vpop.f32.mrb[0].mxu0
  %v13951 = vadd.f32 0.0, %v13950
  %v13952 = vpop.f32.mrb[0].mxu0
  %13953 = vmatprep.mubr.bf16.mxu0 %v13128
  %13954 = vmatmul.mubr.bf16.gmra.mrb[0].mxu0 %v12880
  %v13955 = vpop.f32.mrb[0].mxu0
  %v13956 = vadd.f32 0.0, %v13955
  %v13957 = vpop.f32.mrb[0].mxu0
  %v13958 = vpop.f32.mrb[0].mxu0
  %v13959 = vadd.f32 0.0, %v13958
  %v13960 = vpop.f32.mrb[0].mxu0
  %13961 = vmatprep.mubr.bf16.mxu0 %v13140
  %13962 = vmatmul.mubr.bf16.gmra.mrb[0].mxu0 %v12881
  %v13963 = vpop.f32.mrb[0].mxu0
  %v13964 = vadd.f32 0.0, %v13963
  %v13965 = vpop.f32.mrb[0].mxu0
  %v13966 = vpop.f32.mrb[0].mxu0
  %v13967 = vadd.f32 0.0, %v13966
  %v13968 = vpop.f32.mrb[0].mxu0
  %13969 = vmatprep.mubr.bf16.mxu0 %v13152
  %13970 = vmatmul.mubr.bf16.gmra.mrb[0].mxu0 %v12882
  %v13971 = vpop.f32.mrb[0].mxu0
  %v13972 = vadd.f32 0.0, %v13971
  %v13973 = vpop.f32.mrb[0].mxu0
  %v13974 = vpop.f32.mrb[0].mxu0
  %v13975 = vadd.f32 0.0, %v13974
  %v13976 = vpop.f32.mrb[0].mxu0
  %13977 = vmatprep.mubr.bf16.mxu0 %v13164
  %13978 = vmatmul.mubr.bf16.gmra.mrb[0].mxu0 %v12883
  %v13979 = vpop.f32.mrb[0].mxu0
  %v13980 = vadd.f32 0.0, %v13979
  %v13981 = vpop.f32.mrb[0].mxu0
  %v13982 = vpop.f32.mrb[0].mxu0
  %v13983 = vadd.f32 0.0, %v13982
  %v13984 = vpop.f32.mrb[0].mxu0
  %13985 = vmatprep.mubr.bf16.mxu0 %v13176
  %13986 = vmatmul.mubr.bf16.gmra.mrb[0].mxu0 %v12884
  %v13987 = vpop.f32.mrb[0].mxu0
  %v13988 = vadd.f32 0.0, %v13987
  %v13989 = vpop.f32.mrb[0].mxu0
  %v13990 = vpop.f32.mrb[0].mxu0
  %v13991 = vadd.f32 0.0, %v13990
  %v13992 = vpop.f32.mrb[0].mxu0
  %13993 = vmatprep.mubr.bf16.mxu0 %v13188
  %13994 = vmatmul.mubr.bf16.gmra.mrb[0].mxu0 %v12885
  %v13995 = vpop.f32.mrb[0].mxu0
  %v13996 = vadd.f32 0.0, %v13995
  %v13997 = vpop.f32.mrb[0].mxu0
  %v13998 = vpop.f32.mrb[0].mxu0
  %v13999 = vadd.f32 0.0, %v13998
  %v14000 = vpop.f32.mrb[0].mxu0
  %14001 = vmatprep.mubr.bf16.mxu0 %v13200
  %14002 = vmatmul.mubr.bf16.gmra.mrb[0].mxu0 %v12886
  %v14003 = vpop.f32.mrb[0].mxu0
  %v14004 = vadd.f32 0.0, %v14003
  %v14005 = vpop.f32.mrb[0].mxu0
  %v14006 = vpop.f32.mrb[0].mxu0
  %v14007 = vadd.f32 0.0, %v14006
  %v14008 = vpop.f32.mrb[0].mxu0
  %14009 = vmatprep.mubr.bf16.mxu0 %v13212
  %14010 = vmatmul.mubr.bf16.gmra.mrb[0].mxu0 %v12887
  %v14011 = vpop.f32.mrb[0].mxu0
  %v14012 = vadd.f32 0.0, %v14011
  %v14013 = vpop.f32.mrb[0].mxu0
  %v14014 = vpop.f32.mrb[0].mxu0
  %v14015 = vadd.f32 0.0, %v14014
  %v14016 = vpop.f32.mrb[0].mxu0
  %14017 = vmatprep.mubr.bf16.mxu0 %v13224
  %14018 = vmatmul.mubr.bf16.gmra.mrb[0].mxu0 %v12888
  %v14019 = vpop.f32.mrb[0].mxu0
  %v14020 = vadd.f32 0.0, %v14019
  %v14021 = vpop.f32.mrb[0].mxu0
  %v14022 = vpop.f32.mrb[0].mxu0
  %v14023 = vadd.f32 0.0, %v14022
  %v14024 = vpop.f32.mrb[0].mxu0
  %14025 = vmatprep.mubr.bf16.mxu0 %v13236
  %14026 = vmatmul.mubr.bf16.gmra.mrb[0].mxu0 %v12889
  %v14027 = vpop.f32.mrb[0].mxu0
  %v14028 = vadd.f32 0.0, %v14027
  %v14029 = vpop.f32.mrb[0].mxu0
  %v14030 = vpop.f32.mrb[0].mxu0
  %v14031 = vadd.f32 0.0, %v14030
  %v14032 = vpop.f32.mrb[0].mxu0
  %14033 = vmatprep.mubr.bf16.mxu0 %v13248
  %14034 = vmatmul.mubr.bf16.gmra.mrb[0].mxu0 %v12890
  %v14035 = vpop.f32.mrb[0].mxu0
  %v14036 = vadd.f32 0.0, %v14035
  %v14037 = vpop.f32.mrb[0].mxu0
  %v14038 = vpop.f32.mrb[0].mxu0
  %v14039 = vadd.f32 0.0, %v14038
  %v14040 = vpop.f32.mrb[0].mxu0
  %14041 = vmatprep.mubr.bf16.mxu0 %v13260
  %14042 = vmatmul.mubr.bf16.gmra.mrb[0].mxu0 %v12891
  %v14043 = vpop.f32.mrb[0].mxu0
  %v14044 = vadd.f32 0.0, %v14043
  %v14045 = vpop.f32.mrb[0].mxu0
  %v14046 = vpop.f32.mrb[0].mxu0
  %v14047 = vadd.f32 0.0, %v14046
  %v14048 = vpop.f32.mrb[0].mxu0
  %14049 = vmatprep.mubr.bf16.mxu0 %v13272
  %14050 = vmatmul.mubr.bf16.gmra.mrb[0].mxu0 %v12892
  %v14051 = vpop.f32.mrb[0].mxu0
  %v14052 = vadd.f32 0.0, %v14051
  %v14053 = vpop.f32.mrb[0].mxu0
  %v14054 = vpop.f32.mrb[0].mxu0
  %v14055 = vadd.f32 0.0, %v14054
  %v14056 = vpop.f32.mrb[0].mxu0
  %14057 = vmatprep.mubr.bf16.mxu0 %v13284
  %14058 = vmatmul.mubr.bf16.gmra.mrb[0].mxu0 %v12893
  %v14059 = vpop.f32.mrb[0].mxu0
  %v14060 = vadd.f32 0.0, %v14059
  %v14061 = vpop.f32.mrb[0].mxu0
  %v14062 = vpop.f32.mrb[0].mxu0
  %v14063 = vadd.f32 0.0, %v14062
  %v14064 = vpop.f32.mrb[0].mxu0
  %14065 = vmatprep.mubr.bf16.mxu0 %v13296
  %14066 = vmatmul.mubr.bf16.gmra.mrb[0].mxu0 %v12894
  %v14067 = vpop.f32.mrb[0].mxu0
  %v14068 = vadd.f32 0.0, %v14067
  %v14069 = vpop.f32.mrb[0].mxu0
  %v14070 = vpop.f32.mrb[0].mxu0
  %v14071 = vadd.f32 0.0, %v14070
  %v14072 = vpop.f32.mrb[0].mxu0
  %14073 = vmatprep.mubr.bf16.mxu0 %v13308
  %14074 = vmatmul.mubr.bf16.gmra.mrb[0].mxu0 %v12895
  %v14075 = vpop.f32.mrb[0].mxu0
  %v14076 = vadd.f32 0.0, %v14075
  %v14077 = vpop.f32.mrb[0].mxu0
  %v14078 = vpop.f32.mrb[0].mxu0
  %v14079 = vadd.f32 0.0, %v14078
  %v14080 = vpop.f32.mrb[0].mxu0
  %14081 = vmatprep.mubr.bf16.mxu0 %v13320
  %14082 = vmatmul.mubr.bf16.gmra.mrb[0].mxu0 %v12896
  %v14083 = vpop.f32.mrb[0].mxu0
  %v14084 = vadd.f32 0.0, %v14083
  %v14085 = vpop.f32.mrb[0].mxu0
  %v14086 = vpop.f32.mrb[0].mxu0
  %v14087 = vadd.f32 0.0, %v14086
  %v14088 = vpop.f32.mrb[0].mxu0
  %14089 = vmatprep.mubr.bf16.mxu0 %v13332
  %14090 = vmatmul.mubr.bf16.gmra.mrb[0].mxu0 %v12897
  %v14091 = vpop.f32.mrb[0].mxu0
  %v14092 = vadd.f32 0.0, %v14091
  %v14093 = vpop.f32.mrb[0].mxu0
  %v14094 = vpop.f32.mrb[0].mxu0
  %v14095 = vadd.f32 0.0, %v14094
  %v14096 = vpop.f32.mrb[0].mxu0
  %14097 = vmatprep.mubr.bf16.mxu0 %v13344
  %14098 = vmatmul.mubr.bf16.gmra.mrb[0].mxu0 %v12898
  %v14099 = vpop.f32.mrb[0].mxu0
  %v14100 = vadd.f32 0.0, %v14099
  %v14101 = vpop.f32.mrb[0].mxu0
  %v14102 = vpop.f32.mrb[0].mxu0
  %v14103 = vadd.f32 0.0, %v14102
  %v14104 = vpop.f32.mrb[0].mxu0
  %14105 = vmatprep.mubr.bf16.mxu0 %v13356
  %14106 = vmatmul.mubr.bf16.gmra.mrb[0].mxu0 %v12899
  %v14107 = vpop.f32.mrb[0].mxu0
  %v14108 = vadd.f32 0.0, %v14107
  %v14109 = vpop.f32.mrb[0].mxu0
  %v14110 = vpop.f32.mrb[0].mxu0
  %v14111 = vadd.f32 0.0, %v14110
  %v14112 = vpop.f32.mrb[0].mxu0
  %14113 = vmatprep.mubr.bf16.mxu0 %v13368
  %14114 = vmatmul.mubr.bf16.gmra.mrb[0].mxu0 %v12900
  %v14115 = vpop.f32.mrb[0].mxu0
  %v14116 = vadd.f32 0.0, %v14115
  %v14117 = vpop.f32.mrb[0].mxu0
  %v14118 = vpop.f32.mrb[0].mxu0
  %v14119 = vadd.f32 0.0, %v14118
  %v14120 = vpop.f32.mrb[0].mxu0
  %14121 = vmatprep.mubr.bf16.mxu0 %v13380
  %14122 = vmatmul.mubr.bf16.gmra.mrb[0].mxu0 %v12901
  %v14123 = vpop.f32.mrb[0].mxu0
  %v14124 = vadd.f32 0.0, %v14123
  %v14125 = vpop.f32.mrb[0].mxu0
  %v14126 = vpop.f32.mrb[0].mxu0
  %v14127 = vadd.f32 0.0, %v14126
  %v14128 = vpop.f32.mrb[0].mxu0
  %14129 = vmatprep.mubr.bf16.mxu0 %v13392
  %14130 = vmatmul.mubr.bf16.gmra.mrb[0].mxu0 %v12902
  %v14131 = vpop.f32.mrb[0].mxu0
  %v14132 = vadd.f32 0.0, %v14131
  %v14133 = vpop.f32.mrb[0].mxu0
  %v14134 = vpop.f32.mrb[0].mxu0
  %v14135 = vadd.f32 0.0, %v14134
  %v14136 = vpop.f32.mrb[0].mxu0
  %14137 = vmatprep.mubr.bf16.mxu0 %v13404
  %14138 = vmatmul.mubr.bf16.gmra.mrb[0].mxu0 %v12903
  %v14139 = vpop.f32.mrb[0].mxu0
  %v14140 = vadd.f32 0.0, %v14139
  %v14141 = vpop.f32.mrb[0].mxu0
  %v14142 = vpop.f32.mrb[0].mxu0
  %v14143 = vadd.f32 0.0, %v14142
  %v14144 = vpop.f32.mrb[0].mxu0
  %14145 = vmatprep.mubr.bf16.mxu0 %v13416
  %14146 = vmatmul.mubr.bf16.gmra.mrb[0].mxu0 %v12904
  %v14147 = vpop.f32.mrb[0].mxu0
  %v14148 = vadd.f32 0.0, %v14147
  %v14149 = vpop.f32.mrb[0].mxu0
  %v14150 = vpop.f32.mrb[0].mxu0
  %v14151 = vadd.f32 0.0, %v14150
  %v14152 = vpop.f32.mrb[0].mxu0
  %14153 = vdwg.mxu0
  %14154 = vmatprep.subr.bf16.mxu0 0
  %14155 = vmatpush1.bf16.msra.mxu0 %v13833
  %14156 = vmatprep.subr.bf16.mxu0 0
  %14157 = vmatpush1.bf16.msra.mxu0 %v13834
  %14158 = vmatprep.subr.bf16.mxu0 0
  %14159 = vmatpush1.bf16.msra.mxu0 %v13835
  %14160 = vmatprep.subr.bf16.mxu0 0
  %14161 = vmatpush1.bf16.msra.mxu0 %v13836
  %14162 = vmatprep.subr.bf16.mxu0 0
  %14163 = vmatpush1.bf16.msra.mxu0 %v13837
  %14164 = vmatprep.subr.bf16.mxu0 0
  %14165 = vmatpush1.bf16.msra.mxu0 %v13838
  %14166 = vmatprep.subr.bf16.mxu0 0
  %14167 = vmatpush1.bf16.msra.mxu0 %v13839
  %14168 = vmatprep.subr.bf16.mxu0 0
  %14169 = vmatpush1.bf16.msra.mxu0 %v13840
  %14170 = vmatprep.subr.bf16.mxu0 0
  %14171 = vmatpush1.bf16.msra.mxu0 0
  %14172 = vmatprep.subr.bf16.mxu0 0
  %14173 = vmatpush1.bf16.msra.mxu0 0
  %14174 = vmatprep.subr.bf16.mxu0 0
  %14175 = vmatpush1.bf16.msra.mxu0 0
  %14176 = vmatprep.subr.bf16.mxu0 0
  %14177 = vmatpush1.bf16.msra.mxu0 0
  %14178 = vmatprep.subr.bf16.mxu0 0
  %14179 = vmatpush1.bf16.msra.mxu0 0
  %14180 = vmatprep.subr.bf16.mxu0 0
  %14181 = vmatpush1.bf16.msra.mxu0 0
  %14182 = vmatprep.subr.bf16.mxu0 0
  %14183 = vmatpush1.bf16.msra.mxu0 0
  %14184 = vmatprep.subr.bf16.mxu0 0
  %14185 = vmatpush1.bf16.msra.mxu0 0
  %14186 = vmatprep.mubr.bf16.mxu0 0
  %14187 = vmatmul.mubr.bf16.gmra.mrb[0].mxu0 %v13547
  %v14188 = vpop.f32.mrb[0].mxu0
  %v14189 = vadd.f32 %v13900, %v14188
  %v14190 = vpop.f32.mrb[0].mxu0
  %v14191 = vpop.f32.mrb[0].mxu0
  %v14192 = vadd.f32 %v13903, %v14191
  %v14193 = vpop.f32.mrb[0].mxu0
  %14194 = vmatprep.mubr.bf16.mxu0 0
  %14195 = vmatmul.mubr.bf16.gmra.mrb[0].mxu0 %v13550
  %v14196 = vpop.f32.mrb[0].mxu0
  %v14197 = vadd.f32 %v13908, %v14196
  %v14198 = vpop.f32.mrb[0].mxu0
  %v14199 = vpop.f32.mrb[0].mxu0
  %v14200 = vadd.f32 %v13911, %v14199
  %v14201 = vpop.f32.mrb[0].mxu0
  %14202 = vmatprep.mubr.bf16.mxu0 0
  %14203 = vmatmul.mubr.bf16.gmra.mrb[0].mxu0 %v13553
  %v14204 = vpop.f32.mrb[0].mxu0
  %v14205 = vadd.f32 %v13916, %v14204
  %v14206 = vpop.f32.mrb[0].mxu0
  %v14207 = vpop.f32.mrb[0].mxu0
  %v14208 = vadd.f32 %v13919, %v14207
  %v14209 = vpop.f32.mrb[0].mxu0
  %14210 = vmatprep.mubr.bf16.mxu0 0
  %14211 = vmatmul.mubr.bf16.gmra.mrb[0].mxu0 %v13556
  %v14212 = vpop.f32.mrb[0].mxu0
  %v14213 = vadd.f32 %v13924, %v14212
  %v14214 = vpop.f32.mrb[0].mxu0
  %v14215 = vpop.f32.mrb[0].mxu0
  %v14216 = vadd.f32 %v13927, %v14215
  %v14217 = vpop.f32.mrb[0].mxu0
  %14218 = vmatprep.mubr.bf16.mxu0 0
  %14219 = vmatmul.mubr.bf16.gmra.mrb[0].mxu0 %v13559
  %v14220 = vpop.f32.mrb[0].mxu0
  %v14221 = vadd.f32 %v13932, %v14220
  %v14222 = vpop.f32.mrb[0].mxu0
  %v14223 = vpop.f32.mrb[0].mxu0
  %v14224 = vadd.f32 %v13935, %v14223
  %v14225 = vpop.f32.mrb[0].mxu0
  %14226 = vmatprep.mubr.bf16.mxu0 0
  %14227 = vmatmul.mubr.bf16.gmra.mrb[0].mxu0 %v13562
  %v14228 = vpop.f32.mrb[0].mxu0
  %v14229 = vadd.f32 %v13940, %v14228
  %v14230 = vpop.f32.mrb[0].mxu0
  %v14231 = vpop.f32.mrb[0].mxu0
  %v14232 = vadd.f32 %v13943, %v14231
  %v14233 = vpop.f32.mrb[0].mxu0
  %14234 = vmatprep.mubr.bf16.mxu0 0
  %14235 = vmatmul.mubr.bf16.gmra.mrb[0].mxu0 %v13565
  %v14236 = vpop.f32.mrb[0].mxu0
  %v14237 = vadd.f32 %v13948, %v14236
  %v14238 = vpop.f32.mrb[0].mxu0
  %v14239 = vpop.f32.mrb[0].mxu0
  %v14240 = vadd.f32 %v13951, %v14239
  %v14241 = vpop.f32.mrb[0].mxu0
  %14242 = vmatprep.mubr.bf16.mxu0 0
  %14243 = vmatmul.mubr.bf16.gmra.mrb[0].mxu0 %v13568
  %v14244 = vpop.f32.mrb[0].mxu0
  %v14245 = vadd.f32 %v13956, %v14244
  %v14246 = vpop.f32.mrb[0].mxu0
  %v14247 = vpop.f32.mrb[0].mxu0
  %v14248 = vadd.f32 %v13959, %v14247
  %v14249 = vpop.f32.mrb[0].mxu0
  %14250 = vmatprep.mubr.bf16.mxu0 0
  %14251 = vmatmul.mubr.bf16.gmra.mrb[0].mxu0 %v13571
  %v14252 = vpop.f32.mrb[0].mxu0
  %v14253 = vadd.f32 %v13964, %v14252
  %v14254 = vpop.f32.mrb[0].mxu0
  %v14255 = vpop.f32.mrb[0].mxu0
  %v14256 = vadd.f32 %v13967, %v14255
  %v14257 = vpop.f32.mrb[0].mxu0
  %14258 = vmatprep.mubr.bf16.mxu0 0
  %14259 = vmatmul.mubr.bf16.gmra.mrb[0].mxu0 %v13574
  %v14260 = vpop.f32.mrb[0].mxu0
  %v14261 = vadd.f32 %v13972, %v14260
  %v14262 = vpop.f32.mrb[0].mxu0
  %v14263 = vpop.f32.mrb[0].mxu0
  %v14264 = vadd.f32 %v13975, %v14263
  %v14265 = vpop.f32.mrb[0].mxu0
  %14266 = vmatprep.mubr.bf16.mxu0 0
  %14267 = vmatmul.mubr.bf16.gmra.mrb[0].mxu0 %v13577
  %v14268 = vpop.f32.mrb[0].mxu0
  %v14269 = vadd.f32 %v13980, %v14268
  %v14270 = vpop.f32.mrb[0].mxu0
  %v14271 = vpop.f32.mrb[0].mxu0
  %v14272 = vadd.f32 %v13983, %v14271
  %v14273 = vpop.f32.mrb[0].mxu0
  %14274 = vmatprep.mubr.bf16.mxu0 0
  %14275 = vmatmul.mubr.bf16.gmra.mrb[0].mxu0 %v13580
  %v14276 = vpop.f32.mrb[0].mxu0
  %v14277 = vadd.f32 %v13988, %v14276
  %v14278 = vpop.f32.mrb[0].mxu0
  %v14279 = vpop.f32.mrb[0].mxu0
  %v14280 = vadd.f32 %v13991, %v14279
  %v14281 = vpop.f32.mrb[0].mxu0
  %14282 = vmatprep.mubr.bf16.mxu0 0
  %14283 = vmatmul.mubr.bf16.gmra.mrb[0].mxu0 %v13583
  %v14284 = vpop.f32.mrb[0].mxu0
  %v14285 = vadd.f32 %v13996, %v14284
  %v14286 = vpop.f32.mrb[0].mxu0
  %v14287 = vpop.f32.mrb[0].mxu0
  %v14288 = vadd.f32 %v13999, %v14287
  %v14289 = vpop.f32.mrb[0].mxu0
  %14290 = vmatprep.mubr.bf16.mxu0 0
  %14291 = vmatmul.mubr.bf16.gmra.mrb[0].mxu0 %v13586
  %v14292 = vpop.f32.mrb[0].mxu0
  %v14293 = vadd.f32 %v14004, %v14292
  %v14294 = vpop.f32.mrb[0].mxu0
  %v14295 = vpop.f32.mrb[0].mxu0
  %v14296 = vadd.f32 %v14007, %v14295
  %v14297 = vpop.f32.mrb[0].mxu0
  %14298 = vmatprep.mubr.bf16.mxu0 0
  %14299 = vmatmul.mubr.bf16.gmra.mrb[0].mxu0 %v13589
  %v14300 = vpop.f32.mrb[0].mxu0
  %v14301 = vadd.f32 %v14012, %v14300
  %v14302 = vpop.f32.mrb[0].mxu0
  %v14303 = vpop.f32.mrb[0].mxu0
  %v14304 = vadd.f32 %v14015, %v14303
  %v14305 = vpop.f32.mrb[0].mxu0
  %14306 = vmatprep.mubr.bf16.mxu0 0
  %14307 = vmatmul.mubr.bf16.gmra.mrb[0].mxu0 %v13592
  %v14308 = vpop.f32.mrb[0].mxu0
  %v14309 = vadd.f32 %v14020, %v14308
  %v14310 = vpop.f32.mrb[0].mxu0
  %v14311 = vpop.f32.mrb[0].mxu0
  %v14312 = vadd.f32 %v14023, %v14311
  %v14313 = vpop.f32.mrb[0].mxu0
  %14314 = vmatprep.mubr.bf16.mxu0 0
  %14315 = vmatmul.mubr.bf16.gmra.mrb[0].mxu0 %v13595
  %v14316 = vpop.f32.mrb[0].mxu0
  %v14317 = vadd.f32 %v14028, %v14316
  %v14318 = vpop.f32.mrb[0].mxu0
  %v14319 = vpop.f32.mrb[0].mxu0
  %v14320 = vadd.f32 %v14031, %v14319
  %v14321 = vpop.f32.mrb[0].mxu0
  %14322 = vmatprep.mubr.bf16.mxu0 0
  %14323 = vmatmul.mubr.bf16.gmra.mrb[0].mxu0 %v13598
  %v14324 = vpop.f32.mrb[0].mxu0
  %v14325 = vadd.f32 %v14036, %v14324
  %v14326 = vpop.f32.mrb[0].mxu0
  %v14327 = vpop.f32.mrb[0].mxu0
  %v14328 = vadd.f32 %v14039, %v14327
  %v14329 = vpop.f32.mrb[0].mxu0
  %14330 = vmatprep.mubr.bf16.mxu0 0
  %14331 = vmatmul.mubr.bf16.gmra.mrb[0].mxu0 %v13601
  %v14332 = vpop.f32.mrb[0].mxu0
  %v14333 = vadd.f32 %v14044, %v14332
  %v14334 = vpop.f32.mrb[0].mxu0
  %v14335 = vpop.f32.mrb[0].mxu0
  %v14336 = vadd.f32 %v14047, %v14335
  %v14337 = vpop.f32.mrb[0].mxu0
  %14338 = vmatprep.mubr.bf16.mxu0 0
  %14339 = vmatmul.mubr.bf16.gmra.mrb[0].mxu0 %v13604
  %v14340 = vpop.f32.mrb[0].mxu0
  %v14341 = vadd.f32 %v14052, %v14340
  %v14342 = vpop.f32.mrb[0].mxu0
  %v14343 = vpop.f32.mrb[0].mxu0
  %v14344 = vadd.f32 %v14055, %v14343
  %v14345 = vpop.f32.mrb[0].mxu0
  %14346 = vmatprep.mubr.bf16.mxu0 0
  %14347 = vmatmul.mubr.bf16.gmra.mrb[0].mxu0 %v13607
  %v14348 = vpop.f32.mrb[0].mxu0
  %v14349 = vadd.f32 %v14060, %v14348
  %v14350 = vpop.f32.mrb[0].mxu0
  %v14351 = vpop.f32.mrb[0].mxu0
  %v14352 = vadd.f32 %v14063, %v14351
  %v14353 = vpop.f32.mrb[0].mxu0
  %14354 = vmatprep.mubr.bf16.mxu0 0
  %14355 = vmatmul.mubr.bf16.gmra.mrb[0].mxu0 %v13610
  %v14356 = vpop.f32.mrb[0].mxu0
  %v14357 = vadd.f32 %v14068, %v14356
  %v14358 = vpop.f32.mrb[0].mxu0
  %v14359 = vpop.f32.mrb[0].mxu0
  %v14360 = vadd.f32 %v14071, %v14359
  %v14361 = vpop.f32.mrb[0].mxu0
  %14362 = vmatprep.mubr.bf16.mxu0 0
  %14363 = vmatmul.mubr.bf16.gmra.mrb[0].mxu0 %v13613
  %v14364 = vpop.f32.mrb[0].mxu0
  %v14365 = vadd.f32 %v14076, %v14364
  %v14366 = vpop.f32.mrb[0].mxu0
  %v14367 = vpop.f32.mrb[0].mxu0
  %v14368 = vadd.f32 %v14079, %v14367
  %v14369 = vpop.f32.mrb[0].mxu0
  %14370 = vmatprep.mubr.bf16.mxu0 0
  %14371 = vmatmul.mubr.bf16.gmra.mrb[0].mxu0 %v13616
  %v14372 = vpop.f32.mrb[0].mxu0
  %v14373 = vadd.f32 %v14084, %v14372
  %v14374 = vpop.f32.mrb[0].mxu0
  %v14375 = vpop.f32.mrb[0].mxu0
  %v14376 = vadd.f32 %v14087, %v14375
  %v14377 = vpop.f32.mrb[0].mxu0
  %14378 = vmatprep.mubr.bf16.mxu0 0
  %14379 = vmatmul.mubr.bf16.gmra.mrb[0].mxu0 %v13619
  %v14380 = vpop.f32.mrb[0].mxu0
  %v14381 = vadd.f32 %v14092, %v14380
  %v14382 = vpop.f32.mrb[0].mxu0
  %v14383 = vpop.f32.mrb[0].mxu0
  %v14384 = vadd.f32 %v14095, %v14383
  %v14385 = vpop.f32.mrb[0].mxu0
  %14386 = vmatprep.mubr.bf16.mxu0 0
  %14387 = vmatmul.mubr.bf16.gmra.mrb[0].mxu0 %v13622
  %v14388 = vpop.f32.mrb[0].mxu0
  %v14389 = vadd.f32 %v14100, %v14388
  %v14390 = vpop.f32.mrb[0].mxu0
  %v14391 = vpop.f32.mrb[0].mxu0
  %v14392 = vadd.f32 %v14103, %v14391
  %v14393 = vpop.f32.mrb[0].mxu0
  %14394 = vmatprep.mubr.bf16.mxu0 0
  %14395 = vmatmul.mubr.bf16.gmra.mrb[0].mxu0 %v13625
  %v14396 = vpop.f32.mrb[0].mxu0
  %v14397 = vadd.f32 %v14108, %v14396
  %v14398 = vpop.f32.mrb[0].mxu0
  %v14399 = vpop.f32.mrb[0].mxu0
  %v14400 = vadd.f32 %v14111, %v14399
  %v14401 = vpop.f32.mrb[0].mxu0
  %14402 = vmatprep.mubr.bf16.mxu0 0
  %14403 = vmatmul.mubr.bf16.gmra.mrb[0].mxu0 %v13628
  %v14404 = vpop.f32.mrb[0].mxu0
  %v14405 = vadd.f32 %v14116, %v14404
  %v14406 = vpop.f32.mrb[0].mxu0
  %v14407 = vpop.f32.mrb[0].mxu0
  %v14408 = vadd.f32 %v14119, %v14407
  %v14409 = vpop.f32.mrb[0].mxu0
  %14410 = vmatprep.mubr.bf16.mxu0 0
  %14411 = vmatmul.mubr.bf16.gmra.mrb[0].mxu0 %v13631
  %v14412 = vpop.f32.mrb[0].mxu0
  %v14413 = vadd.f32 %v14124, %v14412
  %v14414 = vpop.f32.mrb[0].mxu0
  %v14415 = vpop.f32.mrb[0].mxu0
  %v14416 = vadd.f32 %v14127, %v14415
  %v14417 = vpop.f32.mrb[0].mxu0
  %14418 = vmatprep.mubr.bf16.mxu0 0
  %14419 = vmatmul.mubr.bf16.gmra.mrb[0].mxu0 %v13634
  %v14420 = vpop.f32.mrb[0].mxu0
  %v14421 = vadd.f32 %v14132, %v14420
  %v14422 = vpop.f32.mrb[0].mxu0
  %v14423 = vpop.f32.mrb[0].mxu0
  %v14424 = vadd.f32 %v14135, %v14423
  %v14425 = vpop.f32.mrb[0].mxu0
  %14426 = vmatprep.mubr.bf16.mxu0 0
  %14427 = vmatmul.mubr.bf16.gmra.mrb[0].mxu0 %v13637
  %v14428 = vpop.f32.mrb[0].mxu0
  %v14429 = vadd.f32 %v14140, %v14428
  %v14430 = vpop.f32.mrb[0].mxu0
  %v14431 = vpop.f32.mrb[0].mxu0
  %v14432 = vadd.f32 %v14143, %v14431
  %v14433 = vpop.f32.mrb[0].mxu0
  %14434 = vmatprep.mubr.bf16.mxu0 0
  %14435 = vmatmul.mubr.bf16.gmra.mrb[0].mxu0 %v13640
  %v14436 = vpop.f32.mrb[0].mxu0
  %v14437 = vadd.f32 %v14148, %v14436
  %v14438 = vpop.f32.mrb[0].mxu0
  %v14439 = vpop.f32.mrb[0].mxu0
  %v14440 = vadd.f32 %v14151, %v14439
  %v14441 = vpop.f32.mrb[0].mxu0
  %14442 = vdwg.mxu0
  %v14443 = vadd.f32 %v12362, %v14189
  %v14444 = vadd.f32 %v12365, %v14192
  %v14445 = vadd.f32 %v12370, %v14197
  %v14446 = vadd.f32 %v12373, %v14200
  %v14447 = vadd.f32 %v12378, %v14205
  %v14448 = vadd.f32 %v12381, %v14208
  %v14449 = vadd.f32 %v12386, %v14213
  %v14450 = vadd.f32 %v12389, %v14216
  %v14451 = vadd.f32 %v12394, %v14221
  %v14452 = vadd.f32 %v12397, %v14224
  %v14453 = vadd.f32 %v12402, %v14229
  %v14454 = vadd.f32 %v12405, %v14232
  %v14455 = vadd.f32 %v12410, %v14237
  %v14456 = vadd.f32 %v12413, %v14240
  %v14457 = vadd.f32 %v12418, %v14245
  %v14458 = vadd.f32 %v12421, %v14248
  %v14459 = vadd.f32 %v12426, %v14253
  %v14460 = vadd.f32 %v12429, %v14256
  %v14461 = vadd.f32 %v12434, %v14261
  %v14462 = vadd.f32 %v12437, %v14264
  %v14463 = vadd.f32 %v12442, %v14269
  %v14464 = vadd.f32 %v12445, %v14272
  %v14465 = vadd.f32 %v12450, %v14277
  %v14466 = vadd.f32 %v12453, %v14280
  %v14467 = vadd.f32 %v12458, %v14285
  %v14468 = vadd.f32 %v12461, %v14288
  %v14469 = vadd.f32 %v12466, %v14293
  %v14470 = vadd.f32 %v12469, %v14296
  %v14471 = vadd.f32 %v12474, %v14301
  %v14472 = vadd.f32 %v12477, %v14304
  %v14473 = vadd.f32 %v12482, %v14309
  %v14474 = vadd.f32 %v12485, %v14312
  %v14475 = vadd.f32 %v12490, %v14317
  %v14476 = vadd.f32 %v12493, %v14320
  %v14477 = vadd.f32 %v12498, %v14325
  %v14478 = vadd.f32 %v12501, %v14328
  %v14479 = vadd.f32 %v12506, %v14333
  %v14480 = vadd.f32 %v12509, %v14336
  %v14481 = vadd.f32 %v12514, %v14341
  %v14482 = vadd.f32 %v12517, %v14344
  %v14483 = vadd.f32 %v12522, %v14349
  %v14484 = vadd.f32 %v12525, %v14352
  %v14485 = vadd.f32 %v12530, %v14357
  %v14486 = vadd.f32 %v12533, %v14360
  %v14487 = vadd.f32 %v12538, %v14365
  %v14488 = vadd.f32 %v12541, %v14368
  %v14489 = vadd.f32 %v12546, %v14373
  %v14490 = vadd.f32 %v12549, %v14376
  %v14491 = vadd.f32 %v12554, %v14381
  %v14492 = vadd.f32 %v12557, %v14384
  %v14493 = vadd.f32 %v12562, %v14389
  %v14494 = vadd.f32 %v12565, %v14392
  %v14495 = vadd.f32 %v12570, %v14397
  %v14496 = vadd.f32 %v12573, %v14400
  %v14497 = vadd.f32 %v12578, %v14405
  %v14498 = vadd.f32 %v12581, %v14408
  %v14499 = vadd.f32 %v12586, %v14413
  %v14500 = vadd.f32 %v12589, %v14416
  %v14501 = vadd.f32 %v12594, %v14421
  %v14502 = vadd.f32 %v12597, %v14424
  %v14503 = vadd.f32 %v12602, %v14429
  %v14504 = vadd.f32 %v12605, %v14432
  %v14505 = vadd.f32 %v12610, %v14437
  %v14506 = vadd.f32 %v12613, %v14440
  %v14507 = vld [vmem:[%s4] sm:$0x1]
  %v14509 = vlaneseq
  %v14510 = vshrl.u32 %v14509, 7
  %v14511 = vsub.s32 0, %v14510
  %v14512 = vrot.slane %v14507, %v14511
  %v14514 = vadd.f32 %v14443, %v14512
  %v14515 = vadd.f32 %v14444, %v14512
  %v14516 = vadd.f32 %v14445, %v14512
  %v14517 = vadd.f32 %v14446, %v14512
  %v14518 = vadd.f32 %v14447, %v14512
  %v14519 = vadd.f32 %v14448, %v14512
  %v14520 = vadd.f32 %v14449, %v14512
  %v14521 = vadd.f32 %v14450, %v14512
  %v14522 = vadd.f32 %v14451, %v14512
  %v14523 = vadd.f32 %v14452, %v14512
  %v14524 = vadd.f32 %v14453, %v14512
  %v14525 = vadd.f32 %v14454, %v14512
  %v14526 = vadd.f32 %v14455, %v14512
  %v14527 = vadd.f32 %v14456, %v14512
  %v14528 = vadd.f32 %v14457, %v14512
  %v14529 = vadd.f32 %v14458, %v14512
  %v14530 = vadd.f32 %v14459, %v14512
  %v14531 = vadd.f32 %v14460, %v14512
  %v14532 = vadd.f32 %v14461, %v14512
  %v14533 = vadd.f32 %v14462, %v14512
  %v14534 = vadd.f32 %v14463, %v14512
  %v14535 = vadd.f32 %v14464, %v14512
  %v14536 = vadd.f32 %v14465, %v14512
  %v14537 = vadd.f32 %v14466, %v14512
  %v14538 = vadd.f32 %v14467, %v14512
  %v14539 = vadd.f32 %v14468, %v14512
  %v14540 = vadd.f32 %v14469, %v14512
  %v14541 = vadd.f32 %v14470, %v14512
  %v14542 = vadd.f32 %v14471, %v14512
  %v14543 = vadd.f32 %v14472, %v14512
  %v14544 = vadd.f32 %v14473, %v14512
  %v14545 = vadd.f32 %v14474, %v14512
  %v14546 = vadd.f32 %v14475, %v14512
  %v14547 = vadd.f32 %v14476, %v14512
  %v14548 = vadd.f32 %v14477, %v14512
  %v14549 = vadd.f32 %v14478, %v14512
  %v14550 = vadd.f32 %v14479, %v14512
  %v14551 = vadd.f32 %v14480, %v14512
  %v14552 = vadd.f32 %v14481, %v14512
  %v14553 = vadd.f32 %v14482, %v14512
  %v14554 = vadd.f32 %v14483, %v14512
  %v14555 = vadd.f32 %v14484, %v14512
  %v14556 = vadd.f32 %v14485, %v14512
  %v14557 = vadd.f32 %v14486, %v14512
  %v14558 = vadd.f32 %v14487, %v14512
  %v14559 = vadd.f32 %v14488, %v14512
  %v14560 = vadd.f32 %v14489, %v14512
  %v14561 = vadd.f32 %v14490, %v14512
  %v14562 = vadd.f32 %v14491, %v14512
  %v14563 = vadd.f32 %v14492, %v14512
  %v14564 = vadd.f32 %v14493, %v14512
  %v14565 = vadd.f32 %v14494, %v14512
  %v14566 = vadd.f32 %v14495, %v14512
  %v14567 = vadd.f32 %v14496, %v14512
  %v14568 = vadd.f32 %v14497, %v14512
  %v14569 = vadd.f32 %v14498, %v14512
  %v14570 = vadd.f32 %v14499, %v14512
  %v14571 = vadd.f32 %v14500, %v14512
  %v14572 = vadd.f32 %v14501, %v14512
  %v14573 = vadd.f32 %v14502, %v14512
  %v14574 = vadd.f32 %v14503, %v14512
  %v14575 = vadd.f32 %v14504, %v14512
  %v14576 = vadd.f32 %v14505, %v14512
  %v14577 = vadd.f32 %v14506, %v14512
  %v14578 = vadd.f32 %v14514, %v7843
  %v14579 = vadd.f32 %v14515, %v7844
  %v14580 = vadd.f32 %v14516, %v7845
  %v14581 = vadd.f32 %v14517, %v7846
  %v14582 = vadd.f32 %v14518, %v7847
  %v14583 = vadd.f32 %v14519, %v7848
  %v14584 = vadd.f32 %v14520, %v7849
  %v14585 = vadd.f32 %v14521, %v7850
  %v14586 = vadd.f32 %v14522, %v7851
  %v14587 = vadd.f32 %v14523, %v7852
  %v14588 = vadd.f32 %v14524, %v7853
  %v14589 = vadd.f32 %v14525, %v7854
  %v14590 = vadd.f32 %v14526, %v7855
  %v14591 = vadd.f32 %v14527, %v7856
  %v14592 = vadd.f32 %v14528, %v7857
  %v14593 = vadd.f32 %v14529, %v7858
  %v14594 = vadd.f32 %v14530, %v7859
  %v14595 = vadd.f32 %v14531, %v7860
  %v14596 = vadd.f32 %v14532, %v7861
  %v14597 = vadd.f32 %v14533, %v7862
  %v14598 = vadd.f32 %v14534, %v7863
  %v14599 = vadd.f32 %v14535, %v7864
  %v14600 = vadd.f32 %v14536, %v7865
  %v14601 = vadd.f32 %v14537, %v7866
  %v14602 = vadd.f32 %v14538, %v7867
  %v14603 = vadd.f32 %v14539, %v7868
  %v14604 = vadd.f32 %v14540, %v7869
  %v14605 = vadd.f32 %v14541, %v7870
  %v14606 = vadd.f32 %v14542, %v7871
  %v14607 = vadd.f32 %v14543, %v7872
  %v14608 = vadd.f32 %v14544, %v7873
  %v14609 = vadd.f32 %v14545, %v7874
  %v14610 = vadd.f32 %v14546, %v7875
  %v14611 = vadd.f32 %v14547, %v7876
  %v14612 = vadd.f32 %v14548, %v7877
  %v14613 = vadd.f32 %v14549, %v7878
  %v14614 = vadd.f32 %v14550, %v7879
  %v14615 = vadd.f32 %v14551, %v7880
  %v14616 = vadd.f32 %v14552, %v7881
  %v14617 = vadd.f32 %v14553, %v7882
  %v14618 = vadd.f32 %v14554, %v7883
  %v14619 = vadd.f32 %v14555, %v7884
  %v14620 = vadd.f32 %v14556, %v7885
  %v14621 = vadd.f32 %v14557, %v7886
  %v14622 = vadd.f32 %v14558, %v7887
  %v14623 = vadd.f32 %v14559, %v7888
  %v14624 = vadd.f32 %v14560, %v7889
  %v14625 = vadd.f32 %v14561, %v7890
  %v14626 = vadd.f32 %v14562, %v7891
  %v14627 = vadd.f32 %v14563, %v7892
  %v14628 = vadd.f32 %v14564, %v7893
  %v14629 = vadd.f32 %v14565, %v7894
  %v14630 = vadd.f32 %v14566, %v7895
  %v14631 = vadd.f32 %v14567, %v7896
  %v14632 = vadd.f32 %v14568, %v7897
  %v14633 = vadd.f32 %v14569, %v7898
  %v14634 = vadd.f32 %v14570, %v7899
  %v14635 = vadd.f32 %v14571, %v7900
  %v14636 = vadd.f32 %v14572, %v7901
  %v14637 = vadd.f32 %v14573, %v7902
  %v14638 = vadd.f32 %v14574, %v7903
  %v14639 = vadd.f32 %v14575, %v7904
  %v14640 = vadd.f32 %v14576, %v7905
  %v14641 = vadd.f32 %v14577, %v7906
  %v14642 = vmax.f32 %v14578, 0.0
  %v14643 = vmax.f32 %v14579, 0.0
  %v14644 = vmax.f32 %v14580, 0.0
  %v14645 = vmax.f32 %v14581, 0.0
  %v14646 = vmax.f32 %v14582, 0.0
  %v14647 = vmax.f32 %v14583, 0.0
  %v14648 = vmax.f32 %v14584, 0.0
  %v14649 = vmax.f32 %v14585, 0.0
  %v14650 = vmax.f32 %v14586, 0.0
  %v14651 = vmax.f32 %v14587, 0.0
  %v14652 = vmax.f32 %v14588, 0.0
  %v14653 = vmax.f32 %v14589, 0.0
  %v14654 = vmax.f32 %v14590, 0.0
  %v14655 = vmax.f32 %v14591, 0.0
  %v14656 = vmax.f32 %v14592, 0.0
  %v14657 = vmax.f32 %v14593, 0.0
  %v14658 = vmax.f32 %v14594, 0.0
  %v14659 = vmax.f32 %v14595, 0.0
  %v14660 = vmax.f32 %v14596, 0.0
  %v14661 = vmax.f32 %v14597, 0.0
  %v14662 = vmax.f32 %v14598, 0.0
  %v14663 = vmax.f32 %v14599, 0.0
  %v14664 = vmax.f32 %v14600, 0.0
  %v14665 = vmax.f32 %v14601, 0.0
  %v14666 = vmax.f32 %v14602, 0.0
  %v14667 = vmax.f32 %v14603, 0.0
  %v14668 = vmax.f32 %v14604, 0.0
  %v14669 = vmax.f32 %v14605, 0.0
  %v14670 = vmax.f32 %v14606, 0.0
  %v14671 = vmax.f32 %v14607, 0.0
  %v14672 = vmax.f32 %v14608, 0.0
  %v14673 = vmax.f32 %v14609, 0.0
  %v14674 = vmax.f32 %v14610, 0.0
  %v14675 = vmax.f32 %v14611, 0.0
  %v14676 = vmax.f32 %v14612, 0.0
  %v14677 = vmax.f32 %v14613, 0.0
  %v14678 = vmax.f32 %v14614, 0.0
  %v14679 = vmax.f32 %v14615, 0.0
  %v14680 = vmax.f32 %v14616, 0.0
  %v14681 = vmax.f32 %v14617, 0.0
  %v14682 = vmax.f32 %v14618, 0.0
  %v14683 = vmax.f32 %v14619, 0.0
  %v14684 = vmax.f32 %v14620, 0.0
  %v14685 = vmax.f32 %v14621, 0.0
  %v14686 = vmax.f32 %v14622, 0.0
  %v14687 = vmax.f32 %v14623, 0.0
  %v14688 = vmax.f32 %v14624, 0.0
  %v14689 = vmax.f32 %v14625, 0.0
  %v14690 = vmax.f32 %v14626, 0.0
  %v14691 = vmax.f32 %v14627, 0.0
  %v14692 = vmax.f32 %v14628, 0.0
  %v14693 = vmax.f32 %v14629, 0.0
  %v14694 = vmax.f32 %v14630, 0.0
  %v14695 = vmax.f32 %v14631, 0.0
  %v14696 = vmax.f32 %v14632, 0.0
  %v14697 = vmax.f32 %v14633, 0.0
  %v14698 = vmax.f32 %v14634, 0.0
  %v14699 = vmax.f32 %v14635, 0.0
  %v14700 = vmax.f32 %v14636, 0.0
  %v14701 = vmax.f32 %v14637, 0.0
  %v14702 = vmax.f32 %v14638, 0.0
  %v14703 = vmax.f32 %v14639, 0.0
  %v14704 = vmax.f32 %v14640, 0.0
  %v14705 = vmax.f32 %v14641, 0.0
  %v14706 = vpack.c.bf16 %v14643, %v14642
  %v14707 = vpack.c.bf16 %v14645, %v14644
  %v14708 = vpack.c.bf16 %v14647, %v14646
  %v14709 = vpack.c.bf16 %v14649, %v14648
  %v14710 = vpack.c.bf16 %v14651, %v14650
  %v14711 = vpack.c.bf16 %v14653, %v14652
  %v14712 = vpack.c.bf16 %v14655, %v14654
  %v14713 = vpack.c.bf16 %v14657, %v14656
  %v14714 = vpack.c.bf16 %v14659, %v14658
  %v14715 = vpack.c.bf16 %v14661, %v14660
  %v14716 = vpack.c.bf16 %v14663, %v14662
  %v14717 = vpack.c.bf16 %v14665, %v14664
  %v14718 = vpack.c.bf16 %v14667, %v14666
  %v14719 = vpack.c.bf16 %v14669, %v14668
  %v14720 = vpack.c.bf16 %v14671, %v14670
  %v14721 = vpack.c.bf16 %v14673, %v14672
  %v14722 = vpack.c.bf16 %v14675, %v14674
  %v14723 = vpack.c.bf16 %v14677, %v14676
  %v14724 = vpack.c.bf16 %v14679, %v14678
  %v14725 = vpack.c.bf16 %v14681, %v14680
  %v14726 = vpack.c.bf16 %v14683, %v14682
  %v14727 = vpack.c.bf16 %v14685, %v14684
  %v14728 = vpack.c.bf16 %v14687, %v14686
  %v14729 = vpack.c.bf16 %v14689, %v14688
  %v14730 = vpack.c.bf16 %v14691, %v14690
  %v14731 = vpack.c.bf16 %v14693, %v14692
  %v14732 = vpack.c.bf16 %v14695, %v14694
  %v14733 = vpack.c.bf16 %v14697, %v14696
  %v14734 = vpack.c.bf16 %v14699, %v14698
  %v14735 = vpack.c.bf16 %v14701, %v14700
  %v14736 = vpack.c.bf16 %v14703, %v14702
  %v14737 = vpack.c.bf16 %v14705, %v14704
  %v14770 = vunpack.c.l.b16 %v14706
  %v14771 = vunpack.c.h.b16 %v14706
  %v14772 = vunpack.c.l.b16 %v14707
  %v14773 = vunpack.c.h.b16 %v14707
  %v14774 = vunpack.c.l.b16 %v14708
  %v14775 = vunpack.c.h.b16 %v14708
  %v14776 = vunpack.c.l.b16 %v14709
  %v14777 = vunpack.c.h.b16 %v14709
  %v14778 = vunpack.c.l.b16 %v14710
  %v14779 = vunpack.c.h.b16 %v14710
  %v14780 = vunpack.c.l.b16 %v14711
  %v14781 = vunpack.c.h.b16 %v14711
  %v14782 = vunpack.c.l.b16 %v14712
  %v14783 = vunpack.c.h.b16 %v14712
  %v14784 = vunpack.c.l.b16 %v14713
  %v14785 = vunpack.c.h.b16 %v14713
  %v14786 = vunpack.c.l.b16 %v14714
  %v14787 = vunpack.c.h.b16 %v14714
  %v14788 = vunpack.c.l.b16 %v14715
  %v14789 = vunpack.c.h.b16 %v14715
  %v14790 = vunpack.c.l.b16 %v14716
  %v14791 = vunpack.c.h.b16 %v14716
  %v14792 = vunpack.c.l.b16 %v14717
  %v14793 = vunpack.c.h.b16 %v14717
  %v14794 = vunpack.c.l.b16 %v14718
  %v14795 = vunpack.c.h.b16 %v14718
  %v14796 = vunpack.c.l.b16 %v14719
  %v14797 = vunpack.c.h.b16 %v14719
  %v14798 = vunpack.c.l.b16 %v14720
  %v14799 = vunpack.c.h.b16 %v14720
  %v14800 = vunpack.c.l.b16 %v14721
  %v14801 = vunpack.c.h.b16 %v14721
  %v14802 = vunpack.c.l.b16 %v14722
  %v14803 = vunpack.c.h.b16 %v14722
  %v14804 = vunpack.c.l.b16 %v14723
  %v14805 = vunpack.c.h.b16 %v14723
  %v14806 = vunpack.c.l.b16 %v14724
  %v14807 = vunpack.c.h.b16 %v14724
  %v14808 = vunpack.c.l.b16 %v14725
  %v14809 = vunpack.c.h.b16 %v14725
  %v14810 = vunpack.c.l.b16 %v14726
  %v14811 = vunpack.c.h.b16 %v14726
  %v14812 = vunpack.c.l.b16 %v14727
  %v14813 = vunpack.c.h.b16 %v14727
  %v14814 = vunpack.c.l.b16 %v14728
  %v14815 = vunpack.c.h.b16 %v14728
  %v14816 = vunpack.c.l.b16 %v14729
  %v14817 = vunpack.c.h.b16 %v14729
  %v14818 = vunpack.c.l.b16 %v14730
  %v14819 = vunpack.c.h.b16 %v14730
  %v14820 = vunpack.c.l.b16 %v14731
  %v14821 = vunpack.c.h.b16 %v14731
  %v14822 = vunpack.c.l.b16 %v14732
  %v14823 = vunpack.c.h.b16 %v14732
  %v14824 = vunpack.c.l.b16 %v14733
  %v14825 = vunpack.c.h.b16 %v14733
  %v14826 = vunpack.c.l.b16 %v14734
  %v14827 = vunpack.c.h.b16 %v14734
  %v14828 = vunpack.c.l.b16 %v14735
  %v14829 = vunpack.c.h.b16 %v14735
  %v14830 = vunpack.c.l.b16 %v14736
  %v14831 = vunpack.c.h.b16 %v14736
  %v14832 = vunpack.c.l.b16 %v14737
  %v14833 = vunpack.c.h.b16 %v14737
  %v14834 = vpack.c.b16 %v14770, %v14770
  %v14835 = vpack.c.b16 %v14771, %v14771
  %v14836 = vpack.c.b16 %v14772, %v14772
  %v14837 = vpack.c.b16 %v14773, %v14773
  %v14838 = vpack.c.b16 %v14774, %v14774
  %v14839 = vpack.c.b16 %v14775, %v14775
  %v14840 = vpack.c.b16 %v14776, %v14776
  %v14841 = vpack.c.b16 %v14777, %v14777
  %v14842 = vpack.c.b16 %v14778, %v14778
  %v14843 = vpack.c.b16 %v14779, %v14779
  %v14844 = vpack.c.b16 %v14780, %v14780
  %v14845 = vpack.c.b16 %v14781, %v14781
  %v14846 = vpack.c.b16 %v14782, %v14782
  %v14847 = vpack.c.b16 %v14783, %v14783
  %v14848 = vpack.c.b16 %v14784, %v14784
  %v14849 = vpack.c.b16 %v14785, %v14785
  %v14850 = vpack.c.b16 %v14786, %v14786
  %v14851 = vpack.c.b16 %v14787, %v14787
  %v14852 = vpack.c.b16 %v14788, %v14788
  %v14853 = vpack.c.b16 %v14789, %v14789
  %v14854 = vpack.c.b16 %v14790, %v14790
  %v14855 = vpack.c.b16 %v14791, %v14791
  %v14856 = vpack.c.b16 %v14792, %v14792
  %v14857 = vpack.c.b16 %v14793, %v14793
  %v14858 = vpack.c.b16 %v14794, %v14794
  %v14859 = vpack.c.b16 %v14795, %v14795
  %v14860 = vpack.c.b16 %v14796, %v14796
  %v14861 = vpack.c.b16 %v14797, %v14797
  %v14862 = vpack.c.b16 %v14798, %v14798
  %v14863 = vpack.c.b16 %v14799, %v14799
  %v14864 = vpack.c.b16 %v14800, %v14800
  %v14865 = vpack.c.b16 %v14801, %v14801
  %v14866 = vpack.c.b16 %v14802, %v14802
  %v14867 = vpack.c.b16 %v14803, %v14803
  %v14868 = vpack.c.b16 %v14804, %v14804
  %v14869 = vpack.c.b16 %v14805, %v14805
  %v14870 = vpack.c.b16 %v14806, %v14806
  %v14871 = vpack.c.b16 %v14807, %v14807
  %v14872 = vpack.c.b16 %v14808, %v14808
  %v14873 = vpack.c.b16 %v14809, %v14809
  %v14874 = vpack.c.b16 %v14810, %v14810
  %v14875 = vpack.c.b16 %v14811, %v14811
  %v14876 = vpack.c.b16 %v14812, %v14812
  %v14877 = vpack.c.b16 %v14813, %v14813
  %v14878 = vpack.c.b16 %v14814, %v14814
  %v14879 = vpack.c.b16 %v14815, %v14815
  %v14880 = vpack.c.b16 %v14816, %v14816
  %v14881 = vpack.c.b16 %v14817, %v14817
  %v14882 = vpack.c.b16 %v14818, %v14818
  %v14883 = vpack.c.b16 %v14819, %v14819
  %v14884 = vpack.c.b16 %v14820, %v14820
  %v14885 = vpack.c.b16 %v14821, %v14821
  %v14886 = vpack.c.b16 %v14822, %v14822
  %v14887 = vpack.c.b16 %v14823, %v14823
  %v14888 = vpack.c.b16 %v14824, %v14824
  %v14889 = vpack.c.b16 %v14825, %v14825
  %v14890 = vpack.c.b16 %v14826, %v14826
  %v14891 = vpack.c.b16 %v14827, %v14827
  %v14892 = vpack.c.b16 %v14828, %v14828
  %v14893 = vpack.c.b16 %v14829, %v14829
  %v14894 = vpack.c.b16 %v14830, %v14830
  %v14895 = vpack.c.b16 %v14831, %v14831
  %v14896 = vpack.c.b16 %v14832, %v14832
  %v14897 = vpack.c.b16 %v14833, %v14833
  %14962 = vst [vmem:[%s6] sm:$0xf] %v14834
  %14963 = vst [vmem:[%s6 + $0x4] sm:$0xf] %v14835
  %14964 = vst [vmem:[%s6 + $0x8] sm:$0xf] %v14836
  %14965 = vst [vmem:[%s6 + $0xc] sm:$0xf] %v14837
  %14966 = vst [vmem:[%s6 + $0x10] sm:$0xf] %v14838
  %14967 = vst [vmem:[%s6 + $0x14] sm:$0xf] %v14839
  %14968 = vst [vmem:[%s6 + $0x18] sm:$0xf] %v14840
  %14969 = vst [vmem:[%s6 + $0x1c] sm:$0xf] %v14841
  %14970 = vst [vmem:[%s6 + $0x20] sm:$0xf] %v14842
  %14971 = vst [vmem:[%s6 + $0x24] sm:$0xf] %v14843
  %14972 = vst [vmem:[%s6 + $0x28] sm:$0xf] %v14844
  %14973 = vst [vmem:[%s6 + $0x2c] sm:$0xf] %v14845
  %14974 = vst [vmem:[%s6 + $0x30] sm:$0xf] %v14846
  %14975 = vst [vmem:[%s6 + $0x34] sm:$0xf] %v14847
  %14976 = vst [vmem:[%s6 + $0x38] sm:$0xf] %v14848
  %14977 = vst [vmem:[%s6 + $0x3c] sm:$0xf] %v14849
  %14978 = vst [vmem:[%s6 + $0x40] sm:$0xf] %v14850
  %14979 = vst [vmem:[%s6 + $0x44] sm:$0xf] %v14851
  %14980 = vst [vmem:[%s6 + $0x48] sm:$0xf] %v14852
  %14981 = vst [vmem:[%s6 + $0x4c] sm:$0xf] %v14853
  %14982 = vst [vmem:[%s6 + $0x50] sm:$0xf] %v14854
  %14983 = vst [vmem:[%s6 + $0x54] sm:$0xf] %v14855
  %14984 = vst [vmem:[%s6 + $0x58] sm:$0xf] %v14856
  %14985 = vst [vmem:[%s6 + $0x5c] sm:$0xf] %v14857
  %14986 = vst [vmem:[%s6 + $0x60] sm:$0xf] %v14858
  %14987 = vst [vmem:[%s6 + $0x64] sm:$0xf] %v14859
  %14988 = vst [vmem:[%s6 + $0x68] sm:$0xf] %v14860
  %14989 = vst [vmem:[%s6 + $0x6c] sm:$0xf] %v14861
  %14990 = vst [vmem:[%s6 + $0x70] sm:$0xf] %v14862
  %14991 = vst [vmem:[%s6 + $0x74] sm:$0xf] %v14863
  %14992 = vst [vmem:[%s6 + $0x78] sm:$0xf] %v14864
  %14993 = vst [vmem:[%s6 + $0x7c] sm:$0xf] %v14865
  %14994 = vst [vmem:[%s6 + $0x80] sm:$0xf] %v14866
  %14995 = vst [vmem:[%s6 + $0x84] sm:$0xf] %v14867
  %14996 = vst [vmem:[%s6 + $0x88] sm:$0xf] %v14868
  %14997 = vst [vmem:[%s6 + $0x8c] sm:$0xf] %v14869
  %14998 = vst [vmem:[%s6 + $0x90] sm:$0xf] %v14870
  %14999 = vst [vmem:[%s6 + $0x94] sm:$0xf] %v14871
  %15000 = vst [vmem:[%s6 + $0x98] sm:$0xf] %v14872
  %15001 = vst [vmem:[%s6 + $0x9c] sm:$0xf] %v14873
  %15002 = vst [vmem:[%s6 + $0xa0] sm:$0xf] %v14874
  %15003 = vst [vmem:[%s6 + $0xa4] sm:$0xf] %v14875
  %15004 = vst [vmem:[%s6 + $0xa8] sm:$0xf] %v14876
  %15005 = vst [vmem:[%s6 + $0xac] sm:$0xf] %v14877
  %15006 = vst [vmem:[%s6 + $0xb0] sm:$0xf] %v14878
  %15007 = vst [vmem:[%s6 + $0xb4] sm:$0xf] %v14879
  %15008 = vst [vmem:[%s6 + $0xb8] sm:$0xf] %v14880
  %15009 = vst [vmem:[%s6 + $0xbc] sm:$0xf] %v14881
  %15010 = vst [vmem:[%s6 + $0xc0] sm:$0xf] %v14882
  %15011 = vst [vmem:[%s6 + $0xc4] sm:$0xf] %v14883
  %15012 = vst [vmem:[%s6 + $0xc8] sm:$0xf] %v14884
  %15013 = vst [vmem:[%s6 + $0xcc] sm:$0xf] %v14885
  %15014 = vst [vmem:[%s6 + $0xd0] sm:$0xf] %v14886
  %15015 = vst [vmem:[%s6 + $0xd4] sm:$0xf] %v14887
  %15016 = vst [vmem:[%s6 + $0xd8] sm:$0xf] %v14888
  %15017 = vst [vmem:[%s6 + $0xdc] sm:$0xf] %v14889
  %15018 = vst [vmem:[%s6 + $0xe0] sm:$0xf] %v14890
  %15019 = vst [vmem:[%s6 + $0xe4] sm:$0xf] %v14891
  %15020 = vst [vmem:[%s6 + $0xe8] sm:$0xf] %v14892
  %15021 = vst [vmem:[%s6 + $0xec] sm:$0xf] %v14893
  %15022 = vst [vmem:[%s6 + $0xf0] sm:$0xf] %v14894
  %15023 = vst [vmem:[%s6 + $0xf4] sm:$0xf] %v14895
  %15024 = vst [vmem:[%s6 + $0xf8] sm:$0xf] %v14896
  %15025 = vst [vmem:[%s6 + $0xfc] sm:$0xf] %v14897
  // Predicated region
  $region26: #{basic_block_forward.1} parent=0 // pred_check
    _
  $region27: #{basic_block_forward.1} parent=0 // pred_check_branch
    %15027 = sbr.rel (0) target = $region29
  $region28: #{basic_block_forward.1} parent=0 // pred_region
    _
  $region29: #{basic_block_forward.1} parent=0 // pred_fallthru
    _
  // Predicated region
  $region30: #{basic_block_forward.1} parent=0 // pred_check
    _
  $region31: #{basic_block_forward.1} parent=0 // pred_check_branch
    %15029 = sbr.rel (0) target = $region33
  $region32: #{basic_block_forward.1} parent=0 // pred_region
    _
  $region33: #{basic_block_forward.1} parent=0 // pred_fallthru
    _

</llo_original>
